<compile_context>
chip_gen: v7x
topology: tpu7x:2x2x1
jax: 0.10.0
libtpu: 0.0.40
codegen_flags: <defaults>
</compile_context>

<pallas_src>
import functools

import numpy as np
import jax
import jax.numpy as jnp
from jax.experimental import pallas as pl
from jax.experimental.pallas import tpu as pltpu

EPS = 1e-5


def _cparams(*sem):
    return pltpu.CompilerParams(
        dimension_semantics=sem,
        vmem_limit_bytes=32 * 1024 * 1024,
    )


# ---------------------------------------------------------------------------
# Pallas kernels
# ---------------------------------------------------------------------------
def _conv_kernel(*refs, taps, relu, res_mode, mask_needed):
    """Direct 3x3 conv (+ folded BN, optional residual / fused projection
    shortcut, optional ReLU) for one image.

    x_ref : (n_planes, Ppad, Cin) bf16   flattened (and flat-padded) activation
    w_ref : (9, Cin, Cout)        bf16   per-tap weights
    m_ref : (9, P, 1)             bf16   per-tap validity masks
    """
    if res_mode == "none":
        x_ref, w_ref, m_ref, sc_ref, sh_ref, out_ref = refs
    elif res_mode == "add":
        x_ref, w_ref, m_ref, sc_ref, sh_ref, res_ref, out_ref = refs
    else:  # "proj": shortcut 1x1 conv + BN computed in-kernel
        (x_ref, w_ref, m_ref, sc_ref, sh_ref,
         rx_ref, rw_ref, rsc_ref, rsh_ref, out_ref) = refs

    P, Cout = out_ref.shape
    acc = jnp.zeros((P, Cout), jnp.float32)
    for t, (pid, start) in enumerate(taps):
        xt = x_ref[pid, pl.ds(start, P), :]            # (P, Cin) contiguous window
        if mask_needed[t]:
            xt = xt * m_ref[t]                         # zero out-of-image taps
        acc = acc + jnp.dot(xt, w_ref[t], preferred_element_type=jnp.float32)

    acc = acc * sc_ref[...] + sh_ref[...]              # folded BatchNorm (f32)
    if res_mode == "add":
        acc = acc + res_ref[...].astype(jnp.float32)
    elif res_mode == "proj":
        sc = jnp.dot(rx_ref[...], rw_ref[...], preferred_element_type=jnp.float32)
        acc = acc + (sc * rsc_ref[...] + rsh_ref[...])
    if relu:
        acc = jnp.maximum(acc, 0.0)
    out_ref[...] = acc.astype(out_ref.dtype)


def _denoise_kernel(x_ref, tw_ref, tb_ref, pw_ref, pb_ref,
                    ww_ref, wsc_ref, wsh_ref, out_ref):
    """Fused non-local block per batch: out = x + BN(W @ (softmax(t p^T) x))."""
    x = x_ref[...]                                                    # (P, C) bf16
    t = jnp.dot(x, tw_ref[...], preferred_element_type=jnp.float32) + tb_ref[...]
    ph = jnp.dot(x, pw_ref[...], preferred_element_type=jnp.float32) + pb_ref[...]
    s = jax.lax.dot_general(t.astype(jnp.bfloat16), ph.astype(jnp.bfloat16),
                            (((1,), (1,)), ((), ())),
                            preferred_element_type=jnp.float32)       # (P, P)
    s = s - jnp.max(s, axis=-1, keepdims=True)
    e = jnp.exp(s)
    a = e * pl.reciprocal(jnp.sum(e, axis=-1, keepdims=True), approx=True)
    y = jnp.dot(a.astype(jnp.bfloat16), x, preferred_element_type=jnp.float32)
    z = jnp.dot(y.astype(jnp.bfloat16), ww_ref[...], preferred_element_type=jnp.float32)
    z = z * wsc_ref[...] + wsh_ref[...] + x.astype(jnp.float32)
    out_ref[...] = z.astype(out_ref.dtype)


def _pool_fc_kernel(x_ref, w_ref, scale_ref, shift_ref, out_ref):
    """Global average pool over spatial positions, then relu(BN(Linear(.)))."""
    pooled = jnp.mean(x_ref[...].astype(jnp.float32), axis=1)         # (N, C)
    y = jnp.dot(pooled.astype(jnp.bfloat16), w_ref[...],
                preferred_element_type=jnp.float32)
    out_ref[...] = jnp.maximum(y * scale_ref[...] + shift_ref[...], 0.0)


# ---------------------------------------------------------------------------
# Conv wrapper: tap/mask setup + pallas_call
# ---------------------------------------------------------------------------
def _make_taps(H, W, stride):
    """Return per-tap (plane, flat_shift, valid_mask(P,)) for a 3x3/pad=1 conv."""
    if stride == 1:
        Ho, Wo = H, W
        ho = np.arange(Ho)[:, None]
        wo = np.arange(Wo)[None, :]
        specs = []
        for ki in range(3):
            for kj in range(3):
                di, dj = ki - 1, kj - 1
                valid = ((ho + di >= 0) & (ho + di < H) &
                         (wo + dj >= 0) & (wo + dj < W))
                specs.append((0, di * Wo + dj, valid.reshape(-1)))
    else:  # stride 2: taps read one of 4 parity planes at offsets in {-1, 0}
        Ho, Wo = H // 2, W // 2
        ho = np.arange(Ho)[:, None]
        wo = np.arange(Wo)[None, :]
        kmap = {0: (1, -1), 1: (0, 0), 2: (1, 0)}     # k -> (parity, plane offset)
        specs = []
        for ki in range(3):
            p, dho = kmap[ki]
            for kj in range(3):
                q, dwo = kmap[kj]
                valid = (ho + dho >= 0) & (wo + dwo >= 0)
                specs.append((2 * p + q, dho * Wo + dwo, valid.reshape(-1)))
    masks = np.stack([m for (_, _, m) in specs]).astype(np.float32)
    return specs, masks


def conv3x3_bn(x, p, stride, relu, res=None, proj=None):
    """3x3 conv + folded BN (+ optional residual / fused projection shortcut)
    (+ optional ReLU).  x: (N,H,W,Cin) bf16 -> (N,Ho,Wo,Cout) bf16."""
    N, H, W, Cin = x.shape
    Cout = p["w"].shape[-1]
    Ho, Wo = (H, W) if stride == 1 else (H // 2, W // 2)
    P = Ho * Wo
    pad = Wo + 1

    specs, masks_np = _make_taps(H, W, stride)
    if stride == 1:
        planes = x.reshape(N, 1, P, Cin)
    else:
        planes = jnp.transpose(x.reshape(N, Ho, 2, Wo, 2, Cin),
                               (0, 2, 4, 1, 3, 5)).reshape(N, 4, P, Cin)
    n_planes = planes.shape[1]
    planes = jnp.pad(planes, ((0, 0), (0, 0), (pad, pad), (0, 0)))
    Ppad = P + 2 * pad

    masks = jnp.asarray(masks_np, dtype=jnp.bfloat16).reshape(9, P, 1)
    taps = tuple((pid, pad + s) for (pid, s, _) in specs)
    mask_needed = tuple(bool(not m.all()) for (_, _, m) in specs)

    inputs = [planes, p["w"], masks, p["scale"], p["shift"]]
    in_specs = [
        pl.BlockSpec((None, n_planes, Ppad, Cin), lambda b: (b, 0, 0, 0)),
        pl.BlockSpec((9, Cin, Cout), lambda b: (0, 0, 0)),
        pl.BlockSpec((9, P, 1), lambda b: (0, 0, 0)),
        pl.BlockSpec((1, Cout), lambda b: (0, 0)),
        pl.BlockSpec((1, Cout), lambda b: (0, 0)),
    ]
    if res is not None:
        res_mode = "add"
        inputs.append(res.reshape(N, P, Cout).astype(jnp.bfloat16))
        in_specs.append(pl.BlockSpec((None, P, Cout), lambda b: (b, 0, 0)))
    elif proj is not None:
        res_mode = "proj"
        x_in, p_sc, s_sc = proj
        Cin_sc = x_in.shape[-1]
        rx = x_in[:, ::s_sc, ::s_sc, :].reshape(N, P, Cin_sc)
        inputs += [rx, p_sc["w"], p_sc["scale"], p_sc["shift"]]
        in_specs += [
            pl.BlockSpec((None, P, Cin_sc), lambda b: (b, 0, 0)),
            pl.BlockSpec((Cin_sc, Cout), lambda b: (0, 0)),
            pl.BlockSpec((1, Cout), lambda b: (0, 0)),
            pl.BlockSpec((1, Cout), lambda b: (0, 0)),
        ]
    else:
        res_mode = "none"

    kern = functools.partial(_conv_kernel, taps=taps, relu=relu,
                             res_mode=res_mode, mask_needed=mask_needed)
    out = pl.pallas_call(
        kern,
        out_shape=jax.ShapeDtypeStruct((N, P, Cout), jnp.bfloat16),
        grid=(N,),
        in_specs=in_specs,
        out_specs=pl.BlockSpec((None, P, Cout), lambda b: (b, 0, 0)),
        compiler_params=_cparams("parallel"),
    )(*inputs)
    return out.reshape(N, Ho, Wo, Cout)


def denoise_block(x, p):
    N, H, W, C = x.shape
    P = H * W
    Ci = p["theta_w"].shape[1]
    xf = x.reshape(N, P, C)
    out = pl.pallas_call(
        _denoise_kernel,
        out_shape=jax.ShapeDtypeStruct((N, P, C), jnp.bfloat16),
        grid=(N,),
        in_specs=[
            pl.BlockSpec((None, P, C), lambda b: (b, 0, 0)),
            pl.BlockSpec((C, Ci), lambda b: (0, 0)),
            pl.BlockSpec((1, Ci), lambda b: (0, 0)),
            pl.BlockSpec((C, Ci), lambda b: (0, 0)),
            pl.BlockSpec((1, Ci), lambda b: (0, 0)),
            pl.BlockSpec((C, C), lambda b: (0, 0)),
            pl.BlockSpec((1, C), lambda b: (0, 0)),
            pl.BlockSpec((1, C), lambda b: (0, 0)),
        ],
        out_specs=pl.BlockSpec((None, P, C), lambda b: (b, 0, 0)),
        compiler_params=_cparams("parallel"),
    )(xf, p["theta_w"], p["theta_b"], p["phi_w"], p["phi_b"],
      p["W_w"], p["W_scale"], p["W_shift"])
    return out.reshape(N, H, W, C)


def pool_fc(x_nhwc, p):
    N, H, W, C = x_nhwc.shape
    L = p["w"].shape[1]
    xr = x_nhwc.reshape(N, H * W, C)
    return pl.pallas_call(
        _pool_fc_kernel,
        out_shape=jax.ShapeDtypeStruct((N, L), jnp.float32),
        grid=(1,),
        in_specs=[
            pl.BlockSpec((N, H * W, C), lambda i: (0, 0, 0)),
            pl.BlockSpec((C, L), lambda i: (0, 0)),
            pl.BlockSpec((1, L), lambda i: (0, 0)),
            pl.BlockSpec((1, L), lambda i: (0, 0)),
        ],
        out_specs=pl.BlockSpec((N, L), lambda i: (0, 0)),
        compiler_params=_cparams("arbitrary"),
    )(xr, p["w"], p["scale"], p["shift"])


# ---------------------------------------------------------------------------
# Model wiring
# ---------------------------------------------------------------------------
def basic_block(x, p, stride):
    out1 = conv3x3_bn(x, p["conv1"], stride, relu=True)
    if "shortcut" in p:
        # projection shortcut (1x1, stride-2) fused into conv2's kernel
        return conv3x3_bn(out1, p["conv2"], 1, relu=True,
                          proj=(x, p["shortcut"], stride))
    # identity shortcut added in-kernel before the final ReLU
    return conv3x3_bn(out1, p["conv2"], 1, relu=True, res=x)


def resnet_forward(params, x_nchw, denoise=(True, True, True, True, True)):
    x = jnp.transpose(x_nchw, (0, 2, 3, 1)).astype(jnp.bfloat16)  # NCHW -> NHWC
    out = conv3x3_bn(x, params["conv1"], 1, relu=True)
    if denoise[0]:
        out = denoise_block(out, params["denoise"][0])
    for li, blocks in enumerate(params["layers"]):
        for bp, s in blocks:
            out = basic_block(out, bp, s)
        if denoise[li + 1]:
            out = denoise_block(out, params["denoise"][li + 1])
        # (after layer2 PyTorch stores self.featuremap = out.detach(); no output effect)
    return pool_fc(out, params["fc"])


# ---------------------------------------------------------------------------
# Deterministic parameter initialization (synthetic, folded-BN form)
# ---------------------------------------------------------------------------
class KeyGen:
    def __init__(self, seed):
        self._key = jax.random.PRNGKey(seed)

    def __call__(self):
        self._key, sub = jax.random.split(self._key)
        return sub


def bn_fold(kg, c):
    gamma = jax.random.uniform(kg(), (c,), jnp.float32, 0.5, 1.5)
    beta = 0.1 * jax.random.normal(kg(), (c,), jnp.float32)
    mean = 0.1 * jax.random.normal(kg(), (c,), jnp.float32)
    var = jax.random.uniform(kg(), (c,), jnp.float32, 0.5, 1.5)
    scale = gamma / jnp.sqrt(var + EPS)
    shift = beta - mean * scale
    return scale[None, :], shift[None, :]


def conv_bn_params(kg, cin, cout):
    fan_in = 9 * cin
    w = jax.random.normal(kg(), (9, cin, cout), jnp.float32) * np.sqrt(2.0 / fan_in)
    scale, shift = bn_fold(kg, cout)
    return {"w": w.astype(jnp.bfloat16), "scale": scale, "shift": shift}


def conv1x1_bn_params(kg, cin, cout):
    w = jax.random.normal(kg(), (cin, cout), jnp.float32) * np.sqrt(2.0 / cin)
    scale, shift = bn_fold(kg, cout)
    return {"w": w.astype(jnp.bfloat16), "scale": scale, "shift": shift}


def denoise_params(kg, c, reduction=16):
    ci = max(c // reduction, 1)
    theta_w = 0.01 * jax.random.normal(kg(), (c, ci), jnp.float32)
    theta_b = 0.01 * jax.random.normal(kg(), (1, ci), jnp.float32)
    phi_w = 0.01 * jax.random.normal(kg(), (c, ci), jnp.float32)
    phi_b = 0.01 * jax.random.normal(kg(), (1, ci), jnp.float32)
    W_w = jax.random.normal(kg(), (c, c), jnp.float32) * np.sqrt(1.0 / c)
    W_b = 0.01 * jax.random.normal(kg(), (c,), jnp.float32)
    scale, shift = bn_fold(kg, c)  # BN after the W 1x1 conv, folded with its bias
    return {
        "theta_w": theta_w.astype(jnp.bfloat16), "theta_b": theta_b,
        "phi_w": phi_w.astype(jnp.bfloat16), "phi_b": phi_b,
        "W_w": W_w.astype(jnp.bfloat16),
        "W_scale": scale, "W_shift": W_b[None, :] * scale + shift,
    }


def block_params(kg, cin, cout, stride):
    p = {"conv1": conv_bn_params(kg, cin, cout),
         "conv2": conv_bn_params(kg, cout, cout)}
    if stride != 1 or cin != cout:
        p["shortcut"] = conv1x1_bn_params(kg, cin, cout)
    return p


def init_resnet_params(seed, input_chlnum, num_blocks, latent_size):
    kg = KeyGen(seed)
    params = {"conv1": conv_bn_params(kg, input_chlnum, 64)}
    in_planes = 64
    layer_cfg = [(64, num_blocks[0], 1), (128, num_blocks[1], 2),
                 (256, num_blocks[2], 2), (512, num_blocks[3], 2)]
    layers = []
    for planes, nb, stride in layer_cfg:
        strides = [stride] + [1] * (nb - 1)
        blocks = []
        for s in strides:
            blocks.append((block_params(kg, in_planes, planes, s), s))
            in_planes = planes  # BasicBlock expansion = 1
        layers.append(blocks)
    params["layers"] = layers
    params["denoise"] = [denoise_params(kg, c) for c in (64, 64, 128, 256, 512)]
    # fc1: Linear(512, latent) + BatchNorm1d + ReLU, BN folded with linear bias
    w = jax.random.normal(kg(), (512, latent_size), jnp.float32) * np.sqrt(1.0 / 512)
    b = 0.01 * jax.random.normal(kg(), (latent_size,), jnp.float32)
    scale, shift = bn_fold(kg, latent_size)
    params["fc"] = {"w": w.astype(jnp.bfloat16), "scale": scale,
                    "shift": b[None, :] * scale + shift}
    return params


# ---------------------------------------------------------------------------
if __name__ == "__main__":
    batch, input_chlnum, spatial = 2, 4, 16
    latent_size = 512
    num_blocks = [1, 1, 1, 1]

    x = jax.random.normal(jax.random.PRNGKey(0),
                          (batch, input_chlnum, spatial, spatial), jnp.float32)
    params = init_resnet_params(0, input_chlnum, num_blocks, latent_size)

    out = resnet_forward(params, x)
    out = jax.block_until_ready(out)
    assert out.shape == (batch, latent_size), out.shape
    assert bool(jnp.all(jnp.isfinite(out)))
    print("KERNEL_OK")
</pallas_src>

<mosaic_0001>
module attributes {stable_mosaic.version = 11 : i64} {
  func.func @_conv_kernel(%arg0: i32, %arg1: memref<1x1x290x4xbf16, #tpu.memory_space<vmem>>, %arg2: memref<9x4x64xbf16, #tpu.memory_space<vmem>>, %arg3: memref<9x256x1xbf16, #tpu.memory_space<vmem>>, %arg4: memref<1x64xf32, #tpu.memory_space<vmem>>, %arg5: memref<1x64xf32, #tpu.memory_space<vmem>>, %arg6: memref<1x256x64xbf16, #tpu.memory_space<vmem>>) attributes {dimension_semantics = [#tpu.dimension_semantics<parallel>], iteration_bounds = array<i64: 2>, scalar_prefetch = 0 : i64, scratch_operands = 0 : i64, tpu.core_type = #tpu.core_type<tc>, window_params = [{transform_indices = @transform_0, window_bounds = array<i64: 1, 1, 290, 4>}, {pipeline_mode = #tpu.pipeline_mode<synchronous>, transform_indices = @transform_1, window_bounds = array<i64: 9, 4, 64>}, {pipeline_mode = #tpu.pipeline_mode<synchronous>, transform_indices = @transform_2, window_bounds = array<i64: 9, 256, 1>}, {pipeline_mode = #tpu.pipeline_mode<synchronous>, transform_indices = @transform_3, window_bounds = array<i64: 1, 64>}, {pipeline_mode = #tpu.pipeline_mode<synchronous>, transform_indices = @transform_4, window_bounds = array<i64: 1, 64>}, {transform_indices = @transform_5, window_bounds = array<i64: 1, 256, 64>}]} {
    %cst = arith.constant 0.000000e+00 : f32
    %0 = vector.broadcast %cst : f32 to vector<256x64xf32>
    %c0 = arith.constant 0 : index
    %c0_0 = arith.constant 0 : index
    %c0_1 = arith.constant 0 : index
    %c0_2 = arith.constant 0 : index
    %1 = vector.load %arg1[%c0, %c0_0, %c0_1, %c0_2] : memref<1x1x290x4xbf16, #tpu.memory_space<vmem>>, vector<1x1x256x4xbf16>
    %2 = vector.shape_cast %1 : vector<1x1x256x4xbf16> to vector<256x4xbf16>
    %c0_3 = arith.constant 0 : index
    %c0_4 = arith.constant 0 : index
    %c0_5 = arith.constant 0 : index
    %3 = vector.load %arg3[%c0_3, %c0_4, %c0_5] : memref<9x256x1xbf16, #tpu.memory_space<vmem>>, vector<1x256x1xbf16>
    %4 = vector.shape_cast %3 : vector<1x256x1xbf16> to vector<256x1xbf16>
    %5 = vector.broadcast %4 : vector<256x1xbf16> to vector<256x4xbf16>
    %6 = arith.mulf %2, %5 : vector<256x4xbf16>
    %c0_6 = arith.constant 0 : index
    %c0_7 = arith.constant 0 : index
    %c0_8 = arith.constant 0 : index
    %7 = vector.load %arg2[%c0_6, %c0_7, %c0_8] : memref<9x4x64xbf16, #tpu.memory_space<vmem>>, vector<1x4x64xbf16>
    %8 = vector.shape_cast %7 : vector<1x4x64xbf16> to vector<4x64xbf16>
    %cst_9 = arith.constant dense<0.000000e+00> : vector<256x64xf32>
    %9 = tpu.matmul %6, %8, %cst_9 {dimension_numbers = #tpu.dot_dimension_numbers<[1], [0], [0], [1], [0, 0, 1, 1], [], []>} : vector<256x4xbf16>, vector<4x64xbf16>, vector<256x64xf32> -> vector<256x64xf32>
    %10 = arith.addf %0, %9 : vector<256x64xf32>
    %c0_10 = arith.constant 0 : index
    %c0_11 = arith.constant 0 : index
    %c1 = arith.constant 1 : index
    %c0_12 = arith.constant 0 : index
    %11 = vector.load %arg1[%c0_10, %c0_11, %c1, %c0_12] : memref<1x1x290x4xbf16, #tpu.memory_space<vmem>>, vector<1x1x256x4xbf16>
    %12 = vector.shape_cast %11 : vector<1x1x256x4xbf16> to vector<256x4xbf16>
    %c1_13 = arith.constant 1 : index
    %c0_14 = arith.constant 0 : index
    %c0_15 = arith.constant 0 : index
    %13 = vector.load %arg3[%c1_13, %c0_14, %c0_15] : memref<9x256x1xbf16, #tpu.memory_space<vmem>>, vector<1x256x1xbf16>
    %14 = vector.shape_cast %13 : vector<1x256x1xbf16> to vector<256x1xbf16>
    %15 = vector.broadcast %14 : vector<256x1xbf16> to vector<256x4xbf16>
    %16 = arith.mulf %12, %15 : vector<256x4xbf16>
    %c1_16 = arith.constant 1 : index
    %c0_17 = arith.constant 0 : index
    %c0_18 = arith.constant 0 : index
    %17 = vector.load %arg2[%c1_16, %c0_17, %c0_18] : memref<9x4x64xbf16, #tpu.memory_space<vmem>>, vector<1x4x64xbf16>
    %18 = vector.shape_cast %17 : vector<1x4x64xbf16> to vector<4x64xbf16>
    %cst_19 = arith.constant dense<0.000000e+00> : vector<256x64xf32>
    %19 = tpu.matmul %16, %18, %cst_19 {dimension_numbers = #tpu.dot_dimension_numbers<[1], [0], [0], [1], [0, 0, 1, 1], [], []>} : vector<256x4xbf16>, vector<4x64xbf16>, vector<256x64xf32> -> vector<256x64xf32>
    %20 = arith.addf %10, %19 : vector<256x64xf32>
    %c0_20 = arith.constant 0 : index
    %c0_21 = arith.constant 0 : index
    %c2 = arith.constant 2 : index
    %c0_22 = arith.constant 0 : index
    %21 = vector.load %arg1[%c0_20, %c0_21, %c2, %c0_22] : memref<1x1x290x4xbf16, #tpu.memory_space<vmem>>, vector<1x1x256x4xbf16>
    %22 = vector.shape_cast %21 : vector<1x1x256x4xbf16> to vector<256x4xbf16>
    %c2_23 = arith.constant 2 : index
    %c0_24 = arith.constant 0 : index
    %c0_25 = arith.constant 0 : index
    %23 = vector.load %arg3[%c2_23, %c0_24, %c0_25] : memref<9x256x1xbf16, #tpu.memory_space<vmem>>, vector<1x256x1xbf16>
    %24 = vector.shape_cast %23 : vector<1x256x1xbf16> to vector<256x1xbf16>
    %25 = vector.broadcast %24 : vector<256x1xbf16> to vector<256x4xbf16>
    %26 = arith.mulf %22, %25 : vector<256x4xbf16>
    %c2_26 = arith.constant 2 : index
    %c0_27 = arith.constant 0 : index
    %c0_28 = arith.constant 0 : index
    %27 = vector.load %arg2[%c2_26, %c0_27, %c0_28] : memref<9x4x64xbf16, #tpu.memory_space<vmem>>, vector<1x4x64xbf16>
    %28 = vector.shape_cast %27 : vector<1x4x64xbf16> to vector<4x64xbf16>
    %cst_29 = arith.constant dense<0.000000e+00> : vector<256x64xf32>
    %29 = tpu.matmul %26, %28, %cst_29 {dimension_numbers = #tpu.dot_dimension_numbers<[1], [0], [0], [1], [0, 0, 1, 1], [], []>} : vector<256x4xbf16>, vector<4x64xbf16>, vector<256x64xf32> -> vector<256x64xf32>
    %30 = arith.addf %20, %29 : vector<256x64xf32>
    %c0_30 = arith.constant 0 : index
    %c0_31 = arith.constant 0 : index
    %c16 = arith.constant 16 : index
    %c0_32 = arith.constant 0 : index
    %31 = vector.load %arg1[%c0_30, %c0_31, %c16, %c0_32] : memref<1x1x290x4xbf16, #tpu.memory_space<vmem>>, vector<1x1x256x4xbf16>
    %32 = vector.shape_cast %31 : vector<1x1x256x4xbf16> to vector<256x4xbf16>
    %c3 = arith.constant 3 : index
    %c0_33 = arith.constant 0 : index
    %c0_34 = arith.constant 0 : index
    %33 = vector.load %arg3[%c3, %c0_33, %c0_34] : memref<9x256x1xbf16, #tpu.memory_space<vmem>>, vector<1x256x1xbf16>
    %34 = vector.shape_cast %33 : vector<1x256x1xbf16> to vector<256x1xbf16>
    %35 = vector.broadcast %34 : vector<256x1xbf16> to vector<256x4xbf16>
    %36 = arith.mulf %32, %35 : vector<256x4xbf16>
    %c3_35 = arith.constant 3 : index
    %c0_36 = arith.constant 0 : index
    %c0_37 = arith.constant 0 : index
    %37 = vector.load %arg2[%c3_35, %c0_36, %c0_37] : memref<9x4x64xbf16, #tpu.memory_space<vmem>>, vector<1x4x64xbf16>
    %38 = vector.shape_cast %37 : vector<1x4x64xbf16> to vector<4x64xbf16>
    %cst_38 = arith.constant dense<0.000000e+00> : vector<256x64xf32>
    %39 = tpu.matmul %36, %38, %cst_38 {dimension_numbers = #tpu.dot_dimension_numbers<[1], [0], [0], [1], [0, 0, 1, 1], [], []>} : vector<256x4xbf16>, vector<4x64xbf16>, vector<256x64xf32> -> vector<256x64xf32>
    %40 = arith.addf %30, %39 : vector<256x64xf32>
    %c0_39 = arith.constant 0 : index
    %c0_40 = arith.constant 0 : index
    %c17 = arith.constant 17 : index
    %c0_41 = arith.constant 0 : index
    %41 = vector.load %arg1[%c0_39, %c0_40, %c17, %c0_41] : memref<1x1x290x4xbf16, #tpu.memory_space<vmem>>, vector<1x1x256x4xbf16>
    %42 = vector.shape_cast %41 : vector<1x1x256x4xbf16> to vector<256x4xbf16>
    %c4 = arith.constant 4 : index
    %c0_42 = arith.constant 0 : index
    %c0_43 = arith.constant 0 : index
    %43 = vector.load %arg2[%c4, %c0_42, %c0_43] : memref<9x4x64xbf16, #tpu.memory_space<vmem>>, vector<1x4x64xbf16>
    %44 = vector.shape_cast %43 : vector<1x4x64xbf16> to vector<4x64xbf16>
    %cst_44 = arith.constant dense<0.000000e+00> : vector<256x64xf32>
    %45 = tpu.matmul %42, %44, %cst_44 {dimension_numbers = #tpu.dot_dimension_numbers<[1], [0], [0], [1], [0, 0, 1, 1], [], []>} : vector<256x4xbf16>, vector<4x64xbf16>, vector<256x64xf32> -> vector<256x64xf32>
    %46 = arith.addf %40, %45 : vector<256x64xf32>
    %c0_45 = arith.constant 0 : index
    %c0_46 = arith.constant 0 : index
    %c18 = arith.constant 18 : index
    %c0_47 = arith.constant 0 : index
    %47 = vector.load %arg1[%c0_45, %c0_46, %c18, %c0_47] : memref<1x1x290x4xbf16, #tpu.memory_space<vmem>>, vector<1x1x256x4xbf16>
    %48 = vector.shape_cast %47 : vector<1x1x256x4xbf16> to vector<256x4xbf16>
    %c5 = arith.constant 5 : index
    %c0_48 = arith.constant 0 : index
    %c0_49 = arith.constant 0 : index
    %49 = vector.load %arg3[%c5, %c0_48, %c0_49] : memref<9x256x1xbf16, #tpu.memory_space<vmem>>, vector<1x256x1xbf16>
    %50 = vector.shape_cast %49 : vector<1x256x1xbf16> to vector<256x1xbf16>
    %51 = vector.broadcast %50 : vector<256x1xbf16> to vector<256x4xbf16>
    %52 = arith.mulf %48, %51 : vector<256x4xbf16>
    %c5_50 = arith.constant 5 : index
    %c0_51 = arith.constant 0 : index
    %c0_52 = arith.constant 0 : index
    %53 = vector.load %arg2[%c5_50, %c0_51, %c0_52] : memref<9x4x64xbf16, #tpu.memory_space<vmem>>, vector<1x4x64xbf16>
    %54 = vector.shape_cast %53 : vector<1x4x64xbf16> to vector<4x64xbf16>
    %cst_53 = arith.constant dense<0.000000e+00> : vector<256x64xf32>
    %55 = tpu.matmul %52, %54, %cst_53 {dimension_numbers = #tpu.dot_dimension_numbers<[1], [0], [0], [1], [0, 0, 1, 1], [], []>} : vector<256x4xbf16>, vector<4x64xbf16>, vector<256x64xf32> -> vector<256x64xf32>
    %56 = arith.addf %46, %55 : vector<256x64xf32>
    %c0_54 = arith.constant 0 : index
    %c0_55 = arith.constant 0 : index
    %c32 = arith.constant 32 : index
    %c0_56 = arith.constant 0 : index
    %57 = vector.load %arg1[%c0_54, %c0_55, %c32, %c0_56] : memref<1x1x290x4xbf16, #tpu.memory_space<vmem>>, vector<1x1x256x4xbf16>
    %58 = vector.shape_cast %57 : vector<1x1x256x4xbf16> to vector<256x4xbf16>
    %c6 = arith.constant 6 : index
    %c0_57 = arith.constant 0 : index
    %c0_58 = arith.constant 0 : index
    %59 = vector.load %arg3[%c6, %c0_57, %c0_58] : memref<9x256x1xbf16, #tpu.memory_space<vmem>>, vector<1x256x1xbf16>
    %60 = vector.shape_cast %59 : vector<1x256x1xbf16> to vector<256x1xbf16>
    %61 = vector.broadcast %60 : vector<256x1xbf16> to vector<256x4xbf16>
    %62 = arith.mulf %58, %61 : vector<256x4xbf16>
    %c6_59 = arith.constant 6 : index
    %c0_60 = arith.constant 0 : index
    %c0_61 = arith.constant 0 : index
    %63 = vector.load %arg2[%c6_59, %c0_60, %c0_61] : memref<9x4x64xbf16, #tpu.memory_space<vmem>>, vector<1x4x64xbf16>
    %64 = vector.shape_cast %63 : vector<1x4x64xbf16> to vector<4x64xbf16>
    %cst_62 = arith.constant dense<0.000000e+00> : vector<256x64xf32>
    %65 = tpu.matmul %62, %64, %cst_62 {dimension_numbers = #tpu.dot_dimension_numbers<[1], [0], [0], [1], [0, 0, 1, 1], [], []>} : vector<256x4xbf16>, vector<4x64xbf16>, vector<256x64xf32> -> vector<256x64xf32>
    %66 = arith.addf %56, %65 : vector<256x64xf32>
    %c0_63 = arith.constant 0 : index
    %c0_64 = arith.constant 0 : index
    %c33 = arith.constant 33 : index
    %c0_65 = arith.constant 0 : index
    %67 = vector.load %arg1[%c0_63, %c0_64, %c33, %c0_65] : memref<1x1x290x4xbf16, #tpu.memory_space<vmem>>, vector<1x1x256x4xbf16>
    %68 = vector.shape_cast %67 : vector<1x1x256x4xbf16> to vector<256x4xbf16>
    %c7 = arith.constant 7 : index
    %c0_66 = arith.constant 0 : index
    %c0_67 = arith.constant 0 : index
    %69 = vector.load %arg3[%c7, %c0_66, %c0_67] : memref<9x256x1xbf16, #tpu.memory_space<vmem>>, vector<1x256x1xbf16>
    %70 = vector.shape_cast %69 : vector<1x256x1xbf16> to vector<256x1xbf16>
    %71 = vector.broadcast %70 : vector<256x1xbf16> to vector<256x4xbf16>
    %72 = arith.mulf %68, %71 : vector<256x4xbf16>
    %c7_68 = arith.constant 7 : index
    %c0_69 = arith.constant 0 : index
    %c0_70 = arith.constant 0 : index
    %73 = vector.load %arg2[%c7_68, %c0_69, %c0_70] : memref<9x4x64xbf16, #tpu.memory_space<vmem>>, vector<1x4x64xbf16>
    %74 = vector.shape_cast %73 : vector<1x4x64xbf16> to vector<4x64xbf16>
    %cst_71 = arith.constant dense<0.000000e+00> : vector<256x64xf32>
    %75 = tpu.matmul %72, %74, %cst_71 {dimension_numbers = #tpu.dot_dimension_numbers<[1], [0], [0], [1], [0, 0, 1, 1], [], []>} : vector<256x4xbf16>, vector<4x64xbf16>, vector<256x64xf32> -> vector<256x64xf32>
    %76 = arith.addf %66, %75 : vector<256x64xf32>
    %c0_72 = arith.constant 0 : index
    %c0_73 = arith.constant 0 : index
    %c34 = arith.constant 34 : index
    %c0_74 = arith.constant 0 : index
    %77 = vector.load %arg1[%c0_72, %c0_73, %c34, %c0_74] : memref<1x1x290x4xbf16, #tpu.memory_space<vmem>>, vector<1x1x256x4xbf16>
    %78 = vector.shape_cast %77 : vector<1x1x256x4xbf16> to vector<256x4xbf16>
    %c8 = arith.constant 8 : index
    %c0_75 = arith.constant 0 : index
    %c0_76 = arith.constant 0 : index
    %79 = vector.load %arg3[%c8, %c0_75, %c0_76] : memref<9x256x1xbf16, #tpu.memory_space<vmem>>, vector<1x256x1xbf16>
    %80 = vector.shape_cast %79 : vector<1x256x1xbf16> to vector<256x1xbf16>
    %81 = vector.broadcast %80 : vector<256x1xbf16> to vector<256x4xbf16>
    %82 = arith.mulf %78, %81 : vector<256x4xbf16>
    %c8_77 = arith.constant 8 : index
    %c0_78 = arith.constant 0 : index
    %c0_79 = arith.constant 0 : index
    %83 = vector.load %arg2[%c8_77, %c0_78, %c0_79] : memref<9x4x64xbf16, #tpu.memory_space<vmem>>, vector<1x4x64xbf16>
    %84 = vector.shape_cast %83 : vector<1x4x64xbf16> to vector<4x64xbf16>
    %cst_80 = arith.constant dense<0.000000e+00> : vector<256x64xf32>
    %85 = tpu.matmul %82, %84, %cst_80 {dimension_numbers = #tpu.dot_dimension_numbers<[1], [0], [0], [1], [0, 0, 1, 1], [], []>} : vector<256x4xbf16>, vector<4x64xbf16>, vector<256x64xf32> -> vector<256x64xf32>
    %86 = arith.addf %76, %85 : vector<256x64xf32>
    %c0_81 = arith.constant 0 : index
    %c0_82 = arith.constant 0 : index
    %87 = vector.load %arg4[%c0_81, %c0_82] : memref<1x64xf32, #tpu.memory_space<vmem>>, vector<1x64xf32>
    %88 = vector.broadcast %87 : vector<1x64xf32> to vector<256x64xf32>
    %89 = arith.mulf %86, %88 : vector<256x64xf32>
    %c0_83 = arith.constant 0 : index
    %c0_84 = arith.constant 0 : index
    %90 = vector.load %arg5[%c0_83, %c0_84] : memref<1x64xf32, #tpu.memory_space<vmem>>, vector<1x64xf32>
    %91 = vector.broadcast %90 : vector<1x64xf32> to vector<256x64xf32>
    %92 = arith.addf %89, %91 : vector<256x64xf32>
    %cst_85 = arith.constant 0.000000e+00 : f32
    %93 = vector.broadcast %cst_85 : f32 to vector<256x64xf32>
    %94 = arith.maximumf %92, %93 : vector<256x64xf32>
    %95 = arith.truncf %94 : vector<256x64xf32> to vector<256x64xbf16>
    %c0_86 = arith.constant 0 : index
    %c0_87 = arith.constant 0 : index
    %c0_88 = arith.constant 0 : index
    %96 = vector.load %arg6[%c0_86, %c0_87, %c0_88] : memref<1x256x64xbf16, #tpu.memory_space<vmem>>, vector<1x256x64xbf16>
    %97 = vector.shape_cast %96 : vector<1x256x64xbf16> to vector<256x64xbf16>
    %98 = vector.shape_cast %95 : vector<256x64xbf16> to vector<1x256x64xbf16>
    tpu.vector_store %arg6[%c0_86, %c0_87, %c0_88], %98 {strides = array<i32>} : memref<1x256x64xbf16, #tpu.memory_space<vmem>>, vector<1x256x64xbf16>,
    return
  }
  func.func @transform_0(%arg0: i32) -> (i32, i32, i32, i32) {
    %c0_i32 = arith.constant 0 : i32
    %c0_i32_0 = arith.constant 0 : i32
    %c0_i32_1 = arith.constant 0 : i32
    %c0_i32_2 = arith.constant 0 : i32
    return %arg0, %c0_i32, %c0_i32_0, %c0_i32_1 : i32, i32, i32, i32
  }
  func.func @transform_1(%arg0: i32) -> (i32, i32, i32) {
    %c0_i32 = arith.constant 0 : i32
    %c0_i32_0 = arith.constant 0 : i32
    %c0_i32_1 = arith.constant 0 : i32
    %c0_i32_2 = arith.constant 0 : i32
    return %c0_i32, %c0_i32_0, %c0_i32_1 : i32, i32, i32
  }
  func.func @transform_2(%arg0: i32) -> (i32, i32, i32) {
    %c0_i32 = arith.constant 0 : i32
    %c0_i32_0 = arith.constant 0 : i32
    %c0_i32_1 = arith.constant 0 : i32
    %c0_i32_2 = arith.constant 0 : i32
    return %c0_i32, %c0_i32_0, %c0_i32_1 : i32, i32, i32
  }
  func.func @transform_3(%arg0: i32) -> (i32, i32) {
    %c0_i32 = arith.constant 0 : i32
    %c0_i32_0 = arith.constant 0 : i32
    %c0_i32_1 = arith.constant 0 : i32
    return %c0_i32, %c0_i32_0 : i32, i32
  }
  func.func @transform_4(%arg0: i32) -> (i32, i32) {
    %c0_i32 = arith.constant 0 : i32
    %c0_i32_0 = arith.constant 0 : i32
    %c0_i32_1 = arith.constant 0 : i32
    return %c0_i32, %c0_i32_0 : i32, i32
  }
  func.func @transform_5(%arg0: i32) -> (i32, i32, i32) {
    %c0_i32 = arith.constant 0 : i32
    %c0_i32_0 = arith.constant 0 : i32
    %c0_i32_1 = arith.constant 0 : i32
    return %arg0, %c0_i32, %c0_i32_0 : i32, i32, i32
  }
}

</mosaic_0001>

<llo_original>
// kernel: tpu_custom_call.1
$region0: #{tpu_custom_call.1}
  #allocation0 [shape = 'u32[]', space=smem, size = 0x4, offset = 0x4, fixed_abs, tag = 'smem constant byte address 0x4 - core index']
  #allocation1 [shape = 'u32[144,128]{1,0:T(1,128)}', space=vmem, size = 0x12000, scoped, tag = 'internal scratch']
  %s0 = inlined_call_operand.vmem [shape: bf16[2,1,290,4], index: 0, kind: input, shape index: {}]
  %s1 = inlined_call_operand.vmem [shape: bf16[9,4,64], index: 1, kind: input, shape index: {}]
  %s2 = inlined_call_operand.vmem [shape: bf16[9,256,1], index: 2, kind: input, shape index: {}]
  %s3 = inlined_call_operand.vmem [shape: f32[1,64], index: 3, kind: input, shape index: {}]
  %s4 = inlined_call_operand.vmem [shape: f32[1,64], index: 4, kind: input, shape index: {}]
  %s5 = inlined_call_operand.vmem [shape: bf16[2,256,64], index: 5, kind: output, shape index: {}]
  %s6 = sld [smem:[#allocation0]]
  $region53: #{tpu_custom_call.1} parent=0
    _
  %s8 = ssub.s32 1, %s6
  %s9 = scalar_select 0, %s8, %s6
  loop: start=0, step=1, limit=4
  $region2: #{tpu_custom_call.1} parent=0 // loop_pre_header
    _
  $region3: #{tpu_custom_call.1} parent=0 // loop_header
    %s11 = sphi 0, %s15
    %p12 = scmp.ge.s32.totalorder %s11, 4
    %s21 = sphi 0, %s23
    %s24 = sphi 0, %s21
    %s25 = sphi 0, %s24
    %s41 = sphi 0, %s25
    %s45 = sphi 0, %s45
    %s47 = sphi 0, %s45
    %s48 = sphi 0, %s47
    %s62 = sphi 0, %s48
    %s66 = sphi 0, %s66
    %s68 = sphi 0, %s66
    %s69 = sphi 0, %s68
    %s83 = sphi 0, %s69
    %s87 = sphi 0, %s87
    %s89 = sphi 0, %s87
    %s90 = sphi 0, %s89
    %s104 = sphi 0, %s90
    %s108 = sphi 0, %s108
    %s110 = sphi 0, %s108
    %s111 = sphi 0, %s110
    %s125 = sphi 0, %s111
    %s131 = sphi 0, %s133
    %s134 = sphi 0, %s131
    %s135 = sphi 0, %s134
    %s151 = sphi 0, %s135
  $region4: #{tpu_custom_call.1} parent=0 // loop_header_branch
    %14 = sbr.rel (%p12) target = $region8
  $region5: #{tpu_custom_call.1} parent=0 // loop_body
    %s16 = ssub.s32 %s11, 1
    %s17 = ssub.s32 %s11, 2
    %s18 = sadd.s32 %s11, 1
    %s19 = ssub.s32 %s11, %s18
    %p20 = scmp.eq.s32.totalorder %s19, 0
    %s22 = sadd.s32 %s21, 1
    %s23 = scalar_select %p20, %s21, %s22
    %p26 = pneg %p20
    %p27 = scmp.eq.s32.totalorder %s11, 1
    %p28 = por %p26, %p27
    %p29 = scmp.ne.s32.totalorder %s21, %s24
    %p30 = scmp.eq.s32.totalorder %s11, 0
    %p31 = por %p29, %p30
    %p32 = scmp.ne.s32.totalorder %s21, %s24
    %p33 = scmp.eq.s32.totalorder %s16, 1
    %p34 = por %p32, %p33
    %p35 = scmp.ne.s32.totalorder %s24, %s25
    %p36 = scmp.eq.s32.totalorder %s16, 0
    %p37 = por %p35, %p36
    %p38 = scmp.ne.s32.totalorder %s24, %s25
    %p39 = scmp.eq.s32.totalorder %s17, 1
    %p40 = por %p38, %p39
    %p42 = scmp.ne.s32.totalorder %s25, %s41
    %p43 = scmp.eq.s32.totalorder %s17, 0
    %p44 = por %p42, %p43
    %s46 = sadd.s32 %s45, 1
    %p49 = scmp.eq.s32.totalorder %s11, 1
    %p50 = scmp.ne.s32.totalorder %s45, %s47
    %p51 = scmp.eq.s32.totalorder %s11, 0
    %p52 = por %p50, %p51
    %p53 = scmp.ne.s32.totalorder %s45, %s47
    %p54 = scmp.eq.s32.totalorder %s16, 1
    %p55 = por %p53, %p54
    %p56 = scmp.ne.s32.totalorder %s47, %s48
    %p57 = scmp.eq.s32.totalorder %s16, 0
    %p58 = por %p56, %p57
    %p59 = scmp.ne.s32.totalorder %s47, %s48
    %p60 = scmp.eq.s32.totalorder %s17, 1
    %p61 = por %p59, %p60
    %p63 = scmp.ne.s32.totalorder %s48, %s62
    %p64 = scmp.eq.s32.totalorder %s17, 0
    %p65 = por %p63, %p64
    %s67 = sadd.s32 %s66, 1
    %p70 = scmp.eq.s32.totalorder %s11, 1
    %p71 = scmp.ne.s32.totalorder %s66, %s68
    %p72 = scmp.eq.s32.totalorder %s11, 0
    %p73 = por %p71, %p72
    %p74 = scmp.ne.s32.totalorder %s66, %s68
    %p75 = scmp.eq.s32.totalorder %s16, 1
    %p76 = por %p74, %p75
    %p77 = scmp.ne.s32.totalorder %s68, %s69
    %p78 = scmp.eq.s32.totalorder %s16, 0
    %p79 = por %p77, %p78
    %p80 = scmp.ne.s32.totalorder %s68, %s69
    %p81 = scmp.eq.s32.totalorder %s17, 1
    %p82 = por %p80, %p81
    %p84 = scmp.ne.s32.totalorder %s69, %s83
    %p85 = scmp.eq.s32.totalorder %s17, 0
    %p86 = por %p84, %p85
    %s88 = sadd.s32 %s87, 1
    %p91 = scmp.eq.s32.totalorder %s11, 1
    %p92 = scmp.ne.s32.totalorder %s87, %s89
    %p93 = scmp.eq.s32.totalorder %s11, 0
    %p94 = por %p92, %p93
    %p95 = scmp.ne.s32.totalorder %s87, %s89
    %p96 = scmp.eq.s32.totalorder %s16, 1
    %p97 = por %p95, %p96
    %p98 = scmp.ne.s32.totalorder %s89, %s90
    %p99 = scmp.eq.s32.totalorder %s16, 0
    %p100 = por %p98, %p99
    %p101 = scmp.ne.s32.totalorder %s89, %s90
    %p102 = scmp.eq.s32.totalorder %s17, 1
    %p103 = por %p101, %p102
    %p105 = scmp.ne.s32.totalorder %s90, %s104
    %p106 = scmp.eq.s32.totalorder %s17, 0
    %p107 = por %p105, %p106
    %s109 = sadd.s32 %s108, 1
    %p112 = scmp.eq.s32.totalorder %s11, 1
    %p113 = scmp.ne.s32.totalorder %s108, %s110
    %p114 = scmp.eq.s32.totalorder %s11, 0
    %p115 = por %p113, %p114
    %p116 = scmp.ne.s32.totalorder %s108, %s110
    %p117 = scmp.eq.s32.totalorder %s16, 1
    %p118 = por %p116, %p117
    %p119 = scmp.ne.s32.totalorder %s110, %s111
    %p120 = scmp.eq.s32.totalorder %s16, 0
    %p121 = por %p119, %p120
    %p122 = scmp.ne.s32.totalorder %s110, %s111
    %p123 = scmp.eq.s32.totalorder %s17, 1
    %p124 = por %p122, %p123
    %p126 = scmp.ne.s32.totalorder %s111, %s125
    %p127 = scmp.eq.s32.totalorder %s17, 0
    %p128 = por %p126, %p127
    %s129 = ssub.s32 %s11, %s18
    %p130 = scmp.eq.s32.totalorder %s129, 0
    %s132 = sadd.s32 %s131, 1
    %s133 = scalar_select %p130, %s131, %s132
    %p136 = pneg %p130
    %p137 = scmp.eq.s32.totalorder %s11, 1
    %p138 = por %p136, %p137
    %p139 = scmp.ne.s32.totalorder %s131, %s134
    %p140 = scmp.eq.s32.totalorder %s11, 0
    %p141 = por %p139, %p140
    %p142 = scmp.ne.s32.totalorder %s131, %s134
    %p143 = scmp.eq.s32.totalorder %s16, 1
    %p144 = por %p142, %p143
    %p145 = scmp.ne.s32.totalorder %s134, %s135
    %p146 = scmp.eq.s32.totalorder %s16, 0
    %p147 = por %p145, %p146
    %p148 = scmp.ne.s32.totalorder %s134, %s135
    %p149 = scmp.eq.s32.totalorder %s17, 1
    %p150 = por %p148, %p149
    %p152 = scmp.ne.s32.totalorder %s135, %s151
    %p153 = scmp.eq.s32.totalorder %s17, 0
    %p154 = por %p152, %p153
    %p155 = scmp.le.s32.totalorder 1, %s11
    %p156 = scmp.lt.s32.totalorder %s11, 3
    %p157 = pnand %p155, %p156
    %p158 = pneg %p157
    // Predicated region
    $region9: #{tpu_custom_call.1} parent=5 // pred_check
      _
    $region10: #{tpu_custom_call.1} parent=5 // pred_check_branch
      %160 = sbr.rel (%p157) target = $region12
    $region11: #{tpu_custom_call.1} parent=5 // pred_region
      %s161 = ssub.s32 %s11, 1
      // Predicated region
      $region13: #{tpu_custom_call.1} parent=11 // pred_check
        %p162 = pneg %p58
      $region14: #{tpu_custom_call.1} parent=11 // pred_check_branch
        %164 = sbr.rel (%p162) target = $region16
      $region15: #{tpu_custom_call.1} parent=11 // pred_region
        _
      $region16: #{tpu_custom_call.1} parent=11 // pred_fallthru
        _
      // Predicated region
      $region17: #{tpu_custom_call.1} parent=11 // pred_check
        %p165 = pneg %p79
      $region18: #{tpu_custom_call.1} parent=11 // pred_check_branch
        %167 = sbr.rel (%p165) target = $region20
      $region19: #{tpu_custom_call.1} parent=11 // pred_region
        _
      $region20: #{tpu_custom_call.1} parent=11 // pred_fallthru
        _
      // Predicated region
      $region21: #{tpu_custom_call.1} parent=11 // pred_check
        %p168 = pneg %p100
      $region22: #{tpu_custom_call.1} parent=11 // pred_check_branch
        %170 = sbr.rel (%p168) target = $region24
      $region23: #{tpu_custom_call.1} parent=11 // pred_region
        _
      $region24: #{tpu_custom_call.1} parent=11 // pred_fallthru
        _
      // Predicated region
      $region25: #{tpu_custom_call.1} parent=11 // pred_check
        %p171 = pneg %p121
      $region26: #{tpu_custom_call.1} parent=11 // pred_check_branch
        %173 = sbr.rel (%p171) target = $region28
      $region27: #{tpu_custom_call.1} parent=11 // pred_region
        _
      $region28: #{tpu_custom_call.1} parent=11 // pred_fallthru
        _
    $region12: #{tpu_custom_call.1} parent=5 // pred_fallthru
      _
    %p174 = scmp.lt.s32.totalorder %s11, 2
    // Predicated region
    $region29: #{tpu_custom_call.1} parent=5 // pred_check
      %p175 = pneg %p174
    $region30: #{tpu_custom_call.1} parent=5 // pred_check_branch
      %177 = sbr.rel (%p175) target = $region32
    $region31: #{tpu_custom_call.1} parent=5 // pred_region
      // Predicated region
      $region33: #{tpu_custom_call.1} parent=31 // pred_check
        %p178 = pneg %p31
      $region34: #{tpu_custom_call.1} parent=31 // pred_check_branch
        %180 = sbr.rel (%p178) target = $region36
      $region35: #{tpu_custom_call.1} parent=31 // pred_region
        %p181 = scmp.lt.s32.totalorder %s11, 1
        %s182 = scalar_select %p181, %s11, 1
        %s183 = smul.addr %s182, 37
        %s184 = smul.addr %s183, 4
        %s185 = scalar_lea.vmem %s0, %s184
      $region36: #{tpu_custom_call.1} parent=31 // pred_fallthru
        _
    $region32: #{tpu_custom_call.1} parent=5 // pred_fallthru
      _
    %p186 = scmp.le.s32.totalorder 1, %s11
    %p187 = scmp.lt.s32.totalorder %s11, 3
    %p188 = pnand %p186, %p187
    %p189 = pneg %p188
    // Predicated region
    $region37: #{tpu_custom_call.1} parent=5 // pred_check
      _
    $region38: #{tpu_custom_call.1} parent=5 // pred_check_branch
      %191 = sbr.rel (%p188) target = $region40
    $region39: #{tpu_custom_call.1} parent=5 // pred_region
      %s192 = ssub.s32 %s11, 1
      %p193 = scmp.lt.s32.totalorder %s16, 1
      %s194 = scalar_select %p193, %s16, 1
      %s195 = smul.addr %s194, 37
      %s196 = smul.addr %s195, 4
      %s197 = scalar_lea.vmem %s0, %s196
      %p198 = pneg %p37
      %p199 = pneg %p34
      %p200 = pneg %p58
      %p201 = pneg %p55
      %p202 = pneg %p79
      %p203 = pneg %p76
      %p204 = pneg %p100
      %p205 = pneg %p97
      %p206 = pneg %p121
      %p207 = pneg %p118
      %p208 = pneg %p147
      %p209 = pneg %p144
      %p210 = scmp.lt.s32.totalorder %s16, 1
      %s211 = scalar_select %p210, %s16, 1
      %s212 = smul.addr %s211, 32
      %s213 = smul.addr %s212, 4
      %s214 = scalar_lea.vmem %s5, %s213
      %p215 = scmp.lt.s32.totalorder %s16, 1
      %s216 = scalar_select %p215, %s16, 1
      %s217 = smul.addr %s216, 37
      %s218 = smul.addr %s217, 4
      %s219 = scalar_lea.vmem %s0, %s218
      %p220 = scmp.lt.s32.totalorder %s16, 1
      %s221 = scalar_select %p220, %s16, 1
      %s222 = smul.addr %s221, 32
      %s223 = smul.addr %s222, 4
      %s224 = scalar_lea.vmem %s5, %s223
      %v226 = vld [vmem:[%s219] sm:$0xf]
      %v227 = vld [vmem:[%s219 + $0x4] sm:$0xf]
      %v228 = vld [vmem:[%s219 + $0x8] sm:$0xf]
      %v229 = vld [vmem:[%s219 + $0xc] sm:$0xf]
      %v230 = vld [vmem:[%s219 + $0x10] sm:$0xf]
      %v231 = vld [vmem:[%s219 + $0x14] sm:$0xf]
      %v232 = vld [vmem:[%s219 + $0x18] sm:$0xf]
      %v233 = vld [vmem:[%s219 + $0x1c] sm:$0xf]
      %v234 = vld [vmem:[%s219 + $0x20] sm:$0xf]
      %v235 = vld [vmem:[%s219 + $0x24] sm:$0xf]
      %v236 = vld [vmem:[%s219 + $0x28] sm:$0xf]
      %v237 = vld [vmem:[%s219 + $0x2c] sm:$0xf]
      %v238 = vld [vmem:[%s219 + $0x30] sm:$0xf]
      %v239 = vld [vmem:[%s219 + $0x34] sm:$0xf]
      %v240 = vld [vmem:[%s219 + $0x38] sm:$0xf]
      %v241 = vld [vmem:[%s219 + $0x3c] sm:$0xf]
      %v242 = vld [vmem:[%s219 + $0x40] sm:$0xf]
      %v243 = vld [vmem:[%s219 + $0x44] sm:$0xf]
      %v244 = vld [vmem:[%s219 + $0x48] sm:$0xf]
      %v245 = vld [vmem:[%s219 + $0x4c] sm:$0xf]
      %v246 = vld [vmem:[%s219 + $0x50] sm:$0xf]
      %v247 = vld [vmem:[%s219 + $0x54] sm:$0xf]
      %v248 = vld [vmem:[%s219 + $0x58] sm:$0xf]
      %v249 = vld [vmem:[%s219 + $0x5c] sm:$0xf]
      %v250 = vld [vmem:[%s219 + $0x60] sm:$0xf]
      %v251 = vld [vmem:[%s219 + $0x64] sm:$0xf]
      %v252 = vld [vmem:[%s219 + $0x68] sm:$0xf]
      %v253 = vld [vmem:[%s219 + $0x6c] sm:$0xf]
      %v254 = vld [vmem:[%s219 + $0x70] sm:$0xf]
      %v255 = vld [vmem:[%s219 + $0x74] sm:$0xf]
      %v256 = vld [vmem:[%s219 + $0x78] sm:$0xf]
      %v257 = vld [vmem:[%s219 + $0x7c] sm:$0xf]
      %v258 = vld [vmem:[%s2] sm:$0xf]
      %v259 = vld [vmem:[%s2 + $0x4] sm:$0xf]
      %v260 = vld [vmem:[%s2 + $0x8] sm:$0xf]
      %v261 = vld [vmem:[%s2 + $0xc] sm:$0xf]
      %v262 = vld [vmem:[%s2 + $0x10] sm:$0xf]
      %v263 = vld [vmem:[%s2 + $0x14] sm:$0xf]
      %v264 = vld [vmem:[%s2 + $0x18] sm:$0xf]
      %v265 = vld [vmem:[%s2 + $0x1c] sm:$0xf]
      %v266 = vld [vmem:[%s2 + $0x20] sm:$0xf]
      %v267 = vld [vmem:[%s2 + $0x24] sm:$0xf]
      %v268 = vld [vmem:[%s2 + $0x28] sm:$0xf]
      %v269 = vld [vmem:[%s2 + $0x2c] sm:$0xf]
      %v270 = vld [vmem:[%s2 + $0x30] sm:$0xf]
      %v271 = vld [vmem:[%s2 + $0x34] sm:$0xf]
      %v272 = vld [vmem:[%s2 + $0x38] sm:$0xf]
      %v273 = vld [vmem:[%s2 + $0x3c] sm:$0xf]
      %v274 = vld [vmem:[%s2 + $0x40] sm:$0xf]
      %v275 = vld [vmem:[%s2 + $0x44] sm:$0xf]
      %v276 = vld [vmem:[%s2 + $0x48] sm:$0xf]
      %v277 = vld [vmem:[%s2 + $0x4c] sm:$0xf]
      %v278 = vld [vmem:[%s2 + $0x50] sm:$0xf]
      %v279 = vld [vmem:[%s2 + $0x54] sm:$0xf]
      %v280 = vld [vmem:[%s2 + $0x58] sm:$0xf]
      %v281 = vld [vmem:[%s2 + $0x5c] sm:$0xf]
      %v282 = vld [vmem:[%s2 + $0x60] sm:$0xf]
      %v283 = vld [vmem:[%s2 + $0x64] sm:$0xf]
      %v284 = vld [vmem:[%s2 + $0x68] sm:$0xf]
      %v285 = vld [vmem:[%s2 + $0x6c] sm:$0xf]
      %v286 = vld [vmem:[%s2 + $0x70] sm:$0xf]
      %v287 = vld [vmem:[%s2 + $0x74] sm:$0xf]
      %v288 = vld [vmem:[%s2 + $0x78] sm:$0xf]
      %v289 = vld [vmem:[%s2 + $0x7c] sm:$0xf]
      %291 = vset.pattern.permute.xlu0 0
      %292 = vperm.xlu0 %291, %v258
      %v293 = vpop.permute.xlu0 %292
      %v296 = vunpack.c.l.s4 839922192
      %v297 = vunpack.c.0.s8 %v296
      %v298 = vlaneseq
      %v299 = vshrl.u32 %v298, 7
      %v300 = vsub.s32 %v297, %v299
      %v301 = vrot.slane %v293, %v300
      %303 = vset.pattern.permute.xlu0 0
      %304 = vperm.xlu0 %303, %v259
      %v305 = vpop.permute.xlu0 %304
      %v308 = vunpack.c.l.s4 839922192
      %v309 = vunpack.c.0.s8 %v308
      %v310 = vlaneseq
      %v311 = vshrl.u32 %v310, 7
      %v312 = vsub.s32 %v309, %v311
      %v313 = vrot.slane %v305, %v312
      %315 = vset.pattern.permute.xlu0 0
      %316 = vperm.xlu0 %315, %v260
      %v317 = vpop.permute.xlu0 %316
      %v320 = vunpack.c.l.s4 839922192
      %v321 = vunpack.c.0.s8 %v320
      %v322 = vlaneseq
      %v323 = vshrl.u32 %v322, 7
      %v324 = vsub.s32 %v321, %v323
      %v325 = vrot.slane %v317, %v324
      %327 = vset.pattern.permute.xlu0 0
      %328 = vperm.xlu0 %327, %v261
      %v329 = vpop.permute.xlu0 %328
      %v332 = vunpack.c.l.s4 839922192
      %v333 = vunpack.c.0.s8 %v332
      %v334 = vlaneseq
      %v335 = vshrl.u32 %v334, 7
      %v336 = vsub.s32 %v333, %v335
      %v337 = vrot.slane %v329, %v336
      %339 = vset.pattern.permute.xlu0 0
      %340 = vperm.xlu0 %339, %v262
      %v341 = vpop.permute.xlu0 %340
      %v344 = vunpack.c.l.s4 839922192
      %v345 = vunpack.c.0.s8 %v344
      %v346 = vlaneseq
      %v347 = vshrl.u32 %v346, 7
      %v348 = vsub.s32 %v345, %v347
      %v349 = vrot.slane %v341, %v348
      %351 = vset.pattern.permute.xlu0 0
      %352 = vperm.xlu0 %351, %v263
      %v353 = vpop.permute.xlu0 %352
      %v356 = vunpack.c.l.s4 839922192
      %v357 = vunpack.c.0.s8 %v356
      %v358 = vlaneseq
      %v359 = vshrl.u32 %v358, 7
      %v360 = vsub.s32 %v357, %v359
      %v361 = vrot.slane %v353, %v360
      %363 = vset.pattern.permute.xlu0 0
      %364 = vperm.xlu0 %363, %v264
      %v365 = vpop.permute.xlu0 %364
      %v368 = vunpack.c.l.s4 839922192
      %v369 = vunpack.c.0.s8 %v368
      %v370 = vlaneseq
      %v371 = vshrl.u32 %v370, 7
      %v372 = vsub.s32 %v369, %v371
      %v373 = vrot.slane %v365, %v372
      %375 = vset.pattern.permute.xlu0 0
      %376 = vperm.xlu0 %375, %v265
      %v377 = vpop.permute.xlu0 %376
      %v380 = vunpack.c.l.s4 839922192
      %v381 = vunpack.c.0.s8 %v380
      %v382 = vlaneseq
      %v383 = vshrl.u32 %v382, 7
      %v384 = vsub.s32 %v381, %v383
      %v385 = vrot.slane %v377, %v384
      %387 = vset.pattern.permute.xlu0 0
      %388 = vperm.xlu0 %387, %v266
      %v389 = vpop.permute.xlu0 %388
      %v392 = vunpack.c.l.s4 839922192
      %v393 = vunpack.c.0.s8 %v392
      %v394 = vlaneseq
      %v395 = vshrl.u32 %v394, 7
      %v396 = vsub.s32 %v393, %v395
      %v397 = vrot.slane %v389, %v396
      %399 = vset.pattern.permute.xlu0 0
      %400 = vperm.xlu0 %399, %v267
      %v401 = vpop.permute.xlu0 %400
      %v404 = vunpack.c.l.s4 839922192
      %v405 = vunpack.c.0.s8 %v404
      %v406 = vlaneseq
      %v407 = vshrl.u32 %v406, 7
      %v408 = vsub.s32 %v405, %v407
      %v409 = vrot.slane %v401, %v408
      %411 = vset.pattern.permute.xlu0 0
      %412 = vperm.xlu0 %411, %v268
      %v413 = vpop.permute.xlu0 %412
      %v416 = vunpack.c.l.s4 839922192
      %v417 = vunpack.c.0.s8 %v416
      %v418 = vlaneseq
      %v419 = vshrl.u32 %v418, 7
      %v420 = vsub.s32 %v417, %v419
      %v421 = vrot.slane %v413, %v420
      %423 = vset.pattern.permute.xlu0 0
      %424 = vperm.xlu0 %423, %v269
      %v425 = vpop.permute.xlu0 %424
      %v428 = vunpack.c.l.s4 839922192
      %v429 = vunpack.c.0.s8 %v428
      %v430 = vlaneseq
      %v431 = vshrl.u32 %v430, 7
      %v432 = vsub.s32 %v429, %v431
      %v433 = vrot.slane %v425, %v432
      %435 = vset.pattern.permute.xlu0 0
      %436 = vperm.xlu0 %435, %v270
      %v437 = vpop.permute.xlu0 %436
      %v440 = vunpack.c.l.s4 839922192
      %v441 = vunpack.c.0.s8 %v440
      %v442 = vlaneseq
      %v443 = vshrl.u32 %v442, 7
      %v444 = vsub.s32 %v441, %v443
      %v445 = vrot.slane %v437, %v444
      %447 = vset.pattern.permute.xlu0 0
      %448 = vperm.xlu0 %447, %v271
      %v449 = vpop.permute.xlu0 %448
      %v452 = vunpack.c.l.s4 839922192
      %v453 = vunpack.c.0.s8 %v452
      %v454 = vlaneseq
      %v455 = vshrl.u32 %v454, 7
      %v456 = vsub.s32 %v453, %v455
      %v457 = vrot.slane %v449, %v456
      %459 = vset.pattern.permute.xlu0 0
      %460 = vperm.xlu0 %459, %v272
      %v461 = vpop.permute.xlu0 %460
      %v464 = vunpack.c.l.s4 839922192
      %v465 = vunpack.c.0.s8 %v464
      %v466 = vlaneseq
      %v467 = vshrl.u32 %v466, 7
      %v468 = vsub.s32 %v465, %v467
      %v469 = vrot.slane %v461, %v468
      %471 = vset.pattern.permute.xlu0 0
      %472 = vperm.xlu0 %471, %v273
      %v473 = vpop.permute.xlu0 %472
      %v476 = vunpack.c.l.s4 839922192
      %v477 = vunpack.c.0.s8 %v476
      %v478 = vlaneseq
      %v479 = vshrl.u32 %v478, 7
      %v480 = vsub.s32 %v477, %v479
      %v481 = vrot.slane %v473, %v480
      %483 = vset.pattern.permute.xlu0 0
      %484 = vperm.xlu0 %483, %v274
      %v485 = vpop.permute.xlu0 %484
      %v488 = vunpack.c.l.s4 839922192
      %v489 = vunpack.c.0.s8 %v488
      %v490 = vlaneseq
      %v491 = vshrl.u32 %v490, 7
      %v492 = vsub.s32 %v489, %v491
      %v493 = vrot.slane %v485, %v492
      %495 = vset.pattern.permute.xlu0 0
      %496 = vperm.xlu0 %495, %v275
      %v497 = vpop.permute.xlu0 %496
      %v500 = vunpack.c.l.s4 839922192
      %v501 = vunpack.c.0.s8 %v500
      %v502 = vlaneseq
      %v503 = vshrl.u32 %v502, 7
      %v504 = vsub.s32 %v501, %v503
      %v505 = vrot.slane %v497, %v504
      %507 = vset.pattern.permute.xlu0 0
      %508 = vperm.xlu0 %507, %v276
      %v509 = vpop.permute.xlu0 %508
      %v512 = vunpack.c.l.s4 839922192
      %v513 = vunpack.c.0.s8 %v512
      %v514 = vlaneseq
      %v515 = vshrl.u32 %v514, 7
      %v516 = vsub.s32 %v513, %v515
      %v517 = vrot.slane %v509, %v516
      %519 = vset.pattern.permute.xlu0 0
      %520 = vperm.xlu0 %519, %v277
      %v521 = vpop.permute.xlu0 %520
      %v524 = vunpack.c.l.s4 839922192
      %v525 = vunpack.c.0.s8 %v524
      %v526 = vlaneseq
      %v527 = vshrl.u32 %v526, 7
      %v528 = vsub.s32 %v525, %v527
      %v529 = vrot.slane %v521, %v528
      %531 = vset.pattern.permute.xlu0 0
      %532 = vperm.xlu0 %531, %v278
      %v533 = vpop.permute.xlu0 %532
      %v536 = vunpack.c.l.s4 839922192
      %v537 = vunpack.c.0.s8 %v536
      %v538 = vlaneseq
      %v539 = vshrl.u32 %v538, 7
      %v540 = vsub.s32 %v537, %v539
      %v541 = vrot.slane %v533, %v540
      %543 = vset.pattern.permute.xlu0 0
      %544 = vperm.xlu0 %543, %v279
      %v545 = vpop.permute.xlu0 %544
      %v548 = vunpack.c.l.s4 839922192
      %v549 = vunpack.c.0.s8 %v548
      %v550 = vlaneseq
      %v551 = vshrl.u32 %v550, 7
      %v552 = vsub.s32 %v549, %v551
      %v553 = vrot.slane %v545, %v552
      %555 = vset.pattern.permute.xlu0 0
      %556 = vperm.xlu0 %555, %v280
      %v557 = vpop.permute.xlu0 %556
      %v560 = vunpack.c.l.s4 839922192
      %v561 = vunpack.c.0.s8 %v560
      %v562 = vlaneseq
      %v563 = vshrl.u32 %v562, 7
      %v564 = vsub.s32 %v561, %v563
      %v565 = vrot.slane %v557, %v564
      %567 = vset.pattern.permute.xlu0 0
      %568 = vperm.xlu0 %567, %v281
      %v569 = vpop.permute.xlu0 %568
      %v572 = vunpack.c.l.s4 839922192
      %v573 = vunpack.c.0.s8 %v572
      %v574 = vlaneseq
      %v575 = vshrl.u32 %v574, 7
      %v576 = vsub.s32 %v573, %v575
      %v577 = vrot.slane %v569, %v576
      %579 = vset.pattern.permute.xlu0 0
      %580 = vperm.xlu0 %579, %v282
      %v581 = vpop.permute.xlu0 %580
      %v584 = vunpack.c.l.s4 839922192
      %v585 = vunpack.c.0.s8 %v584
      %v586 = vlaneseq
      %v587 = vshrl.u32 %v586, 7
      %v588 = vsub.s32 %v585, %v587
      %v589 = vrot.slane %v581, %v588
      %591 = vset.pattern.permute.xlu0 0
      %592 = vperm.xlu0 %591, %v283
      %v593 = vpop.permute.xlu0 %592
      %v596 = vunpack.c.l.s4 839922192
      %v597 = vunpack.c.0.s8 %v596
      %v598 = vlaneseq
      %v599 = vshrl.u32 %v598, 7
      %v600 = vsub.s32 %v597, %v599
      %v601 = vrot.slane %v593, %v600
      %603 = vset.pattern.permute.xlu0 0
      %604 = vperm.xlu0 %603, %v284
      %v605 = vpop.permute.xlu0 %604
      %v608 = vunpack.c.l.s4 839922192
      %v609 = vunpack.c.0.s8 %v608
      %v610 = vlaneseq
      %v611 = vshrl.u32 %v610, 7
      %v612 = vsub.s32 %v609, %v611
      %v613 = vrot.slane %v605, %v612
      %615 = vset.pattern.permute.xlu0 0
      %616 = vperm.xlu0 %615, %v285
      %v617 = vpop.permute.xlu0 %616
      %v620 = vunpack.c.l.s4 839922192
      %v621 = vunpack.c.0.s8 %v620
      %v622 = vlaneseq
      %v623 = vshrl.u32 %v622, 7
      %v624 = vsub.s32 %v621, %v623
      %v625 = vrot.slane %v617, %v624
      %627 = vset.pattern.permute.xlu0 0
      %628 = vperm.xlu0 %627, %v286
      %v629 = vpop.permute.xlu0 %628
      %v632 = vunpack.c.l.s4 839922192
      %v633 = vunpack.c.0.s8 %v632
      %v634 = vlaneseq
      %v635 = vshrl.u32 %v634, 7
      %v636 = vsub.s32 %v633, %v635
      %v637 = vrot.slane %v629, %v636
      %639 = vset.pattern.permute.xlu0 0
      %640 = vperm.xlu0 %639, %v287
      %v641 = vpop.permute.xlu0 %640
      %v644 = vunpack.c.l.s4 839922192
      %v645 = vunpack.c.0.s8 %v644
      %v646 = vlaneseq
      %v647 = vshrl.u32 %v646, 7
      %v648 = vsub.s32 %v645, %v647
      %v649 = vrot.slane %v641, %v648
      %651 = vset.pattern.permute.xlu0 0
      %652 = vperm.xlu0 %651, %v288
      %v653 = vpop.permute.xlu0 %652
      %v656 = vunpack.c.l.s4 839922192
      %v657 = vunpack.c.0.s8 %v656
      %v658 = vlaneseq
      %v659 = vshrl.u32 %v658, 7
      %v660 = vsub.s32 %v657, %v659
      %v661 = vrot.slane %v653, %v660
      %663 = vset.pattern.permute.xlu0 0
      %664 = vperm.xlu0 %663, %v289
      %v665 = vpop.permute.xlu0 %664
      %v668 = vunpack.c.l.s4 839922192
      %v669 = vunpack.c.0.s8 %v668
      %v670 = vlaneseq
      %v671 = vshrl.u32 %v670, 7
      %v672 = vsub.s32 %v669, %v671
      %v673 = vrot.slane %v665, %v672
      %v674 = vmul.bf16 %v226, %v301
      %v675 = vmul.bf16 %v227, %v313
      %v676 = vmul.bf16 %v228, %v325
      %v677 = vmul.bf16 %v229, %v337
      %v678 = vmul.bf16 %v230, %v349
      %v679 = vmul.bf16 %v231, %v361
      %v680 = vmul.bf16 %v232, %v373
      %v681 = vmul.bf16 %v233, %v385
      %v682 = vmul.bf16 %v234, %v397
      %v683 = vmul.bf16 %v235, %v409
      %v684 = vmul.bf16 %v236, %v421
      %v685 = vmul.bf16 %v237, %v433
      %v686 = vmul.bf16 %v238, %v445
      %v687 = vmul.bf16 %v239, %v457
      %v688 = vmul.bf16 %v240, %v469
      %v689 = vmul.bf16 %v241, %v481
      %v690 = vmul.bf16 %v242, %v493
      %v691 = vmul.bf16 %v243, %v505
      %v692 = vmul.bf16 %v244, %v517
      %v693 = vmul.bf16 %v245, %v529
      %v694 = vmul.bf16 %v246, %v541
      %v695 = vmul.bf16 %v247, %v553
      %v696 = vmul.bf16 %v248, %v565
      %v697 = vmul.bf16 %v249, %v577
      %v698 = vmul.bf16 %v250, %v589
      %v699 = vmul.bf16 %v251, %v601
      %v700 = vmul.bf16 %v252, %v613
      %v701 = vmul.bf16 %v253, %v625
      %v702 = vmul.bf16 %v254, %v637
      %v703 = vmul.bf16 %v255, %v649
      %v704 = vmul.bf16 %v256, %v661
      %v705 = vmul.bf16 %v257, %v673
      %v706 = vld [vmem:[%s1] sm:$0x3]
      %v707 = vld [vmem:[%s219] sm:$0xf]
      %v708 = vld [vmem:[%s219 + $0x4] sm:$0xf]
      %v709 = vld [vmem:[%s219 + $0x8] sm:$0xf]
      %v710 = vld [vmem:[%s219 + $0xc] sm:$0xf]
      %v711 = vld [vmem:[%s219 + $0x10] sm:$0xf]
      %v712 = vld [vmem:[%s219 + $0x14] sm:$0xf]
      %v713 = vld [vmem:[%s219 + $0x18] sm:$0xf]
      %v714 = vld [vmem:[%s219 + $0x1c] sm:$0xf]
      %v715 = vld [vmem:[%s219 + $0x20] sm:$0xf]
      %v716 = vld [vmem:[%s219 + $0x24] sm:$0xf]
      %v717 = vld [vmem:[%s219 + $0x28] sm:$0xf]
      %v718 = vld [vmem:[%s219 + $0x2c] sm:$0xf]
      %v719 = vld [vmem:[%s219 + $0x30] sm:$0xf]
      %v720 = vld [vmem:[%s219 + $0x34] sm:$0xf]
      %v721 = vld [vmem:[%s219 + $0x38] sm:$0xf]
      %v722 = vld [vmem:[%s219 + $0x3c] sm:$0xf]
      %v723 = vld [vmem:[%s219 + $0x40] sm:$0xf]
      %v724 = vld [vmem:[%s219 + $0x44] sm:$0xf]
      %v725 = vld [vmem:[%s219 + $0x48] sm:$0xf]
      %v726 = vld [vmem:[%s219 + $0x4c] sm:$0xf]
      %v727 = vld [vmem:[%s219 + $0x50] sm:$0xf]
      %v728 = vld [vmem:[%s219 + $0x54] sm:$0xf]
      %v729 = vld [vmem:[%s219 + $0x58] sm:$0xf]
      %v730 = vld [vmem:[%s219 + $0x5c] sm:$0xf]
      %v731 = vld [vmem:[%s219 + $0x60] sm:$0xf]
      %v732 = vld [vmem:[%s219 + $0x64] sm:$0xf]
      %v733 = vld [vmem:[%s219 + $0x68] sm:$0xf]
      %v734 = vld [vmem:[%s219 + $0x6c] sm:$0xf]
      %v735 = vld [vmem:[%s219 + $0x70] sm:$0xf]
      %v736 = vld [vmem:[%s219 + $0x74] sm:$0xf]
      %v737 = vld [vmem:[%s219 + $0x78] sm:$0xf]
      %v738 = vld [vmem:[%s219 + $0x7c] sm:$0xf]
      %v739 = vld [vmem:[%s219 + $0x80] sm:$0x1]
      %s740 = scalar_lea.vmem %s2, 128
      %v741 = vld [vmem:[%s740] sm:$0xf]
      %v742 = vld [vmem:[%s740 + $0x4] sm:$0xf]
      %v743 = vld [vmem:[%s740 + $0x8] sm:$0xf]
      %v744 = vld [vmem:[%s740 + $0xc] sm:$0xf]
      %v745 = vld [vmem:[%s740 + $0x10] sm:$0xf]
      %v746 = vld [vmem:[%s740 + $0x14] sm:$0xf]
      %v747 = vld [vmem:[%s740 + $0x18] sm:$0xf]
      %v748 = vld [vmem:[%s740 + $0x1c] sm:$0xf]
      %v749 = vld [vmem:[%s740 + $0x20] sm:$0xf]
      %v750 = vld [vmem:[%s740 + $0x24] sm:$0xf]
      %v751 = vld [vmem:[%s740 + $0x28] sm:$0xf]
      %v752 = vld [vmem:[%s740 + $0x2c] sm:$0xf]
      %v753 = vld [vmem:[%s740 + $0x30] sm:$0xf]
      %v754 = vld [vmem:[%s740 + $0x34] sm:$0xf]
      %v755 = vld [vmem:[%s740 + $0x38] sm:$0xf]
      %v756 = vld [vmem:[%s740 + $0x3c] sm:$0xf]
      %v757 = vld [vmem:[%s740 + $0x40] sm:$0xf]
      %v758 = vld [vmem:[%s740 + $0x44] sm:$0xf]
      %v759 = vld [vmem:[%s740 + $0x48] sm:$0xf]
      %v760 = vld [vmem:[%s740 + $0x4c] sm:$0xf]
      %v761 = vld [vmem:[%s740 + $0x50] sm:$0xf]
      %v762 = vld [vmem:[%s740 + $0x54] sm:$0xf]
      %v763 = vld [vmem:[%s740 + $0x58] sm:$0xf]
      %v764 = vld [vmem:[%s740 + $0x5c] sm:$0xf]
      %v765 = vld [vmem:[%s740 + $0x60] sm:$0xf]
      %v766 = vld [vmem:[%s740 + $0x64] sm:$0xf]
      %v767 = vld [vmem:[%s740 + $0x68] sm:$0xf]
      %v768 = vld [vmem:[%s740 + $0x6c] sm:$0xf]
      %v769 = vld [vmem:[%s740 + $0x70] sm:$0xf]
      %v770 = vld [vmem:[%s740 + $0x74] sm:$0xf]
      %v771 = vld [vmem:[%s740 + $0x78] sm:$0xf]
      %v772 = vld [vmem:[%s740 + $0x7c] sm:$0xf]
      %774 = vset.pattern.permute.xlu0 0
      %775 = vperm.xlu0 %774, %v741
      %v776 = vpop.permute.xlu0 %775
      %v779 = vunpack.c.l.s4 839922192
      %v780 = vunpack.c.0.s8 %v779
      %v781 = vlaneseq
      %v782 = vshrl.u32 %v781, 7
      %v783 = vsub.s32 %v780, %v782
      %v784 = vrot.slane %v776, %v783
      %786 = vset.pattern.permute.xlu0 0
      %787 = vperm.xlu0 %786, %v742
      %v788 = vpop.permute.xlu0 %787
      %v791 = vunpack.c.l.s4 839922192
      %v792 = vunpack.c.0.s8 %v791
      %v793 = vlaneseq
      %v794 = vshrl.u32 %v793, 7
      %v795 = vsub.s32 %v792, %v794
      %v796 = vrot.slane %v788, %v795
      %798 = vset.pattern.permute.xlu0 0
      %799 = vperm.xlu0 %798, %v743
      %v800 = vpop.permute.xlu0 %799
      %v803 = vunpack.c.l.s4 839922192
      %v804 = vunpack.c.0.s8 %v803
      %v805 = vlaneseq
      %v806 = vshrl.u32 %v805, 7
      %v807 = vsub.s32 %v804, %v806
      %v808 = vrot.slane %v800, %v807
      %810 = vset.pattern.permute.xlu0 0
      %811 = vperm.xlu0 %810, %v744
      %v812 = vpop.permute.xlu0 %811
      %v815 = vunpack.c.l.s4 839922192
      %v816 = vunpack.c.0.s8 %v815
      %v817 = vlaneseq
      %v818 = vshrl.u32 %v817, 7
      %v819 = vsub.s32 %v816, %v818
      %v820 = vrot.slane %v812, %v819
      %822 = vset.pattern.permute.xlu0 0
      %823 = vperm.xlu0 %822, %v745
      %v824 = vpop.permute.xlu0 %823
      %v827 = vunpack.c.l.s4 839922192
      %v828 = vunpack.c.0.s8 %v827
      %v829 = vlaneseq
      %v830 = vshrl.u32 %v829, 7
      %v831 = vsub.s32 %v828, %v830
      %v832 = vrot.slane %v824, %v831
      %834 = vset.pattern.permute.xlu0 0
      %835 = vperm.xlu0 %834, %v746
      %v836 = vpop.permute.xlu0 %835
      %v839 = vunpack.c.l.s4 839922192
      %v840 = vunpack.c.0.s8 %v839
      %v841 = vlaneseq
      %v842 = vshrl.u32 %v841, 7
      %v843 = vsub.s32 %v840, %v842
      %v844 = vrot.slane %v836, %v843
      %846 = vset.pattern.permute.xlu0 0
      %847 = vperm.xlu0 %846, %v747
      %v848 = vpop.permute.xlu0 %847
      %v851 = vunpack.c.l.s4 839922192
      %v852 = vunpack.c.0.s8 %v851
      %v853 = vlaneseq
      %v854 = vshrl.u32 %v853, 7
      %v855 = vsub.s32 %v852, %v854
      %v856 = vrot.slane %v848, %v855
      %858 = vset.pattern.permute.xlu0 0
      %859 = vperm.xlu0 %858, %v748
      %v860 = vpop.permute.xlu0 %859
      %v863 = vunpack.c.l.s4 839922192
      %v864 = vunpack.c.0.s8 %v863
      %v865 = vlaneseq
      %v866 = vshrl.u32 %v865, 7
      %v867 = vsub.s32 %v864, %v866
      %v868 = vrot.slane %v860, %v867
      %870 = vset.pattern.permute.xlu0 0
      %871 = vperm.xlu0 %870, %v749
      %v872 = vpop.permute.xlu0 %871
      %v875 = vunpack.c.l.s4 839922192
      %v876 = vunpack.c.0.s8 %v875
      %v877 = vlaneseq
      %v878 = vshrl.u32 %v877, 7
      %v879 = vsub.s32 %v876, %v878
      %v880 = vrot.slane %v872, %v879
      %882 = vset.pattern.permute.xlu0 0
      %883 = vperm.xlu0 %882, %v750
      %v884 = vpop.permute.xlu0 %883
      %v887 = vunpack.c.l.s4 839922192
      %v888 = vunpack.c.0.s8 %v887
      %v889 = vlaneseq
      %v890 = vshrl.u32 %v889, 7
      %v891 = vsub.s32 %v888, %v890
      %v892 = vrot.slane %v884, %v891
      %894 = vset.pattern.permute.xlu0 0
      %895 = vperm.xlu0 %894, %v751
      %v896 = vpop.permute.xlu0 %895
      %v899 = vunpack.c.l.s4 839922192
      %v900 = vunpack.c.0.s8 %v899
      %v901 = vlaneseq
      %v902 = vshrl.u32 %v901, 7
      %v903 = vsub.s32 %v900, %v902
      %v904 = vrot.slane %v896, %v903
      %906 = vset.pattern.permute.xlu0 0
      %907 = vperm.xlu0 %906, %v752
      %v908 = vpop.permute.xlu0 %907
      %v911 = vunpack.c.l.s4 839922192
      %v912 = vunpack.c.0.s8 %v911
      %v913 = vlaneseq
      %v914 = vshrl.u32 %v913, 7
      %v915 = vsub.s32 %v912, %v914
      %v916 = vrot.slane %v908, %v915
      %918 = vset.pattern.permute.xlu0 0
      %919 = vperm.xlu0 %918, %v753
      %v920 = vpop.permute.xlu0 %919
      %v923 = vunpack.c.l.s4 839922192
      %v924 = vunpack.c.0.s8 %v923
      %v925 = vlaneseq
      %v926 = vshrl.u32 %v925, 7
      %v927 = vsub.s32 %v924, %v926
      %v928 = vrot.slane %v920, %v927
      %930 = vset.pattern.permute.xlu0 0
      %931 = vperm.xlu0 %930, %v754
      %v932 = vpop.permute.xlu0 %931
      %v935 = vunpack.c.l.s4 839922192
      %v936 = vunpack.c.0.s8 %v935
      %v937 = vlaneseq
      %v938 = vshrl.u32 %v937, 7
      %v939 = vsub.s32 %v936, %v938
      %v940 = vrot.slane %v932, %v939
      %942 = vset.pattern.permute.xlu0 0
      %943 = vperm.xlu0 %942, %v755
      %v944 = vpop.permute.xlu0 %943
      %v947 = vunpack.c.l.s4 839922192
      %v948 = vunpack.c.0.s8 %v947
      %v949 = vlaneseq
      %v950 = vshrl.u32 %v949, 7
      %v951 = vsub.s32 %v948, %v950
      %v952 = vrot.slane %v944, %v951
      %954 = vset.pattern.permute.xlu0 0
      %955 = vperm.xlu0 %954, %v756
      %v956 = vpop.permute.xlu0 %955
      %v959 = vunpack.c.l.s4 839922192
      %v960 = vunpack.c.0.s8 %v959
      %v961 = vlaneseq
      %v962 = vshrl.u32 %v961, 7
      %v963 = vsub.s32 %v960, %v962
      %v964 = vrot.slane %v956, %v963
      %966 = vset.pattern.permute.xlu0 0
      %967 = vperm.xlu0 %966, %v757
      %v968 = vpop.permute.xlu0 %967
      %v971 = vunpack.c.l.s4 839922192
      %v972 = vunpack.c.0.s8 %v971
      %v973 = vlaneseq
      %v974 = vshrl.u32 %v973, 7
      %v975 = vsub.s32 %v972, %v974
      %v976 = vrot.slane %v968, %v975
      %978 = vset.pattern.permute.xlu0 0
      %979 = vperm.xlu0 %978, %v758
      %v980 = vpop.permute.xlu0 %979
      %v983 = vunpack.c.l.s4 839922192
      %v984 = vunpack.c.0.s8 %v983
      %v985 = vlaneseq
      %v986 = vshrl.u32 %v985, 7
      %v987 = vsub.s32 %v984, %v986
      %v988 = vrot.slane %v980, %v987
      %990 = vset.pattern.permute.xlu0 0
      %991 = vperm.xlu0 %990, %v759
      %v992 = vpop.permute.xlu0 %991
      %v995 = vunpack.c.l.s4 839922192
      %v996 = vunpack.c.0.s8 %v995
      %v997 = vlaneseq
      %v998 = vshrl.u32 %v997, 7
      %v999 = vsub.s32 %v996, %v998
      %v1000 = vrot.slane %v992, %v999
      %1002 = vset.pattern.permute.xlu0 0
      %1003 = vperm.xlu0 %1002, %v760
      %v1004 = vpop.permute.xlu0 %1003
      %v1007 = vunpack.c.l.s4 839922192
      %v1008 = vunpack.c.0.s8 %v1007
      %v1009 = vlaneseq
      %v1010 = vshrl.u32 %v1009, 7
      %v1011 = vsub.s32 %v1008, %v1010
      %v1012 = vrot.slane %v1004, %v1011
      %1014 = vset.pattern.permute.xlu0 0
      %1015 = vperm.xlu0 %1014, %v761
      %v1016 = vpop.permute.xlu0 %1015
      %v1019 = vunpack.c.l.s4 839922192
      %v1020 = vunpack.c.0.s8 %v1019
      %v1021 = vlaneseq
      %v1022 = vshrl.u32 %v1021, 7
      %v1023 = vsub.s32 %v1020, %v1022
      %v1024 = vrot.slane %v1016, %v1023
      %1026 = vset.pattern.permute.xlu0 0
      %1027 = vperm.xlu0 %1026, %v762
      %v1028 = vpop.permute.xlu0 %1027
      %v1031 = vunpack.c.l.s4 839922192
      %v1032 = vunpack.c.0.s8 %v1031
      %v1033 = vlaneseq
      %v1034 = vshrl.u32 %v1033, 7
      %v1035 = vsub.s32 %v1032, %v1034
      %v1036 = vrot.slane %v1028, %v1035
      %1038 = vset.pattern.permute.xlu0 0
      %1039 = vperm.xlu0 %1038, %v763
      %v1040 = vpop.permute.xlu0 %1039
      %v1043 = vunpack.c.l.s4 839922192
      %v1044 = vunpack.c.0.s8 %v1043
      %v1045 = vlaneseq
      %v1046 = vshrl.u32 %v1045, 7
      %v1047 = vsub.s32 %v1044, %v1046
      %v1048 = vrot.slane %v1040, %v1047
      %1050 = vset.pattern.permute.xlu0 0
      %1051 = vperm.xlu0 %1050, %v764
      %v1052 = vpop.permute.xlu0 %1051
      %v1055 = vunpack.c.l.s4 839922192
      %v1056 = vunpack.c.0.s8 %v1055
      %v1057 = vlaneseq
      %v1058 = vshrl.u32 %v1057, 7
      %v1059 = vsub.s32 %v1056, %v1058
      %v1060 = vrot.slane %v1052, %v1059
      %1062 = vset.pattern.permute.xlu0 0
      %1063 = vperm.xlu0 %1062, %v765
      %v1064 = vpop.permute.xlu0 %1063
      %v1067 = vunpack.c.l.s4 839922192
      %v1068 = vunpack.c.0.s8 %v1067
      %v1069 = vlaneseq
      %v1070 = vshrl.u32 %v1069, 7
      %v1071 = vsub.s32 %v1068, %v1070
      %v1072 = vrot.slane %v1064, %v1071
      %1074 = vset.pattern.permute.xlu0 0
      %1075 = vperm.xlu0 %1074, %v766
      %v1076 = vpop.permute.xlu0 %1075
      %v1079 = vunpack.c.l.s4 839922192
      %v1080 = vunpack.c.0.s8 %v1079
      %v1081 = vlaneseq
      %v1082 = vshrl.u32 %v1081, 7
      %v1083 = vsub.s32 %v1080, %v1082
      %v1084 = vrot.slane %v1076, %v1083
      %1086 = vset.pattern.permute.xlu0 0
      %1087 = vperm.xlu0 %1086, %v767
      %v1088 = vpop.permute.xlu0 %1087
      %v1091 = vunpack.c.l.s4 839922192
      %v1092 = vunpack.c.0.s8 %v1091
      %v1093 = vlaneseq
      %v1094 = vshrl.u32 %v1093, 7
      %v1095 = vsub.s32 %v1092, %v1094
      %v1096 = vrot.slane %v1088, %v1095
      %1098 = vset.pattern.permute.xlu0 0
      %1099 = vperm.xlu0 %1098, %v768
      %v1100 = vpop.permute.xlu0 %1099
      %v1103 = vunpack.c.l.s4 839922192
      %v1104 = vunpack.c.0.s8 %v1103
      %v1105 = vlaneseq
      %v1106 = vshrl.u32 %v1105, 7
      %v1107 = vsub.s32 %v1104, %v1106
      %v1108 = vrot.slane %v1100, %v1107
      %1110 = vset.pattern.permute.xlu0 0
      %1111 = vperm.xlu0 %1110, %v769
      %v1112 = vpop.permute.xlu0 %1111
      %v1115 = vunpack.c.l.s4 839922192
      %v1116 = vunpack.c.0.s8 %v1115
      %v1117 = vlaneseq
      %v1118 = vshrl.u32 %v1117, 7
      %v1119 = vsub.s32 %v1116, %v1118
      %v1120 = vrot.slane %v1112, %v1119
      %1122 = vset.pattern.permute.xlu0 0
      %1123 = vperm.xlu0 %1122, %v770
      %v1124 = vpop.permute.xlu0 %1123
      %v1127 = vunpack.c.l.s4 839922192
      %v1128 = vunpack.c.0.s8 %v1127
      %v1129 = vlaneseq
      %v1130 = vshrl.u32 %v1129, 7
      %v1131 = vsub.s32 %v1128, %v1130
      %v1132 = vrot.slane %v1124, %v1131
      %1134 = vset.pattern.permute.xlu0 0
      %1135 = vperm.xlu0 %1134, %v771
      %v1136 = vpop.permute.xlu0 %1135
      %v1139 = vunpack.c.l.s4 839922192
      %v1140 = vunpack.c.0.s8 %v1139
      %v1141 = vlaneseq
      %v1142 = vshrl.u32 %v1141, 7
      %v1143 = vsub.s32 %v1140, %v1142
      %v1144 = vrot.slane %v1136, %v1143
      %1146 = vset.pattern.permute.xlu0 0
      %1147 = vperm.xlu0 %1146, %v772
      %v1148 = vpop.permute.xlu0 %1147
      %v1151 = vunpack.c.l.s4 839922192
      %v1152 = vunpack.c.0.s8 %v1151
      %v1153 = vlaneseq
      %v1154 = vshrl.u32 %v1153, 7
      %v1155 = vsub.s32 %v1152, %v1154
      %v1156 = vrot.slane %v1148, %v1155
      %vm1157 = vsmask.f32 256
      %vm1158 = vsmask.f32 4368
      %vm1159 = vmor %vm1157, %vm1158
      %v1161 = vshrl.u32 %v784, 16
      %v1163 = vrot.slane %v1161, 7
      %v1164 = vshll.u32 %v784, 16
      %v1166 = vor.u32 %v1163, %v1164
      %v1167 = vrot.slane %v1163, 4
      %v1169 = vshrl.u32 %v796, 16
      %v1171 = vrot.slane %v1169, 7
      %v1172 = vshll.u32 %v796, 16
      %v1174 = vor.u32 %v1171, %v1172
      %v1175 = vsel %vm1159, %v1167, %v1174
      %v1176 = vrot.slane %v1171, 4
      %v1178 = vshrl.u32 %v808, 16
      %v1180 = vrot.slane %v1178, 7
      %v1181 = vshll.u32 %v808, 16
      %v1183 = vor.u32 %v1180, %v1181
      %v1184 = vsel %vm1159, %v1176, %v1183
      %v1185 = vrot.slane %v1180, 4
      %v1187 = vshrl.u32 %v820, 16
      %v1189 = vrot.slane %v1187, 7
      %v1190 = vshll.u32 %v820, 16
      %v1192 = vor.u32 %v1189, %v1190
      %v1193 = vsel %vm1159, %v1185, %v1192
      %v1194 = vrot.slane %v1189, 4
      %v1196 = vshrl.u32 %v832, 16
      %v1198 = vrot.slane %v1196, 7
      %v1199 = vshll.u32 %v832, 16
      %v1201 = vor.u32 %v1198, %v1199
      %v1202 = vsel %vm1159, %v1194, %v1201
      %v1203 = vrot.slane %v1198, 4
      %v1205 = vshrl.u32 %v844, 16
      %v1207 = vrot.slane %v1205, 7
      %v1208 = vshll.u32 %v844, 16
      %v1210 = vor.u32 %v1207, %v1208
      %v1211 = vsel %vm1159, %v1203, %v1210
      %v1212 = vrot.slane %v1207, 4
      %v1214 = vshrl.u32 %v856, 16
      %v1216 = vrot.slane %v1214, 7
      %v1217 = vshll.u32 %v856, 16
      %v1219 = vor.u32 %v1216, %v1217
      %v1220 = vsel %vm1159, %v1212, %v1219
      %v1221 = vrot.slane %v1216, 4
      %v1223 = vshrl.u32 %v868, 16
      %v1225 = vrot.slane %v1223, 7
      %v1226 = vshll.u32 %v868, 16
      %v1228 = vor.u32 %v1225, %v1226
      %v1229 = vsel %vm1159, %v1221, %v1228
      %v1230 = vrot.slane %v1225, 4
      %v1232 = vshrl.u32 %v880, 16
      %v1234 = vrot.slane %v1232, 7
      %v1235 = vshll.u32 %v880, 16
      %v1237 = vor.u32 %v1234, %v1235
      %v1238 = vsel %vm1159, %v1230, %v1237
      %v1239 = vrot.slane %v1234, 4
      %v1241 = vshrl.u32 %v892, 16
      %v1243 = vrot.slane %v1241, 7
      %v1244 = vshll.u32 %v892, 16
      %v1246 = vor.u32 %v1243, %v1244
      %v1247 = vsel %vm1159, %v1239, %v1246
      %v1248 = vrot.slane %v1243, 4
      %v1250 = vshrl.u32 %v904, 16
      %v1252 = vrot.slane %v1250, 7
      %v1253 = vshll.u32 %v904, 16
      %v1255 = vor.u32 %v1252, %v1253
      %v1256 = vsel %vm1159, %v1248, %v1255
      %v1257 = vrot.slane %v1252, 4
      %v1259 = vshrl.u32 %v916, 16
      %v1261 = vrot.slane %v1259, 7
      %v1262 = vshll.u32 %v916, 16
      %v1264 = vor.u32 %v1261, %v1262
      %v1265 = vsel %vm1159, %v1257, %v1264
      %v1266 = vrot.slane %v1261, 4
      %v1268 = vshrl.u32 %v928, 16
      %v1270 = vrot.slane %v1268, 7
      %v1271 = vshll.u32 %v928, 16
      %v1273 = vor.u32 %v1270, %v1271
      %v1274 = vsel %vm1159, %v1266, %v1273
      %v1275 = vrot.slane %v1270, 4
      %v1277 = vshrl.u32 %v940, 16
      %v1279 = vrot.slane %v1277, 7
      %v1280 = vshll.u32 %v940, 16
      %v1282 = vor.u32 %v1279, %v1280
      %v1283 = vsel %vm1159, %v1275, %v1282
      %v1284 = vrot.slane %v1279, 4
      %v1286 = vshrl.u32 %v952, 16
      %v1288 = vrot.slane %v1286, 7
      %v1289 = vshll.u32 %v952, 16
      %v1291 = vor.u32 %v1288, %v1289
      %v1292 = vsel %vm1159, %v1284, %v1291
      %v1293 = vrot.slane %v1288, 4
      %v1295 = vshrl.u32 %v964, 16
      %v1297 = vrot.slane %v1295, 7
      %v1298 = vshll.u32 %v964, 16
      %v1300 = vor.u32 %v1297, %v1298
      %v1301 = vsel %vm1159, %v1293, %v1300
      %v1302 = vrot.slane %v1297, 4
      %v1304 = vshrl.u32 %v976, 16
      %v1306 = vrot.slane %v1304, 7
      %v1307 = vshll.u32 %v976, 16
      %v1309 = vor.u32 %v1306, %v1307
      %v1310 = vsel %vm1159, %v1302, %v1309
      %v1311 = vrot.slane %v1306, 4
      %v1313 = vshrl.u32 %v988, 16
      %v1315 = vrot.slane %v1313, 7
      %v1316 = vshll.u32 %v988, 16
      %v1318 = vor.u32 %v1315, %v1316
      %v1319 = vsel %vm1159, %v1311, %v1318
      %v1320 = vrot.slane %v1315, 4
      %v1322 = vshrl.u32 %v1000, 16
      %v1324 = vrot.slane %v1322, 7
      %v1325 = vshll.u32 %v1000, 16
      %v1327 = vor.u32 %v1324, %v1325
      %v1328 = vsel %vm1159, %v1320, %v1327
      %v1329 = vrot.slane %v1324, 4
      %v1331 = vshrl.u32 %v1012, 16
      %v1333 = vrot.slane %v1331, 7
      %v1334 = vshll.u32 %v1012, 16
      %v1336 = vor.u32 %v1333, %v1334
      %v1337 = vsel %vm1159, %v1329, %v1336
      %v1338 = vrot.slane %v1333, 4
      %v1340 = vshrl.u32 %v1024, 16
      %v1342 = vrot.slane %v1340, 7
      %v1343 = vshll.u32 %v1024, 16
      %v1345 = vor.u32 %v1342, %v1343
      %v1346 = vsel %vm1159, %v1338, %v1345
      %v1347 = vrot.slane %v1342, 4
      %v1349 = vshrl.u32 %v1036, 16
      %v1351 = vrot.slane %v1349, 7
      %v1352 = vshll.u32 %v1036, 16
      %v1354 = vor.u32 %v1351, %v1352
      %v1355 = vsel %vm1159, %v1347, %v1354
      %v1356 = vrot.slane %v1351, 4
      %v1358 = vshrl.u32 %v1048, 16
      %v1360 = vrot.slane %v1358, 7
      %v1361 = vshll.u32 %v1048, 16
      %v1363 = vor.u32 %v1360, %v1361
      %v1364 = vsel %vm1159, %v1356, %v1363
      %v1365 = vrot.slane %v1360, 4
      %v1367 = vshrl.u32 %v1060, 16
      %v1369 = vrot.slane %v1367, 7
      %v1370 = vshll.u32 %v1060, 16
      %v1372 = vor.u32 %v1369, %v1370
      %v1373 = vsel %vm1159, %v1365, %v1372
      %v1374 = vrot.slane %v1369, 4
      %v1376 = vshrl.u32 %v1072, 16
      %v1378 = vrot.slane %v1376, 7
      %v1379 = vshll.u32 %v1072, 16
      %v1381 = vor.u32 %v1378, %v1379
      %v1382 = vsel %vm1159, %v1374, %v1381
      %v1383 = vrot.slane %v1378, 4
      %v1385 = vshrl.u32 %v1084, 16
      %v1387 = vrot.slane %v1385, 7
      %v1388 = vshll.u32 %v1084, 16
      %v1390 = vor.u32 %v1387, %v1388
      %v1391 = vsel %vm1159, %v1383, %v1390
      %v1392 = vrot.slane %v1387, 4
      %v1394 = vshrl.u32 %v1096, 16
      %v1396 = vrot.slane %v1394, 7
      %v1397 = vshll.u32 %v1096, 16
      %v1399 = vor.u32 %v1396, %v1397
      %v1400 = vsel %vm1159, %v1392, %v1399
      %v1401 = vrot.slane %v1396, 4
      %v1403 = vshrl.u32 %v1108, 16
      %v1405 = vrot.slane %v1403, 7
      %v1406 = vshll.u32 %v1108, 16
      %v1408 = vor.u32 %v1405, %v1406
      %v1409 = vsel %vm1159, %v1401, %v1408
      %v1410 = vrot.slane %v1405, 4
      %v1412 = vshrl.u32 %v1120, 16
      %v1414 = vrot.slane %v1412, 7
      %v1415 = vshll.u32 %v1120, 16
      %v1417 = vor.u32 %v1414, %v1415
      %v1418 = vsel %vm1159, %v1410, %v1417
      %v1419 = vrot.slane %v1414, 4
      %v1421 = vshrl.u32 %v1132, 16
      %v1423 = vrot.slane %v1421, 7
      %v1424 = vshll.u32 %v1132, 16
      %v1426 = vor.u32 %v1423, %v1424
      %v1427 = vsel %vm1159, %v1419, %v1426
      %v1428 = vrot.slane %v1423, 4
      %v1430 = vshrl.u32 %v1144, 16
      %v1432 = vrot.slane %v1430, 7
      %v1433 = vshll.u32 %v1144, 16
      %v1435 = vor.u32 %v1432, %v1433
      %v1436 = vsel %vm1159, %v1428, %v1435
      %v1437 = vrot.slane %v1432, 4
      %v1439 = vshrl.u32 %v1156, 16
      %v1441 = vrot.slane %v1439, 7
      %v1442 = vshll.u32 %v1156, 16
      %v1444 = vor.u32 %v1441, %v1442
      %v1445 = vsel %vm1159, %v1437, %v1444
      %v1446 = vrot.slane %v1441, 4
      %v1480 = vmul.bf16 %v707, %v1166
      %v1481 = vmul.bf16 %v708, %v1175
      %v1482 = vmul.bf16 %v709, %v1184
      %v1483 = vmul.bf16 %v710, %v1193
      %v1484 = vmul.bf16 %v711, %v1202
      %v1485 = vmul.bf16 %v712, %v1211
      %v1486 = vmul.bf16 %v713, %v1220
      %v1487 = vmul.bf16 %v714, %v1229
      %v1488 = vmul.bf16 %v715, %v1238
      %v1489 = vmul.bf16 %v716, %v1247
      %v1490 = vmul.bf16 %v717, %v1256
      %v1491 = vmul.bf16 %v718, %v1265
      %v1492 = vmul.bf16 %v719, %v1274
      %v1493 = vmul.bf16 %v720, %v1283
      %v1494 = vmul.bf16 %v721, %v1292
      %v1495 = vmul.bf16 %v722, %v1301
      %v1496 = vmul.bf16 %v723, %v1310
      %v1497 = vmul.bf16 %v724, %v1319
      %v1498 = vmul.bf16 %v725, %v1328
      %v1499 = vmul.bf16 %v726, %v1337
      %v1500 = vmul.bf16 %v727, %v1346
      %v1501 = vmul.bf16 %v728, %v1355
      %v1502 = vmul.bf16 %v729, %v1364
      %v1503 = vmul.bf16 %v730, %v1373
      %v1504 = vmul.bf16 %v731, %v1382
      %v1505 = vmul.bf16 %v732, %v1391
      %v1506 = vmul.bf16 %v733, %v1400
      %v1507 = vmul.bf16 %v734, %v1409
      %v1508 = vmul.bf16 %v735, %v1418
      %v1509 = vmul.bf16 %v736, %v1427
      %v1510 = vmul.bf16 %v737, %v1436
      %v1511 = vmul.bf16 %v738, %v1445
      %v1512 = vmul.bf16 %v739, %v1446
      %s1513 = scalar_lea.vmem %s1, 2
      %v1514 = vld [vmem:[%s1513] sm:$0x3]
      %v1548 = vunpack.c.l.b16 %v1480
      %v1549 = vunpack.c.l.b16 %v1481
      %v1550 = vunpack.c.l.b16 %v1482
      %v1551 = vunpack.c.l.b16 %v1483
      %v1552 = vunpack.c.l.b16 %v1484
      %v1553 = vunpack.c.l.b16 %v1485
      %v1554 = vunpack.c.l.b16 %v1486
      %v1555 = vunpack.c.l.b16 %v1487
      %v1556 = vunpack.c.l.b16 %v1488
      %v1557 = vunpack.c.l.b16 %v1489
      %v1558 = vunpack.c.l.b16 %v1490
      %v1559 = vunpack.c.l.b16 %v1491
      %v1560 = vunpack.c.l.b16 %v1492
      %v1561 = vunpack.c.l.b16 %v1493
      %v1562 = vunpack.c.l.b16 %v1494
      %v1563 = vunpack.c.l.b16 %v1495
      %v1564 = vunpack.c.l.b16 %v1496
      %v1565 = vunpack.c.l.b16 %v1497
      %v1566 = vunpack.c.l.b16 %v1498
      %v1567 = vunpack.c.l.b16 %v1499
      %v1568 = vunpack.c.l.b16 %v1500
      %v1569 = vunpack.c.l.b16 %v1501
      %v1570 = vunpack.c.l.b16 %v1502
      %v1571 = vunpack.c.l.b16 %v1503
      %v1572 = vunpack.c.l.b16 %v1504
      %v1573 = vunpack.c.l.b16 %v1505
      %v1574 = vunpack.c.l.b16 %v1506
      %v1575 = vunpack.c.l.b16 %v1507
      %v1576 = vunpack.c.l.b16 %v1508
      %v1577 = vunpack.c.l.b16 %v1509
      %v1578 = vunpack.c.l.b16 %v1510
      %v1579 = vunpack.c.l.b16 %v1511
      %v1580 = vunpack.c.l.b16 %v1512
      %v1581 = vpack.c.b16 %v1549, %v1548
      %v1582 = vpack.c.b16 %v1551, %v1550
      %v1583 = vpack.c.b16 %v1553, %v1552
      %v1584 = vpack.c.b16 %v1555, %v1554
      %v1585 = vpack.c.b16 %v1557, %v1556
      %v1586 = vpack.c.b16 %v1559, %v1558
      %v1587 = vpack.c.b16 %v1561, %v1560
      %v1588 = vpack.c.b16 %v1563, %v1562
      %v1589 = vpack.c.b16 %v1565, %v1564
      %v1590 = vpack.c.b16 %v1567, %v1566
      %v1591 = vpack.c.b16 %v1569, %v1568
      %v1592 = vpack.c.b16 %v1571, %v1570
      %v1593 = vpack.c.b16 %v1573, %v1572
      %v1594 = vpack.c.b16 %v1575, %v1574
      %v1595 = vpack.c.b16 %v1577, %v1576
      %v1596 = vpack.c.b16 %v1579, %v1578
      %v1597 = vpack.c.b16 %v1580, %v1580
      %vm1598 = vsmask.f32 7424
      %v1600 = vshrl.u32 %v1581, 16
      %v1602 = vshll.u32 %v1581, 16
      %v1604 = vrot.slane %v1602, 1
      %v1605 = vor.u32 %v1600, %v1604
      %v1607 = vshll.u32 %v1582, 16
      %v1609 = vrot.slane %v1607, 1
      %v1610 = vsel %vm1598, %v1605, %v1609
      %v1611 = vshrl.u32 %v1582, 16
      %v1613 = vor.u32 %v1611, %v1609
      %v1615 = vshll.u32 %v1583, 16
      %v1617 = vrot.slane %v1615, 1
      %v1618 = vsel %vm1598, %v1613, %v1617
      %v1619 = vshrl.u32 %v1583, 16
      %v1621 = vor.u32 %v1619, %v1617
      %v1623 = vshll.u32 %v1584, 16
      %v1625 = vrot.slane %v1623, 1
      %v1626 = vsel %vm1598, %v1621, %v1625
      %v1627 = vshrl.u32 %v1584, 16
      %v1629 = vor.u32 %v1627, %v1625
      %v1631 = vshll.u32 %v1585, 16
      %v1633 = vrot.slane %v1631, 1
      %v1634 = vsel %vm1598, %v1629, %v1633
      %v1635 = vshrl.u32 %v1585, 16
      %v1637 = vor.u32 %v1635, %v1633
      %v1639 = vshll.u32 %v1586, 16
      %v1641 = vrot.slane %v1639, 1
      %v1642 = vsel %vm1598, %v1637, %v1641
      %v1643 = vshrl.u32 %v1586, 16
      %v1645 = vor.u32 %v1643, %v1641
      %v1647 = vshll.u32 %v1587, 16
      %v1649 = vrot.slane %v1647, 1
      %v1650 = vsel %vm1598, %v1645, %v1649
      %v1651 = vshrl.u32 %v1587, 16
      %v1653 = vor.u32 %v1651, %v1649
      %v1655 = vshll.u32 %v1588, 16
      %v1657 = vrot.slane %v1655, 1
      %v1658 = vsel %vm1598, %v1653, %v1657
      %v1659 = vshrl.u32 %v1588, 16
      %v1661 = vor.u32 %v1659, %v1657
      %v1663 = vshll.u32 %v1589, 16
      %v1665 = vrot.slane %v1663, 1
      %v1666 = vsel %vm1598, %v1661, %v1665
      %v1667 = vshrl.u32 %v1589, 16
      %v1669 = vor.u32 %v1667, %v1665
      %v1671 = vshll.u32 %v1590, 16
      %v1673 = vrot.slane %v1671, 1
      %v1674 = vsel %vm1598, %v1669, %v1673
      %v1675 = vshrl.u32 %v1590, 16
      %v1677 = vor.u32 %v1675, %v1673
      %v1679 = vshll.u32 %v1591, 16
      %v1681 = vrot.slane %v1679, 1
      %v1682 = vsel %vm1598, %v1677, %v1681
      %v1683 = vshrl.u32 %v1591, 16
      %v1685 = vor.u32 %v1683, %v1681
      %v1687 = vshll.u32 %v1592, 16
      %v1689 = vrot.slane %v1687, 1
      %v1690 = vsel %vm1598, %v1685, %v1689
      %v1691 = vshrl.u32 %v1592, 16
      %v1693 = vor.u32 %v1691, %v1689
      %v1695 = vshll.u32 %v1593, 16
      %v1697 = vrot.slane %v1695, 1
      %v1698 = vsel %vm1598, %v1693, %v1697
      %v1699 = vshrl.u32 %v1593, 16
      %v1701 = vor.u32 %v1699, %v1697
      %v1703 = vshll.u32 %v1594, 16
      %v1705 = vrot.slane %v1703, 1
      %v1706 = vsel %vm1598, %v1701, %v1705
      %v1707 = vshrl.u32 %v1594, 16
      %v1709 = vor.u32 %v1707, %v1705
      %v1711 = vshll.u32 %v1595, 16
      %v1713 = vrot.slane %v1711, 1
      %v1714 = vsel %vm1598, %v1709, %v1713
      %v1715 = vshrl.u32 %v1595, 16
      %v1717 = vor.u32 %v1715, %v1713
      %v1719 = vshll.u32 %v1596, 16
      %v1721 = vrot.slane %v1719, 1
      %v1722 = vsel %vm1598, %v1717, %v1721
      %v1723 = vshrl.u32 %v1596, 16
      %v1725 = vor.u32 %v1723, %v1721
      %v1727 = vshll.u32 %v1597, 16
      %v1729 = vrot.slane %v1727, 1
      %v1730 = vsel %vm1598, %v1725, %v1729
      %vm1731 = vcmask 31744
      %v1733 = vsel %vm1731, %v1610, 0
      %v1736 = vsel %vm1731, %v1618, 0
      %v1739 = vsel %vm1731, %v1626, 0
      %v1742 = vsel %vm1731, %v1634, 0
      %v1745 = vsel %vm1731, %v1642, 0
      %v1748 = vsel %vm1731, %v1650, 0
      %v1751 = vsel %vm1731, %v1658, 0
      %v1754 = vsel %vm1731, %v1666, 0
      %v1757 = vsel %vm1731, %v1674, 0
      %v1760 = vsel %vm1731, %v1682, 0
      %v1763 = vsel %vm1731, %v1690, 0
      %v1766 = vsel %vm1731, %v1698, 0
      %v1769 = vsel %vm1731, %v1706, 0
      %v1772 = vsel %vm1731, %v1714, 0
      %v1775 = vsel %vm1731, %v1722, 0
      %v1778 = vsel %vm1731, %v1730, 0
      %vm1780 = vcmask 1041408
      %v1782 = vsel %vm1780, %v1514, 0
      %1784 = vmatprep.subr.bf16.mxu0 0
      %1785 = vmatpush1.bf16.msra.mxu0 %v1782
      %1786 = vmatprep.subr.bf16.mxu0 0
      %1787 = vmatpush1.bf16.msra.mxu0 0
      %1788 = vmatprep.subr.bf16.mxu0 0
      %1789 = vmatpush1.bf16.msra.mxu0 0
      %1790 = vmatprep.subr.bf16.mxu0 0
      %1791 = vmatpush1.bf16.msra.mxu0 0
      %1792 = vmatprep.subr.bf16.mxu0 0
      %1793 = vmatpush1.bf16.msra.mxu0 0
      %1794 = vmatprep.subr.bf16.mxu0 0
      %1795 = vmatpush1.bf16.msra.mxu0 0
      %1796 = vmatprep.subr.bf16.mxu0 0
      %1797 = vmatpush1.bf16.msra.mxu0 0
      %1798 = vmatprep.subr.bf16.mxu0 0
      %1799 = vmatpush1.bf16.msra.mxu0 0
      %1800 = vmatprep.subr.bf16.mxu0 0
      %1801 = vmatpush1.bf16.msra.mxu0 0
      %1802 = vmatprep.subr.bf16.mxu0 0
      %1803 = vmatpush1.bf16.msra.mxu0 0
      %1804 = vmatprep.subr.bf16.mxu0 0
      %1805 = vmatpush1.bf16.msra.mxu0 0
      %1806 = vmatprep.subr.bf16.mxu0 0
      %1807 = vmatpush1.bf16.msra.mxu0 0
      %1808 = vmatprep.subr.bf16.mxu0 0
      %1809 = vmatpush1.bf16.msra.mxu0 0
      %1810 = vmatprep.subr.bf16.mxu0 0
      %1811 = vmatpush1.bf16.msra.mxu0 0
      %1812 = vmatprep.subr.bf16.mxu0 0
      %1813 = vmatpush1.bf16.msra.mxu0 0
      %1814 = vmatprep.subr.bf16.mxu0 0
      %1815 = vmatpush1.bf16.msra.mxu0 0
      %1816 = vmatprep.mubr.bf16.mxu0 0
      %1817 = vmatmul.mubr.bf16.gmra.mrb[0].mxu0 %v1733
      %v1818 = vpop.f32.mrb[0].mxu0
      %v1819 = vadd.f32 0.0, %v1818
      %v1820 = vpop.f32.mrb[0].mxu0
      %v1821 = vpop.f32.mrb[0].mxu0
      %v1822 = vadd.f32 0.0, %v1821
      %v1823 = vpop.f32.mrb[0].mxu0
      %1824 = vmatprep.mubr.bf16.mxu0 0
      %1825 = vmatmul.mubr.bf16.gmra.mrb[0].mxu0 %v1736
      %v1826 = vpop.f32.mrb[0].mxu0
      %v1827 = vadd.f32 0.0, %v1826
      %v1828 = vpop.f32.mrb[0].mxu0
      %v1829 = vpop.f32.mrb[0].mxu0
      %v1830 = vadd.f32 0.0, %v1829
      %v1831 = vpop.f32.mrb[0].mxu0
      %1832 = vmatprep.mubr.bf16.mxu0 0
      %1833 = vmatmul.mubr.bf16.gmra.mrb[0].mxu0 %v1739
      %v1834 = vpop.f32.mrb[0].mxu0
      %v1835 = vadd.f32 0.0, %v1834
      %v1836 = vpop.f32.mrb[0].mxu0
      %v1837 = vpop.f32.mrb[0].mxu0
      %v1838 = vadd.f32 0.0, %v1837
      %v1839 = vpop.f32.mrb[0].mxu0
      %1840 = vmatprep.mubr.bf16.mxu0 0
      %1841 = vmatmul.mubr.bf16.gmra.mrb[0].mxu0 %v1742
      %v1842 = vpop.f32.mrb[0].mxu0
      %v1843 = vadd.f32 0.0, %v1842
      %v1844 = vpop.f32.mrb[0].mxu0
      %v1845 = vpop.f32.mrb[0].mxu0
      %v1846 = vadd.f32 0.0, %v1845
      %v1847 = vpop.f32.mrb[0].mxu0
      %1848 = vmatprep.mubr.bf16.mxu0 0
      %1849 = vmatmul.mubr.bf16.gmra.mrb[0].mxu0 %v1745
      %v1850 = vpop.f32.mrb[0].mxu0
      %v1851 = vadd.f32 0.0, %v1850
      %v1852 = vpop.f32.mrb[0].mxu0
      %v1853 = vpop.f32.mrb[0].mxu0
      %v1854 = vadd.f32 0.0, %v1853
      %v1855 = vpop.f32.mrb[0].mxu0
      %1856 = vmatprep.mubr.bf16.mxu0 0
      %1857 = vmatmul.mubr.bf16.gmra.mrb[0].mxu0 %v1748
      %v1858 = vpop.f32.mrb[0].mxu0
      %v1859 = vadd.f32 0.0, %v1858
      %v1860 = vpop.f32.mrb[0].mxu0
      %v1861 = vpop.f32.mrb[0].mxu0
      %v1862 = vadd.f32 0.0, %v1861
      %v1863 = vpop.f32.mrb[0].mxu0
      %1864 = vmatprep.mubr.bf16.mxu0 0
      %1865 = vmatmul.mubr.bf16.gmra.mrb[0].mxu0 %v1751
      %v1866 = vpop.f32.mrb[0].mxu0
      %v1867 = vadd.f32 0.0, %v1866
      %v1868 = vpop.f32.mrb[0].mxu0
      %v1869 = vpop.f32.mrb[0].mxu0
      %v1870 = vadd.f32 0.0, %v1869
      %v1871 = vpop.f32.mrb[0].mxu0
      %1872 = vmatprep.mubr.bf16.mxu0 0
      %1873 = vmatmul.mubr.bf16.gmra.mrb[0].mxu0 %v1754
      %v1874 = vpop.f32.mrb[0].mxu0
      %v1875 = vadd.f32 0.0, %v1874
      %v1876 = vpop.f32.mrb[0].mxu0
      %v1877 = vpop.f32.mrb[0].mxu0
      %v1878 = vadd.f32 0.0, %v1877
      %v1879 = vpop.f32.mrb[0].mxu0
      %1880 = vmatprep.mubr.bf16.mxu0 0
      %1881 = vmatmul.mubr.bf16.gmra.mrb[0].mxu0 %v1757
      %v1882 = vpop.f32.mrb[0].mxu0
      %v1883 = vadd.f32 0.0, %v1882
      %v1884 = vpop.f32.mrb[0].mxu0
      %v1885 = vpop.f32.mrb[0].mxu0
      %v1886 = vadd.f32 0.0, %v1885
      %v1887 = vpop.f32.mrb[0].mxu0
      %1888 = vmatprep.mubr.bf16.mxu0 0
      %1889 = vmatmul.mubr.bf16.gmra.mrb[0].mxu0 %v1760
      %v1890 = vpop.f32.mrb[0].mxu0
      %v1891 = vadd.f32 0.0, %v1890
      %v1892 = vpop.f32.mrb[0].mxu0
      %v1893 = vpop.f32.mrb[0].mxu0
      %v1894 = vadd.f32 0.0, %v1893
      %v1895 = vpop.f32.mrb[0].mxu0
      %1896 = vmatprep.mubr.bf16.mxu0 0
      %1897 = vmatmul.mubr.bf16.gmra.mrb[0].mxu0 %v1763
      %v1898 = vpop.f32.mrb[0].mxu0
      %v1899 = vadd.f32 0.0, %v1898
      %v1900 = vpop.f32.mrb[0].mxu0
      %v1901 = vpop.f32.mrb[0].mxu0
      %v1902 = vadd.f32 0.0, %v1901
      %v1903 = vpop.f32.mrb[0].mxu0
      %1904 = vmatprep.mubr.bf16.mxu0 0
      %1905 = vmatmul.mubr.bf16.gmra.mrb[0].mxu0 %v1766
      %v1906 = vpop.f32.mrb[0].mxu0
      %v1907 = vadd.f32 0.0, %v1906
      %v1908 = vpop.f32.mrb[0].mxu0
      %v1909 = vpop.f32.mrb[0].mxu0
      %v1910 = vadd.f32 0.0, %v1909
      %v1911 = vpop.f32.mrb[0].mxu0
      %1912 = vmatprep.mubr.bf16.mxu0 0
      %1913 = vmatmul.mubr.bf16.gmra.mrb[0].mxu0 %v1769
      %v1914 = vpop.f32.mrb[0].mxu0
      %v1915 = vadd.f32 0.0, %v1914
      %v1916 = vpop.f32.mrb[0].mxu0
      %v1917 = vpop.f32.mrb[0].mxu0
      %v1918 = vadd.f32 0.0, %v1917
      %v1919 = vpop.f32.mrb[0].mxu0
      %1920 = vmatprep.mubr.bf16.mxu0 0
      %1921 = vmatmul.mubr.bf16.gmra.mrb[0].mxu0 %v1772
      %v1922 = vpop.f32.mrb[0].mxu0
      %v1923 = vadd.f32 0.0, %v1922
      %v1924 = vpop.f32.mrb[0].mxu0
      %v1925 = vpop.f32.mrb[0].mxu0
      %v1926 = vadd.f32 0.0, %v1925
      %v1927 = vpop.f32.mrb[0].mxu0
      %1928 = vmatprep.mubr.bf16.mxu0 0
      %1929 = vmatmul.mubr.bf16.gmra.mrb[0].mxu0 %v1775
      %v1930 = vpop.f32.mrb[0].mxu0
      %v1931 = vadd.f32 0.0, %v1930
      %v1932 = vpop.f32.mrb[0].mxu0
      %v1933 = vpop.f32.mrb[0].mxu0
      %v1934 = vadd.f32 0.0, %v1933
      %v1935 = vpop.f32.mrb[0].mxu0
      %1936 = vmatprep.mubr.bf16.mxu0 0
      %1937 = vmatmul.mubr.bf16.gmra.mrb[0].mxu0 %v1778
      %v1938 = vpop.f32.mrb[0].mxu0
      %v1939 = vadd.f32 0.0, %v1938
      %v1940 = vpop.f32.mrb[0].mxu0
      %v1941 = vpop.f32.mrb[0].mxu0
      %v1942 = vadd.f32 0.0, %v1941
      %v1943 = vpop.f32.mrb[0].mxu0
      %1944 = vdwg.mxu0
      %v1977 = vunpack.c.l.b16 %v674
      %v1978 = vunpack.c.l.b16 %v675
      %v1979 = vunpack.c.l.b16 %v676
      %v1980 = vunpack.c.l.b16 %v677
      %v1981 = vunpack.c.l.b16 %v678
      %v1982 = vunpack.c.l.b16 %v679
      %v1983 = vunpack.c.l.b16 %v680
      %v1984 = vunpack.c.l.b16 %v681
      %v1985 = vunpack.c.l.b16 %v682
      %v1986 = vunpack.c.l.b16 %v683
      %v1987 = vunpack.c.l.b16 %v684
      %v1988 = vunpack.c.l.b16 %v685
      %v1989 = vunpack.c.l.b16 %v686
      %v1990 = vunpack.c.l.b16 %v687
      %v1991 = vunpack.c.l.b16 %v688
      %v1992 = vunpack.c.l.b16 %v689
      %v1993 = vunpack.c.l.b16 %v690
      %v1994 = vunpack.c.l.b16 %v691
      %v1995 = vunpack.c.l.b16 %v692
      %v1996 = vunpack.c.l.b16 %v693
      %v1997 = vunpack.c.l.b16 %v694
      %v1998 = vunpack.c.l.b16 %v695
      %v1999 = vunpack.c.l.b16 %v696
      %v2000 = vunpack.c.l.b16 %v697
      %v2001 = vunpack.c.l.b16 %v698
      %v2002 = vunpack.c.l.b16 %v699
      %v2003 = vunpack.c.l.b16 %v700
      %v2004 = vunpack.c.l.b16 %v701
      %v2005 = vunpack.c.l.b16 %v702
      %v2006 = vunpack.c.l.b16 %v703
      %v2007 = vunpack.c.l.b16 %v704
      %v2008 = vunpack.c.l.b16 %v705
      %v2009 = vpack.c.b16 %v1978, %v1977
      %v2010 = vpack.c.b16 %v1980, %v1979
      %v2011 = vpack.c.b16 %v1982, %v1981
      %v2012 = vpack.c.b16 %v1984, %v1983
      %v2013 = vpack.c.b16 %v1986, %v1985
      %v2014 = vpack.c.b16 %v1988, %v1987
      %v2015 = vpack.c.b16 %v1990, %v1989
      %v2016 = vpack.c.b16 %v1992, %v1991
      %v2017 = vpack.c.b16 %v1994, %v1993
      %v2018 = vpack.c.b16 %v1996, %v1995
      %v2019 = vpack.c.b16 %v1998, %v1997
      %v2020 = vpack.c.b16 %v2000, %v1999
      %v2021 = vpack.c.b16 %v2002, %v2001
      %v2022 = vpack.c.b16 %v2004, %v2003
      %v2023 = vpack.c.b16 %v2006, %v2005
      %v2024 = vpack.c.b16 %v2008, %v2007
      %v2026 = vsel %vm1731, %v2009, 0
      %v2029 = vsel %vm1731, %v2010, 0
      %v2032 = vsel %vm1731, %v2011, 0
      %v2035 = vsel %vm1731, %v2012, 0
      %v2038 = vsel %vm1731, %v2013, 0
      %v2041 = vsel %vm1731, %v2014, 0
      %v2044 = vsel %vm1731, %v2015, 0
      %v2047 = vsel %vm1731, %v2016, 0
      %v2050 = vsel %vm1731, %v2017, 0
      %v2053 = vsel %vm1731, %v2018, 0
      %v2056 = vsel %vm1731, %v2019, 0
      %v2059 = vsel %vm1731, %v2020, 0
      %v2062 = vsel %vm1731, %v2021, 0
      %v2065 = vsel %vm1731, %v2022, 0
      %v2068 = vsel %vm1731, %v2023, 0
      %v2071 = vsel %vm1731, %v2024, 0
      %v2074 = vsel %vm1780, %v706, 0
      %2076 = vmatprep.subr.bf16.mxu0 0
      %2077 = vmatpush1.bf16.msra.mxu0 %v2074
      %2078 = vmatprep.subr.bf16.mxu0 0
      %2079 = vmatpush1.bf16.msra.mxu0 0
      %2080 = vmatprep.subr.bf16.mxu0 0
      %2081 = vmatpush1.bf16.msra.mxu0 0
      %2082 = vmatprep.subr.bf16.mxu0 0
      %2083 = vmatpush1.bf16.msra.mxu0 0
      %2084 = vmatprep.subr.bf16.mxu0 0
      %2085 = vmatpush1.bf16.msra.mxu0 0
      %2086 = vmatprep.subr.bf16.mxu0 0
      %2087 = vmatpush1.bf16.msra.mxu0 0
      %2088 = vmatprep.subr.bf16.mxu0 0
      %2089 = vmatpush1.bf16.msra.mxu0 0
      %2090 = vmatprep.subr.bf16.mxu0 0
      %2091 = vmatpush1.bf16.msra.mxu0 0
      %2092 = vmatprep.subr.bf16.mxu0 0
      %2093 = vmatpush1.bf16.msra.mxu0 0
      %2094 = vmatprep.subr.bf16.mxu0 0
      %2095 = vmatpush1.bf16.msra.mxu0 0
      %2096 = vmatprep.subr.bf16.mxu0 0
      %2097 = vmatpush1.bf16.msra.mxu0 0
      %2098 = vmatprep.subr.bf16.mxu0 0
      %2099 = vmatpush1.bf16.msra.mxu0 0
      %2100 = vmatprep.subr.bf16.mxu0 0
      %2101 = vmatpush1.bf16.msra.mxu0 0
      %2102 = vmatprep.subr.bf16.mxu0 0
      %2103 = vmatpush1.bf16.msra.mxu0 0
      %2104 = vmatprep.subr.bf16.mxu0 0
      %2105 = vmatpush1.bf16.msra.mxu0 0
      %2106 = vmatprep.subr.bf16.mxu0 0
      %2107 = vmatpush1.bf16.msra.mxu0 0
      %2108 = vmatprep.mubr.bf16.mxu0 0
      %2109 = vmatmul.mubr.bf16.gmra.mrb[0].mxu0 %v2026
      %v2110 = vpop.f32.mrb[0].mxu0
      %v2111 = vadd.f32 %v1819, %v2110
      %v2112 = vpop.f32.mrb[0].mxu0
      %v2113 = vpop.f32.mrb[0].mxu0
      %v2114 = vadd.f32 %v1822, %v2113
      %v2115 = vpop.f32.mrb[0].mxu0
      %2116 = vmatprep.mubr.bf16.mxu0 0
      %2117 = vmatmul.mubr.bf16.gmra.mrb[0].mxu0 %v2029
      %v2118 = vpop.f32.mrb[0].mxu0
      %v2119 = vadd.f32 %v1827, %v2118
      %v2120 = vpop.f32.mrb[0].mxu0
      %v2121 = vpop.f32.mrb[0].mxu0
      %v2122 = vadd.f32 %v1830, %v2121
      %v2123 = vpop.f32.mrb[0].mxu0
      %2124 = vmatprep.mubr.bf16.mxu0 0
      %2125 = vmatmul.mubr.bf16.gmra.mrb[0].mxu0 %v2032
      %v2126 = vpop.f32.mrb[0].mxu0
      %v2127 = vadd.f32 %v1835, %v2126
      %v2128 = vpop.f32.mrb[0].mxu0
      %v2129 = vpop.f32.mrb[0].mxu0
      %v2130 = vadd.f32 %v1838, %v2129
      %v2131 = vpop.f32.mrb[0].mxu0
      %2132 = vmatprep.mubr.bf16.mxu0 0
      %2133 = vmatmul.mubr.bf16.gmra.mrb[0].mxu0 %v2035
      %v2134 = vpop.f32.mrb[0].mxu0
      %v2135 = vadd.f32 %v1843, %v2134
      %v2136 = vpop.f32.mrb[0].mxu0
      %v2137 = vpop.f32.mrb[0].mxu0
      %v2138 = vadd.f32 %v1846, %v2137
      %v2139 = vpop.f32.mrb[0].mxu0
      %2140 = vmatprep.mubr.bf16.mxu0 0
      %2141 = vmatmul.mubr.bf16.gmra.mrb[0].mxu0 %v2038
      %v2142 = vpop.f32.mrb[0].mxu0
      %v2143 = vadd.f32 %v1851, %v2142
      %v2144 = vpop.f32.mrb[0].mxu0
      %v2145 = vpop.f32.mrb[0].mxu0
      %v2146 = vadd.f32 %v1854, %v2145
      %v2147 = vpop.f32.mrb[0].mxu0
      %2148 = vmatprep.mubr.bf16.mxu0 0
      %2149 = vmatmul.mubr.bf16.gmra.mrb[0].mxu0 %v2041
      %v2150 = vpop.f32.mrb[0].mxu0
      %v2151 = vadd.f32 %v1859, %v2150
      %v2152 = vpop.f32.mrb[0].mxu0
      %v2153 = vpop.f32.mrb[0].mxu0
      %v2154 = vadd.f32 %v1862, %v2153
      %v2155 = vpop.f32.mrb[0].mxu0
      %2156 = vmatprep.mubr.bf16.mxu0 0
      %2157 = vmatmul.mubr.bf16.gmra.mrb[0].mxu0 %v2044
      %v2158 = vpop.f32.mrb[0].mxu0
      %v2159 = vadd.f32 %v1867, %v2158
      %v2160 = vpop.f32.mrb[0].mxu0
      %v2161 = vpop.f32.mrb[0].mxu0
      %v2162 = vadd.f32 %v1870, %v2161
      %v2163 = vpop.f32.mrb[0].mxu0
      %2164 = vmatprep.mubr.bf16.mxu0 0
      %2165 = vmatmul.mubr.bf16.gmra.mrb[0].mxu0 %v2047
      %v2166 = vpop.f32.mrb[0].mxu0
      %v2167 = vadd.f32 %v1875, %v2166
      %v2168 = vpop.f32.mrb[0].mxu0
      %v2169 = vpop.f32.mrb[0].mxu0
      %v2170 = vadd.f32 %v1878, %v2169
      %v2171 = vpop.f32.mrb[0].mxu0
      %2172 = vmatprep.mubr.bf16.mxu0 0
      %2173 = vmatmul.mubr.bf16.gmra.mrb[0].mxu0 %v2050
      %v2174 = vpop.f32.mrb[0].mxu0
      %v2175 = vadd.f32 %v1883, %v2174
      %v2176 = vpop.f32.mrb[0].mxu0
      %v2177 = vpop.f32.mrb[0].mxu0
      %v2178 = vadd.f32 %v1886, %v2177
      %v2179 = vpop.f32.mrb[0].mxu0
      %2180 = vmatprep.mubr.bf16.mxu0 0
      %2181 = vmatmul.mubr.bf16.gmra.mrb[0].mxu0 %v2053
      %v2182 = vpop.f32.mrb[0].mxu0
      %v2183 = vadd.f32 %v1891, %v2182
      %v2184 = vpop.f32.mrb[0].mxu0
      %v2185 = vpop.f32.mrb[0].mxu0
      %v2186 = vadd.f32 %v1894, %v2185
      %v2187 = vpop.f32.mrb[0].mxu0
      %2188 = vmatprep.mubr.bf16.mxu0 0
      %2189 = vmatmul.mubr.bf16.gmra.mrb[0].mxu0 %v2056
      %v2190 = vpop.f32.mrb[0].mxu0
      %v2191 = vadd.f32 %v1899, %v2190
      %v2192 = vpop.f32.mrb[0].mxu0
      %v2193 = vpop.f32.mrb[0].mxu0
      %v2194 = vadd.f32 %v1902, %v2193
      %v2195 = vpop.f32.mrb[0].mxu0
      %2196 = vmatprep.mubr.bf16.mxu0 0
      %2197 = vmatmul.mubr.bf16.gmra.mrb[0].mxu0 %v2059
      %v2198 = vpop.f32.mrb[0].mxu0
      %v2199 = vadd.f32 %v1907, %v2198
      %v2200 = vpop.f32.mrb[0].mxu0
      %v2201 = vpop.f32.mrb[0].mxu0
      %v2202 = vadd.f32 %v1910, %v2201
      %v2203 = vpop.f32.mrb[0].mxu0
      %2204 = vmatprep.mubr.bf16.mxu0 0
      %2205 = vmatmul.mubr.bf16.gmra.mrb[0].mxu0 %v2062
      %v2206 = vpop.f32.mrb[0].mxu0
      %v2207 = vadd.f32 %v1915, %v2206
      %v2208 = vpop.f32.mrb[0].mxu0
      %v2209 = vpop.f32.mrb[0].mxu0
      %v2210 = vadd.f32 %v1918, %v2209
      %v2211 = vpop.f32.mrb[0].mxu0
      %2212 = vmatprep.mubr.bf16.mxu0 0
      %2213 = vmatmul.mubr.bf16.gmra.mrb[0].mxu0 %v2065
      %v2214 = vpop.f32.mrb[0].mxu0
      %v2215 = vadd.f32 %v1923, %v2214
      %v2216 = vpop.f32.mrb[0].mxu0
      %v2217 = vpop.f32.mrb[0].mxu0
      %v2218 = vadd.f32 %v1926, %v2217
      %v2219 = vpop.f32.mrb[0].mxu0
      %2220 = vmatprep.mubr.bf16.mxu0 0
      %2221 = vmatmul.mubr.bf16.gmra.mrb[0].mxu0 %v2068
      %v2222 = vpop.f32.mrb[0].mxu0
      %v2223 = vadd.f32 %v1931, %v2222
      %v2224 = vpop.f32.mrb[0].mxu0
      %v2225 = vpop.f32.mrb[0].mxu0
      %v2226 = vadd.f32 %v1934, %v2225
      %v2227 = vpop.f32.mrb[0].mxu0
      %2228 = vmatprep.mubr.bf16.mxu0 0
      %2229 = vmatmul.mubr.bf16.gmra.mrb[0].mxu0 %v2071
      %v2230 = vpop.f32.mrb[0].mxu0
      %v2231 = vadd.f32 %v1939, %v2230
      %v2232 = vpop.f32.mrb[0].mxu0
      %v2233 = vpop.f32.mrb[0].mxu0
      %v2234 = vadd.f32 %v1942, %v2233
      %v2235 = vpop.f32.mrb[0].mxu0
      %2236 = vdwg.mxu0
      %v2237 = vld [vmem:[%s219] sm:$0xe]
      %s2238 = scalar_lea.vmem %s2, 256
      %v2239 = vld [vmem:[%s2238] sm:$0xf]
      %v2240 = vld [vmem:[%s2238 + $0x4] sm:$0xf]
      %v2241 = vld [vmem:[%s2238 + $0x8] sm:$0xf]
      %v2242 = vld [vmem:[%s2238 + $0xc] sm:$0xf]
      %v2243 = vld [vmem:[%s2238 + $0x10] sm:$0xf]
      %v2244 = vld [vmem:[%s2238 + $0x14] sm:$0xf]
      %v2245 = vld [vmem:[%s2238 + $0x18] sm:$0xf]
      %v2246 = vld [vmem:[%s2238 + $0x1c] sm:$0xf]
      %v2247 = vld [vmem:[%s2238 + $0x20] sm:$0xf]
      %v2248 = vld [vmem:[%s2238 + $0x24] sm:$0xf]
      %v2249 = vld [vmem:[%s2238 + $0x28] sm:$0xf]
      %v2250 = vld [vmem:[%s2238 + $0x2c] sm:$0xf]
      %v2251 = vld [vmem:[%s2238 + $0x30] sm:$0xf]
      %v2252 = vld [vmem:[%s2238 + $0x34] sm:$0xf]
      %v2253 = vld [vmem:[%s2238 + $0x38] sm:$0xf]
      %v2254 = vld [vmem:[%s2238 + $0x3c] sm:$0xf]
      %v2255 = vld [vmem:[%s2238 + $0x40] sm:$0xf]
      %v2256 = vld [vmem:[%s2238 + $0x44] sm:$0xf]
      %v2257 = vld [vmem:[%s2238 + $0x48] sm:$0xf]
      %v2258 = vld [vmem:[%s2238 + $0x4c] sm:$0xf]
      %v2259 = vld [vmem:[%s2238 + $0x50] sm:$0xf]
      %v2260 = vld [vmem:[%s2238 + $0x54] sm:$0xf]
      %v2261 = vld [vmem:[%s2238 + $0x58] sm:$0xf]
      %v2262 = vld [vmem:[%s2238 + $0x5c] sm:$0xf]
      %v2263 = vld [vmem:[%s2238 + $0x60] sm:$0xf]
      %v2264 = vld [vmem:[%s2238 + $0x64] sm:$0xf]
      %v2265 = vld [vmem:[%s2238 + $0x68] sm:$0xf]
      %v2266 = vld [vmem:[%s2238 + $0x6c] sm:$0xf]
      %v2267 = vld [vmem:[%s2238 + $0x70] sm:$0xf]
      %v2268 = vld [vmem:[%s2238 + $0x74] sm:$0xf]
      %v2269 = vld [vmem:[%s2238 + $0x78] sm:$0xf]
      %v2270 = vld [vmem:[%s2238 + $0x7c] sm:$0xf]
      %2272 = vset.pattern.permute.xlu0 0
      %2273 = vperm.xlu0 %2272, %v2239
      %v2274 = vpop.permute.xlu0 %2273
      %v2277 = vunpack.c.l.s4 839922192
      %v2278 = vunpack.c.0.s8 %v2277
      %v2279 = vlaneseq
      %v2280 = vshrl.u32 %v2279, 7
      %v2281 = vsub.s32 %v2278, %v2280
      %v2282 = vrot.slane %v2274, %v2281
      %2284 = vset.pattern.permute.xlu0 0
      %2285 = vperm.xlu0 %2284, %v2240
      %v2286 = vpop.permute.xlu0 %2285
      %v2289 = vunpack.c.l.s4 839922192
      %v2290 = vunpack.c.0.s8 %v2289
      %v2291 = vlaneseq
      %v2292 = vshrl.u32 %v2291, 7
      %v2293 = vsub.s32 %v2290, %v2292
      %v2294 = vrot.slane %v2286, %v2293
      %2296 = vset.pattern.permute.xlu0 0
      %2297 = vperm.xlu0 %2296, %v2241
      %v2298 = vpop.permute.xlu0 %2297
      %v2301 = vunpack.c.l.s4 839922192
      %v2302 = vunpack.c.0.s8 %v2301
      %v2303 = vlaneseq
      %v2304 = vshrl.u32 %v2303, 7
      %v2305 = vsub.s32 %v2302, %v2304
      %v2306 = vrot.slane %v2298, %v2305
      %2308 = vset.pattern.permute.xlu0 0
      %2309 = vperm.xlu0 %2308, %v2242
      %v2310 = vpop.permute.xlu0 %2309
      %v2313 = vunpack.c.l.s4 839922192
      %v2314 = vunpack.c.0.s8 %v2313
      %v2315 = vlaneseq
      %v2316 = vshrl.u32 %v2315, 7
      %v2317 = vsub.s32 %v2314, %v2316
      %v2318 = vrot.slane %v2310, %v2317
      %2320 = vset.pattern.permute.xlu0 0
      %2321 = vperm.xlu0 %2320, %v2243
      %v2322 = vpop.permute.xlu0 %2321
      %v2325 = vunpack.c.l.s4 839922192
      %v2326 = vunpack.c.0.s8 %v2325
      %v2327 = vlaneseq
      %v2328 = vshrl.u32 %v2327, 7
      %v2329 = vsub.s32 %v2326, %v2328
      %v2330 = vrot.slane %v2322, %v2329
      %2332 = vset.pattern.permute.xlu0 0
      %2333 = vperm.xlu0 %2332, %v2244
      %v2334 = vpop.permute.xlu0 %2333
      %v2337 = vunpack.c.l.s4 839922192
      %v2338 = vunpack.c.0.s8 %v2337
      %v2339 = vlaneseq
      %v2340 = vshrl.u32 %v2339, 7
      %v2341 = vsub.s32 %v2338, %v2340
      %v2342 = vrot.slane %v2334, %v2341
      %2344 = vset.pattern.permute.xlu0 0
      %2345 = vperm.xlu0 %2344, %v2245
      %v2346 = vpop.permute.xlu0 %2345
      %v2349 = vunpack.c.l.s4 839922192
      %v2350 = vunpack.c.0.s8 %v2349
      %v2351 = vlaneseq
      %v2352 = vshrl.u32 %v2351, 7
      %v2353 = vsub.s32 %v2350, %v2352
      %v2354 = vrot.slane %v2346, %v2353
      %2356 = vset.pattern.permute.xlu0 0
      %2357 = vperm.xlu0 %2356, %v2246
      %v2358 = vpop.permute.xlu0 %2357
      %v2361 = vunpack.c.l.s4 839922192
      %v2362 = vunpack.c.0.s8 %v2361
      %v2363 = vlaneseq
      %v2364 = vshrl.u32 %v2363, 7
      %v2365 = vsub.s32 %v2362, %v2364
      %v2366 = vrot.slane %v2358, %v2365
      %2368 = vset.pattern.permute.xlu0 0
      %2369 = vperm.xlu0 %2368, %v2247
      %v2370 = vpop.permute.xlu0 %2369
      %v2373 = vunpack.c.l.s4 839922192
      %v2374 = vunpack.c.0.s8 %v2373
      %v2375 = vlaneseq
      %v2376 = vshrl.u32 %v2375, 7
      %v2377 = vsub.s32 %v2374, %v2376
      %v2378 = vrot.slane %v2370, %v2377
      %2380 = vset.pattern.permute.xlu0 0
      %2381 = vperm.xlu0 %2380, %v2248
      %v2382 = vpop.permute.xlu0 %2381
      %v2385 = vunpack.c.l.s4 839922192
      %v2386 = vunpack.c.0.s8 %v2385
      %v2387 = vlaneseq
      %v2388 = vshrl.u32 %v2387, 7
      %v2389 = vsub.s32 %v2386, %v2388
      %v2390 = vrot.slane %v2382, %v2389
      %2392 = vset.pattern.permute.xlu0 0
      %2393 = vperm.xlu0 %2392, %v2249
      %v2394 = vpop.permute.xlu0 %2393
      %v2397 = vunpack.c.l.s4 839922192
      %v2398 = vunpack.c.0.s8 %v2397
      %v2399 = vlaneseq
      %v2400 = vshrl.u32 %v2399, 7
      %v2401 = vsub.s32 %v2398, %v2400
      %v2402 = vrot.slane %v2394, %v2401
      %2404 = vset.pattern.permute.xlu0 0
      %2405 = vperm.xlu0 %2404, %v2250
      %v2406 = vpop.permute.xlu0 %2405
      %v2409 = vunpack.c.l.s4 839922192
      %v2410 = vunpack.c.0.s8 %v2409
      %v2411 = vlaneseq
      %v2412 = vshrl.u32 %v2411, 7
      %v2413 = vsub.s32 %v2410, %v2412
      %v2414 = vrot.slane %v2406, %v2413
      %2416 = vset.pattern.permute.xlu0 0
      %2417 = vperm.xlu0 %2416, %v2251
      %v2418 = vpop.permute.xlu0 %2417
      %v2421 = vunpack.c.l.s4 839922192
      %v2422 = vunpack.c.0.s8 %v2421
      %v2423 = vlaneseq
      %v2424 = vshrl.u32 %v2423, 7
      %v2425 = vsub.s32 %v2422, %v2424
      %v2426 = vrot.slane %v2418, %v2425
      %2428 = vset.pattern.permute.xlu0 0
      %2429 = vperm.xlu0 %2428, %v2252
      %v2430 = vpop.permute.xlu0 %2429
      %v2433 = vunpack.c.l.s4 839922192
      %v2434 = vunpack.c.0.s8 %v2433
      %v2435 = vlaneseq
      %v2436 = vshrl.u32 %v2435, 7
      %v2437 = vsub.s32 %v2434, %v2436
      %v2438 = vrot.slane %v2430, %v2437
      %2440 = vset.pattern.permute.xlu0 0
      %2441 = vperm.xlu0 %2440, %v2253
      %v2442 = vpop.permute.xlu0 %2441
      %v2445 = vunpack.c.l.s4 839922192
      %v2446 = vunpack.c.0.s8 %v2445
      %v2447 = vlaneseq
      %v2448 = vshrl.u32 %v2447, 7
      %v2449 = vsub.s32 %v2446, %v2448
      %v2450 = vrot.slane %v2442, %v2449
      %2452 = vset.pattern.permute.xlu0 0
      %2453 = vperm.xlu0 %2452, %v2254
      %v2454 = vpop.permute.xlu0 %2453
      %v2457 = vunpack.c.l.s4 839922192
      %v2458 = vunpack.c.0.s8 %v2457
      %v2459 = vlaneseq
      %v2460 = vshrl.u32 %v2459, 7
      %v2461 = vsub.s32 %v2458, %v2460
      %v2462 = vrot.slane %v2454, %v2461
      %2464 = vset.pattern.permute.xlu0 0
      %2465 = vperm.xlu0 %2464, %v2255
      %v2466 = vpop.permute.xlu0 %2465
      %v2469 = vunpack.c.l.s4 839922192
      %v2470 = vunpack.c.0.s8 %v2469
      %v2471 = vlaneseq
      %v2472 = vshrl.u32 %v2471, 7
      %v2473 = vsub.s32 %v2470, %v2472
      %v2474 = vrot.slane %v2466, %v2473
      %2476 = vset.pattern.permute.xlu0 0
      %2477 = vperm.xlu0 %2476, %v2256
      %v2478 = vpop.permute.xlu0 %2477
      %v2481 = vunpack.c.l.s4 839922192
      %v2482 = vunpack.c.0.s8 %v2481
      %v2483 = vlaneseq
      %v2484 = vshrl.u32 %v2483, 7
      %v2485 = vsub.s32 %v2482, %v2484
      %v2486 = vrot.slane %v2478, %v2485
      %2488 = vset.pattern.permute.xlu0 0
      %2489 = vperm.xlu0 %2488, %v2257
      %v2490 = vpop.permute.xlu0 %2489
      %v2493 = vunpack.c.l.s4 839922192
      %v2494 = vunpack.c.0.s8 %v2493
      %v2495 = vlaneseq
      %v2496 = vshrl.u32 %v2495, 7
      %v2497 = vsub.s32 %v2494, %v2496
      %v2498 = vrot.slane %v2490, %v2497
      %2500 = vset.pattern.permute.xlu0 0
      %2501 = vperm.xlu0 %2500, %v2258
      %v2502 = vpop.permute.xlu0 %2501
      %v2505 = vunpack.c.l.s4 839922192
      %v2506 = vunpack.c.0.s8 %v2505
      %v2507 = vlaneseq
      %v2508 = vshrl.u32 %v2507, 7
      %v2509 = vsub.s32 %v2506, %v2508
      %v2510 = vrot.slane %v2502, %v2509
      %2512 = vset.pattern.permute.xlu0 0
      %2513 = vperm.xlu0 %2512, %v2259
      %v2514 = vpop.permute.xlu0 %2513
      %v2517 = vunpack.c.l.s4 839922192
      %v2518 = vunpack.c.0.s8 %v2517
      %v2519 = vlaneseq
      %v2520 = vshrl.u32 %v2519, 7
      %v2521 = vsub.s32 %v2518, %v2520
      %v2522 = vrot.slane %v2514, %v2521
      %2524 = vset.pattern.permute.xlu0 0
      %2525 = vperm.xlu0 %2524, %v2260
      %v2526 = vpop.permute.xlu0 %2525
      %v2529 = vunpack.c.l.s4 839922192
      %v2530 = vunpack.c.0.s8 %v2529
      %v2531 = vlaneseq
      %v2532 = vshrl.u32 %v2531, 7
      %v2533 = vsub.s32 %v2530, %v2532
      %v2534 = vrot.slane %v2526, %v2533
      %2536 = vset.pattern.permute.xlu0 0
      %2537 = vperm.xlu0 %2536, %v2261
      %v2538 = vpop.permute.xlu0 %2537
      %v2541 = vunpack.c.l.s4 839922192
      %v2542 = vunpack.c.0.s8 %v2541
      %v2543 = vlaneseq
      %v2544 = vshrl.u32 %v2543, 7
      %v2545 = vsub.s32 %v2542, %v2544
      %v2546 = vrot.slane %v2538, %v2545
      %2548 = vset.pattern.permute.xlu0 0
      %2549 = vperm.xlu0 %2548, %v2262
      %v2550 = vpop.permute.xlu0 %2549
      %v2553 = vunpack.c.l.s4 839922192
      %v2554 = vunpack.c.0.s8 %v2553
      %v2555 = vlaneseq
      %v2556 = vshrl.u32 %v2555, 7
      %v2557 = vsub.s32 %v2554, %v2556
      %v2558 = vrot.slane %v2550, %v2557
      %2560 = vset.pattern.permute.xlu0 0
      %2561 = vperm.xlu0 %2560, %v2263
      %v2562 = vpop.permute.xlu0 %2561
      %v2565 = vunpack.c.l.s4 839922192
      %v2566 = vunpack.c.0.s8 %v2565
      %v2567 = vlaneseq
      %v2568 = vshrl.u32 %v2567, 7
      %v2569 = vsub.s32 %v2566, %v2568
      %v2570 = vrot.slane %v2562, %v2569
      %2572 = vset.pattern.permute.xlu0 0
      %2573 = vperm.xlu0 %2572, %v2264
      %v2574 = vpop.permute.xlu0 %2573
      %v2577 = vunpack.c.l.s4 839922192
      %v2578 = vunpack.c.0.s8 %v2577
      %v2579 = vlaneseq
      %v2580 = vshrl.u32 %v2579, 7
      %v2581 = vsub.s32 %v2578, %v2580
      %v2582 = vrot.slane %v2574, %v2581
      %2584 = vset.pattern.permute.xlu0 0
      %2585 = vperm.xlu0 %2584, %v2265
      %v2586 = vpop.permute.xlu0 %2585
      %v2589 = vunpack.c.l.s4 839922192
      %v2590 = vunpack.c.0.s8 %v2589
      %v2591 = vlaneseq
      %v2592 = vshrl.u32 %v2591, 7
      %v2593 = vsub.s32 %v2590, %v2592
      %v2594 = vrot.slane %v2586, %v2593
      %2596 = vset.pattern.permute.xlu0 0
      %2597 = vperm.xlu0 %2596, %v2266
      %v2598 = vpop.permute.xlu0 %2597
      %v2601 = vunpack.c.l.s4 839922192
      %v2602 = vunpack.c.0.s8 %v2601
      %v2603 = vlaneseq
      %v2604 = vshrl.u32 %v2603, 7
      %v2605 = vsub.s32 %v2602, %v2604
      %v2606 = vrot.slane %v2598, %v2605
      %2608 = vset.pattern.permute.xlu0 0
      %2609 = vperm.xlu0 %2608, %v2267
      %v2610 = vpop.permute.xlu0 %2609
      %v2613 = vunpack.c.l.s4 839922192
      %v2614 = vunpack.c.0.s8 %v2613
      %v2615 = vlaneseq
      %v2616 = vshrl.u32 %v2615, 7
      %v2617 = vsub.s32 %v2614, %v2616
      %v2618 = vrot.slane %v2610, %v2617
      %2620 = vset.pattern.permute.xlu0 0
      %2621 = vperm.xlu0 %2620, %v2268
      %v2622 = vpop.permute.xlu0 %2621
      %v2625 = vunpack.c.l.s4 839922192
      %v2626 = vunpack.c.0.s8 %v2625
      %v2627 = vlaneseq
      %v2628 = vshrl.u32 %v2627, 7
      %v2629 = vsub.s32 %v2626, %v2628
      %v2630 = vrot.slane %v2622, %v2629
      %2632 = vset.pattern.permute.xlu0 0
      %2633 = vperm.xlu0 %2632, %v2269
      %v2634 = vpop.permute.xlu0 %2633
      %v2637 = vunpack.c.l.s4 839922192
      %v2638 = vunpack.c.0.s8 %v2637
      %v2639 = vlaneseq
      %v2640 = vshrl.u32 %v2639, 7
      %v2641 = vsub.s32 %v2638, %v2640
      %v2642 = vrot.slane %v2634, %v2641
      %2644 = vset.pattern.permute.xlu0 0
      %2645 = vperm.xlu0 %2644, %v2270
      %v2646 = vpop.permute.xlu0 %2645
      %v2649 = vunpack.c.l.s4 839922192
      %v2650 = vunpack.c.0.s8 %v2649
      %v2651 = vlaneseq
      %v2652 = vshrl.u32 %v2651, 7
      %v2653 = vsub.s32 %v2650, %v2652
      %v2654 = vrot.slane %v2646, %v2653
      %vm2687 = vcmask 1040384
      %vm2688 = vcmask 1044484
      %vm2689 = vmor %vm2687, %vm2688
      %v2690 = vrot.slane %v2282, 7
      %v2691 = vrot.slane %v2690, 4
      %v2692 = vrot.slane %v2294, 7
      %v2693 = vsel %vm2689, %v2691, %v2692
      %v2694 = vrot.slane %v2692, 4
      %v2695 = vrot.slane %v2306, 7
      %v2696 = vsel %vm2689, %v2694, %v2695
      %v2697 = vrot.slane %v2695, 4
      %v2698 = vrot.slane %v2318, 7
      %v2699 = vsel %vm2689, %v2697, %v2698
      %v2700 = vrot.slane %v2698, 4
      %v2701 = vrot.slane %v2330, 7
      %v2702 = vsel %vm2689, %v2700, %v2701
      %v2703 = vrot.slane %v2701, 4
      %v2704 = vrot.slane %v2342, 7
      %v2705 = vsel %vm2689, %v2703, %v2704
      %v2706 = vrot.slane %v2704, 4
      %v2707 = vrot.slane %v2354, 7
      %v2708 = vsel %vm2689, %v2706, %v2707
      %v2709 = vrot.slane %v2707, 4
      %v2710 = vrot.slane %v2366, 7
      %v2711 = vsel %vm2689, %v2709, %v2710
      %v2712 = vrot.slane %v2710, 4
      %v2713 = vrot.slane %v2378, 7
      %v2714 = vsel %vm2689, %v2712, %v2713
      %v2715 = vrot.slane %v2713, 4
      %v2716 = vrot.slane %v2390, 7
      %v2717 = vsel %vm2689, %v2715, %v2716
      %v2718 = vrot.slane %v2716, 4
      %v2719 = vrot.slane %v2402, 7
      %v2720 = vsel %vm2689, %v2718, %v2719
      %v2721 = vrot.slane %v2719, 4
      %v2722 = vrot.slane %v2414, 7
      %v2723 = vsel %vm2689, %v2721, %v2722
      %v2724 = vrot.slane %v2722, 4
      %v2725 = vrot.slane %v2426, 7
      %v2726 = vsel %vm2689, %v2724, %v2725
      %v2727 = vrot.slane %v2725, 4
      %v2728 = vrot.slane %v2438, 7
      %v2729 = vsel %vm2689, %v2727, %v2728
      %v2730 = vrot.slane %v2728, 4
      %v2731 = vrot.slane %v2450, 7
      %v2732 = vsel %vm2689, %v2730, %v2731
      %v2733 = vrot.slane %v2731, 4
      %v2734 = vrot.slane %v2462, 7
      %v2735 = vsel %vm2689, %v2733, %v2734
      %v2736 = vrot.slane %v2734, 4
      %v2737 = vrot.slane %v2474, 7
      %v2738 = vsel %vm2689, %v2736, %v2737
      %v2739 = vrot.slane %v2737, 4
      %v2740 = vrot.slane %v2486, 7
      %v2741 = vsel %vm2689, %v2739, %v2740
      %v2742 = vrot.slane %v2740, 4
      %v2743 = vrot.slane %v2498, 7
      %v2744 = vsel %vm2689, %v2742, %v2743
      %v2745 = vrot.slane %v2743, 4
      %v2746 = vrot.slane %v2510, 7
      %v2747 = vsel %vm2689, %v2745, %v2746
      %v2748 = vrot.slane %v2746, 4
      %v2749 = vrot.slane %v2522, 7
      %v2750 = vsel %vm2689, %v2748, %v2749
      %v2751 = vrot.slane %v2749, 4
      %v2752 = vrot.slane %v2534, 7
      %v2753 = vsel %vm2689, %v2751, %v2752
      %v2754 = vrot.slane %v2752, 4
      %v2755 = vrot.slane %v2546, 7
      %v2756 = vsel %vm2689, %v2754, %v2755
      %v2757 = vrot.slane %v2755, 4
      %v2758 = vrot.slane %v2558, 7
      %v2759 = vsel %vm2689, %v2757, %v2758
      %v2760 = vrot.slane %v2758, 4
      %v2761 = vrot.slane %v2570, 7
      %v2762 = vsel %vm2689, %v2760, %v2761
      %v2763 = vrot.slane %v2761, 4
      %v2764 = vrot.slane %v2582, 7
      %v2765 = vsel %vm2689, %v2763, %v2764
      %v2766 = vrot.slane %v2764, 4
      %v2767 = vrot.slane %v2594, 7
      %v2768 = vsel %vm2689, %v2766, %v2767
      %v2769 = vrot.slane %v2767, 4
      %v2770 = vrot.slane %v2606, 7
      %v2771 = vsel %vm2689, %v2769, %v2770
      %v2772 = vrot.slane %v2770, 4
      %v2773 = vrot.slane %v2618, 7
      %v2774 = vsel %vm2689, %v2772, %v2773
      %v2775 = vrot.slane %v2773, 4
      %v2776 = vrot.slane %v2630, 7
      %v2777 = vsel %vm2689, %v2775, %v2776
      %v2778 = vrot.slane %v2776, 4
      %v2779 = vrot.slane %v2642, 7
      %v2780 = vsel %vm2689, %v2778, %v2779
      %v2781 = vrot.slane %v2779, 4
      %v2782 = vrot.slane %v2654, 7
      %v2783 = vsel %vm2689, %v2781, %v2782
      %v2784 = vrot.slane %v2782, 4
      %v2818 = vmul.bf16 %v2237, %v2690
      %v2819 = vmul.bf16 %v708, %v2693
      %v2820 = vmul.bf16 %v709, %v2696
      %v2821 = vmul.bf16 %v710, %v2699
      %v2822 = vmul.bf16 %v711, %v2702
      %v2823 = vmul.bf16 %v712, %v2705
      %v2824 = vmul.bf16 %v713, %v2708
      %v2825 = vmul.bf16 %v714, %v2711
      %v2826 = vmul.bf16 %v715, %v2714
      %v2827 = vmul.bf16 %v716, %v2717
      %v2828 = vmul.bf16 %v717, %v2720
      %v2829 = vmul.bf16 %v718, %v2723
      %v2830 = vmul.bf16 %v719, %v2726
      %v2831 = vmul.bf16 %v720, %v2729
      %v2832 = vmul.bf16 %v721, %v2732
      %v2833 = vmul.bf16 %v722, %v2735
      %v2834 = vmul.bf16 %v723, %v2738
      %v2835 = vmul.bf16 %v724, %v2741
      %v2836 = vmul.bf16 %v725, %v2744
      %v2837 = vmul.bf16 %v726, %v2747
      %v2838 = vmul.bf16 %v727, %v2750
      %v2839 = vmul.bf16 %v728, %v2753
      %v2840 = vmul.bf16 %v729, %v2756
      %v2841 = vmul.bf16 %v730, %v2759
      %v2842 = vmul.bf16 %v731, %v2762
      %v2843 = vmul.bf16 %v732, %v2765
      %v2844 = vmul.bf16 %v733, %v2768
      %v2845 = vmul.bf16 %v734, %v2771
      %v2846 = vmul.bf16 %v735, %v2774
      %v2847 = vmul.bf16 %v736, %v2777
      %v2848 = vmul.bf16 %v737, %v2780
      %v2849 = vmul.bf16 %v738, %v2783
      %v2850 = vmul.bf16 %v739, %v2784
      %s2851 = scalar_lea.vmem %s1, 4
      %v2852 = vld [vmem:[%s2851] sm:$0x3]
      %v2886 = vunpack.c.l.b16 %v2818
      %v2887 = vunpack.c.l.b16 %v2819
      %v2888 = vunpack.c.l.b16 %v2820
      %v2889 = vunpack.c.l.b16 %v2821
      %v2890 = vunpack.c.l.b16 %v2822
      %v2891 = vunpack.c.l.b16 %v2823
      %v2892 = vunpack.c.l.b16 %v2824
      %v2893 = vunpack.c.l.b16 %v2825
      %v2894 = vunpack.c.l.b16 %v2826
      %v2895 = vunpack.c.l.b16 %v2827
      %v2896 = vunpack.c.l.b16 %v2828
      %v2897 = vunpack.c.l.b16 %v2829
      %v2898 = vunpack.c.l.b16 %v2830
      %v2899 = vunpack.c.l.b16 %v2831
      %v2900 = vunpack.c.l.b16 %v2832
      %v2901 = vunpack.c.l.b16 %v2833
      %v2902 = vunpack.c.l.b16 %v2834
      %v2903 = vunpack.c.l.b16 %v2835
      %v2904 = vunpack.c.l.b16 %v2836
      %v2905 = vunpack.c.l.b16 %v2837
      %v2906 = vunpack.c.l.b16 %v2838
      %v2907 = vunpack.c.l.b16 %v2839
      %v2908 = vunpack.c.l.b16 %v2840
      %v2909 = vunpack.c.l.b16 %v2841
      %v2910 = vunpack.c.l.b16 %v2842
      %v2911 = vunpack.c.l.b16 %v2843
      %v2912 = vunpack.c.l.b16 %v2844
      %v2913 = vunpack.c.l.b16 %v2845
      %v2914 = vunpack.c.l.b16 %v2846
      %v2915 = vunpack.c.l.b16 %v2847
      %v2916 = vunpack.c.l.b16 %v2848
      %v2917 = vunpack.c.l.b16 %v2849
      %v2918 = vunpack.c.l.b16 %v2850
      %v2919 = vpack.c.b16 %v2887, %v2886
      %v2920 = vpack.c.b16 %v2889, %v2888
      %v2921 = vpack.c.b16 %v2891, %v2890
      %v2922 = vpack.c.b16 %v2893, %v2892
      %v2923 = vpack.c.b16 %v2895, %v2894
      %v2924 = vpack.c.b16 %v2897, %v2896
      %v2925 = vpack.c.b16 %v2899, %v2898
      %v2926 = vpack.c.b16 %v2901, %v2900
      %v2927 = vpack.c.b16 %v2903, %v2902
      %v2928 = vpack.c.b16 %v2905, %v2904
      %v2929 = vpack.c.b16 %v2907, %v2906
      %v2930 = vpack.c.b16 %v2909, %v2908
      %v2931 = vpack.c.b16 %v2911, %v2910
      %v2932 = vpack.c.b16 %v2913, %v2912
      %v2933 = vpack.c.b16 %v2915, %v2914
      %v2934 = vpack.c.b16 %v2917, %v2916
      %v2935 = vpack.c.b16 %v2918, %v2918
      %vm2936 = vcmask 1046528
      %v2937 = vrot.slane %v2919, 1
      %v2938 = vrot.slane %v2920, 1
      %v2939 = vsel %vm2936, %v2937, %v2938
      %v2940 = vrot.slane %v2921, 1
      %v2941 = vsel %vm2936, %v2938, %v2940
      %v2942 = vrot.slane %v2922, 1
      %v2943 = vsel %vm2936, %v2940, %v2942
      %v2944 = vrot.slane %v2923, 1
      %v2945 = vsel %vm2936, %v2942, %v2944
      %v2946 = vrot.slane %v2924, 1
      %v2947 = vsel %vm2936, %v2944, %v2946
      %v2948 = vrot.slane %v2925, 1
      %v2949 = vsel %vm2936, %v2946, %v2948
      %v2950 = vrot.slane %v2926, 1
      %v2951 = vsel %vm2936, %v2948, %v2950
      %v2952 = vrot.slane %v2927, 1
      %v2953 = vsel %vm2936, %v2950, %v2952
      %v2954 = vrot.slane %v2928, 1
      %v2955 = vsel %vm2936, %v2952, %v2954
      %v2956 = vrot.slane %v2929, 1
      %v2957 = vsel %vm2936, %v2954, %v2956
      %v2958 = vrot.slane %v2930, 1
      %v2959 = vsel %vm2936, %v2956, %v2958
      %v2960 = vrot.slane %v2931, 1
      %v2961 = vsel %vm2936, %v2958, %v2960
      %v2962 = vrot.slane %v2932, 1
      %v2963 = vsel %vm2936, %v2960, %v2962
      %v2964 = vrot.slane %v2933, 1
      %v2965 = vsel %vm2936, %v2962, %v2964
      %v2966 = vrot.slane %v2934, 1
      %v2967 = vsel %vm2936, %v2964, %v2966
      %v2968 = vrot.slane %v2935, 1
      %v2969 = vsel %vm2936, %v2966, %v2968
      %v2971 = vsel %vm1731, %v2939, 0
      %v2974 = vsel %vm1731, %v2941, 0
      %v2977 = vsel %vm1731, %v2943, 0
      %v2980 = vsel %vm1731, %v2945, 0
      %v2983 = vsel %vm1731, %v2947, 0
      %v2986 = vsel %vm1731, %v2949, 0
      %v2989 = vsel %vm1731, %v2951, 0
      %v2992 = vsel %vm1731, %v2953, 0
      %v2995 = vsel %vm1731, %v2955, 0
      %v2998 = vsel %vm1731, %v2957, 0
      %v3001 = vsel %vm1731, %v2959, 0
      %v3004 = vsel %vm1731, %v2961, 0
      %v3007 = vsel %vm1731, %v2963, 0
      %v3010 = vsel %vm1731, %v2965, 0
      %v3013 = vsel %vm1731, %v2967, 0
      %v3016 = vsel %vm1731, %v2969, 0
      %v3019 = vsel %vm1780, %v2852, 0
      %3021 = vmatprep.subr.bf16.mxu0 0
      %3022 = vmatpush1.bf16.msra.mxu0 %v3019
      %3023 = vmatprep.subr.bf16.mxu0 0
      %3024 = vmatpush1.bf16.msra.mxu0 0
      %3025 = vmatprep.subr.bf16.mxu0 0
      %3026 = vmatpush1.bf16.msra.mxu0 0
      %3027 = vmatprep.subr.bf16.mxu0 0
      %3028 = vmatpush1.bf16.msra.mxu0 0
      %3029 = vmatprep.subr.bf16.mxu0 0
      %3030 = vmatpush1.bf16.msra.mxu0 0
      %3031 = vmatprep.subr.bf16.mxu0 0
      %3032 = vmatpush1.bf16.msra.mxu0 0
      %3033 = vmatprep.subr.bf16.mxu0 0
      %3034 = vmatpush1.bf16.msra.mxu0 0
      %3035 = vmatprep.subr.bf16.mxu0 0
      %3036 = vmatpush1.bf16.msra.mxu0 0
      %3037 = vmatprep.subr.bf16.mxu0 0
      %3038 = vmatpush1.bf16.msra.mxu0 0
      %3039 = vmatprep.subr.bf16.mxu0 0
      %3040 = vmatpush1.bf16.msra.mxu0 0
      %3041 = vmatprep.subr.bf16.mxu0 0
      %3042 = vmatpush1.bf16.msra.mxu0 0
      %3043 = vmatprep.subr.bf16.mxu0 0
      %3044 = vmatpush1.bf16.msra.mxu0 0
      %3045 = vmatprep.subr.bf16.mxu0 0
      %3046 = vmatpush1.bf16.msra.mxu0 0
      %3047 = vmatprep.subr.bf16.mxu0 0
      %3048 = vmatpush1.bf16.msra.mxu0 0
      %3049 = vmatprep.subr.bf16.mxu0 0
      %3050 = vmatpush1.bf16.msra.mxu0 0
      %3051 = vmatprep.subr.bf16.mxu0 0
      %3052 = vmatpush1.bf16.msra.mxu0 0
      %3053 = vmatprep.mubr.bf16.mxu0 0
      %3054 = vmatmul.mubr.bf16.gmra.mrb[0].mxu0 %v2971
      %v3055 = vpop.f32.mrb[0].mxu0
      %v3056 = vadd.f32 0.0, %v3055
      %v3057 = vpop.f32.mrb[0].mxu0
      %v3058 = vpop.f32.mrb[0].mxu0
      %v3059 = vadd.f32 0.0, %v3058
      %v3060 = vpop.f32.mrb[0].mxu0
      %3061 = vmatprep.mubr.bf16.mxu0 0
      %3062 = vmatmul.mubr.bf16.gmra.mrb[0].mxu0 %v2974
      %v3063 = vpop.f32.mrb[0].mxu0
      %v3064 = vadd.f32 0.0, %v3063
      %v3065 = vpop.f32.mrb[0].mxu0
      %v3066 = vpop.f32.mrb[0].mxu0
      %v3067 = vadd.f32 0.0, %v3066
      %v3068 = vpop.f32.mrb[0].mxu0
      %3069 = vmatprep.mubr.bf16.mxu0 0
      %3070 = vmatmul.mubr.bf16.gmra.mrb[0].mxu0 %v2977
      %v3071 = vpop.f32.mrb[0].mxu0
      %v3072 = vadd.f32 0.0, %v3071
      %v3073 = vpop.f32.mrb[0].mxu0
      %v3074 = vpop.f32.mrb[0].mxu0
      %v3075 = vadd.f32 0.0, %v3074
      %v3076 = vpop.f32.mrb[0].mxu0
      %3077 = vmatprep.mubr.bf16.mxu0 0
      %3078 = vmatmul.mubr.bf16.gmra.mrb[0].mxu0 %v2980
      %v3079 = vpop.f32.mrb[0].mxu0
      %v3080 = vadd.f32 0.0, %v3079
      %v3081 = vpop.f32.mrb[0].mxu0
      %v3082 = vpop.f32.mrb[0].mxu0
      %v3083 = vadd.f32 0.0, %v3082
      %v3084 = vpop.f32.mrb[0].mxu0
      %3085 = vmatprep.mubr.bf16.mxu0 0
      %3086 = vmatmul.mubr.bf16.gmra.mrb[0].mxu0 %v2983
      %v3087 = vpop.f32.mrb[0].mxu0
      %v3088 = vadd.f32 0.0, %v3087
      %v3089 = vpop.f32.mrb[0].mxu0
      %v3090 = vpop.f32.mrb[0].mxu0
      %v3091 = vadd.f32 0.0, %v3090
      %v3092 = vpop.f32.mrb[0].mxu0
      %3093 = vmatprep.mubr.bf16.mxu0 0
      %3094 = vmatmul.mubr.bf16.gmra.mrb[0].mxu0 %v2986
      %v3095 = vpop.f32.mrb[0].mxu0
      %v3096 = vadd.f32 0.0, %v3095
      %v3097 = vpop.f32.mrb[0].mxu0
      %v3098 = vpop.f32.mrb[0].mxu0
      %v3099 = vadd.f32 0.0, %v3098
      %v3100 = vpop.f32.mrb[0].mxu0
      %3101 = vmatprep.mubr.bf16.mxu0 0
      %3102 = vmatmul.mubr.bf16.gmra.mrb[0].mxu0 %v2989
      %v3103 = vpop.f32.mrb[0].mxu0
      %v3104 = vadd.f32 0.0, %v3103
      %v3105 = vpop.f32.mrb[0].mxu0
      %v3106 = vpop.f32.mrb[0].mxu0
      %v3107 = vadd.f32 0.0, %v3106
      %v3108 = vpop.f32.mrb[0].mxu0
      %3109 = vmatprep.mubr.bf16.mxu0 0
      %3110 = vmatmul.mubr.bf16.gmra.mrb[0].mxu0 %v2992
      %v3111 = vpop.f32.mrb[0].mxu0
      %v3112 = vadd.f32 0.0, %v3111
      %v3113 = vpop.f32.mrb[0].mxu0
      %v3114 = vpop.f32.mrb[0].mxu0
      %v3115 = vadd.f32 0.0, %v3114
      %v3116 = vpop.f32.mrb[0].mxu0
      %3117 = vmatprep.mubr.bf16.mxu0 0
      %3118 = vmatmul.mubr.bf16.gmra.mrb[0].mxu0 %v2995
      %v3119 = vpop.f32.mrb[0].mxu0
      %v3120 = vadd.f32 0.0, %v3119
      %v3121 = vpop.f32.mrb[0].mxu0
      %v3122 = vpop.f32.mrb[0].mxu0
      %v3123 = vadd.f32 0.0, %v3122
      %v3124 = vpop.f32.mrb[0].mxu0
      %3125 = vmatprep.mubr.bf16.mxu0 0
      %3126 = vmatmul.mubr.bf16.gmra.mrb[0].mxu0 %v2998
      %v3127 = vpop.f32.mrb[0].mxu0
      %v3128 = vadd.f32 0.0, %v3127
      %v3129 = vpop.f32.mrb[0].mxu0
      %v3130 = vpop.f32.mrb[0].mxu0
      %v3131 = vadd.f32 0.0, %v3130
      %v3132 = vpop.f32.mrb[0].mxu0
      %3133 = vmatprep.mubr.bf16.mxu0 0
      %3134 = vmatmul.mubr.bf16.gmra.mrb[0].mxu0 %v3001
      %v3135 = vpop.f32.mrb[0].mxu0
      %v3136 = vadd.f32 0.0, %v3135
      %v3137 = vpop.f32.mrb[0].mxu0
      %v3138 = vpop.f32.mrb[0].mxu0
      %v3139 = vadd.f32 0.0, %v3138
      %v3140 = vpop.f32.mrb[0].mxu0
      %3141 = vmatprep.mubr.bf16.mxu0 0
      %3142 = vmatmul.mubr.bf16.gmra.mrb[0].mxu0 %v3004
      %v3143 = vpop.f32.mrb[0].mxu0
      %v3144 = vadd.f32 0.0, %v3143
      %v3145 = vpop.f32.mrb[0].mxu0
      %v3146 = vpop.f32.mrb[0].mxu0
      %v3147 = vadd.f32 0.0, %v3146
      %v3148 = vpop.f32.mrb[0].mxu0
      %3149 = vmatprep.mubr.bf16.mxu0 0
      %3150 = vmatmul.mubr.bf16.gmra.mrb[0].mxu0 %v3007
      %v3151 = vpop.f32.mrb[0].mxu0
      %v3152 = vadd.f32 0.0, %v3151
      %v3153 = vpop.f32.mrb[0].mxu0
      %v3154 = vpop.f32.mrb[0].mxu0
      %v3155 = vadd.f32 0.0, %v3154
      %v3156 = vpop.f32.mrb[0].mxu0
      %3157 = vmatprep.mubr.bf16.mxu0 0
      %3158 = vmatmul.mubr.bf16.gmra.mrb[0].mxu0 %v3010
      %v3159 = vpop.f32.mrb[0].mxu0
      %v3160 = vadd.f32 0.0, %v3159
      %v3161 = vpop.f32.mrb[0].mxu0
      %v3162 = vpop.f32.mrb[0].mxu0
      %v3163 = vadd.f32 0.0, %v3162
      %v3164 = vpop.f32.mrb[0].mxu0
      %3165 = vmatprep.mubr.bf16.mxu0 0
      %3166 = vmatmul.mubr.bf16.gmra.mrb[0].mxu0 %v3013
      %v3167 = vpop.f32.mrb[0].mxu0
      %v3168 = vadd.f32 0.0, %v3167
      %v3169 = vpop.f32.mrb[0].mxu0
      %v3170 = vpop.f32.mrb[0].mxu0
      %v3171 = vadd.f32 0.0, %v3170
      %v3172 = vpop.f32.mrb[0].mxu0
      %3173 = vmatprep.mubr.bf16.mxu0 0
      %3174 = vmatmul.mubr.bf16.gmra.mrb[0].mxu0 %v3016
      %v3175 = vpop.f32.mrb[0].mxu0
      %v3176 = vadd.f32 0.0, %v3175
      %v3177 = vpop.f32.mrb[0].mxu0
      %v3178 = vpop.f32.mrb[0].mxu0
      %v3179 = vadd.f32 0.0, %v3178
      %v3180 = vpop.f32.mrb[0].mxu0
      %3181 = vdwg.mxu0
      %v3182 = vadd.f32 %v2111, %v3056
      %v3183 = vadd.f32 %v2114, %v3059
      %v3184 = vadd.f32 %v2119, %v3064
      %v3185 = vadd.f32 %v2122, %v3067
      %v3186 = vadd.f32 %v2127, %v3072
      %v3187 = vadd.f32 %v2130, %v3075
      %v3188 = vadd.f32 %v2135, %v3080
      %v3189 = vadd.f32 %v2138, %v3083
      %v3190 = vadd.f32 %v2143, %v3088
      %v3191 = vadd.f32 %v2146, %v3091
      %v3192 = vadd.f32 %v2151, %v3096
      %v3193 = vadd.f32 %v2154, %v3099
      %v3194 = vadd.f32 %v2159, %v3104
      %v3195 = vadd.f32 %v2162, %v3107
      %v3196 = vadd.f32 %v2167, %v3112
      %v3197 = vadd.f32 %v2170, %v3115
      %v3198 = vadd.f32 %v2175, %v3120
      %v3199 = vadd.f32 %v2178, %v3123
      %v3200 = vadd.f32 %v2183, %v3128
      %v3201 = vadd.f32 %v2186, %v3131
      %v3202 = vadd.f32 %v2191, %v3136
      %v3203 = vadd.f32 %v2194, %v3139
      %v3204 = vadd.f32 %v2199, %v3144
      %v3205 = vadd.f32 %v2202, %v3147
      %v3206 = vadd.f32 %v2207, %v3152
      %v3207 = vadd.f32 %v2210, %v3155
      %v3208 = vadd.f32 %v2215, %v3160
      %v3209 = vadd.f32 %v2218, %v3163
      %v3210 = vadd.f32 %v2223, %v3168
      %v3211 = vadd.f32 %v2226, %v3171
      %v3212 = vadd.f32 %v2231, %v3176
      %v3213 = vadd.f32 %v2234, %v3179
      %v3214 = vld [vmem:[%s219 + $0x8] sm:$0xf]
      %v3215 = vld [vmem:[%s219 + $0xc] sm:$0xf]
      %v3216 = vld [vmem:[%s219 + $0x10] sm:$0xf]
      %v3217 = vld [vmem:[%s219 + $0x14] sm:$0xf]
      %v3218 = vld [vmem:[%s219 + $0x18] sm:$0xf]
      %v3219 = vld [vmem:[%s219 + $0x1c] sm:$0xf]
      %v3220 = vld [vmem:[%s219 + $0x20] sm:$0xf]
      %v3221 = vld [vmem:[%s219 + $0x24] sm:$0xf]
      %v3222 = vld [vmem:[%s219 + $0x28] sm:$0xf]
      %v3223 = vld [vmem:[%s219 + $0x2c] sm:$0xf]
      %v3224 = vld [vmem:[%s219 + $0x30] sm:$0xf]
      %v3225 = vld [vmem:[%s219 + $0x34] sm:$0xf]
      %v3226 = vld [vmem:[%s219 + $0x38] sm:$0xf]
      %v3227 = vld [vmem:[%s219 + $0x3c] sm:$0xf]
      %v3228 = vld [vmem:[%s219 + $0x40] sm:$0xf]
      %v3229 = vld [vmem:[%s219 + $0x44] sm:$0xf]
      %v3230 = vld [vmem:[%s219 + $0x48] sm:$0xf]
      %v3231 = vld [vmem:[%s219 + $0x4c] sm:$0xf]
      %v3232 = vld [vmem:[%s219 + $0x50] sm:$0xf]
      %v3233 = vld [vmem:[%s219 + $0x54] sm:$0xf]
      %v3234 = vld [vmem:[%s219 + $0x58] sm:$0xf]
      %v3235 = vld [vmem:[%s219 + $0x5c] sm:$0xf]
      %v3236 = vld [vmem:[%s219 + $0x60] sm:$0xf]
      %v3237 = vld [vmem:[%s219 + $0x64] sm:$0xf]
      %v3238 = vld [vmem:[%s219 + $0x68] sm:$0xf]
      %v3239 = vld [vmem:[%s219 + $0x6c] sm:$0xf]
      %v3240 = vld [vmem:[%s219 + $0x70] sm:$0xf]
      %v3241 = vld [vmem:[%s219 + $0x74] sm:$0xf]
      %v3242 = vld [vmem:[%s219 + $0x78] sm:$0xf]
      %v3243 = vld [vmem:[%s219 + $0x7c] sm:$0xf]
      %v3244 = vld [vmem:[%s219 + $0x80] sm:$0xf]
      %v3245 = vld [vmem:[%s219 + $0x84] sm:$0xf]
      %s3246 = scalar_lea.vmem %s2, 384
      %v3247 = vld [vmem:[%s3246] sm:$0xf]
      %v3248 = vld [vmem:[%s3246 + $0x4] sm:$0xf]
      %v3249 = vld [vmem:[%s3246 + $0x8] sm:$0xf]
      %v3250 = vld [vmem:[%s3246 + $0xc] sm:$0xf]
      %v3251 = vld [vmem:[%s3246 + $0x10] sm:$0xf]
      %v3252 = vld [vmem:[%s3246 + $0x14] sm:$0xf]
      %v3253 = vld [vmem:[%s3246 + $0x18] sm:$0xf]
      %v3254 = vld [vmem:[%s3246 + $0x1c] sm:$0xf]
      %v3255 = vld [vmem:[%s3246 + $0x20] sm:$0xf]
      %v3256 = vld [vmem:[%s3246 + $0x24] sm:$0xf]
      %v3257 = vld [vmem:[%s3246 + $0x28] sm:$0xf]
      %v3258 = vld [vmem:[%s3246 + $0x2c] sm:$0xf]
      %v3259 = vld [vmem:[%s3246 + $0x30] sm:$0xf]
      %v3260 = vld [vmem:[%s3246 + $0x34] sm:$0xf]
      %v3261 = vld [vmem:[%s3246 + $0x38] sm:$0xf]
      %v3262 = vld [vmem:[%s3246 + $0x3c] sm:$0xf]
      %v3263 = vld [vmem:[%s3246 + $0x40] sm:$0xf]
      %v3264 = vld [vmem:[%s3246 + $0x44] sm:$0xf]
      %v3265 = vld [vmem:[%s3246 + $0x48] sm:$0xf]
      %v3266 = vld [vmem:[%s3246 + $0x4c] sm:$0xf]
      %v3267 = vld [vmem:[%s3246 + $0x50] sm:$0xf]
      %v3268 = vld [vmem:[%s3246 + $0x54] sm:$0xf]
      %v3269 = vld [vmem:[%s3246 + $0x58] sm:$0xf]
      %v3270 = vld [vmem:[%s3246 + $0x5c] sm:$0xf]
      %v3271 = vld [vmem:[%s3246 + $0x60] sm:$0xf]
      %v3272 = vld [vmem:[%s3246 + $0x64] sm:$0xf]
      %v3273 = vld [vmem:[%s3246 + $0x68] sm:$0xf]
      %v3274 = vld [vmem:[%s3246 + $0x6c] sm:$0xf]
      %v3275 = vld [vmem:[%s3246 + $0x70] sm:$0xf]
      %v3276 = vld [vmem:[%s3246 + $0x74] sm:$0xf]
      %v3277 = vld [vmem:[%s3246 + $0x78] sm:$0xf]
      %v3278 = vld [vmem:[%s3246 + $0x7c] sm:$0xf]
      %3280 = vset.pattern.permute.xlu0 0
      %3281 = vperm.xlu0 %3280, %v3247
      %v3282 = vpop.permute.xlu0 %3281
      %v3285 = vunpack.c.l.s4 839922192
      %v3286 = vunpack.c.0.s8 %v3285
      %v3287 = vlaneseq
      %v3288 = vshrl.u32 %v3287, 7
      %v3289 = vsub.s32 %v3286, %v3288
      %v3290 = vrot.slane %v3282, %v3289
      %3292 = vset.pattern.permute.xlu0 0
      %3293 = vperm.xlu0 %3292, %v3248
      %v3294 = vpop.permute.xlu0 %3293
      %v3297 = vunpack.c.l.s4 839922192
      %v3298 = vunpack.c.0.s8 %v3297
      %v3299 = vlaneseq
      %v3300 = vshrl.u32 %v3299, 7
      %v3301 = vsub.s32 %v3298, %v3300
      %v3302 = vrot.slane %v3294, %v3301
      %3304 = vset.pattern.permute.xlu0 0
      %3305 = vperm.xlu0 %3304, %v3249
      %v3306 = vpop.permute.xlu0 %3305
      %v3309 = vunpack.c.l.s4 839922192
      %v3310 = vunpack.c.0.s8 %v3309
      %v3311 = vlaneseq
      %v3312 = vshrl.u32 %v3311, 7
      %v3313 = vsub.s32 %v3310, %v3312
      %v3314 = vrot.slane %v3306, %v3313
      %3316 = vset.pattern.permute.xlu0 0
      %3317 = vperm.xlu0 %3316, %v3250
      %v3318 = vpop.permute.xlu0 %3317
      %v3321 = vunpack.c.l.s4 839922192
      %v3322 = vunpack.c.0.s8 %v3321
      %v3323 = vlaneseq
      %v3324 = vshrl.u32 %v3323, 7
      %v3325 = vsub.s32 %v3322, %v3324
      %v3326 = vrot.slane %v3318, %v3325
      %3328 = vset.pattern.permute.xlu0 0
      %3329 = vperm.xlu0 %3328, %v3251
      %v3330 = vpop.permute.xlu0 %3329
      %v3333 = vunpack.c.l.s4 839922192
      %v3334 = vunpack.c.0.s8 %v3333
      %v3335 = vlaneseq
      %v3336 = vshrl.u32 %v3335, 7
      %v3337 = vsub.s32 %v3334, %v3336
      %v3338 = vrot.slane %v3330, %v3337
      %3340 = vset.pattern.permute.xlu0 0
      %3341 = vperm.xlu0 %3340, %v3252
      %v3342 = vpop.permute.xlu0 %3341
      %v3345 = vunpack.c.l.s4 839922192
      %v3346 = vunpack.c.0.s8 %v3345
      %v3347 = vlaneseq
      %v3348 = vshrl.u32 %v3347, 7
      %v3349 = vsub.s32 %v3346, %v3348
      %v3350 = vrot.slane %v3342, %v3349
      %3352 = vset.pattern.permute.xlu0 0
      %3353 = vperm.xlu0 %3352, %v3253
      %v3354 = vpop.permute.xlu0 %3353
      %v3357 = vunpack.c.l.s4 839922192
      %v3358 = vunpack.c.0.s8 %v3357
      %v3359 = vlaneseq
      %v3360 = vshrl.u32 %v3359, 7
      %v3361 = vsub.s32 %v3358, %v3360
      %v3362 = vrot.slane %v3354, %v3361
      %3364 = vset.pattern.permute.xlu0 0
      %3365 = vperm.xlu0 %3364, %v3254
      %v3366 = vpop.permute.xlu0 %3365
      %v3369 = vunpack.c.l.s4 839922192
      %v3370 = vunpack.c.0.s8 %v3369
      %v3371 = vlaneseq
      %v3372 = vshrl.u32 %v3371, 7
      %v3373 = vsub.s32 %v3370, %v3372
      %v3374 = vrot.slane %v3366, %v3373
      %3376 = vset.pattern.permute.xlu0 0
      %3377 = vperm.xlu0 %3376, %v3255
      %v3378 = vpop.permute.xlu0 %3377
      %v3381 = vunpack.c.l.s4 839922192
      %v3382 = vunpack.c.0.s8 %v3381
      %v3383 = vlaneseq
      %v3384 = vshrl.u32 %v3383, 7
      %v3385 = vsub.s32 %v3382, %v3384
      %v3386 = vrot.slane %v3378, %v3385
      %3388 = vset.pattern.permute.xlu0 0
      %3389 = vperm.xlu0 %3388, %v3256
      %v3390 = vpop.permute.xlu0 %3389
      %v3393 = vunpack.c.l.s4 839922192
      %v3394 = vunpack.c.0.s8 %v3393
      %v3395 = vlaneseq
      %v3396 = vshrl.u32 %v3395, 7
      %v3397 = vsub.s32 %v3394, %v3396
      %v3398 = vrot.slane %v3390, %v3397
      %3400 = vset.pattern.permute.xlu0 0
      %3401 = vperm.xlu0 %3400, %v3257
      %v3402 = vpop.permute.xlu0 %3401
      %v3405 = vunpack.c.l.s4 839922192
      %v3406 = vunpack.c.0.s8 %v3405
      %v3407 = vlaneseq
      %v3408 = vshrl.u32 %v3407, 7
      %v3409 = vsub.s32 %v3406, %v3408
      %v3410 = vrot.slane %v3402, %v3409
      %3412 = vset.pattern.permute.xlu0 0
      %3413 = vperm.xlu0 %3412, %v3258
      %v3414 = vpop.permute.xlu0 %3413
      %v3417 = vunpack.c.l.s4 839922192
      %v3418 = vunpack.c.0.s8 %v3417
      %v3419 = vlaneseq
      %v3420 = vshrl.u32 %v3419, 7
      %v3421 = vsub.s32 %v3418, %v3420
      %v3422 = vrot.slane %v3414, %v3421
      %3424 = vset.pattern.permute.xlu0 0
      %3425 = vperm.xlu0 %3424, %v3259
      %v3426 = vpop.permute.xlu0 %3425
      %v3429 = vunpack.c.l.s4 839922192
      %v3430 = vunpack.c.0.s8 %v3429
      %v3431 = vlaneseq
      %v3432 = vshrl.u32 %v3431, 7
      %v3433 = vsub.s32 %v3430, %v3432
      %v3434 = vrot.slane %v3426, %v3433
      %3436 = vset.pattern.permute.xlu0 0
      %3437 = vperm.xlu0 %3436, %v3260
      %v3438 = vpop.permute.xlu0 %3437
      %v3441 = vunpack.c.l.s4 839922192
      %v3442 = vunpack.c.0.s8 %v3441
      %v3443 = vlaneseq
      %v3444 = vshrl.u32 %v3443, 7
      %v3445 = vsub.s32 %v3442, %v3444
      %v3446 = vrot.slane %v3438, %v3445
      %3448 = vset.pattern.permute.xlu0 0
      %3449 = vperm.xlu0 %3448, %v3261
      %v3450 = vpop.permute.xlu0 %3449
      %v3453 = vunpack.c.l.s4 839922192
      %v3454 = vunpack.c.0.s8 %v3453
      %v3455 = vlaneseq
      %v3456 = vshrl.u32 %v3455, 7
      %v3457 = vsub.s32 %v3454, %v3456
      %v3458 = vrot.slane %v3450, %v3457
      %3460 = vset.pattern.permute.xlu0 0
      %3461 = vperm.xlu0 %3460, %v3262
      %v3462 = vpop.permute.xlu0 %3461
      %v3465 = vunpack.c.l.s4 839922192
      %v3466 = vunpack.c.0.s8 %v3465
      %v3467 = vlaneseq
      %v3468 = vshrl.u32 %v3467, 7
      %v3469 = vsub.s32 %v3466, %v3468
      %v3470 = vrot.slane %v3462, %v3469
      %3472 = vset.pattern.permute.xlu0 0
      %3473 = vperm.xlu0 %3472, %v3263
      %v3474 = vpop.permute.xlu0 %3473
      %v3477 = vunpack.c.l.s4 839922192
      %v3478 = vunpack.c.0.s8 %v3477
      %v3479 = vlaneseq
      %v3480 = vshrl.u32 %v3479, 7
      %v3481 = vsub.s32 %v3478, %v3480
      %v3482 = vrot.slane %v3474, %v3481
      %3484 = vset.pattern.permute.xlu0 0
      %3485 = vperm.xlu0 %3484, %v3264
      %v3486 = vpop.permute.xlu0 %3485
      %v3489 = vunpack.c.l.s4 839922192
      %v3490 = vunpack.c.0.s8 %v3489
      %v3491 = vlaneseq
      %v3492 = vshrl.u32 %v3491, 7
      %v3493 = vsub.s32 %v3490, %v3492
      %v3494 = vrot.slane %v3486, %v3493
      %3496 = vset.pattern.permute.xlu0 0
      %3497 = vperm.xlu0 %3496, %v3265
      %v3498 = vpop.permute.xlu0 %3497
      %v3501 = vunpack.c.l.s4 839922192
      %v3502 = vunpack.c.0.s8 %v3501
      %v3503 = vlaneseq
      %v3504 = vshrl.u32 %v3503, 7
      %v3505 = vsub.s32 %v3502, %v3504
      %v3506 = vrot.slane %v3498, %v3505
      %3508 = vset.pattern.permute.xlu0 0
      %3509 = vperm.xlu0 %3508, %v3266
      %v3510 = vpop.permute.xlu0 %3509
      %v3513 = vunpack.c.l.s4 839922192
      %v3514 = vunpack.c.0.s8 %v3513
      %v3515 = vlaneseq
      %v3516 = vshrl.u32 %v3515, 7
      %v3517 = vsub.s32 %v3514, %v3516
      %v3518 = vrot.slane %v3510, %v3517
      %3520 = vset.pattern.permute.xlu0 0
      %3521 = vperm.xlu0 %3520, %v3267
      %v3522 = vpop.permute.xlu0 %3521
      %v3525 = vunpack.c.l.s4 839922192
      %v3526 = vunpack.c.0.s8 %v3525
      %v3527 = vlaneseq
      %v3528 = vshrl.u32 %v3527, 7
      %v3529 = vsub.s32 %v3526, %v3528
      %v3530 = vrot.slane %v3522, %v3529
      %3532 = vset.pattern.permute.xlu0 0
      %3533 = vperm.xlu0 %3532, %v3268
      %v3534 = vpop.permute.xlu0 %3533
      %v3537 = vunpack.c.l.s4 839922192
      %v3538 = vunpack.c.0.s8 %v3537
      %v3539 = vlaneseq
      %v3540 = vshrl.u32 %v3539, 7
      %v3541 = vsub.s32 %v3538, %v3540
      %v3542 = vrot.slane %v3534, %v3541
      %3544 = vset.pattern.permute.xlu0 0
      %3545 = vperm.xlu0 %3544, %v3269
      %v3546 = vpop.permute.xlu0 %3545
      %v3549 = vunpack.c.l.s4 839922192
      %v3550 = vunpack.c.0.s8 %v3549
      %v3551 = vlaneseq
      %v3552 = vshrl.u32 %v3551, 7
      %v3553 = vsub.s32 %v3550, %v3552
      %v3554 = vrot.slane %v3546, %v3553
      %3556 = vset.pattern.permute.xlu0 0
      %3557 = vperm.xlu0 %3556, %v3270
      %v3558 = vpop.permute.xlu0 %3557
      %v3561 = vunpack.c.l.s4 839922192
      %v3562 = vunpack.c.0.s8 %v3561
      %v3563 = vlaneseq
      %v3564 = vshrl.u32 %v3563, 7
      %v3565 = vsub.s32 %v3562, %v3564
      %v3566 = vrot.slane %v3558, %v3565
      %3568 = vset.pattern.permute.xlu0 0
      %3569 = vperm.xlu0 %3568, %v3271
      %v3570 = vpop.permute.xlu0 %3569
      %v3573 = vunpack.c.l.s4 839922192
      %v3574 = vunpack.c.0.s8 %v3573
      %v3575 = vlaneseq
      %v3576 = vshrl.u32 %v3575, 7
      %v3577 = vsub.s32 %v3574, %v3576
      %v3578 = vrot.slane %v3570, %v3577
      %3580 = vset.pattern.permute.xlu0 0
      %3581 = vperm.xlu0 %3580, %v3272
      %v3582 = vpop.permute.xlu0 %3581
      %v3585 = vunpack.c.l.s4 839922192
      %v3586 = vunpack.c.0.s8 %v3585
      %v3587 = vlaneseq
      %v3588 = vshrl.u32 %v3587, 7
      %v3589 = vsub.s32 %v3586, %v3588
      %v3590 = vrot.slane %v3582, %v3589
      %3592 = vset.pattern.permute.xlu0 0
      %3593 = vperm.xlu0 %3592, %v3273
      %v3594 = vpop.permute.xlu0 %3593
      %v3597 = vunpack.c.l.s4 839922192
      %v3598 = vunpack.c.0.s8 %v3597
      %v3599 = vlaneseq
      %v3600 = vshrl.u32 %v3599, 7
      %v3601 = vsub.s32 %v3598, %v3600
      %v3602 = vrot.slane %v3594, %v3601
      %3604 = vset.pattern.permute.xlu0 0
      %3605 = vperm.xlu0 %3604, %v3274
      %v3606 = vpop.permute.xlu0 %3605
      %v3609 = vunpack.c.l.s4 839922192
      %v3610 = vunpack.c.0.s8 %v3609
      %v3611 = vlaneseq
      %v3612 = vshrl.u32 %v3611, 7
      %v3613 = vsub.s32 %v3610, %v3612
      %v3614 = vrot.slane %v3606, %v3613
      %3616 = vset.pattern.permute.xlu0 0
      %3617 = vperm.xlu0 %3616, %v3275
      %v3618 = vpop.permute.xlu0 %3617
      %v3621 = vunpack.c.l.s4 839922192
      %v3622 = vunpack.c.0.s8 %v3621
      %v3623 = vlaneseq
      %v3624 = vshrl.u32 %v3623, 7
      %v3625 = vsub.s32 %v3622, %v3624
      %v3626 = vrot.slane %v3618, %v3625
      %3628 = vset.pattern.permute.xlu0 0
      %3629 = vperm.xlu0 %3628, %v3276
      %v3630 = vpop.permute.xlu0 %3629
      %v3633 = vunpack.c.l.s4 839922192
      %v3634 = vunpack.c.0.s8 %v3633
      %v3635 = vlaneseq
      %v3636 = vshrl.u32 %v3635, 7
      %v3637 = vsub.s32 %v3634, %v3636
      %v3638 = vrot.slane %v3630, %v3637
      %3640 = vset.pattern.permute.xlu0 0
      %3641 = vperm.xlu0 %3640, %v3277
      %v3642 = vpop.permute.xlu0 %3641
      %v3645 = vunpack.c.l.s4 839922192
      %v3646 = vunpack.c.0.s8 %v3645
      %v3647 = vlaneseq
      %v3648 = vshrl.u32 %v3647, 7
      %v3649 = vsub.s32 %v3646, %v3648
      %v3650 = vrot.slane %v3642, %v3649
      %3652 = vset.pattern.permute.xlu0 0
      %3653 = vperm.xlu0 %3652, %v3278
      %v3654 = vpop.permute.xlu0 %3653
      %v3657 = vunpack.c.l.s4 839922192
      %v3658 = vunpack.c.0.s8 %v3657
      %v3659 = vlaneseq
      %v3660 = vshrl.u32 %v3659, 7
      %v3661 = vsub.s32 %v3658, %v3660
      %v3662 = vrot.slane %v3654, %v3661
      %v3663 = vmul.bf16 %v3214, %v3290
      %v3664 = vmul.bf16 %v3215, %v3302
      %v3665 = vmul.bf16 %v3216, %v3314
      %v3666 = vmul.bf16 %v3217, %v3326
      %v3667 = vmul.bf16 %v3218, %v3338
      %v3668 = vmul.bf16 %v3219, %v3350
      %v3669 = vmul.bf16 %v3220, %v3362
      %v3670 = vmul.bf16 %v3221, %v3374
      %v3671 = vmul.bf16 %v3222, %v3386
      %v3672 = vmul.bf16 %v3223, %v3398
      %v3673 = vmul.bf16 %v3224, %v3410
      %v3674 = vmul.bf16 %v3225, %v3422
      %v3675 = vmul.bf16 %v3226, %v3434
      %v3676 = vmul.bf16 %v3227, %v3446
      %v3677 = vmul.bf16 %v3228, %v3458
      %v3678 = vmul.bf16 %v3229, %v3470
      %v3679 = vmul.bf16 %v3230, %v3482
      %v3680 = vmul.bf16 %v3231, %v3494
      %v3681 = vmul.bf16 %v3232, %v3506
      %v3682 = vmul.bf16 %v3233, %v3518
      %v3683 = vmul.bf16 %v3234, %v3530
      %v3684 = vmul.bf16 %v3235, %v3542
      %v3685 = vmul.bf16 %v3236, %v3554
      %v3686 = vmul.bf16 %v3237, %v3566
      %v3687 = vmul.bf16 %v3238, %v3578
      %v3688 = vmul.bf16 %v3239, %v3590
      %v3689 = vmul.bf16 %v3240, %v3602
      %v3690 = vmul.bf16 %v3241, %v3614
      %v3691 = vmul.bf16 %v3242, %v3626
      %v3692 = vmul.bf16 %v3243, %v3638
      %v3693 = vmul.bf16 %v3244, %v3650
      %v3694 = vmul.bf16 %v3245, %v3662
      %s3695 = scalar_lea.vmem %s1, 6
      %v3696 = vld [vmem:[%s3695] sm:$0x3]
      %v3729 = vunpack.c.l.b16 %v3663
      %v3730 = vunpack.c.l.b16 %v3664
      %v3731 = vunpack.c.l.b16 %v3665
      %v3732 = vunpack.c.l.b16 %v3666
      %v3733 = vunpack.c.l.b16 %v3667
      %v3734 = vunpack.c.l.b16 %v3668
      %v3735 = vunpack.c.l.b16 %v3669
      %v3736 = vunpack.c.l.b16 %v3670
      %v3737 = vunpack.c.l.b16 %v3671
      %v3738 = vunpack.c.l.b16 %v3672
      %v3739 = vunpack.c.l.b16 %v3673
      %v3740 = vunpack.c.l.b16 %v3674
      %v3741 = vunpack.c.l.b16 %v3675
      %v3742 = vunpack.c.l.b16 %v3676
      %v3743 = vunpack.c.l.b16 %v3677
      %v3744 = vunpack.c.l.b16 %v3678
      %v3745 = vunpack.c.l.b16 %v3679
      %v3746 = vunpack.c.l.b16 %v3680
      %v3747 = vunpack.c.l.b16 %v3681
      %v3748 = vunpack.c.l.b16 %v3682
      %v3749 = vunpack.c.l.b16 %v3683
      %v3750 = vunpack.c.l.b16 %v3684
      %v3751 = vunpack.c.l.b16 %v3685
      %v3752 = vunpack.c.l.b16 %v3686
      %v3753 = vunpack.c.l.b16 %v3687
      %v3754 = vunpack.c.l.b16 %v3688
      %v3755 = vunpack.c.l.b16 %v3689
      %v3756 = vunpack.c.l.b16 %v3690
      %v3757 = vunpack.c.l.b16 %v3691
      %v3758 = vunpack.c.l.b16 %v3692
      %v3759 = vunpack.c.l.b16 %v3693
      %v3760 = vunpack.c.l.b16 %v3694
      %v3761 = vpack.c.b16 %v3730, %v3729
      %v3762 = vpack.c.b16 %v3732, %v3731
      %v3763 = vpack.c.b16 %v3734, %v3733
      %v3764 = vpack.c.b16 %v3736, %v3735
      %v3765 = vpack.c.b16 %v3738, %v3737
      %v3766 = vpack.c.b16 %v3740, %v3739
      %v3767 = vpack.c.b16 %v3742, %v3741
      %v3768 = vpack.c.b16 %v3744, %v3743
      %v3769 = vpack.c.b16 %v3746, %v3745
      %v3770 = vpack.c.b16 %v3748, %v3747
      %v3771 = vpack.c.b16 %v3750, %v3749
      %v3772 = vpack.c.b16 %v3752, %v3751
      %v3773 = vpack.c.b16 %v3754, %v3753
      %v3774 = vpack.c.b16 %v3756, %v3755
      %v3775 = vpack.c.b16 %v3758, %v3757
      %v3776 = vpack.c.b16 %v3760, %v3759
      %v3778 = vsel %vm1731, %v3761, 0
      %v3781 = vsel %vm1731, %v3762, 0
      %v3784 = vsel %vm1731, %v3763, 0
      %v3787 = vsel %vm1731, %v3764, 0
      %v3790 = vsel %vm1731, %v3765, 0
      %v3793 = vsel %vm1731, %v3766, 0
      %v3796 = vsel %vm1731, %v3767, 0
      %v3799 = vsel %vm1731, %v3768, 0
      %v3802 = vsel %vm1731, %v3769, 0
      %v3805 = vsel %vm1731, %v3770, 0
      %v3808 = vsel %vm1731, %v3771, 0
      %v3811 = vsel %vm1731, %v3772, 0
      %v3814 = vsel %vm1731, %v3773, 0
      %v3817 = vsel %vm1731, %v3774, 0
      %v3820 = vsel %vm1731, %v3775, 0
      %v3823 = vsel %vm1731, %v3776, 0
      %v3826 = vsel %vm1780, %v3696, 0
      %3828 = vmatprep.subr.bf16.mxu0 0
      %3829 = vmatpush1.bf16.msra.mxu0 %v3826
      %3830 = vmatprep.subr.bf16.mxu0 0
      %3831 = vmatpush1.bf16.msra.mxu0 0
      %3832 = vmatprep.subr.bf16.mxu0 0
      %3833 = vmatpush1.bf16.msra.mxu0 0
      %3834 = vmatprep.subr.bf16.mxu0 0
      %3835 = vmatpush1.bf16.msra.mxu0 0
      %3836 = vmatprep.subr.bf16.mxu0 0
      %3837 = vmatpush1.bf16.msra.mxu0 0
      %3838 = vmatprep.subr.bf16.mxu0 0
      %3839 = vmatpush1.bf16.msra.mxu0 0
      %3840 = vmatprep.subr.bf16.mxu0 0
      %3841 = vmatpush1.bf16.msra.mxu0 0
      %3842 = vmatprep.subr.bf16.mxu0 0
      %3843 = vmatpush1.bf16.msra.mxu0 0
      %3844 = vmatprep.subr.bf16.mxu0 0
      %3845 = vmatpush1.bf16.msra.mxu0 0
      %3846 = vmatprep.subr.bf16.mxu0 0
      %3847 = vmatpush1.bf16.msra.mxu0 0
      %3848 = vmatprep.subr.bf16.mxu0 0
      %3849 = vmatpush1.bf16.msra.mxu0 0
      %3850 = vmatprep.subr.bf16.mxu0 0
      %3851 = vmatpush1.bf16.msra.mxu0 0
      %3852 = vmatprep.subr.bf16.mxu0 0
      %3853 = vmatpush1.bf16.msra.mxu0 0
      %3854 = vmatprep.subr.bf16.mxu0 0
      %3855 = vmatpush1.bf16.msra.mxu0 0
      %3856 = vmatprep.subr.bf16.mxu0 0
      %3857 = vmatpush1.bf16.msra.mxu0 0
      %3858 = vmatprep.subr.bf16.mxu0 0
      %3859 = vmatpush1.bf16.msra.mxu0 0
      %3860 = vmatprep.mubr.bf16.mxu0 0
      %3861 = vmatmul.mubr.bf16.gmra.mrb[0].mxu0 %v3778
      %v3862 = vpop.f32.mrb[0].mxu0
      %v3863 = vadd.f32 0.0, %v3862
      %v3864 = vpop.f32.mrb[0].mxu0
      %v3865 = vpop.f32.mrb[0].mxu0
      %v3866 = vadd.f32 0.0, %v3865
      %v3867 = vpop.f32.mrb[0].mxu0
      %3868 = vmatprep.mubr.bf16.mxu0 0
      %3869 = vmatmul.mubr.bf16.gmra.mrb[0].mxu0 %v3781
      %v3870 = vpop.f32.mrb[0].mxu0
      %v3871 = vadd.f32 0.0, %v3870
      %v3872 = vpop.f32.mrb[0].mxu0
      %v3873 = vpop.f32.mrb[0].mxu0
      %v3874 = vadd.f32 0.0, %v3873
      %v3875 = vpop.f32.mrb[0].mxu0
      %3876 = vmatprep.mubr.bf16.mxu0 0
      %3877 = vmatmul.mubr.bf16.gmra.mrb[0].mxu0 %v3784
      %v3878 = vpop.f32.mrb[0].mxu0
      %v3879 = vadd.f32 0.0, %v3878
      %v3880 = vpop.f32.mrb[0].mxu0
      %v3881 = vpop.f32.mrb[0].mxu0
      %v3882 = vadd.f32 0.0, %v3881
      %v3883 = vpop.f32.mrb[0].mxu0
      %3884 = vmatprep.mubr.bf16.mxu0 0
      %3885 = vmatmul.mubr.bf16.gmra.mrb[0].mxu0 %v3787
      %v3886 = vpop.f32.mrb[0].mxu0
      %v3887 = vadd.f32 0.0, %v3886
      %v3888 = vpop.f32.mrb[0].mxu0
      %v3889 = vpop.f32.mrb[0].mxu0
      %v3890 = vadd.f32 0.0, %v3889
      %v3891 = vpop.f32.mrb[0].mxu0
      %3892 = vmatprep.mubr.bf16.mxu0 0
      %3893 = vmatmul.mubr.bf16.gmra.mrb[0].mxu0 %v3790
      %v3894 = vpop.f32.mrb[0].mxu0
      %v3895 = vadd.f32 0.0, %v3894
      %v3896 = vpop.f32.mrb[0].mxu0
      %v3897 = vpop.f32.mrb[0].mxu0
      %v3898 = vadd.f32 0.0, %v3897
      %v3899 = vpop.f32.mrb[0].mxu0
      %3900 = vmatprep.mubr.bf16.mxu0 0
      %3901 = vmatmul.mubr.bf16.gmra.mrb[0].mxu0 %v3793
      %v3902 = vpop.f32.mrb[0].mxu0
      %v3903 = vadd.f32 0.0, %v3902
      %v3904 = vpop.f32.mrb[0].mxu0
      %v3905 = vpop.f32.mrb[0].mxu0
      %v3906 = vadd.f32 0.0, %v3905
      %v3907 = vpop.f32.mrb[0].mxu0
      %3908 = vmatprep.mubr.bf16.mxu0 0
      %3909 = vmatmul.mubr.bf16.gmra.mrb[0].mxu0 %v3796
      %v3910 = vpop.f32.mrb[0].mxu0
      %v3911 = vadd.f32 0.0, %v3910
      %v3912 = vpop.f32.mrb[0].mxu0
      %v3913 = vpop.f32.mrb[0].mxu0
      %v3914 = vadd.f32 0.0, %v3913
      %v3915 = vpop.f32.mrb[0].mxu0
      %3916 = vmatprep.mubr.bf16.mxu0 0
      %3917 = vmatmul.mubr.bf16.gmra.mrb[0].mxu0 %v3799
      %v3918 = vpop.f32.mrb[0].mxu0
      %v3919 = vadd.f32 0.0, %v3918
      %v3920 = vpop.f32.mrb[0].mxu0
      %v3921 = vpop.f32.mrb[0].mxu0
      %v3922 = vadd.f32 0.0, %v3921
      %v3923 = vpop.f32.mrb[0].mxu0
      %3924 = vmatprep.mubr.bf16.mxu0 0
      %3925 = vmatmul.mubr.bf16.gmra.mrb[0].mxu0 %v3802
      %v3926 = vpop.f32.mrb[0].mxu0
      %v3927 = vadd.f32 0.0, %v3926
      %v3928 = vpop.f32.mrb[0].mxu0
      %v3929 = vpop.f32.mrb[0].mxu0
      %v3930 = vadd.f32 0.0, %v3929
      %v3931 = vpop.f32.mrb[0].mxu0
      %3932 = vmatprep.mubr.bf16.mxu0 0
      %3933 = vmatmul.mubr.bf16.gmra.mrb[0].mxu0 %v3805
      %v3934 = vpop.f32.mrb[0].mxu0
      %v3935 = vadd.f32 0.0, %v3934
      %v3936 = vpop.f32.mrb[0].mxu0
      %v3937 = vpop.f32.mrb[0].mxu0
      %v3938 = vadd.f32 0.0, %v3937
      %v3939 = vpop.f32.mrb[0].mxu0
      %3940 = vmatprep.mubr.bf16.mxu0 0
      %3941 = vmatmul.mubr.bf16.gmra.mrb[0].mxu0 %v3808
      %v3942 = vpop.f32.mrb[0].mxu0
      %v3943 = vadd.f32 0.0, %v3942
      %v3944 = vpop.f32.mrb[0].mxu0
      %v3945 = vpop.f32.mrb[0].mxu0
      %v3946 = vadd.f32 0.0, %v3945
      %v3947 = vpop.f32.mrb[0].mxu0
      %3948 = vmatprep.mubr.bf16.mxu0 0
      %3949 = vmatmul.mubr.bf16.gmra.mrb[0].mxu0 %v3811
      %v3950 = vpop.f32.mrb[0].mxu0
      %v3951 = vadd.f32 0.0, %v3950
      %v3952 = vpop.f32.mrb[0].mxu0
      %v3953 = vpop.f32.mrb[0].mxu0
      %v3954 = vadd.f32 0.0, %v3953
      %v3955 = vpop.f32.mrb[0].mxu0
      %3956 = vmatprep.mubr.bf16.mxu0 0
      %3957 = vmatmul.mubr.bf16.gmra.mrb[0].mxu0 %v3814
      %v3958 = vpop.f32.mrb[0].mxu0
      %v3959 = vadd.f32 0.0, %v3958
      %v3960 = vpop.f32.mrb[0].mxu0
      %v3961 = vpop.f32.mrb[0].mxu0
      %v3962 = vadd.f32 0.0, %v3961
      %v3963 = vpop.f32.mrb[0].mxu0
      %3964 = vmatprep.mubr.bf16.mxu0 0
      %3965 = vmatmul.mubr.bf16.gmra.mrb[0].mxu0 %v3817
      %v3966 = vpop.f32.mrb[0].mxu0
      %v3967 = vadd.f32 0.0, %v3966
      %v3968 = vpop.f32.mrb[0].mxu0
      %v3969 = vpop.f32.mrb[0].mxu0
      %v3970 = vadd.f32 0.0, %v3969
      %v3971 = vpop.f32.mrb[0].mxu0
      %3972 = vmatprep.mubr.bf16.mxu0 0
      %3973 = vmatmul.mubr.bf16.gmra.mrb[0].mxu0 %v3820
      %v3974 = vpop.f32.mrb[0].mxu0
      %v3975 = vadd.f32 0.0, %v3974
      %v3976 = vpop.f32.mrb[0].mxu0
      %v3977 = vpop.f32.mrb[0].mxu0
      %v3978 = vadd.f32 0.0, %v3977
      %v3979 = vpop.f32.mrb[0].mxu0
      %3980 = vmatprep.mubr.bf16.mxu0 0
      %3981 = vmatmul.mubr.bf16.gmra.mrb[0].mxu0 %v3823
      %v3982 = vpop.f32.mrb[0].mxu0
      %v3983 = vadd.f32 0.0, %v3982
      %v3984 = vpop.f32.mrb[0].mxu0
      %v3985 = vpop.f32.mrb[0].mxu0
      %v3986 = vadd.f32 0.0, %v3985
      %v3987 = vpop.f32.mrb[0].mxu0
      %3988 = vdwg.mxu0
      %v3989 = vadd.f32 %v3182, %v3863
      %v3990 = vadd.f32 %v3183, %v3866
      %v3991 = vadd.f32 %v3184, %v3871
      %v3992 = vadd.f32 %v3185, %v3874
      %v3993 = vadd.f32 %v3186, %v3879
      %v3994 = vadd.f32 %v3187, %v3882
      %v3995 = vadd.f32 %v3188, %v3887
      %v3996 = vadd.f32 %v3189, %v3890
      %v3997 = vadd.f32 %v3190, %v3895
      %v3998 = vadd.f32 %v3191, %v3898
      %v3999 = vadd.f32 %v3192, %v3903
      %v4000 = vadd.f32 %v3193, %v3906
      %v4001 = vadd.f32 %v3194, %v3911
      %v4002 = vadd.f32 %v3195, %v3914
      %v4003 = vadd.f32 %v3196, %v3919
      %v4004 = vadd.f32 %v3197, %v3922
      %v4005 = vadd.f32 %v3198, %v3927
      %v4006 = vadd.f32 %v3199, %v3930
      %v4007 = vadd.f32 %v3200, %v3935
      %v4008 = vadd.f32 %v3201, %v3938
      %v4009 = vadd.f32 %v3202, %v3943
      %v4010 = vadd.f32 %v3203, %v3946
      %v4011 = vadd.f32 %v3204, %v3951
      %v4012 = vadd.f32 %v3205, %v3954
      %v4013 = vadd.f32 %v3206, %v3959
      %v4014 = vadd.f32 %v3207, %v3962
      %v4015 = vadd.f32 %v3208, %v3967
      %v4016 = vadd.f32 %v3209, %v3970
      %v4017 = vadd.f32 %v3210, %v3975
      %v4018 = vadd.f32 %v3211, %v3978
      %v4019 = vadd.f32 %v3212, %v3983
      %v4020 = vadd.f32 %v3213, %v3986
      %v4021 = vld [vmem:[%s219 + $0x8] sm:$0xf]
      %v4022 = vld [vmem:[%s219 + $0xc] sm:$0xf]
      %v4023 = vld [vmem:[%s219 + $0x10] sm:$0xf]
      %v4024 = vld [vmem:[%s219 + $0x14] sm:$0xf]
      %v4025 = vld [vmem:[%s219 + $0x18] sm:$0xf]
      %v4026 = vld [vmem:[%s219 + $0x1c] sm:$0xf]
      %v4027 = vld [vmem:[%s219 + $0x20] sm:$0xf]
      %v4028 = vld [vmem:[%s219 + $0x24] sm:$0xf]
      %v4029 = vld [vmem:[%s219 + $0x28] sm:$0xf]
      %v4030 = vld [vmem:[%s219 + $0x2c] sm:$0xf]
      %v4031 = vld [vmem:[%s219 + $0x30] sm:$0xf]
      %v4032 = vld [vmem:[%s219 + $0x34] sm:$0xf]
      %v4033 = vld [vmem:[%s219 + $0x38] sm:$0xf]
      %v4034 = vld [vmem:[%s219 + $0x3c] sm:$0xf]
      %v4035 = vld [vmem:[%s219 + $0x40] sm:$0xf]
      %v4036 = vld [vmem:[%s219 + $0x44] sm:$0xf]
      %v4037 = vld [vmem:[%s219 + $0x48] sm:$0xf]
      %v4038 = vld [vmem:[%s219 + $0x4c] sm:$0xf]
      %v4039 = vld [vmem:[%s219 + $0x50] sm:$0xf]
      %v4040 = vld [vmem:[%s219 + $0x54] sm:$0xf]
      %v4041 = vld [vmem:[%s219 + $0x58] sm:$0xf]
      %v4042 = vld [vmem:[%s219 + $0x5c] sm:$0xf]
      %v4043 = vld [vmem:[%s219 + $0x60] sm:$0xf]
      %v4044 = vld [vmem:[%s219 + $0x64] sm:$0xf]
      %v4045 = vld [vmem:[%s219 + $0x68] sm:$0xf]
      %v4046 = vld [vmem:[%s219 + $0x6c] sm:$0xf]
      %v4047 = vld [vmem:[%s219 + $0x70] sm:$0xf]
      %v4048 = vld [vmem:[%s219 + $0x74] sm:$0xf]
      %v4049 = vld [vmem:[%s219 + $0x78] sm:$0xf]
      %v4050 = vld [vmem:[%s219 + $0x7c] sm:$0xf]
      %v4051 = vld [vmem:[%s219 + $0x80] sm:$0xf]
      %v4052 = vld [vmem:[%s219 + $0x84] sm:$0xf]
      %v4053 = vld [vmem:[%s219 + $0x88] sm:$0x1]
      %s4054 = scalar_lea.vmem %s1, 8
      %v4055 = vld [vmem:[%s4054] sm:$0x3]
      %v4089 = vunpack.c.l.b16 %v4021
      %v4090 = vunpack.c.l.b16 %v4022
      %v4091 = vunpack.c.l.b16 %v4023
      %v4092 = vunpack.c.l.b16 %v4024
      %v4093 = vunpack.c.l.b16 %v4025
      %v4094 = vunpack.c.l.b16 %v4026
      %v4095 = vunpack.c.l.b16 %v4027
      %v4096 = vunpack.c.l.b16 %v4028
      %v4097 = vunpack.c.l.b16 %v4029
      %v4098 = vunpack.c.l.b16 %v4030
      %v4099 = vunpack.c.l.b16 %v4031
      %v4100 = vunpack.c.l.b16 %v4032
      %v4101 = vunpack.c.l.b16 %v4033
      %v4102 = vunpack.c.l.b16 %v4034
      %v4103 = vunpack.c.l.b16 %v4035
      %v4104 = vunpack.c.l.b16 %v4036
      %v4105 = vunpack.c.l.b16 %v4037
      %v4106 = vunpack.c.l.b16 %v4038
      %v4107 = vunpack.c.l.b16 %v4039
      %v4108 = vunpack.c.l.b16 %v4040
      %v4109 = vunpack.c.l.b16 %v4041
      %v4110 = vunpack.c.l.b16 %v4042
      %v4111 = vunpack.c.l.b16 %v4043
      %v4112 = vunpack.c.l.b16 %v4044
      %v4113 = vunpack.c.l.b16 %v4045
      %v4114 = vunpack.c.l.b16 %v4046
      %v4115 = vunpack.c.l.b16 %v4047
      %v4116 = vunpack.c.l.b16 %v4048
      %v4117 = vunpack.c.l.b16 %v4049
      %v4118 = vunpack.c.l.b16 %v4050
      %v4119 = vunpack.c.l.b16 %v4051
      %v4120 = vunpack.c.l.b16 %v4052
      %v4121 = vunpack.c.l.b16 %v4053
      %v4122 = vpack.c.b16 %v4090, %v4089
      %v4123 = vpack.c.b16 %v4092, %v4091
      %v4124 = vpack.c.b16 %v4094, %v4093
      %v4125 = vpack.c.b16 %v4096, %v4095
      %v4126 = vpack.c.b16 %v4098, %v4097
      %v4127 = vpack.c.b16 %v4100, %v4099
      %v4128 = vpack.c.b16 %v4102, %v4101
      %v4129 = vpack.c.b16 %v4104, %v4103
      %v4130 = vpack.c.b16 %v4106, %v4105
      %v4131 = vpack.c.b16 %v4108, %v4107
      %v4132 = vpack.c.b16 %v4110, %v4109
      %v4133 = vpack.c.b16 %v4112, %v4111
      %v4134 = vpack.c.b16 %v4114, %v4113
      %v4135 = vpack.c.b16 %v4116, %v4115
      %v4136 = vpack.c.b16 %v4118, %v4117
      %v4137 = vpack.c.b16 %v4120, %v4119
      %v4138 = vpack.c.b16 %v4121, %v4121
      %v4140 = vshrl.u32 %v4122, 16
      %v4142 = vshll.u32 %v4122, 16
      %v4144 = vrot.slane %v4142, 1
      %v4145 = vor.u32 %v4140, %v4144
      %v4147 = vshll.u32 %v4123, 16
      %v4149 = vrot.slane %v4147, 1
      %v4150 = vsel %vm1598, %v4145, %v4149
      %v4151 = vshrl.u32 %v4123, 16
      %v4153 = vor.u32 %v4151, %v4149
      %v4155 = vshll.u32 %v4124, 16
      %v4157 = vrot.slane %v4155, 1
      %v4158 = vsel %vm1598, %v4153, %v4157
      %v4159 = vshrl.u32 %v4124, 16
      %v4161 = vor.u32 %v4159, %v4157
      %v4163 = vshll.u32 %v4125, 16
      %v4165 = vrot.slane %v4163, 1
      %v4166 = vsel %vm1598, %v4161, %v4165
      %v4167 = vshrl.u32 %v4125, 16
      %v4169 = vor.u32 %v4167, %v4165
      %v4171 = vshll.u32 %v4126, 16
      %v4173 = vrot.slane %v4171, 1
      %v4174 = vsel %vm1598, %v4169, %v4173
      %v4175 = vshrl.u32 %v4126, 16
      %v4177 = vor.u32 %v4175, %v4173
      %v4179 = vshll.u32 %v4127, 16
      %v4181 = vrot.slane %v4179, 1
      %v4182 = vsel %vm1598, %v4177, %v4181
      %v4183 = vshrl.u32 %v4127, 16
      %v4185 = vor.u32 %v4183, %v4181
      %v4187 = vshll.u32 %v4128, 16
      %v4189 = vrot.slane %v4187, 1
      %v4190 = vsel %vm1598, %v4185, %v4189
      %v4191 = vshrl.u32 %v4128, 16
      %v4193 = vor.u32 %v4191, %v4189
      %v4195 = vshll.u32 %v4129, 16
      %v4197 = vrot.slane %v4195, 1
      %v4198 = vsel %vm1598, %v4193, %v4197
      %v4199 = vshrl.u32 %v4129, 16
      %v4201 = vor.u32 %v4199, %v4197
      %v4203 = vshll.u32 %v4130, 16
      %v4205 = vrot.slane %v4203, 1
      %v4206 = vsel %vm1598, %v4201, %v4205
      %v4207 = vshrl.u32 %v4130, 16
      %v4209 = vor.u32 %v4207, %v4205
      %v4211 = vshll.u32 %v4131, 16
      %v4213 = vrot.slane %v4211, 1
      %v4214 = vsel %vm1598, %v4209, %v4213
      %v4215 = vshrl.u32 %v4131, 16
      %v4217 = vor.u32 %v4215, %v4213
      %v4219 = vshll.u32 %v4132, 16
      %v4221 = vrot.slane %v4219, 1
      %v4222 = vsel %vm1598, %v4217, %v4221
      %v4223 = vshrl.u32 %v4132, 16
      %v4225 = vor.u32 %v4223, %v4221
      %v4227 = vshll.u32 %v4133, 16
      %v4229 = vrot.slane %v4227, 1
      %v4230 = vsel %vm1598, %v4225, %v4229
      %v4231 = vshrl.u32 %v4133, 16
      %v4233 = vor.u32 %v4231, %v4229
      %v4235 = vshll.u32 %v4134, 16
      %v4237 = vrot.slane %v4235, 1
      %v4238 = vsel %vm1598, %v4233, %v4237
      %v4239 = vshrl.u32 %v4134, 16
      %v4241 = vor.u32 %v4239, %v4237
      %v4243 = vshll.u32 %v4135, 16
      %v4245 = vrot.slane %v4243, 1
      %v4246 = vsel %vm1598, %v4241, %v4245
      %v4247 = vshrl.u32 %v4135, 16
      %v4249 = vor.u32 %v4247, %v4245
      %v4251 = vshll.u32 %v4136, 16
      %v4253 = vrot.slane %v4251, 1
      %v4254 = vsel %vm1598, %v4249, %v4253
      %v4255 = vshrl.u32 %v4136, 16
      %v4257 = vor.u32 %v4255, %v4253
      %v4259 = vshll.u32 %v4137, 16
      %v4261 = vrot.slane %v4259, 1
      %v4262 = vsel %vm1598, %v4257, %v4261
      %v4263 = vshrl.u32 %v4137, 16
      %v4265 = vor.u32 %v4263, %v4261
      %v4267 = vshll.u32 %v4138, 16
      %v4269 = vrot.slane %v4267, 1
      %v4270 = vsel %vm1598, %v4265, %v4269
      %v4272 = vsel %vm1731, %v4150, 0
      %v4275 = vsel %vm1731, %v4158, 0
      %v4278 = vsel %vm1731, %v4166, 0
      %v4281 = vsel %vm1731, %v4174, 0
      %v4284 = vsel %vm1731, %v4182, 0
      %v4287 = vsel %vm1731, %v4190, 0
      %v4290 = vsel %vm1731, %v4198, 0
      %v4293 = vsel %vm1731, %v4206, 0
      %v4296 = vsel %vm1731, %v4214, 0
      %v4299 = vsel %vm1731, %v4222, 0
      %v4302 = vsel %vm1731, %v4230, 0
      %v4305 = vsel %vm1731, %v4238, 0
      %v4308 = vsel %vm1731, %v4246, 0
      %v4311 = vsel %vm1731, %v4254, 0
      %v4314 = vsel %vm1731, %v4262, 0
      %v4317 = vsel %vm1731, %v4270, 0
      %v4320 = vsel %vm1780, %v4055, 0
      %4322 = vmatprep.subr.bf16.mxu0 0
      %4323 = vmatpush1.bf16.msra.mxu0 %v4320
      %4324 = vmatprep.subr.bf16.mxu0 0
      %4325 = vmatpush1.bf16.msra.mxu0 0
      %4326 = vmatprep.subr.bf16.mxu0 0
      %4327 = vmatpush1.bf16.msra.mxu0 0
      %4328 = vmatprep.subr.bf16.mxu0 0
      %4329 = vmatpush1.bf16.msra.mxu0 0
      %4330 = vmatprep.subr.bf16.mxu0 0
      %4331 = vmatpush1.bf16.msra.mxu0 0
      %4332 = vmatprep.subr.bf16.mxu0 0
      %4333 = vmatpush1.bf16.msra.mxu0 0
      %4334 = vmatprep.subr.bf16.mxu0 0
      %4335 = vmatpush1.bf16.msra.mxu0 0
      %4336 = vmatprep.subr.bf16.mxu0 0
      %4337 = vmatpush1.bf16.msra.mxu0 0
      %4338 = vmatprep.subr.bf16.mxu0 0
      %4339 = vmatpush1.bf16.msra.mxu0 0
      %4340 = vmatprep.subr.bf16.mxu0 0
      %4341 = vmatpush1.bf16.msra.mxu0 0
      %4342 = vmatprep.subr.bf16.mxu0 0
      %4343 = vmatpush1.bf16.msra.mxu0 0
      %4344 = vmatprep.subr.bf16.mxu0 0
      %4345 = vmatpush1.bf16.msra.mxu0 0
      %4346 = vmatprep.subr.bf16.mxu0 0
      %4347 = vmatpush1.bf16.msra.mxu0 0
      %4348 = vmatprep.subr.bf16.mxu0 0
      %4349 = vmatpush1.bf16.msra.mxu0 0
      %4350 = vmatprep.subr.bf16.mxu0 0
      %4351 = vmatpush1.bf16.msra.mxu0 0
      %4352 = vmatprep.subr.bf16.mxu0 0
      %4353 = vmatpush1.bf16.msra.mxu0 0
      %4354 = vmatprep.mubr.bf16.mxu0 0
      %4355 = vmatmul.mubr.bf16.gmra.mrb[0].mxu0 %v4272
      %v4356 = vpop.f32.mrb[0].mxu0
      %v4357 = vadd.f32 0.0, %v4356
      %v4358 = vpop.f32.mrb[0].mxu0
      %v4359 = vpop.f32.mrb[0].mxu0
      %v4360 = vadd.f32 0.0, %v4359
      %v4361 = vpop.f32.mrb[0].mxu0
      %4362 = vmatprep.mubr.bf16.mxu0 0
      %4363 = vmatmul.mubr.bf16.gmra.mrb[0].mxu0 %v4275
      %v4364 = vpop.f32.mrb[0].mxu0
      %v4365 = vadd.f32 0.0, %v4364
      %v4366 = vpop.f32.mrb[0].mxu0
      %v4367 = vpop.f32.mrb[0].mxu0
      %v4368 = vadd.f32 0.0, %v4367
      %v4369 = vpop.f32.mrb[0].mxu0
      %4370 = vmatprep.mubr.bf16.mxu0 0
      %4371 = vmatmul.mubr.bf16.gmra.mrb[0].mxu0 %v4278
      %v4372 = vpop.f32.mrb[0].mxu0
      %v4373 = vadd.f32 0.0, %v4372
      %v4374 = vpop.f32.mrb[0].mxu0
      %v4375 = vpop.f32.mrb[0].mxu0
      %v4376 = vadd.f32 0.0, %v4375
      %v4377 = vpop.f32.mrb[0].mxu0
      %4378 = vmatprep.mubr.bf16.mxu0 0
      %4379 = vmatmul.mubr.bf16.gmra.mrb[0].mxu0 %v4281
      %v4380 = vpop.f32.mrb[0].mxu0
      %v4381 = vadd.f32 0.0, %v4380
      %v4382 = vpop.f32.mrb[0].mxu0
      %v4383 = vpop.f32.mrb[0].mxu0
      %v4384 = vadd.f32 0.0, %v4383
      %v4385 = vpop.f32.mrb[0].mxu0
      %4386 = vmatprep.mubr.bf16.mxu0 0
      %4387 = vmatmul.mubr.bf16.gmra.mrb[0].mxu0 %v4284
      %v4388 = vpop.f32.mrb[0].mxu0
      %v4389 = vadd.f32 0.0, %v4388
      %v4390 = vpop.f32.mrb[0].mxu0
      %v4391 = vpop.f32.mrb[0].mxu0
      %v4392 = vadd.f32 0.0, %v4391
      %v4393 = vpop.f32.mrb[0].mxu0
      %4394 = vmatprep.mubr.bf16.mxu0 0
      %4395 = vmatmul.mubr.bf16.gmra.mrb[0].mxu0 %v4287
      %v4396 = vpop.f32.mrb[0].mxu0
      %v4397 = vadd.f32 0.0, %v4396
      %v4398 = vpop.f32.mrb[0].mxu0
      %v4399 = vpop.f32.mrb[0].mxu0
      %v4400 = vadd.f32 0.0, %v4399
      %v4401 = vpop.f32.mrb[0].mxu0
      %4402 = vmatprep.mubr.bf16.mxu0 0
      %4403 = vmatmul.mubr.bf16.gmra.mrb[0].mxu0 %v4290
      %v4404 = vpop.f32.mrb[0].mxu0
      %v4405 = vadd.f32 0.0, %v4404
      %v4406 = vpop.f32.mrb[0].mxu0
      %v4407 = vpop.f32.mrb[0].mxu0
      %v4408 = vadd.f32 0.0, %v4407
      %v4409 = vpop.f32.mrb[0].mxu0
      %4410 = vmatprep.mubr.bf16.mxu0 0
      %4411 = vmatmul.mubr.bf16.gmra.mrb[0].mxu0 %v4293
      %v4412 = vpop.f32.mrb[0].mxu0
      %v4413 = vadd.f32 0.0, %v4412
      %v4414 = vpop.f32.mrb[0].mxu0
      %v4415 = vpop.f32.mrb[0].mxu0
      %v4416 = vadd.f32 0.0, %v4415
      %v4417 = vpop.f32.mrb[0].mxu0
      %4418 = vmatprep.mubr.bf16.mxu0 0
      %4419 = vmatmul.mubr.bf16.gmra.mrb[0].mxu0 %v4296
      %v4420 = vpop.f32.mrb[0].mxu0
      %v4421 = vadd.f32 0.0, %v4420
      %v4422 = vpop.f32.mrb[0].mxu0
      %v4423 = vpop.f32.mrb[0].mxu0
      %v4424 = vadd.f32 0.0, %v4423
      %v4425 = vpop.f32.mrb[0].mxu0
      %4426 = vmatprep.mubr.bf16.mxu0 0
      %4427 = vmatmul.mubr.bf16.gmra.mrb[0].mxu0 %v4299
      %v4428 = vpop.f32.mrb[0].mxu0
      %v4429 = vadd.f32 0.0, %v4428
      %v4430 = vpop.f32.mrb[0].mxu0
      %v4431 = vpop.f32.mrb[0].mxu0
      %v4432 = vadd.f32 0.0, %v4431
      %v4433 = vpop.f32.mrb[0].mxu0
      %4434 = vmatprep.mubr.bf16.mxu0 0
      %4435 = vmatmul.mubr.bf16.gmra.mrb[0].mxu0 %v4302
      %v4436 = vpop.f32.mrb[0].mxu0
      %v4437 = vadd.f32 0.0, %v4436
      %v4438 = vpop.f32.mrb[0].mxu0
      %v4439 = vpop.f32.mrb[0].mxu0
      %v4440 = vadd.f32 0.0, %v4439
      %v4441 = vpop.f32.mrb[0].mxu0
      %4442 = vmatprep.mubr.bf16.mxu0 0
      %4443 = vmatmul.mubr.bf16.gmra.mrb[0].mxu0 %v4305
      %v4444 = vpop.f32.mrb[0].mxu0
      %v4445 = vadd.f32 0.0, %v4444
      %v4446 = vpop.f32.mrb[0].mxu0
      %v4447 = vpop.f32.mrb[0].mxu0
      %v4448 = vadd.f32 0.0, %v4447
      %v4449 = vpop.f32.mrb[0].mxu0
      %4450 = vmatprep.mubr.bf16.mxu0 0
      %4451 = vmatmul.mubr.bf16.gmra.mrb[0].mxu0 %v4308
      %v4452 = vpop.f32.mrb[0].mxu0
      %v4453 = vadd.f32 0.0, %v4452
      %v4454 = vpop.f32.mrb[0].mxu0
      %v4455 = vpop.f32.mrb[0].mxu0
      %v4456 = vadd.f32 0.0, %v4455
      %v4457 = vpop.f32.mrb[0].mxu0
      %4458 = vmatprep.mubr.bf16.mxu0 0
      %4459 = vmatmul.mubr.bf16.gmra.mrb[0].mxu0 %v4311
      %v4460 = vpop.f32.mrb[0].mxu0
      %v4461 = vadd.f32 0.0, %v4460
      %v4462 = vpop.f32.mrb[0].mxu0
      %v4463 = vpop.f32.mrb[0].mxu0
      %v4464 = vadd.f32 0.0, %v4463
      %v4465 = vpop.f32.mrb[0].mxu0
      %4466 = vmatprep.mubr.bf16.mxu0 0
      %4467 = vmatmul.mubr.bf16.gmra.mrb[0].mxu0 %v4314
      %v4468 = vpop.f32.mrb[0].mxu0
      %v4469 = vadd.f32 0.0, %v4468
      %v4470 = vpop.f32.mrb[0].mxu0
      %v4471 = vpop.f32.mrb[0].mxu0
      %v4472 = vadd.f32 0.0, %v4471
      %v4473 = vpop.f32.mrb[0].mxu0
      %4474 = vmatprep.mubr.bf16.mxu0 0
      %4475 = vmatmul.mubr.bf16.gmra.mrb[0].mxu0 %v4317
      %v4476 = vpop.f32.mrb[0].mxu0
      %v4477 = vadd.f32 0.0, %v4476
      %v4478 = vpop.f32.mrb[0].mxu0
      %v4479 = vpop.f32.mrb[0].mxu0
      %v4480 = vadd.f32 0.0, %v4479
      %v4481 = vpop.f32.mrb[0].mxu0
      %4482 = vdwg.mxu0
      %v4483 = vadd.f32 %v3989, %v4357
      %v4484 = vadd.f32 %v3990, %v4360
      %v4485 = vadd.f32 %v3991, %v4365
      %v4486 = vadd.f32 %v3992, %v4368
      %v4487 = vadd.f32 %v3993, %v4373
      %v4488 = vadd.f32 %v3994, %v4376
      %v4489 = vadd.f32 %v3995, %v4381
      %v4490 = vadd.f32 %v3996, %v4384
      %v4491 = vadd.f32 %v3997, %v4389
      %v4492 = vadd.f32 %v3998, %v4392
      %v4493 = vadd.f32 %v3999, %v4397
      %v4494 = vadd.f32 %v4000, %v4400
      %v4495 = vadd.f32 %v4001, %v4405
      %v4496 = vadd.f32 %v4002, %v4408
      %v4497 = vadd.f32 %v4003, %v4413
      %v4498 = vadd.f32 %v4004, %v4416
      %v4499 = vadd.f32 %v4005, %v4421
      %v4500 = vadd.f32 %v4006, %v4424
      %v4501 = vadd.f32 %v4007, %v4429
      %v4502 = vadd.f32 %v4008, %v4432
      %v4503 = vadd.f32 %v4009, %v4437
      %v4504 = vadd.f32 %v4010, %v4440
      %v4505 = vadd.f32 %v4011, %v4445
      %v4506 = vadd.f32 %v4012, %v4448
      %v4507 = vadd.f32 %v4013, %v4453
      %v4508 = vadd.f32 %v4014, %v4456
      %v4509 = vadd.f32 %v4015, %v4461
      %v4510 = vadd.f32 %v4016, %v4464
      %v4511 = vadd.f32 %v4017, %v4469
      %v4512 = vadd.f32 %v4018, %v4472
      %v4513 = vadd.f32 %v4019, %v4477
      %v4514 = vadd.f32 %v4020, %v4480
      %v4515 = vld [vmem:[%s219 + $0x8] sm:$0xe]
      %s4516 = scalar_lea.vmem %s2, 640
      %v4517 = vld [vmem:[%s4516] sm:$0xf]
      %v4518 = vld [vmem:[%s4516 + $0x4] sm:$0xf]
      %v4519 = vld [vmem:[%s4516 + $0x8] sm:$0xf]
      %v4520 = vld [vmem:[%s4516 + $0xc] sm:$0xf]
      %v4521 = vld [vmem:[%s4516 + $0x10] sm:$0xf]
      %v4522 = vld [vmem:[%s4516 + $0x14] sm:$0xf]
      %v4523 = vld [vmem:[%s4516 + $0x18] sm:$0xf]
      %v4524 = vld [vmem:[%s4516 + $0x1c] sm:$0xf]
      %v4525 = vld [vmem:[%s4516 + $0x20] sm:$0xf]
      %v4526 = vld [vmem:[%s4516 + $0x24] sm:$0xf]
      %v4527 = vld [vmem:[%s4516 + $0x28] sm:$0xf]
      %v4528 = vld [vmem:[%s4516 + $0x2c] sm:$0xf]
      %v4529 = vld [vmem:[%s4516 + $0x30] sm:$0xf]
      %v4530 = vld [vmem:[%s4516 + $0x34] sm:$0xf]
      %v4531 = vld [vmem:[%s4516 + $0x38] sm:$0xf]
      %v4532 = vld [vmem:[%s4516 + $0x3c] sm:$0xf]
      %v4533 = vld [vmem:[%s4516 + $0x40] sm:$0xf]
      %v4534 = vld [vmem:[%s4516 + $0x44] sm:$0xf]
      %v4535 = vld [vmem:[%s4516 + $0x48] sm:$0xf]
      %v4536 = vld [vmem:[%s4516 + $0x4c] sm:$0xf]
      %v4537 = vld [vmem:[%s4516 + $0x50] sm:$0xf]
      %v4538 = vld [vmem:[%s4516 + $0x54] sm:$0xf]
      %v4539 = vld [vmem:[%s4516 + $0x58] sm:$0xf]
      %v4540 = vld [vmem:[%s4516 + $0x5c] sm:$0xf]
      %v4541 = vld [vmem:[%s4516 + $0x60] sm:$0xf]
      %v4542 = vld [vmem:[%s4516 + $0x64] sm:$0xf]
      %v4543 = vld [vmem:[%s4516 + $0x68] sm:$0xf]
      %v4544 = vld [vmem:[%s4516 + $0x6c] sm:$0xf]
      %v4545 = vld [vmem:[%s4516 + $0x70] sm:$0xf]
      %v4546 = vld [vmem:[%s4516 + $0x74] sm:$0xf]
      %v4547 = vld [vmem:[%s4516 + $0x78] sm:$0xf]
      %v4548 = vld [vmem:[%s4516 + $0x7c] sm:$0xf]
      %4550 = vset.pattern.permute.xlu0 0
      %4551 = vperm.xlu0 %4550, %v4517
      %v4552 = vpop.permute.xlu0 %4551
      %v4555 = vunpack.c.l.s4 839922192
      %v4556 = vunpack.c.0.s8 %v4555
      %v4557 = vlaneseq
      %v4558 = vshrl.u32 %v4557, 7
      %v4559 = vsub.s32 %v4556, %v4558
      %v4560 = vrot.slane %v4552, %v4559
      %4562 = vset.pattern.permute.xlu0 0
      %4563 = vperm.xlu0 %4562, %v4518
      %v4564 = vpop.permute.xlu0 %4563
      %v4567 = vunpack.c.l.s4 839922192
      %v4568 = vunpack.c.0.s8 %v4567
      %v4569 = vlaneseq
      %v4570 = vshrl.u32 %v4569, 7
      %v4571 = vsub.s32 %v4568, %v4570
      %v4572 = vrot.slane %v4564, %v4571
      %4574 = vset.pattern.permute.xlu0 0
      %4575 = vperm.xlu0 %4574, %v4519
      %v4576 = vpop.permute.xlu0 %4575
      %v4579 = vunpack.c.l.s4 839922192
      %v4580 = vunpack.c.0.s8 %v4579
      %v4581 = vlaneseq
      %v4582 = vshrl.u32 %v4581, 7
      %v4583 = vsub.s32 %v4580, %v4582
      %v4584 = vrot.slane %v4576, %v4583
      %4586 = vset.pattern.permute.xlu0 0
      %4587 = vperm.xlu0 %4586, %v4520
      %v4588 = vpop.permute.xlu0 %4587
      %v4591 = vunpack.c.l.s4 839922192
      %v4592 = vunpack.c.0.s8 %v4591
      %v4593 = vlaneseq
      %v4594 = vshrl.u32 %v4593, 7
      %v4595 = vsub.s32 %v4592, %v4594
      %v4596 = vrot.slane %v4588, %v4595
      %4598 = vset.pattern.permute.xlu0 0
      %4599 = vperm.xlu0 %4598, %v4521
      %v4600 = vpop.permute.xlu0 %4599
      %v4603 = vunpack.c.l.s4 839922192
      %v4604 = vunpack.c.0.s8 %v4603
      %v4605 = vlaneseq
      %v4606 = vshrl.u32 %v4605, 7
      %v4607 = vsub.s32 %v4604, %v4606
      %v4608 = vrot.slane %v4600, %v4607
      %4610 = vset.pattern.permute.xlu0 0
      %4611 = vperm.xlu0 %4610, %v4522
      %v4612 = vpop.permute.xlu0 %4611
      %v4615 = vunpack.c.l.s4 839922192
      %v4616 = vunpack.c.0.s8 %v4615
      %v4617 = vlaneseq
      %v4618 = vshrl.u32 %v4617, 7
      %v4619 = vsub.s32 %v4616, %v4618
      %v4620 = vrot.slane %v4612, %v4619
      %4622 = vset.pattern.permute.xlu0 0
      %4623 = vperm.xlu0 %4622, %v4523
      %v4624 = vpop.permute.xlu0 %4623
      %v4627 = vunpack.c.l.s4 839922192
      %v4628 = vunpack.c.0.s8 %v4627
      %v4629 = vlaneseq
      %v4630 = vshrl.u32 %v4629, 7
      %v4631 = vsub.s32 %v4628, %v4630
      %v4632 = vrot.slane %v4624, %v4631
      %4634 = vset.pattern.permute.xlu0 0
      %4635 = vperm.xlu0 %4634, %v4524
      %v4636 = vpop.permute.xlu0 %4635
      %v4639 = vunpack.c.l.s4 839922192
      %v4640 = vunpack.c.0.s8 %v4639
      %v4641 = vlaneseq
      %v4642 = vshrl.u32 %v4641, 7
      %v4643 = vsub.s32 %v4640, %v4642
      %v4644 = vrot.slane %v4636, %v4643
      %4646 = vset.pattern.permute.xlu0 0
      %4647 = vperm.xlu0 %4646, %v4525
      %v4648 = vpop.permute.xlu0 %4647
      %v4651 = vunpack.c.l.s4 839922192
      %v4652 = vunpack.c.0.s8 %v4651
      %v4653 = vlaneseq
      %v4654 = vshrl.u32 %v4653, 7
      %v4655 = vsub.s32 %v4652, %v4654
      %v4656 = vrot.slane %v4648, %v4655
      %4658 = vset.pattern.permute.xlu0 0
      %4659 = vperm.xlu0 %4658, %v4526
      %v4660 = vpop.permute.xlu0 %4659
      %v4663 = vunpack.c.l.s4 839922192
      %v4664 = vunpack.c.0.s8 %v4663
      %v4665 = vlaneseq
      %v4666 = vshrl.u32 %v4665, 7
      %v4667 = vsub.s32 %v4664, %v4666
      %v4668 = vrot.slane %v4660, %v4667
      %4670 = vset.pattern.permute.xlu0 0
      %4671 = vperm.xlu0 %4670, %v4527
      %v4672 = vpop.permute.xlu0 %4671
      %v4675 = vunpack.c.l.s4 839922192
      %v4676 = vunpack.c.0.s8 %v4675
      %v4677 = vlaneseq
      %v4678 = vshrl.u32 %v4677, 7
      %v4679 = vsub.s32 %v4676, %v4678
      %v4680 = vrot.slane %v4672, %v4679
      %4682 = vset.pattern.permute.xlu0 0
      %4683 = vperm.xlu0 %4682, %v4528
      %v4684 = vpop.permute.xlu0 %4683
      %v4687 = vunpack.c.l.s4 839922192
      %v4688 = vunpack.c.0.s8 %v4687
      %v4689 = vlaneseq
      %v4690 = vshrl.u32 %v4689, 7
      %v4691 = vsub.s32 %v4688, %v4690
      %v4692 = vrot.slane %v4684, %v4691
      %4694 = vset.pattern.permute.xlu0 0
      %4695 = vperm.xlu0 %4694, %v4529
      %v4696 = vpop.permute.xlu0 %4695
      %v4699 = vunpack.c.l.s4 839922192
      %v4700 = vunpack.c.0.s8 %v4699
      %v4701 = vlaneseq
      %v4702 = vshrl.u32 %v4701, 7
      %v4703 = vsub.s32 %v4700, %v4702
      %v4704 = vrot.slane %v4696, %v4703
      %4706 = vset.pattern.permute.xlu0 0
      %4707 = vperm.xlu0 %4706, %v4530
      %v4708 = vpop.permute.xlu0 %4707
      %v4711 = vunpack.c.l.s4 839922192
      %v4712 = vunpack.c.0.s8 %v4711
      %v4713 = vlaneseq
      %v4714 = vshrl.u32 %v4713, 7
      %v4715 = vsub.s32 %v4712, %v4714
      %v4716 = vrot.slane %v4708, %v4715
      %4718 = vset.pattern.permute.xlu0 0
      %4719 = vperm.xlu0 %4718, %v4531
      %v4720 = vpop.permute.xlu0 %4719
      %v4723 = vunpack.c.l.s4 839922192
      %v4724 = vunpack.c.0.s8 %v4723
      %v4725 = vlaneseq
      %v4726 = vshrl.u32 %v4725, 7
      %v4727 = vsub.s32 %v4724, %v4726
      %v4728 = vrot.slane %v4720, %v4727
      %4730 = vset.pattern.permute.xlu0 0
      %4731 = vperm.xlu0 %4730, %v4532
      %v4732 = vpop.permute.xlu0 %4731
      %v4735 = vunpack.c.l.s4 839922192
      %v4736 = vunpack.c.0.s8 %v4735
      %v4737 = vlaneseq
      %v4738 = vshrl.u32 %v4737, 7
      %v4739 = vsub.s32 %v4736, %v4738
      %v4740 = vrot.slane %v4732, %v4739
      %4742 = vset.pattern.permute.xlu0 0
      %4743 = vperm.xlu0 %4742, %v4533
      %v4744 = vpop.permute.xlu0 %4743
      %v4747 = vunpack.c.l.s4 839922192
      %v4748 = vunpack.c.0.s8 %v4747
      %v4749 = vlaneseq
      %v4750 = vshrl.u32 %v4749, 7
      %v4751 = vsub.s32 %v4748, %v4750
      %v4752 = vrot.slane %v4744, %v4751
      %4754 = vset.pattern.permute.xlu0 0
      %4755 = vperm.xlu0 %4754, %v4534
      %v4756 = vpop.permute.xlu0 %4755
      %v4759 = vunpack.c.l.s4 839922192
      %v4760 = vunpack.c.0.s8 %v4759
      %v4761 = vlaneseq
      %v4762 = vshrl.u32 %v4761, 7
      %v4763 = vsub.s32 %v4760, %v4762
      %v4764 = vrot.slane %v4756, %v4763
      %4766 = vset.pattern.permute.xlu0 0
      %4767 = vperm.xlu0 %4766, %v4535
      %v4768 = vpop.permute.xlu0 %4767
      %v4771 = vunpack.c.l.s4 839922192
      %v4772 = vunpack.c.0.s8 %v4771
      %v4773 = vlaneseq
      %v4774 = vshrl.u32 %v4773, 7
      %v4775 = vsub.s32 %v4772, %v4774
      %v4776 = vrot.slane %v4768, %v4775
      %4778 = vset.pattern.permute.xlu0 0
      %4779 = vperm.xlu0 %4778, %v4536
      %v4780 = vpop.permute.xlu0 %4779
      %v4783 = vunpack.c.l.s4 839922192
      %v4784 = vunpack.c.0.s8 %v4783
      %v4785 = vlaneseq
      %v4786 = vshrl.u32 %v4785, 7
      %v4787 = vsub.s32 %v4784, %v4786
      %v4788 = vrot.slane %v4780, %v4787
      %4790 = vset.pattern.permute.xlu0 0
      %4791 = vperm.xlu0 %4790, %v4537
      %v4792 = vpop.permute.xlu0 %4791
      %v4795 = vunpack.c.l.s4 839922192
      %v4796 = vunpack.c.0.s8 %v4795
      %v4797 = vlaneseq
      %v4798 = vshrl.u32 %v4797, 7
      %v4799 = vsub.s32 %v4796, %v4798
      %v4800 = vrot.slane %v4792, %v4799
      %4802 = vset.pattern.permute.xlu0 0
      %4803 = vperm.xlu0 %4802, %v4538
      %v4804 = vpop.permute.xlu0 %4803
      %v4807 = vunpack.c.l.s4 839922192
      %v4808 = vunpack.c.0.s8 %v4807
      %v4809 = vlaneseq
      %v4810 = vshrl.u32 %v4809, 7
      %v4811 = vsub.s32 %v4808, %v4810
      %v4812 = vrot.slane %v4804, %v4811
      %4814 = vset.pattern.permute.xlu0 0
      %4815 = vperm.xlu0 %4814, %v4539
      %v4816 = vpop.permute.xlu0 %4815
      %v4819 = vunpack.c.l.s4 839922192
      %v4820 = vunpack.c.0.s8 %v4819
      %v4821 = vlaneseq
      %v4822 = vshrl.u32 %v4821, 7
      %v4823 = vsub.s32 %v4820, %v4822
      %v4824 = vrot.slane %v4816, %v4823
      %4826 = vset.pattern.permute.xlu0 0
      %4827 = vperm.xlu0 %4826, %v4540
      %v4828 = vpop.permute.xlu0 %4827
      %v4831 = vunpack.c.l.s4 839922192
      %v4832 = vunpack.c.0.s8 %v4831
      %v4833 = vlaneseq
      %v4834 = vshrl.u32 %v4833, 7
      %v4835 = vsub.s32 %v4832, %v4834
      %v4836 = vrot.slane %v4828, %v4835
      %4838 = vset.pattern.permute.xlu0 0
      %4839 = vperm.xlu0 %4838, %v4541
      %v4840 = vpop.permute.xlu0 %4839
      %v4843 = vunpack.c.l.s4 839922192
      %v4844 = vunpack.c.0.s8 %v4843
      %v4845 = vlaneseq
      %v4846 = vshrl.u32 %v4845, 7
      %v4847 = vsub.s32 %v4844, %v4846
      %v4848 = vrot.slane %v4840, %v4847
      %4850 = vset.pattern.permute.xlu0 0
      %4851 = vperm.xlu0 %4850, %v4542
      %v4852 = vpop.permute.xlu0 %4851
      %v4855 = vunpack.c.l.s4 839922192
      %v4856 = vunpack.c.0.s8 %v4855
      %v4857 = vlaneseq
      %v4858 = vshrl.u32 %v4857, 7
      %v4859 = vsub.s32 %v4856, %v4858
      %v4860 = vrot.slane %v4852, %v4859
      %4862 = vset.pattern.permute.xlu0 0
      %4863 = vperm.xlu0 %4862, %v4543
      %v4864 = vpop.permute.xlu0 %4863
      %v4867 = vunpack.c.l.s4 839922192
      %v4868 = vunpack.c.0.s8 %v4867
      %v4869 = vlaneseq
      %v4870 = vshrl.u32 %v4869, 7
      %v4871 = vsub.s32 %v4868, %v4870
      %v4872 = vrot.slane %v4864, %v4871
      %4874 = vset.pattern.permute.xlu0 0
      %4875 = vperm.xlu0 %4874, %v4544
      %v4876 = vpop.permute.xlu0 %4875
      %v4879 = vunpack.c.l.s4 839922192
      %v4880 = vunpack.c.0.s8 %v4879
      %v4881 = vlaneseq
      %v4882 = vshrl.u32 %v4881, 7
      %v4883 = vsub.s32 %v4880, %v4882
      %v4884 = vrot.slane %v4876, %v4883
      %4886 = vset.pattern.permute.xlu0 0
      %4887 = vperm.xlu0 %4886, %v4545
      %v4888 = vpop.permute.xlu0 %4887
      %v4891 = vunpack.c.l.s4 839922192
      %v4892 = vunpack.c.0.s8 %v4891
      %v4893 = vlaneseq
      %v4894 = vshrl.u32 %v4893, 7
      %v4895 = vsub.s32 %v4892, %v4894
      %v4896 = vrot.slane %v4888, %v4895
      %4898 = vset.pattern.permute.xlu0 0
      %4899 = vperm.xlu0 %4898, %v4546
      %v4900 = vpop.permute.xlu0 %4899
      %v4903 = vunpack.c.l.s4 839922192
      %v4904 = vunpack.c.0.s8 %v4903
      %v4905 = vlaneseq
      %v4906 = vshrl.u32 %v4905, 7
      %v4907 = vsub.s32 %v4904, %v4906
      %v4908 = vrot.slane %v4900, %v4907
      %4910 = vset.pattern.permute.xlu0 0
      %4911 = vperm.xlu0 %4910, %v4547
      %v4912 = vpop.permute.xlu0 %4911
      %v4915 = vunpack.c.l.s4 839922192
      %v4916 = vunpack.c.0.s8 %v4915
      %v4917 = vlaneseq
      %v4918 = vshrl.u32 %v4917, 7
      %v4919 = vsub.s32 %v4916, %v4918
      %v4920 = vrot.slane %v4912, %v4919
      %4922 = vset.pattern.permute.xlu0 0
      %4923 = vperm.xlu0 %4922, %v4548
      %v4924 = vpop.permute.xlu0 %4923
      %v4927 = vunpack.c.l.s4 839922192
      %v4928 = vunpack.c.0.s8 %v4927
      %v4929 = vlaneseq
      %v4930 = vshrl.u32 %v4929, 7
      %v4931 = vsub.s32 %v4928, %v4930
      %v4932 = vrot.slane %v4924, %v4931
      %v4965 = vrot.slane %v4560, 7
      %v4966 = vrot.slane %v4965, 4
      %v4967 = vrot.slane %v4572, 7
      %v4968 = vsel %vm2689, %v4966, %v4967
      %v4969 = vrot.slane %v4967, 4
      %v4970 = vrot.slane %v4584, 7
      %v4971 = vsel %vm2689, %v4969, %v4970
      %v4972 = vrot.slane %v4970, 4
      %v4973 = vrot.slane %v4596, 7
      %v4974 = vsel %vm2689, %v4972, %v4973
      %v4975 = vrot.slane %v4973, 4
      %v4976 = vrot.slane %v4608, 7
      %v4977 = vsel %vm2689, %v4975, %v4976
      %v4978 = vrot.slane %v4976, 4
      %v4979 = vrot.slane %v4620, 7
      %v4980 = vsel %vm2689, %v4978, %v4979
      %v4981 = vrot.slane %v4979, 4
      %v4982 = vrot.slane %v4632, 7
      %v4983 = vsel %vm2689, %v4981, %v4982
      %v4984 = vrot.slane %v4982, 4
      %v4985 = vrot.slane %v4644, 7
      %v4986 = vsel %vm2689, %v4984, %v4985
      %v4987 = vrot.slane %v4985, 4
      %v4988 = vrot.slane %v4656, 7
      %v4989 = vsel %vm2689, %v4987, %v4988
      %v4990 = vrot.slane %v4988, 4
      %v4991 = vrot.slane %v4668, 7
      %v4992 = vsel %vm2689, %v4990, %v4991
      %v4993 = vrot.slane %v4991, 4
      %v4994 = vrot.slane %v4680, 7
      %v4995 = vsel %vm2689, %v4993, %v4994
      %v4996 = vrot.slane %v4994, 4
      %v4997 = vrot.slane %v4692, 7
      %v4998 = vsel %vm2689, %v4996, %v4997
      %v4999 = vrot.slane %v4997, 4
      %v5000 = vrot.slane %v4704, 7
      %v5001 = vsel %vm2689, %v4999, %v5000
      %v5002 = vrot.slane %v5000, 4
      %v5003 = vrot.slane %v4716, 7
      %v5004 = vsel %vm2689, %v5002, %v5003
      %v5005 = vrot.slane %v5003, 4
      %v5006 = vrot.slane %v4728, 7
      %v5007 = vsel %vm2689, %v5005, %v5006
      %v5008 = vrot.slane %v5006, 4
      %v5009 = vrot.slane %v4740, 7
      %v5010 = vsel %vm2689, %v5008, %v5009
      %v5011 = vrot.slane %v5009, 4
      %v5012 = vrot.slane %v4752, 7
      %v5013 = vsel %vm2689, %v5011, %v5012
      %v5014 = vrot.slane %v5012, 4
      %v5015 = vrot.slane %v4764, 7
      %v5016 = vsel %vm2689, %v5014, %v5015
      %v5017 = vrot.slane %v5015, 4
      %v5018 = vrot.slane %v4776, 7
      %v5019 = vsel %vm2689, %v5017, %v5018
      %v5020 = vrot.slane %v5018, 4
      %v5021 = vrot.slane %v4788, 7
      %v5022 = vsel %vm2689, %v5020, %v5021
      %v5023 = vrot.slane %v5021, 4
      %v5024 = vrot.slane %v4800, 7
      %v5025 = vsel %vm2689, %v5023, %v5024
      %v5026 = vrot.slane %v5024, 4
      %v5027 = vrot.slane %v4812, 7
      %v5028 = vsel %vm2689, %v5026, %v5027
      %v5029 = vrot.slane %v5027, 4
      %v5030 = vrot.slane %v4824, 7
      %v5031 = vsel %vm2689, %v5029, %v5030
      %v5032 = vrot.slane %v5030, 4
      %v5033 = vrot.slane %v4836, 7
      %v5034 = vsel %vm2689, %v5032, %v5033
      %v5035 = vrot.slane %v5033, 4
      %v5036 = vrot.slane %v4848, 7
      %v5037 = vsel %vm2689, %v5035, %v5036
      %v5038 = vrot.slane %v5036, 4
      %v5039 = vrot.slane %v4860, 7
      %v5040 = vsel %vm2689, %v5038, %v5039
      %v5041 = vrot.slane %v5039, 4
      %v5042 = vrot.slane %v4872, 7
      %v5043 = vsel %vm2689, %v5041, %v5042
      %v5044 = vrot.slane %v5042, 4
      %v5045 = vrot.slane %v4884, 7
      %v5046 = vsel %vm2689, %v5044, %v5045
      %v5047 = vrot.slane %v5045, 4
      %v5048 = vrot.slane %v4896, 7
      %v5049 = vsel %vm2689, %v5047, %v5048
      %v5050 = vrot.slane %v5048, 4
      %v5051 = vrot.slane %v4908, 7
      %v5052 = vsel %vm2689, %v5050, %v5051
      %v5053 = vrot.slane %v5051, 4
      %v5054 = vrot.slane %v4920, 7
      %v5055 = vsel %vm2689, %v5053, %v5054
      %v5056 = vrot.slane %v5054, 4
      %v5057 = vrot.slane %v4932, 7
      %v5058 = vsel %vm2689, %v5056, %v5057
      %v5059 = vrot.slane %v5057, 4
      %v5093 = vmul.bf16 %v4515, %v4965
      %v5094 = vmul.bf16 %v4022, %v4968
      %v5095 = vmul.bf16 %v4023, %v4971
      %v5096 = vmul.bf16 %v4024, %v4974
      %v5097 = vmul.bf16 %v4025, %v4977
      %v5098 = vmul.bf16 %v4026, %v4980
      %v5099 = vmul.bf16 %v4027, %v4983
      %v5100 = vmul.bf16 %v4028, %v4986
      %v5101 = vmul.bf16 %v4029, %v4989
      %v5102 = vmul.bf16 %v4030, %v4992
      %v5103 = vmul.bf16 %v4031, %v4995
      %v5104 = vmul.bf16 %v4032, %v4998
      %v5105 = vmul.bf16 %v4033, %v5001
      %v5106 = vmul.bf16 %v4034, %v5004
      %v5107 = vmul.bf16 %v4035, %v5007
      %v5108 = vmul.bf16 %v4036, %v5010
      %v5109 = vmul.bf16 %v4037, %v5013
      %v5110 = vmul.bf16 %v4038, %v5016
      %v5111 = vmul.bf16 %v4039, %v5019
      %v5112 = vmul.bf16 %v4040, %v5022
      %v5113 = vmul.bf16 %v4041, %v5025
      %v5114 = vmul.bf16 %v4042, %v5028
      %v5115 = vmul.bf16 %v4043, %v5031
      %v5116 = vmul.bf16 %v4044, %v5034
      %v5117 = vmul.bf16 %v4045, %v5037
      %v5118 = vmul.bf16 %v4046, %v5040
      %v5119 = vmul.bf16 %v4047, %v5043
      %v5120 = vmul.bf16 %v4048, %v5046
      %v5121 = vmul.bf16 %v4049, %v5049
      %v5122 = vmul.bf16 %v4050, %v5052
      %v5123 = vmul.bf16 %v4051, %v5055
      %v5124 = vmul.bf16 %v4052, %v5058
      %v5125 = vmul.bf16 %v4053, %v5059
      %s5126 = scalar_lea.vmem %s1, 10
      %v5127 = vld [vmem:[%s5126] sm:$0x3]
      %v5161 = vunpack.c.l.b16 %v5093
      %v5162 = vunpack.c.l.b16 %v5094
      %v5163 = vunpack.c.l.b16 %v5095
      %v5164 = vunpack.c.l.b16 %v5096
      %v5165 = vunpack.c.l.b16 %v5097
      %v5166 = vunpack.c.l.b16 %v5098
      %v5167 = vunpack.c.l.b16 %v5099
      %v5168 = vunpack.c.l.b16 %v5100
      %v5169 = vunpack.c.l.b16 %v5101
      %v5170 = vunpack.c.l.b16 %v5102
      %v5171 = vunpack.c.l.b16 %v5103
      %v5172 = vunpack.c.l.b16 %v5104
      %v5173 = vunpack.c.l.b16 %v5105
      %v5174 = vunpack.c.l.b16 %v5106
      %v5175 = vunpack.c.l.b16 %v5107
      %v5176 = vunpack.c.l.b16 %v5108
      %v5177 = vunpack.c.l.b16 %v5109
      %v5178 = vunpack.c.l.b16 %v5110
      %v5179 = vunpack.c.l.b16 %v5111
      %v5180 = vunpack.c.l.b16 %v5112
      %v5181 = vunpack.c.l.b16 %v5113
      %v5182 = vunpack.c.l.b16 %v5114
      %v5183 = vunpack.c.l.b16 %v5115
      %v5184 = vunpack.c.l.b16 %v5116
      %v5185 = vunpack.c.l.b16 %v5117
      %v5186 = vunpack.c.l.b16 %v5118
      %v5187 = vunpack.c.l.b16 %v5119
      %v5188 = vunpack.c.l.b16 %v5120
      %v5189 = vunpack.c.l.b16 %v5121
      %v5190 = vunpack.c.l.b16 %v5122
      %v5191 = vunpack.c.l.b16 %v5123
      %v5192 = vunpack.c.l.b16 %v5124
      %v5193 = vunpack.c.l.b16 %v5125
      %v5194 = vpack.c.b16 %v5162, %v5161
      %v5195 = vpack.c.b16 %v5164, %v5163
      %v5196 = vpack.c.b16 %v5166, %v5165
      %v5197 = vpack.c.b16 %v5168, %v5167
      %v5198 = vpack.c.b16 %v5170, %v5169
      %v5199 = vpack.c.b16 %v5172, %v5171
      %v5200 = vpack.c.b16 %v5174, %v5173
      %v5201 = vpack.c.b16 %v5176, %v5175
      %v5202 = vpack.c.b16 %v5178, %v5177
      %v5203 = vpack.c.b16 %v5180, %v5179
      %v5204 = vpack.c.b16 %v5182, %v5181
      %v5205 = vpack.c.b16 %v5184, %v5183
      %v5206 = vpack.c.b16 %v5186, %v5185
      %v5207 = vpack.c.b16 %v5188, %v5187
      %v5208 = vpack.c.b16 %v5190, %v5189
      %v5209 = vpack.c.b16 %v5192, %v5191
      %v5210 = vpack.c.b16 %v5193, %v5193
      %v5211 = vrot.slane %v5194, 1
      %v5212 = vrot.slane %v5195, 1
      %v5213 = vsel %vm2936, %v5211, %v5212
      %v5214 = vrot.slane %v5196, 1
      %v5215 = vsel %vm2936, %v5212, %v5214
      %v5216 = vrot.slane %v5197, 1
      %v5217 = vsel %vm2936, %v5214, %v5216
      %v5218 = vrot.slane %v5198, 1
      %v5219 = vsel %vm2936, %v5216, %v5218
      %v5220 = vrot.slane %v5199, 1
      %v5221 = vsel %vm2936, %v5218, %v5220
      %v5222 = vrot.slane %v5200, 1
      %v5223 = vsel %vm2936, %v5220, %v5222
      %v5224 = vrot.slane %v5201, 1
      %v5225 = vsel %vm2936, %v5222, %v5224
      %v5226 = vrot.slane %v5202, 1
      %v5227 = vsel %vm2936, %v5224, %v5226
      %v5228 = vrot.slane %v5203, 1
      %v5229 = vsel %vm2936, %v5226, %v5228
      %v5230 = vrot.slane %v5204, 1
      %v5231 = vsel %vm2936, %v5228, %v5230
      %v5232 = vrot.slane %v5205, 1
      %v5233 = vsel %vm2936, %v5230, %v5232
      %v5234 = vrot.slane %v5206, 1
      %v5235 = vsel %vm2936, %v5232, %v5234
      %v5236 = vrot.slane %v5207, 1
      %v5237 = vsel %vm2936, %v5234, %v5236
      %v5238 = vrot.slane %v5208, 1
      %v5239 = vsel %vm2936, %v5236, %v5238
      %v5240 = vrot.slane %v5209, 1
      %v5241 = vsel %vm2936, %v5238, %v5240
      %v5242 = vrot.slane %v5210, 1
      %v5243 = vsel %vm2936, %v5240, %v5242
      %v5245 = vsel %vm1731, %v5213, 0
      %v5248 = vsel %vm1731, %v5215, 0
      %v5251 = vsel %vm1731, %v5217, 0
      %v5254 = vsel %vm1731, %v5219, 0
      %v5257 = vsel %vm1731, %v5221, 0
      %v5260 = vsel %vm1731, %v5223, 0
      %v5263 = vsel %vm1731, %v5225, 0
      %v5266 = vsel %vm1731, %v5227, 0
      %v5269 = vsel %vm1731, %v5229, 0
      %v5272 = vsel %vm1731, %v5231, 0
      %v5275 = vsel %vm1731, %v5233, 0
      %v5278 = vsel %vm1731, %v5235, 0
      %v5281 = vsel %vm1731, %v5237, 0
      %v5284 = vsel %vm1731, %v5239, 0
      %v5287 = vsel %vm1731, %v5241, 0
      %v5290 = vsel %vm1731, %v5243, 0
      %v5293 = vsel %vm1780, %v5127, 0
      %5295 = vmatprep.subr.bf16.mxu0 0
      %5296 = vmatpush1.bf16.msra.mxu0 %v5293
      %5297 = vmatprep.subr.bf16.mxu0 0
      %5298 = vmatpush1.bf16.msra.mxu0 0
      %5299 = vmatprep.subr.bf16.mxu0 0
      %5300 = vmatpush1.bf16.msra.mxu0 0
      %5301 = vmatprep.subr.bf16.mxu0 0
      %5302 = vmatpush1.bf16.msra.mxu0 0
      %5303 = vmatprep.subr.bf16.mxu0 0
      %5304 = vmatpush1.bf16.msra.mxu0 0
      %5305 = vmatprep.subr.bf16.mxu0 0
      %5306 = vmatpush1.bf16.msra.mxu0 0
      %5307 = vmatprep.subr.bf16.mxu0 0
      %5308 = vmatpush1.bf16.msra.mxu0 0
      %5309 = vmatprep.subr.bf16.mxu0 0
      %5310 = vmatpush1.bf16.msra.mxu0 0
      %5311 = vmatprep.subr.bf16.mxu0 0
      %5312 = vmatpush1.bf16.msra.mxu0 0
      %5313 = vmatprep.subr.bf16.mxu0 0
      %5314 = vmatpush1.bf16.msra.mxu0 0
      %5315 = vmatprep.subr.bf16.mxu0 0
      %5316 = vmatpush1.bf16.msra.mxu0 0
      %5317 = vmatprep.subr.bf16.mxu0 0
      %5318 = vmatpush1.bf16.msra.mxu0 0
      %5319 = vmatprep.subr.bf16.mxu0 0
      %5320 = vmatpush1.bf16.msra.mxu0 0
      %5321 = vmatprep.subr.bf16.mxu0 0
      %5322 = vmatpush1.bf16.msra.mxu0 0
      %5323 = vmatprep.subr.bf16.mxu0 0
      %5324 = vmatpush1.bf16.msra.mxu0 0
      %5325 = vmatprep.subr.bf16.mxu0 0
      %5326 = vmatpush1.bf16.msra.mxu0 0
      %5327 = vmatprep.mubr.bf16.mxu0 0
      %5328 = vmatmul.mubr.bf16.gmra.mrb[0].mxu0 %v5245
      %v5329 = vpop.f32.mrb[0].mxu0
      %v5330 = vadd.f32 0.0, %v5329
      %v5331 = vpop.f32.mrb[0].mxu0
      %v5332 = vpop.f32.mrb[0].mxu0
      %v5333 = vadd.f32 0.0, %v5332
      %v5334 = vpop.f32.mrb[0].mxu0
      %5335 = vmatprep.mubr.bf16.mxu0 0
      %5336 = vmatmul.mubr.bf16.gmra.mrb[0].mxu0 %v5248
      %v5337 = vpop.f32.mrb[0].mxu0
      %v5338 = vadd.f32 0.0, %v5337
      %v5339 = vpop.f32.mrb[0].mxu0
      %v5340 = vpop.f32.mrb[0].mxu0
      %v5341 = vadd.f32 0.0, %v5340
      %v5342 = vpop.f32.mrb[0].mxu0
      %5343 = vmatprep.mubr.bf16.mxu0 0
      %5344 = vmatmul.mubr.bf16.gmra.mrb[0].mxu0 %v5251
      %v5345 = vpop.f32.mrb[0].mxu0
      %v5346 = vadd.f32 0.0, %v5345
      %v5347 = vpop.f32.mrb[0].mxu0
      %v5348 = vpop.f32.mrb[0].mxu0
      %v5349 = vadd.f32 0.0, %v5348
      %v5350 = vpop.f32.mrb[0].mxu0
      %5351 = vmatprep.mubr.bf16.mxu0 0
      %5352 = vmatmul.mubr.bf16.gmra.mrb[0].mxu0 %v5254
      %v5353 = vpop.f32.mrb[0].mxu0
      %v5354 = vadd.f32 0.0, %v5353
      %v5355 = vpop.f32.mrb[0].mxu0
      %v5356 = vpop.f32.mrb[0].mxu0
      %v5357 = vadd.f32 0.0, %v5356
      %v5358 = vpop.f32.mrb[0].mxu0
      %5359 = vmatprep.mubr.bf16.mxu0 0
      %5360 = vmatmul.mubr.bf16.gmra.mrb[0].mxu0 %v5257
      %v5361 = vpop.f32.mrb[0].mxu0
      %v5362 = vadd.f32 0.0, %v5361
      %v5363 = vpop.f32.mrb[0].mxu0
      %v5364 = vpop.f32.mrb[0].mxu0
      %v5365 = vadd.f32 0.0, %v5364
      %v5366 = vpop.f32.mrb[0].mxu0
      %5367 = vmatprep.mubr.bf16.mxu0 0
      %5368 = vmatmul.mubr.bf16.gmra.mrb[0].mxu0 %v5260
      %v5369 = vpop.f32.mrb[0].mxu0
      %v5370 = vadd.f32 0.0, %v5369
      %v5371 = vpop.f32.mrb[0].mxu0
      %v5372 = vpop.f32.mrb[0].mxu0
      %v5373 = vadd.f32 0.0, %v5372
      %v5374 = vpop.f32.mrb[0].mxu0
      %5375 = vmatprep.mubr.bf16.mxu0 0
      %5376 = vmatmul.mubr.bf16.gmra.mrb[0].mxu0 %v5263
      %v5377 = vpop.f32.mrb[0].mxu0
      %v5378 = vadd.f32 0.0, %v5377
      %v5379 = vpop.f32.mrb[0].mxu0
      %v5380 = vpop.f32.mrb[0].mxu0
      %v5381 = vadd.f32 0.0, %v5380
      %v5382 = vpop.f32.mrb[0].mxu0
      %5383 = vmatprep.mubr.bf16.mxu0 0
      %5384 = vmatmul.mubr.bf16.gmra.mrb[0].mxu0 %v5266
      %v5385 = vpop.f32.mrb[0].mxu0
      %v5386 = vadd.f32 0.0, %v5385
      %v5387 = vpop.f32.mrb[0].mxu0
      %v5388 = vpop.f32.mrb[0].mxu0
      %v5389 = vadd.f32 0.0, %v5388
      %v5390 = vpop.f32.mrb[0].mxu0
      %5391 = vmatprep.mubr.bf16.mxu0 0
      %5392 = vmatmul.mubr.bf16.gmra.mrb[0].mxu0 %v5269
      %v5393 = vpop.f32.mrb[0].mxu0
      %v5394 = vadd.f32 0.0, %v5393
      %v5395 = vpop.f32.mrb[0].mxu0
      %v5396 = vpop.f32.mrb[0].mxu0
      %v5397 = vadd.f32 0.0, %v5396
      %v5398 = vpop.f32.mrb[0].mxu0
      %5399 = vmatprep.mubr.bf16.mxu0 0
      %5400 = vmatmul.mubr.bf16.gmra.mrb[0].mxu0 %v5272
      %v5401 = vpop.f32.mrb[0].mxu0
      %v5402 = vadd.f32 0.0, %v5401
      %v5403 = vpop.f32.mrb[0].mxu0
      %v5404 = vpop.f32.mrb[0].mxu0
      %v5405 = vadd.f32 0.0, %v5404
      %v5406 = vpop.f32.mrb[0].mxu0
      %5407 = vmatprep.mubr.bf16.mxu0 0
      %5408 = vmatmul.mubr.bf16.gmra.mrb[0].mxu0 %v5275
      %v5409 = vpop.f32.mrb[0].mxu0
      %v5410 = vadd.f32 0.0, %v5409
      %v5411 = vpop.f32.mrb[0].mxu0
      %v5412 = vpop.f32.mrb[0].mxu0
      %v5413 = vadd.f32 0.0, %v5412
      %v5414 = vpop.f32.mrb[0].mxu0
      %5415 = vmatprep.mubr.bf16.mxu0 0
      %5416 = vmatmul.mubr.bf16.gmra.mrb[0].mxu0 %v5278
      %v5417 = vpop.f32.mrb[0].mxu0
      %v5418 = vadd.f32 0.0, %v5417
      %v5419 = vpop.f32.mrb[0].mxu0
      %v5420 = vpop.f32.mrb[0].mxu0
      %v5421 = vadd.f32 0.0, %v5420
      %v5422 = vpop.f32.mrb[0].mxu0
      %5423 = vmatprep.mubr.bf16.mxu0 0
      %5424 = vmatmul.mubr.bf16.gmra.mrb[0].mxu0 %v5281
      %v5425 = vpop.f32.mrb[0].mxu0
      %v5426 = vadd.f32 0.0, %v5425
      %v5427 = vpop.f32.mrb[0].mxu0
      %v5428 = vpop.f32.mrb[0].mxu0
      %v5429 = vadd.f32 0.0, %v5428
      %v5430 = vpop.f32.mrb[0].mxu0
      %5431 = vmatprep.mubr.bf16.mxu0 0
      %5432 = vmatmul.mubr.bf16.gmra.mrb[0].mxu0 %v5284
      %v5433 = vpop.f32.mrb[0].mxu0
      %v5434 = vadd.f32 0.0, %v5433
      %v5435 = vpop.f32.mrb[0].mxu0
      %v5436 = vpop.f32.mrb[0].mxu0
      %v5437 = vadd.f32 0.0, %v5436
      %v5438 = vpop.f32.mrb[0].mxu0
      %5439 = vmatprep.mubr.bf16.mxu0 0
      %5440 = vmatmul.mubr.bf16.gmra.mrb[0].mxu0 %v5287
      %v5441 = vpop.f32.mrb[0].mxu0
      %v5442 = vadd.f32 0.0, %v5441
      %v5443 = vpop.f32.mrb[0].mxu0
      %v5444 = vpop.f32.mrb[0].mxu0
      %v5445 = vadd.f32 0.0, %v5444
      %v5446 = vpop.f32.mrb[0].mxu0
      %5447 = vmatprep.mubr.bf16.mxu0 0
      %5448 = vmatmul.mubr.bf16.gmra.mrb[0].mxu0 %v5290
      %v5449 = vpop.f32.mrb[0].mxu0
      %v5450 = vadd.f32 0.0, %v5449
      %v5451 = vpop.f32.mrb[0].mxu0
      %v5452 = vpop.f32.mrb[0].mxu0
      %v5453 = vadd.f32 0.0, %v5452
      %v5454 = vpop.f32.mrb[0].mxu0
      %5455 = vdwg.mxu0
      %v5456 = vadd.f32 %v4483, %v5330
      %v5457 = vadd.f32 %v4484, %v5333
      %v5458 = vadd.f32 %v4485, %v5338
      %v5459 = vadd.f32 %v4486, %v5341
      %v5460 = vadd.f32 %v4487, %v5346
      %v5461 = vadd.f32 %v4488, %v5349
      %v5462 = vadd.f32 %v4489, %v5354
      %v5463 = vadd.f32 %v4490, %v5357
      %v5464 = vadd.f32 %v4491, %v5362
      %v5465 = vadd.f32 %v4492, %v5365
      %v5466 = vadd.f32 %v4493, %v5370
      %v5467 = vadd.f32 %v4494, %v5373
      %v5468 = vadd.f32 %v4495, %v5378
      %v5469 = vadd.f32 %v4496, %v5381
      %v5470 = vadd.f32 %v4497, %v5386
      %v5471 = vadd.f32 %v4498, %v5389
      %v5472 = vadd.f32 %v4499, %v5394
      %v5473 = vadd.f32 %v4500, %v5397
      %v5474 = vadd.f32 %v4501, %v5402
      %v5475 = vadd.f32 %v4502, %v5405
      %v5476 = vadd.f32 %v4503, %v5410
      %v5477 = vadd.f32 %v4504, %v5413
      %v5478 = vadd.f32 %v4505, %v5418
      %v5479 = vadd.f32 %v4506, %v5421
      %v5480 = vadd.f32 %v4507, %v5426
      %v5481 = vadd.f32 %v4508, %v5429
      %v5482 = vadd.f32 %v4509, %v5434
      %v5483 = vadd.f32 %v4510, %v5437
      %v5484 = vadd.f32 %v4511, %v5442
      %v5485 = vadd.f32 %v4512, %v5445
      %v5486 = vadd.f32 %v4513, %v5450
      %v5487 = vadd.f32 %v4514, %v5453
      %v5488 = vld [vmem:[%s219 + $0x10] sm:$0xf]
      %v5489 = vld [vmem:[%s219 + $0x14] sm:$0xf]
      %v5490 = vld [vmem:[%s219 + $0x18] sm:$0xf]
      %v5491 = vld [vmem:[%s219 + $0x1c] sm:$0xf]
      %v5492 = vld [vmem:[%s219 + $0x20] sm:$0xf]
      %v5493 = vld [vmem:[%s219 + $0x24] sm:$0xf]
      %v5494 = vld [vmem:[%s219 + $0x28] sm:$0xf]
      %v5495 = vld [vmem:[%s219 + $0x2c] sm:$0xf]
      %v5496 = vld [vmem:[%s219 + $0x30] sm:$0xf]
      %v5497 = vld [vmem:[%s219 + $0x34] sm:$0xf]
      %v5498 = vld [vmem:[%s219 + $0x38] sm:$0xf]
      %v5499 = vld [vmem:[%s219 + $0x3c] sm:$0xf]
      %v5500 = vld [vmem:[%s219 + $0x40] sm:$0xf]
      %v5501 = vld [vmem:[%s219 + $0x44] sm:$0xf]
      %v5502 = vld [vmem:[%s219 + $0x48] sm:$0xf]
      %v5503 = vld [vmem:[%s219 + $0x4c] sm:$0xf]
      %v5504 = vld [vmem:[%s219 + $0x50] sm:$0xf]
      %v5505 = vld [vmem:[%s219 + $0x54] sm:$0xf]
      %v5506 = vld [vmem:[%s219 + $0x58] sm:$0xf]
      %v5507 = vld [vmem:[%s219 + $0x5c] sm:$0xf]
      %v5508 = vld [vmem:[%s219 + $0x60] sm:$0xf]
      %v5509 = vld [vmem:[%s219 + $0x64] sm:$0xf]
      %v5510 = vld [vmem:[%s219 + $0x68] sm:$0xf]
      %v5511 = vld [vmem:[%s219 + $0x6c] sm:$0xf]
      %v5512 = vld [vmem:[%s219 + $0x70] sm:$0xf]
      %v5513 = vld [vmem:[%s219 + $0x74] sm:$0xf]
      %v5514 = vld [vmem:[%s219 + $0x78] sm:$0xf]
      %v5515 = vld [vmem:[%s219 + $0x7c] sm:$0xf]
      %v5516 = vld [vmem:[%s219 + $0x80] sm:$0xf]
      %v5517 = vld [vmem:[%s219 + $0x84] sm:$0xf]
      %v5518 = vld [vmem:[%s219 + $0x88] sm:$0xf]
      %v5519 = vld [vmem:[%s219 + $0x8c] sm:$0xf]
      %s5520 = scalar_lea.vmem %s2, 768
      %v5521 = vld [vmem:[%s5520] sm:$0xf]
      %v5522 = vld [vmem:[%s5520 + $0x4] sm:$0xf]
      %v5523 = vld [vmem:[%s5520 + $0x8] sm:$0xf]
      %v5524 = vld [vmem:[%s5520 + $0xc] sm:$0xf]
      %v5525 = vld [vmem:[%s5520 + $0x10] sm:$0xf]
      %v5526 = vld [vmem:[%s5520 + $0x14] sm:$0xf]
      %v5527 = vld [vmem:[%s5520 + $0x18] sm:$0xf]
      %v5528 = vld [vmem:[%s5520 + $0x1c] sm:$0xf]
      %v5529 = vld [vmem:[%s5520 + $0x20] sm:$0xf]
      %v5530 = vld [vmem:[%s5520 + $0x24] sm:$0xf]
      %v5531 = vld [vmem:[%s5520 + $0x28] sm:$0xf]
      %v5532 = vld [vmem:[%s5520 + $0x2c] sm:$0xf]
      %v5533 = vld [vmem:[%s5520 + $0x30] sm:$0xf]
      %v5534 = vld [vmem:[%s5520 + $0x34] sm:$0xf]
      %v5535 = vld [vmem:[%s5520 + $0x38] sm:$0xf]
      %v5536 = vld [vmem:[%s5520 + $0x3c] sm:$0xf]
      %v5537 = vld [vmem:[%s5520 + $0x40] sm:$0xf]
      %v5538 = vld [vmem:[%s5520 + $0x44] sm:$0xf]
      %v5539 = vld [vmem:[%s5520 + $0x48] sm:$0xf]
      %v5540 = vld [vmem:[%s5520 + $0x4c] sm:$0xf]
      %v5541 = vld [vmem:[%s5520 + $0x50] sm:$0xf]
      %v5542 = vld [vmem:[%s5520 + $0x54] sm:$0xf]
      %v5543 = vld [vmem:[%s5520 + $0x58] sm:$0xf]
      %v5544 = vld [vmem:[%s5520 + $0x5c] sm:$0xf]
      %v5545 = vld [vmem:[%s5520 + $0x60] sm:$0xf]
      %v5546 = vld [vmem:[%s5520 + $0x64] sm:$0xf]
      %v5547 = vld [vmem:[%s5520 + $0x68] sm:$0xf]
      %v5548 = vld [vmem:[%s5520 + $0x6c] sm:$0xf]
      %v5549 = vld [vmem:[%s5520 + $0x70] sm:$0xf]
      %v5550 = vld [vmem:[%s5520 + $0x74] sm:$0xf]
      %v5551 = vld [vmem:[%s5520 + $0x78] sm:$0xf]
      %v5552 = vld [vmem:[%s5520 + $0x7c] sm:$0xf]
      %5554 = vset.pattern.permute.xlu0 0
      %5555 = vperm.xlu0 %5554, %v5521
      %v5556 = vpop.permute.xlu0 %5555
      %v5559 = vunpack.c.l.s4 839922192
      %v5560 = vunpack.c.0.s8 %v5559
      %v5561 = vlaneseq
      %v5562 = vshrl.u32 %v5561, 7
      %v5563 = vsub.s32 %v5560, %v5562
      %v5564 = vrot.slane %v5556, %v5563
      %5566 = vset.pattern.permute.xlu0 0
      %5567 = vperm.xlu0 %5566, %v5522
      %v5568 = vpop.permute.xlu0 %5567
      %v5571 = vunpack.c.l.s4 839922192
      %v5572 = vunpack.c.0.s8 %v5571
      %v5573 = vlaneseq
      %v5574 = vshrl.u32 %v5573, 7
      %v5575 = vsub.s32 %v5572, %v5574
      %v5576 = vrot.slane %v5568, %v5575
      %5578 = vset.pattern.permute.xlu0 0
      %5579 = vperm.xlu0 %5578, %v5523
      %v5580 = vpop.permute.xlu0 %5579
      %v5583 = vunpack.c.l.s4 839922192
      %v5584 = vunpack.c.0.s8 %v5583
      %v5585 = vlaneseq
      %v5586 = vshrl.u32 %v5585, 7
      %v5587 = vsub.s32 %v5584, %v5586
      %v5588 = vrot.slane %v5580, %v5587
      %5590 = vset.pattern.permute.xlu0 0
      %5591 = vperm.xlu0 %5590, %v5524
      %v5592 = vpop.permute.xlu0 %5591
      %v5595 = vunpack.c.l.s4 839922192
      %v5596 = vunpack.c.0.s8 %v5595
      %v5597 = vlaneseq
      %v5598 = vshrl.u32 %v5597, 7
      %v5599 = vsub.s32 %v5596, %v5598
      %v5600 = vrot.slane %v5592, %v5599
      %5602 = vset.pattern.permute.xlu0 0
      %5603 = vperm.xlu0 %5602, %v5525
      %v5604 = vpop.permute.xlu0 %5603
      %v5607 = vunpack.c.l.s4 839922192
      %v5608 = vunpack.c.0.s8 %v5607
      %v5609 = vlaneseq
      %v5610 = vshrl.u32 %v5609, 7
      %v5611 = vsub.s32 %v5608, %v5610
      %v5612 = vrot.slane %v5604, %v5611
      %5614 = vset.pattern.permute.xlu0 0
      %5615 = vperm.xlu0 %5614, %v5526
      %v5616 = vpop.permute.xlu0 %5615
      %v5619 = vunpack.c.l.s4 839922192
      %v5620 = vunpack.c.0.s8 %v5619
      %v5621 = vlaneseq
      %v5622 = vshrl.u32 %v5621, 7
      %v5623 = vsub.s32 %v5620, %v5622
      %v5624 = vrot.slane %v5616, %v5623
      %5626 = vset.pattern.permute.xlu0 0
      %5627 = vperm.xlu0 %5626, %v5527
      %v5628 = vpop.permute.xlu0 %5627
      %v5631 = vunpack.c.l.s4 839922192
      %v5632 = vunpack.c.0.s8 %v5631
      %v5633 = vlaneseq
      %v5634 = vshrl.u32 %v5633, 7
      %v5635 = vsub.s32 %v5632, %v5634
      %v5636 = vrot.slane %v5628, %v5635
      %5638 = vset.pattern.permute.xlu0 0
      %5639 = vperm.xlu0 %5638, %v5528
      %v5640 = vpop.permute.xlu0 %5639
      %v5643 = vunpack.c.l.s4 839922192
      %v5644 = vunpack.c.0.s8 %v5643
      %v5645 = vlaneseq
      %v5646 = vshrl.u32 %v5645, 7
      %v5647 = vsub.s32 %v5644, %v5646
      %v5648 = vrot.slane %v5640, %v5647
      %5650 = vset.pattern.permute.xlu0 0
      %5651 = vperm.xlu0 %5650, %v5529
      %v5652 = vpop.permute.xlu0 %5651
      %v5655 = vunpack.c.l.s4 839922192
      %v5656 = vunpack.c.0.s8 %v5655
      %v5657 = vlaneseq
      %v5658 = vshrl.u32 %v5657, 7
      %v5659 = vsub.s32 %v5656, %v5658
      %v5660 = vrot.slane %v5652, %v5659
      %5662 = vset.pattern.permute.xlu0 0
      %5663 = vperm.xlu0 %5662, %v5530
      %v5664 = vpop.permute.xlu0 %5663
      %v5667 = vunpack.c.l.s4 839922192
      %v5668 = vunpack.c.0.s8 %v5667
      %v5669 = vlaneseq
      %v5670 = vshrl.u32 %v5669, 7
      %v5671 = vsub.s32 %v5668, %v5670
      %v5672 = vrot.slane %v5664, %v5671
      %5674 = vset.pattern.permute.xlu0 0
      %5675 = vperm.xlu0 %5674, %v5531
      %v5676 = vpop.permute.xlu0 %5675
      %v5679 = vunpack.c.l.s4 839922192
      %v5680 = vunpack.c.0.s8 %v5679
      %v5681 = vlaneseq
      %v5682 = vshrl.u32 %v5681, 7
      %v5683 = vsub.s32 %v5680, %v5682
      %v5684 = vrot.slane %v5676, %v5683
      %5686 = vset.pattern.permute.xlu0 0
      %5687 = vperm.xlu0 %5686, %v5532
      %v5688 = vpop.permute.xlu0 %5687
      %v5691 = vunpack.c.l.s4 839922192
      %v5692 = vunpack.c.0.s8 %v5691
      %v5693 = vlaneseq
      %v5694 = vshrl.u32 %v5693, 7
      %v5695 = vsub.s32 %v5692, %v5694
      %v5696 = vrot.slane %v5688, %v5695
      %5698 = vset.pattern.permute.xlu0 0
      %5699 = vperm.xlu0 %5698, %v5533
      %v5700 = vpop.permute.xlu0 %5699
      %v5703 = vunpack.c.l.s4 839922192
      %v5704 = vunpack.c.0.s8 %v5703
      %v5705 = vlaneseq
      %v5706 = vshrl.u32 %v5705, 7
      %v5707 = vsub.s32 %v5704, %v5706
      %v5708 = vrot.slane %v5700, %v5707
      %5710 = vset.pattern.permute.xlu0 0
      %5711 = vperm.xlu0 %5710, %v5534
      %v5712 = vpop.permute.xlu0 %5711
      %v5715 = vunpack.c.l.s4 839922192
      %v5716 = vunpack.c.0.s8 %v5715
      %v5717 = vlaneseq
      %v5718 = vshrl.u32 %v5717, 7
      %v5719 = vsub.s32 %v5716, %v5718
      %v5720 = vrot.slane %v5712, %v5719
      %5722 = vset.pattern.permute.xlu0 0
      %5723 = vperm.xlu0 %5722, %v5535
      %v5724 = vpop.permute.xlu0 %5723
      %v5727 = vunpack.c.l.s4 839922192
      %v5728 = vunpack.c.0.s8 %v5727
      %v5729 = vlaneseq
      %v5730 = vshrl.u32 %v5729, 7
      %v5731 = vsub.s32 %v5728, %v5730
      %v5732 = vrot.slane %v5724, %v5731
      %5734 = vset.pattern.permute.xlu0 0
      %5735 = vperm.xlu0 %5734, %v5536
      %v5736 = vpop.permute.xlu0 %5735
      %v5739 = vunpack.c.l.s4 839922192
      %v5740 = vunpack.c.0.s8 %v5739
      %v5741 = vlaneseq
      %v5742 = vshrl.u32 %v5741, 7
      %v5743 = vsub.s32 %v5740, %v5742
      %v5744 = vrot.slane %v5736, %v5743
      %5746 = vset.pattern.permute.xlu0 0
      %5747 = vperm.xlu0 %5746, %v5537
      %v5748 = vpop.permute.xlu0 %5747
      %v5751 = vunpack.c.l.s4 839922192
      %v5752 = vunpack.c.0.s8 %v5751
      %v5753 = vlaneseq
      %v5754 = vshrl.u32 %v5753, 7
      %v5755 = vsub.s32 %v5752, %v5754
      %v5756 = vrot.slane %v5748, %v5755
      %5758 = vset.pattern.permute.xlu0 0
      %5759 = vperm.xlu0 %5758, %v5538
      %v5760 = vpop.permute.xlu0 %5759
      %v5763 = vunpack.c.l.s4 839922192
      %v5764 = vunpack.c.0.s8 %v5763
      %v5765 = vlaneseq
      %v5766 = vshrl.u32 %v5765, 7
      %v5767 = vsub.s32 %v5764, %v5766
      %v5768 = vrot.slane %v5760, %v5767
      %5770 = vset.pattern.permute.xlu0 0
      %5771 = vperm.xlu0 %5770, %v5539
      %v5772 = vpop.permute.xlu0 %5771
      %v5775 = vunpack.c.l.s4 839922192
      %v5776 = vunpack.c.0.s8 %v5775
      %v5777 = vlaneseq
      %v5778 = vshrl.u32 %v5777, 7
      %v5779 = vsub.s32 %v5776, %v5778
      %v5780 = vrot.slane %v5772, %v5779
      %5782 = vset.pattern.permute.xlu0 0
      %5783 = vperm.xlu0 %5782, %v5540
      %v5784 = vpop.permute.xlu0 %5783
      %v5787 = vunpack.c.l.s4 839922192
      %v5788 = vunpack.c.0.s8 %v5787
      %v5789 = vlaneseq
      %v5790 = vshrl.u32 %v5789, 7
      %v5791 = vsub.s32 %v5788, %v5790
      %v5792 = vrot.slane %v5784, %v5791
      %5794 = vset.pattern.permute.xlu0 0
      %5795 = vperm.xlu0 %5794, %v5541
      %v5796 = vpop.permute.xlu0 %5795
      %v5799 = vunpack.c.l.s4 839922192
      %v5800 = vunpack.c.0.s8 %v5799
      %v5801 = vlaneseq
      %v5802 = vshrl.u32 %v5801, 7
      %v5803 = vsub.s32 %v5800, %v5802
      %v5804 = vrot.slane %v5796, %v5803
      %5806 = vset.pattern.permute.xlu0 0
      %5807 = vperm.xlu0 %5806, %v5542
      %v5808 = vpop.permute.xlu0 %5807
      %v5811 = vunpack.c.l.s4 839922192
      %v5812 = vunpack.c.0.s8 %v5811
      %v5813 = vlaneseq
      %v5814 = vshrl.u32 %v5813, 7
      %v5815 = vsub.s32 %v5812, %v5814
      %v5816 = vrot.slane %v5808, %v5815
      %5818 = vset.pattern.permute.xlu0 0
      %5819 = vperm.xlu0 %5818, %v5543
      %v5820 = vpop.permute.xlu0 %5819
      %v5823 = vunpack.c.l.s4 839922192
      %v5824 = vunpack.c.0.s8 %v5823
      %v5825 = vlaneseq
      %v5826 = vshrl.u32 %v5825, 7
      %v5827 = vsub.s32 %v5824, %v5826
      %v5828 = vrot.slane %v5820, %v5827
      %5830 = vset.pattern.permute.xlu0 0
      %5831 = vperm.xlu0 %5830, %v5544
      %v5832 = vpop.permute.xlu0 %5831
      %v5835 = vunpack.c.l.s4 839922192
      %v5836 = vunpack.c.0.s8 %v5835
      %v5837 = vlaneseq
      %v5838 = vshrl.u32 %v5837, 7
      %v5839 = vsub.s32 %v5836, %v5838
      %v5840 = vrot.slane %v5832, %v5839
      %5842 = vset.pattern.permute.xlu0 0
      %5843 = vperm.xlu0 %5842, %v5545
      %v5844 = vpop.permute.xlu0 %5843
      %v5847 = vunpack.c.l.s4 839922192
      %v5848 = vunpack.c.0.s8 %v5847
      %v5849 = vlaneseq
      %v5850 = vshrl.u32 %v5849, 7
      %v5851 = vsub.s32 %v5848, %v5850
      %v5852 = vrot.slane %v5844, %v5851
      %5854 = vset.pattern.permute.xlu0 0
      %5855 = vperm.xlu0 %5854, %v5546
      %v5856 = vpop.permute.xlu0 %5855
      %v5859 = vunpack.c.l.s4 839922192
      %v5860 = vunpack.c.0.s8 %v5859
      %v5861 = vlaneseq
      %v5862 = vshrl.u32 %v5861, 7
      %v5863 = vsub.s32 %v5860, %v5862
      %v5864 = vrot.slane %v5856, %v5863
      %5866 = vset.pattern.permute.xlu0 0
      %5867 = vperm.xlu0 %5866, %v5547
      %v5868 = vpop.permute.xlu0 %5867
      %v5871 = vunpack.c.l.s4 839922192
      %v5872 = vunpack.c.0.s8 %v5871
      %v5873 = vlaneseq
      %v5874 = vshrl.u32 %v5873, 7
      %v5875 = vsub.s32 %v5872, %v5874
      %v5876 = vrot.slane %v5868, %v5875
      %5878 = vset.pattern.permute.xlu0 0
      %5879 = vperm.xlu0 %5878, %v5548
      %v5880 = vpop.permute.xlu0 %5879
      %v5883 = vunpack.c.l.s4 839922192
      %v5884 = vunpack.c.0.s8 %v5883
      %v5885 = vlaneseq
      %v5886 = vshrl.u32 %v5885, 7
      %v5887 = vsub.s32 %v5884, %v5886
      %v5888 = vrot.slane %v5880, %v5887
      %5890 = vset.pattern.permute.xlu0 0
      %5891 = vperm.xlu0 %5890, %v5549
      %v5892 = vpop.permute.xlu0 %5891
      %v5895 = vunpack.c.l.s4 839922192
      %v5896 = vunpack.c.0.s8 %v5895
      %v5897 = vlaneseq
      %v5898 = vshrl.u32 %v5897, 7
      %v5899 = vsub.s32 %v5896, %v5898
      %v5900 = vrot.slane %v5892, %v5899
      %5902 = vset.pattern.permute.xlu0 0
      %5903 = vperm.xlu0 %5902, %v5550
      %v5904 = vpop.permute.xlu0 %5903
      %v5907 = vunpack.c.l.s4 839922192
      %v5908 = vunpack.c.0.s8 %v5907
      %v5909 = vlaneseq
      %v5910 = vshrl.u32 %v5909, 7
      %v5911 = vsub.s32 %v5908, %v5910
      %v5912 = vrot.slane %v5904, %v5911
      %5914 = vset.pattern.permute.xlu0 0
      %5915 = vperm.xlu0 %5914, %v5551
      %v5916 = vpop.permute.xlu0 %5915
      %v5919 = vunpack.c.l.s4 839922192
      %v5920 = vunpack.c.0.s8 %v5919
      %v5921 = vlaneseq
      %v5922 = vshrl.u32 %v5921, 7
      %v5923 = vsub.s32 %v5920, %v5922
      %v5924 = vrot.slane %v5916, %v5923
      %5926 = vset.pattern.permute.xlu0 0
      %5927 = vperm.xlu0 %5926, %v5552
      %v5928 = vpop.permute.xlu0 %5927
      %v5931 = vunpack.c.l.s4 839922192
      %v5932 = vunpack.c.0.s8 %v5931
      %v5933 = vlaneseq
      %v5934 = vshrl.u32 %v5933, 7
      %v5935 = vsub.s32 %v5932, %v5934
      %v5936 = vrot.slane %v5928, %v5935
      %v5937 = vmul.bf16 %v5488, %v5564
      %v5938 = vmul.bf16 %v5489, %v5576
      %v5939 = vmul.bf16 %v5490, %v5588
      %v5940 = vmul.bf16 %v5491, %v5600
      %v5941 = vmul.bf16 %v5492, %v5612
      %v5942 = vmul.bf16 %v5493, %v5624
      %v5943 = vmul.bf16 %v5494, %v5636
      %v5944 = vmul.bf16 %v5495, %v5648
      %v5945 = vmul.bf16 %v5496, %v5660
      %v5946 = vmul.bf16 %v5497, %v5672
      %v5947 = vmul.bf16 %v5498, %v5684
      %v5948 = vmul.bf16 %v5499, %v5696
      %v5949 = vmul.bf16 %v5500, %v5708
      %v5950 = vmul.bf16 %v5501, %v5720
      %v5951 = vmul.bf16 %v5502, %v5732
      %v5952 = vmul.bf16 %v5503, %v5744
      %v5953 = vmul.bf16 %v5504, %v5756
      %v5954 = vmul.bf16 %v5505, %v5768
      %v5955 = vmul.bf16 %v5506, %v5780
      %v5956 = vmul.bf16 %v5507, %v5792
      %v5957 = vmul.bf16 %v5508, %v5804
      %v5958 = vmul.bf16 %v5509, %v5816
      %v5959 = vmul.bf16 %v5510, %v5828
      %v5960 = vmul.bf16 %v5511, %v5840
      %v5961 = vmul.bf16 %v5512, %v5852
      %v5962 = vmul.bf16 %v5513, %v5864
      %v5963 = vmul.bf16 %v5514, %v5876
      %v5964 = vmul.bf16 %v5515, %v5888
      %v5965 = vmul.bf16 %v5516, %v5900
      %v5966 = vmul.bf16 %v5517, %v5912
      %v5967 = vmul.bf16 %v5518, %v5924
      %v5968 = vmul.bf16 %v5519, %v5936
      %s5969 = scalar_lea.vmem %s1, 12
      %v5970 = vld [vmem:[%s5969] sm:$0x3]
      %v6003 = vunpack.c.l.b16 %v5937
      %v6004 = vunpack.c.l.b16 %v5938
      %v6005 = vunpack.c.l.b16 %v5939
      %v6006 = vunpack.c.l.b16 %v5940
      %v6007 = vunpack.c.l.b16 %v5941
      %v6008 = vunpack.c.l.b16 %v5942
      %v6009 = vunpack.c.l.b16 %v5943
      %v6010 = vunpack.c.l.b16 %v5944
      %v6011 = vunpack.c.l.b16 %v5945
      %v6012 = vunpack.c.l.b16 %v5946
      %v6013 = vunpack.c.l.b16 %v5947
      %v6014 = vunpack.c.l.b16 %v5948
      %v6015 = vunpack.c.l.b16 %v5949
      %v6016 = vunpack.c.l.b16 %v5950
      %v6017 = vunpack.c.l.b16 %v5951
      %v6018 = vunpack.c.l.b16 %v5952
      %v6019 = vunpack.c.l.b16 %v5953
      %v6020 = vunpack.c.l.b16 %v5954
      %v6021 = vunpack.c.l.b16 %v5955
      %v6022 = vunpack.c.l.b16 %v5956
      %v6023 = vunpack.c.l.b16 %v5957
      %v6024 = vunpack.c.l.b16 %v5958
      %v6025 = vunpack.c.l.b16 %v5959
      %v6026 = vunpack.c.l.b16 %v5960
      %v6027 = vunpack.c.l.b16 %v5961
      %v6028 = vunpack.c.l.b16 %v5962
      %v6029 = vunpack.c.l.b16 %v5963
      %v6030 = vunpack.c.l.b16 %v5964
      %v6031 = vunpack.c.l.b16 %v5965
      %v6032 = vunpack.c.l.b16 %v5966
      %v6033 = vunpack.c.l.b16 %v5967
      %v6034 = vunpack.c.l.b16 %v5968
      %v6035 = vpack.c.b16 %v6004, %v6003
      %v6036 = vpack.c.b16 %v6006, %v6005
      %v6037 = vpack.c.b16 %v6008, %v6007
      %v6038 = vpack.c.b16 %v6010, %v6009
      %v6039 = vpack.c.b16 %v6012, %v6011
      %v6040 = vpack.c.b16 %v6014, %v6013
      %v6041 = vpack.c.b16 %v6016, %v6015
      %v6042 = vpack.c.b16 %v6018, %v6017
      %v6043 = vpack.c.b16 %v6020, %v6019
      %v6044 = vpack.c.b16 %v6022, %v6021
      %v6045 = vpack.c.b16 %v6024, %v6023
      %v6046 = vpack.c.b16 %v6026, %v6025
      %v6047 = vpack.c.b16 %v6028, %v6027
      %v6048 = vpack.c.b16 %v6030, %v6029
      %v6049 = vpack.c.b16 %v6032, %v6031
      %v6050 = vpack.c.b16 %v6034, %v6033
      %v6052 = vsel %vm1731, %v6035, 0
      %v6055 = vsel %vm1731, %v6036, 0
      %v6058 = vsel %vm1731, %v6037, 0
      %v6061 = vsel %vm1731, %v6038, 0
      %v6064 = vsel %vm1731, %v6039, 0
      %v6067 = vsel %vm1731, %v6040, 0
      %v6070 = vsel %vm1731, %v6041, 0
      %v6073 = vsel %vm1731, %v6042, 0
      %v6076 = vsel %vm1731, %v6043, 0
      %v6079 = vsel %vm1731, %v6044, 0
      %v6082 = vsel %vm1731, %v6045, 0
      %v6085 = vsel %vm1731, %v6046, 0
      %v6088 = vsel %vm1731, %v6047, 0
      %v6091 = vsel %vm1731, %v6048, 0
      %v6094 = vsel %vm1731, %v6049, 0
      %v6097 = vsel %vm1731, %v6050, 0
      %v6100 = vsel %vm1780, %v5970, 0
      %6102 = vmatprep.subr.bf16.mxu0 0
      %6103 = vmatpush1.bf16.msra.mxu0 %v6100
      %6104 = vmatprep.subr.bf16.mxu0 0
      %6105 = vmatpush1.bf16.msra.mxu0 0
      %6106 = vmatprep.subr.bf16.mxu0 0
      %6107 = vmatpush1.bf16.msra.mxu0 0
      %6108 = vmatprep.subr.bf16.mxu0 0
      %6109 = vmatpush1.bf16.msra.mxu0 0
      %6110 = vmatprep.subr.bf16.mxu0 0
      %6111 = vmatpush1.bf16.msra.mxu0 0
      %6112 = vmatprep.subr.bf16.mxu0 0
      %6113 = vmatpush1.bf16.msra.mxu0 0
      %6114 = vmatprep.subr.bf16.mxu0 0
      %6115 = vmatpush1.bf16.msra.mxu0 0
      %6116 = vmatprep.subr.bf16.mxu0 0
      %6117 = vmatpush1.bf16.msra.mxu0 0
      %6118 = vmatprep.subr.bf16.mxu0 0
      %6119 = vmatpush1.bf16.msra.mxu0 0
      %6120 = vmatprep.subr.bf16.mxu0 0
      %6121 = vmatpush1.bf16.msra.mxu0 0
      %6122 = vmatprep.subr.bf16.mxu0 0
      %6123 = vmatpush1.bf16.msra.mxu0 0
      %6124 = vmatprep.subr.bf16.mxu0 0
      %6125 = vmatpush1.bf16.msra.mxu0 0
      %6126 = vmatprep.subr.bf16.mxu0 0
      %6127 = vmatpush1.bf16.msra.mxu0 0
      %6128 = vmatprep.subr.bf16.mxu0 0
      %6129 = vmatpush1.bf16.msra.mxu0 0
      %6130 = vmatprep.subr.bf16.mxu0 0
      %6131 = vmatpush1.bf16.msra.mxu0 0
      %6132 = vmatprep.subr.bf16.mxu0 0
      %6133 = vmatpush1.bf16.msra.mxu0 0
      %6134 = vmatprep.mubr.bf16.mxu0 0
      %6135 = vmatmul.mubr.bf16.gmra.mrb[0].mxu0 %v6052
      %v6136 = vpop.f32.mrb[0].mxu0
      %v6137 = vadd.f32 0.0, %v6136
      %v6138 = vpop.f32.mrb[0].mxu0
      %v6139 = vpop.f32.mrb[0].mxu0
      %v6140 = vadd.f32 0.0, %v6139
      %v6141 = vpop.f32.mrb[0].mxu0
      %6142 = vmatprep.mubr.bf16.mxu0 0
      %6143 = vmatmul.mubr.bf16.gmra.mrb[0].mxu0 %v6055
      %v6144 = vpop.f32.mrb[0].mxu0
      %v6145 = vadd.f32 0.0, %v6144
      %v6146 = vpop.f32.mrb[0].mxu0
      %v6147 = vpop.f32.mrb[0].mxu0
      %v6148 = vadd.f32 0.0, %v6147
      %v6149 = vpop.f32.mrb[0].mxu0
      %6150 = vmatprep.mubr.bf16.mxu0 0
      %6151 = vmatmul.mubr.bf16.gmra.mrb[0].mxu0 %v6058
      %v6152 = vpop.f32.mrb[0].mxu0
      %v6153 = vadd.f32 0.0, %v6152
      %v6154 = vpop.f32.mrb[0].mxu0
      %v6155 = vpop.f32.mrb[0].mxu0
      %v6156 = vadd.f32 0.0, %v6155
      %v6157 = vpop.f32.mrb[0].mxu0
      %6158 = vmatprep.mubr.bf16.mxu0 0
      %6159 = vmatmul.mubr.bf16.gmra.mrb[0].mxu0 %v6061
      %v6160 = vpop.f32.mrb[0].mxu0
      %v6161 = vadd.f32 0.0, %v6160
      %v6162 = vpop.f32.mrb[0].mxu0
      %v6163 = vpop.f32.mrb[0].mxu0
      %v6164 = vadd.f32 0.0, %v6163
      %v6165 = vpop.f32.mrb[0].mxu0
      %6166 = vmatprep.mubr.bf16.mxu0 0
      %6167 = vmatmul.mubr.bf16.gmra.mrb[0].mxu0 %v6064
      %v6168 = vpop.f32.mrb[0].mxu0
      %v6169 = vadd.f32 0.0, %v6168
      %v6170 = vpop.f32.mrb[0].mxu0
      %v6171 = vpop.f32.mrb[0].mxu0
      %v6172 = vadd.f32 0.0, %v6171
      %v6173 = vpop.f32.mrb[0].mxu0
      %6174 = vmatprep.mubr.bf16.mxu0 0
      %6175 = vmatmul.mubr.bf16.gmra.mrb[0].mxu0 %v6067
      %v6176 = vpop.f32.mrb[0].mxu0
      %v6177 = vadd.f32 0.0, %v6176
      %v6178 = vpop.f32.mrb[0].mxu0
      %v6179 = vpop.f32.mrb[0].mxu0
      %v6180 = vadd.f32 0.0, %v6179
      %v6181 = vpop.f32.mrb[0].mxu0
      %6182 = vmatprep.mubr.bf16.mxu0 0
      %6183 = vmatmul.mubr.bf16.gmra.mrb[0].mxu0 %v6070
      %v6184 = vpop.f32.mrb[0].mxu0
      %v6185 = vadd.f32 0.0, %v6184
      %v6186 = vpop.f32.mrb[0].mxu0
      %v6187 = vpop.f32.mrb[0].mxu0
      %v6188 = vadd.f32 0.0, %v6187
      %v6189 = vpop.f32.mrb[0].mxu0
      %6190 = vmatprep.mubr.bf16.mxu0 0
      %6191 = vmatmul.mubr.bf16.gmra.mrb[0].mxu0 %v6073
      %v6192 = vpop.f32.mrb[0].mxu0
      %v6193 = vadd.f32 0.0, %v6192
      %v6194 = vpop.f32.mrb[0].mxu0
      %v6195 = vpop.f32.mrb[0].mxu0
      %v6196 = vadd.f32 0.0, %v6195
      %v6197 = vpop.f32.mrb[0].mxu0
      %6198 = vmatprep.mubr.bf16.mxu0 0
      %6199 = vmatmul.mubr.bf16.gmra.mrb[0].mxu0 %v6076
      %v6200 = vpop.f32.mrb[0].mxu0
      %v6201 = vadd.f32 0.0, %v6200
      %v6202 = vpop.f32.mrb[0].mxu0
      %v6203 = vpop.f32.mrb[0].mxu0
      %v6204 = vadd.f32 0.0, %v6203
      %v6205 = vpop.f32.mrb[0].mxu0
      %6206 = vmatprep.mubr.bf16.mxu0 0
      %6207 = vmatmul.mubr.bf16.gmra.mrb[0].mxu0 %v6079
      %v6208 = vpop.f32.mrb[0].mxu0
      %v6209 = vadd.f32 0.0, %v6208
      %v6210 = vpop.f32.mrb[0].mxu0
      %v6211 = vpop.f32.mrb[0].mxu0
      %v6212 = vadd.f32 0.0, %v6211
      %v6213 = vpop.f32.mrb[0].mxu0
      %6214 = vmatprep.mubr.bf16.mxu0 0
      %6215 = vmatmul.mubr.bf16.gmra.mrb[0].mxu0 %v6082
      %v6216 = vpop.f32.mrb[0].mxu0
      %v6217 = vadd.f32 0.0, %v6216
      %v6218 = vpop.f32.mrb[0].mxu0
      %v6219 = vpop.f32.mrb[0].mxu0
      %v6220 = vadd.f32 0.0, %v6219
      %v6221 = vpop.f32.mrb[0].mxu0
      %6222 = vmatprep.mubr.bf16.mxu0 0
      %6223 = vmatmul.mubr.bf16.gmra.mrb[0].mxu0 %v6085
      %v6224 = vpop.f32.mrb[0].mxu0
      %v6225 = vadd.f32 0.0, %v6224
      %v6226 = vpop.f32.mrb[0].mxu0
      %v6227 = vpop.f32.mrb[0].mxu0
      %v6228 = vadd.f32 0.0, %v6227
      %v6229 = vpop.f32.mrb[0].mxu0
      %6230 = vmatprep.mubr.bf16.mxu0 0
      %6231 = vmatmul.mubr.bf16.gmra.mrb[0].mxu0 %v6088
      %v6232 = vpop.f32.mrb[0].mxu0
      %v6233 = vadd.f32 0.0, %v6232
      %v6234 = vpop.f32.mrb[0].mxu0
      %v6235 = vpop.f32.mrb[0].mxu0
      %v6236 = vadd.f32 0.0, %v6235
      %v6237 = vpop.f32.mrb[0].mxu0
      %6238 = vmatprep.mubr.bf16.mxu0 0
      %6239 = vmatmul.mubr.bf16.gmra.mrb[0].mxu0 %v6091
      %v6240 = vpop.f32.mrb[0].mxu0
      %v6241 = vadd.f32 0.0, %v6240
      %v6242 = vpop.f32.mrb[0].mxu0
      %v6243 = vpop.f32.mrb[0].mxu0
      %v6244 = vadd.f32 0.0, %v6243
      %v6245 = vpop.f32.mrb[0].mxu0
      %6246 = vmatprep.mubr.bf16.mxu0 0
      %6247 = vmatmul.mubr.bf16.gmra.mrb[0].mxu0 %v6094
      %v6248 = vpop.f32.mrb[0].mxu0
      %v6249 = vadd.f32 0.0, %v6248
      %v6250 = vpop.f32.mrb[0].mxu0
      %v6251 = vpop.f32.mrb[0].mxu0
      %v6252 = vadd.f32 0.0, %v6251
      %v6253 = vpop.f32.mrb[0].mxu0
      %6254 = vmatprep.mubr.bf16.mxu0 0
      %6255 = vmatmul.mubr.bf16.gmra.mrb[0].mxu0 %v6097
      %v6256 = vpop.f32.mrb[0].mxu0
      %v6257 = vadd.f32 0.0, %v6256
      %v6258 = vpop.f32.mrb[0].mxu0
      %v6259 = vpop.f32.mrb[0].mxu0
      %v6260 = vadd.f32 0.0, %v6259
      %v6261 = vpop.f32.mrb[0].mxu0
      %6262 = vdwg.mxu0
      %v6263 = vadd.f32 %v5456, %v6137
      %v6264 = vadd.f32 %v5457, %v6140
      %v6265 = vadd.f32 %v5458, %v6145
      %v6266 = vadd.f32 %v5459, %v6148
      %v6267 = vadd.f32 %v5460, %v6153
      %v6268 = vadd.f32 %v5461, %v6156
      %v6269 = vadd.f32 %v5462, %v6161
      %v6270 = vadd.f32 %v5463, %v6164
      %v6271 = vadd.f32 %v5464, %v6169
      %v6272 = vadd.f32 %v5465, %v6172
      %v6273 = vadd.f32 %v5466, %v6177
      %v6274 = vadd.f32 %v5467, %v6180
      %v6275 = vadd.f32 %v5468, %v6185
      %v6276 = vadd.f32 %v5469, %v6188
      %v6277 = vadd.f32 %v5470, %v6193
      %v6278 = vadd.f32 %v5471, %v6196
      %v6279 = vadd.f32 %v5472, %v6201
      %v6280 = vadd.f32 %v5473, %v6204
      %v6281 = vadd.f32 %v5474, %v6209
      %v6282 = vadd.f32 %v5475, %v6212
      %v6283 = vadd.f32 %v5476, %v6217
      %v6284 = vadd.f32 %v5477, %v6220
      %v6285 = vadd.f32 %v5478, %v6225
      %v6286 = vadd.f32 %v5479, %v6228
      %v6287 = vadd.f32 %v5480, %v6233
      %v6288 = vadd.f32 %v5481, %v6236
      %v6289 = vadd.f32 %v5482, %v6241
      %v6290 = vadd.f32 %v5483, %v6244
      %v6291 = vadd.f32 %v5484, %v6249
      %v6292 = vadd.f32 %v5485, %v6252
      %v6293 = vadd.f32 %v5486, %v6257
      %v6294 = vadd.f32 %v5487, %v6260
      %v6295 = vld [vmem:[%s219 + $0x10] sm:$0xf]
      %v6296 = vld [vmem:[%s219 + $0x14] sm:$0xf]
      %v6297 = vld [vmem:[%s219 + $0x18] sm:$0xf]
      %v6298 = vld [vmem:[%s219 + $0x1c] sm:$0xf]
      %v6299 = vld [vmem:[%s219 + $0x20] sm:$0xf]
      %v6300 = vld [vmem:[%s219 + $0x24] sm:$0xf]
      %v6301 = vld [vmem:[%s219 + $0x28] sm:$0xf]
      %v6302 = vld [vmem:[%s219 + $0x2c] sm:$0xf]
      %v6303 = vld [vmem:[%s219 + $0x30] sm:$0xf]
      %v6304 = vld [vmem:[%s219 + $0x34] sm:$0xf]
      %v6305 = vld [vmem:[%s219 + $0x38] sm:$0xf]
      %v6306 = vld [vmem:[%s219 + $0x3c] sm:$0xf]
      %v6307 = vld [vmem:[%s219 + $0x40] sm:$0xf]
      %v6308 = vld [vmem:[%s219 + $0x44] sm:$0xf]
      %v6309 = vld [vmem:[%s219 + $0x48] sm:$0xf]
      %v6310 = vld [vmem:[%s219 + $0x4c] sm:$0xf]
      %v6311 = vld [vmem:[%s219 + $0x50] sm:$0xf]
      %v6312 = vld [vmem:[%s219 + $0x54] sm:$0xf]
      %v6313 = vld [vmem:[%s219 + $0x58] sm:$0xf]
      %v6314 = vld [vmem:[%s219 + $0x5c] sm:$0xf]
      %v6315 = vld [vmem:[%s219 + $0x60] sm:$0xf]
      %v6316 = vld [vmem:[%s219 + $0x64] sm:$0xf]
      %v6317 = vld [vmem:[%s219 + $0x68] sm:$0xf]
      %v6318 = vld [vmem:[%s219 + $0x6c] sm:$0xf]
      %v6319 = vld [vmem:[%s219 + $0x70] sm:$0xf]
      %v6320 = vld [vmem:[%s219 + $0x74] sm:$0xf]
      %v6321 = vld [vmem:[%s219 + $0x78] sm:$0xf]
      %v6322 = vld [vmem:[%s219 + $0x7c] sm:$0xf]
      %v6323 = vld [vmem:[%s219 + $0x80] sm:$0xf]
      %v6324 = vld [vmem:[%s219 + $0x84] sm:$0xf]
      %v6325 = vld [vmem:[%s219 + $0x88] sm:$0xf]
      %v6326 = vld [vmem:[%s219 + $0x8c] sm:$0xf]
      %v6327 = vld [vmem:[%s219 + $0x90] sm:$0x1]
      %s6328 = scalar_lea.vmem %s2, 896
      %v6329 = vld [vmem:[%s6328] sm:$0xf]
      %v6330 = vld [vmem:[%s6328 + $0x4] sm:$0xf]
      %v6331 = vld [vmem:[%s6328 + $0x8] sm:$0xf]
      %v6332 = vld [vmem:[%s6328 + $0xc] sm:$0xf]
      %v6333 = vld [vmem:[%s6328 + $0x10] sm:$0xf]
      %v6334 = vld [vmem:[%s6328 + $0x14] sm:$0xf]
      %v6335 = vld [vmem:[%s6328 + $0x18] sm:$0xf]
      %v6336 = vld [vmem:[%s6328 + $0x1c] sm:$0xf]
      %v6337 = vld [vmem:[%s6328 + $0x20] sm:$0xf]
      %v6338 = vld [vmem:[%s6328 + $0x24] sm:$0xf]
      %v6339 = vld [vmem:[%s6328 + $0x28] sm:$0xf]
      %v6340 = vld [vmem:[%s6328 + $0x2c] sm:$0xf]
      %v6341 = vld [vmem:[%s6328 + $0x30] sm:$0xf]
      %v6342 = vld [vmem:[%s6328 + $0x34] sm:$0xf]
      %v6343 = vld [vmem:[%s6328 + $0x38] sm:$0xf]
      %v6344 = vld [vmem:[%s6328 + $0x3c] sm:$0xf]
      %v6345 = vld [vmem:[%s6328 + $0x40] sm:$0xf]
      %v6346 = vld [vmem:[%s6328 + $0x44] sm:$0xf]
      %v6347 = vld [vmem:[%s6328 + $0x48] sm:$0xf]
      %v6348 = vld [vmem:[%s6328 + $0x4c] sm:$0xf]
      %v6349 = vld [vmem:[%s6328 + $0x50] sm:$0xf]
      %v6350 = vld [vmem:[%s6328 + $0x54] sm:$0xf]
      %v6351 = vld [vmem:[%s6328 + $0x58] sm:$0xf]
      %v6352 = vld [vmem:[%s6328 + $0x5c] sm:$0xf]
      %v6353 = vld [vmem:[%s6328 + $0x60] sm:$0xf]
      %v6354 = vld [vmem:[%s6328 + $0x64] sm:$0xf]
      %v6355 = vld [vmem:[%s6328 + $0x68] sm:$0xf]
      %v6356 = vld [vmem:[%s6328 + $0x6c] sm:$0xf]
      %v6357 = vld [vmem:[%s6328 + $0x70] sm:$0xf]
      %v6358 = vld [vmem:[%s6328 + $0x74] sm:$0xf]
      %v6359 = vld [vmem:[%s6328 + $0x78] sm:$0xf]
      %v6360 = vld [vmem:[%s6328 + $0x7c] sm:$0xf]
      %6362 = vset.pattern.permute.xlu0 0
      %6363 = vperm.xlu0 %6362, %v6329
      %v6364 = vpop.permute.xlu0 %6363
      %v6367 = vunpack.c.l.s4 839922192
      %v6368 = vunpack.c.0.s8 %v6367
      %v6369 = vlaneseq
      %v6370 = vshrl.u32 %v6369, 7
      %v6371 = vsub.s32 %v6368, %v6370
      %v6372 = vrot.slane %v6364, %v6371
      %6374 = vset.pattern.permute.xlu0 0
      %6375 = vperm.xlu0 %6374, %v6330
      %v6376 = vpop.permute.xlu0 %6375
      %v6379 = vunpack.c.l.s4 839922192
      %v6380 = vunpack.c.0.s8 %v6379
      %v6381 = vlaneseq
      %v6382 = vshrl.u32 %v6381, 7
      %v6383 = vsub.s32 %v6380, %v6382
      %v6384 = vrot.slane %v6376, %v6383
      %6386 = vset.pattern.permute.xlu0 0
      %6387 = vperm.xlu0 %6386, %v6331
      %v6388 = vpop.permute.xlu0 %6387
      %v6391 = vunpack.c.l.s4 839922192
      %v6392 = vunpack.c.0.s8 %v6391
      %v6393 = vlaneseq
      %v6394 = vshrl.u32 %v6393, 7
      %v6395 = vsub.s32 %v6392, %v6394
      %v6396 = vrot.slane %v6388, %v6395
      %6398 = vset.pattern.permute.xlu0 0
      %6399 = vperm.xlu0 %6398, %v6332
      %v6400 = vpop.permute.xlu0 %6399
      %v6403 = vunpack.c.l.s4 839922192
      %v6404 = vunpack.c.0.s8 %v6403
      %v6405 = vlaneseq
      %v6406 = vshrl.u32 %v6405, 7
      %v6407 = vsub.s32 %v6404, %v6406
      %v6408 = vrot.slane %v6400, %v6407
      %6410 = vset.pattern.permute.xlu0 0
      %6411 = vperm.xlu0 %6410, %v6333
      %v6412 = vpop.permute.xlu0 %6411
      %v6415 = vunpack.c.l.s4 839922192
      %v6416 = vunpack.c.0.s8 %v6415
      %v6417 = vlaneseq
      %v6418 = vshrl.u32 %v6417, 7
      %v6419 = vsub.s32 %v6416, %v6418
      %v6420 = vrot.slane %v6412, %v6419
      %6422 = vset.pattern.permute.xlu0 0
      %6423 = vperm.xlu0 %6422, %v6334
      %v6424 = vpop.permute.xlu0 %6423
      %v6427 = vunpack.c.l.s4 839922192
      %v6428 = vunpack.c.0.s8 %v6427
      %v6429 = vlaneseq
      %v6430 = vshrl.u32 %v6429, 7
      %v6431 = vsub.s32 %v6428, %v6430
      %v6432 = vrot.slane %v6424, %v6431
      %6434 = vset.pattern.permute.xlu0 0
      %6435 = vperm.xlu0 %6434, %v6335
      %v6436 = vpop.permute.xlu0 %6435
      %v6439 = vunpack.c.l.s4 839922192
      %v6440 = vunpack.c.0.s8 %v6439
      %v6441 = vlaneseq
      %v6442 = vshrl.u32 %v6441, 7
      %v6443 = vsub.s32 %v6440, %v6442
      %v6444 = vrot.slane %v6436, %v6443
      %6446 = vset.pattern.permute.xlu0 0
      %6447 = vperm.xlu0 %6446, %v6336
      %v6448 = vpop.permute.xlu0 %6447
      %v6451 = vunpack.c.l.s4 839922192
      %v6452 = vunpack.c.0.s8 %v6451
      %v6453 = vlaneseq
      %v6454 = vshrl.u32 %v6453, 7
      %v6455 = vsub.s32 %v6452, %v6454
      %v6456 = vrot.slane %v6448, %v6455
      %6458 = vset.pattern.permute.xlu0 0
      %6459 = vperm.xlu0 %6458, %v6337
      %v6460 = vpop.permute.xlu0 %6459
      %v6463 = vunpack.c.l.s4 839922192
      %v6464 = vunpack.c.0.s8 %v6463
      %v6465 = vlaneseq
      %v6466 = vshrl.u32 %v6465, 7
      %v6467 = vsub.s32 %v6464, %v6466
      %v6468 = vrot.slane %v6460, %v6467
      %6470 = vset.pattern.permute.xlu0 0
      %6471 = vperm.xlu0 %6470, %v6338
      %v6472 = vpop.permute.xlu0 %6471
      %v6475 = vunpack.c.l.s4 839922192
      %v6476 = vunpack.c.0.s8 %v6475
      %v6477 = vlaneseq
      %v6478 = vshrl.u32 %v6477, 7
      %v6479 = vsub.s32 %v6476, %v6478
      %v6480 = vrot.slane %v6472, %v6479
      %6482 = vset.pattern.permute.xlu0 0
      %6483 = vperm.xlu0 %6482, %v6339
      %v6484 = vpop.permute.xlu0 %6483
      %v6487 = vunpack.c.l.s4 839922192
      %v6488 = vunpack.c.0.s8 %v6487
      %v6489 = vlaneseq
      %v6490 = vshrl.u32 %v6489, 7
      %v6491 = vsub.s32 %v6488, %v6490
      %v6492 = vrot.slane %v6484, %v6491
      %6494 = vset.pattern.permute.xlu0 0
      %6495 = vperm.xlu0 %6494, %v6340
      %v6496 = vpop.permute.xlu0 %6495
      %v6499 = vunpack.c.l.s4 839922192
      %v6500 = vunpack.c.0.s8 %v6499
      %v6501 = vlaneseq
      %v6502 = vshrl.u32 %v6501, 7
      %v6503 = vsub.s32 %v6500, %v6502
      %v6504 = vrot.slane %v6496, %v6503
      %6506 = vset.pattern.permute.xlu0 0
      %6507 = vperm.xlu0 %6506, %v6341
      %v6508 = vpop.permute.xlu0 %6507
      %v6511 = vunpack.c.l.s4 839922192
      %v6512 = vunpack.c.0.s8 %v6511
      %v6513 = vlaneseq
      %v6514 = vshrl.u32 %v6513, 7
      %v6515 = vsub.s32 %v6512, %v6514
      %v6516 = vrot.slane %v6508, %v6515
      %6518 = vset.pattern.permute.xlu0 0
      %6519 = vperm.xlu0 %6518, %v6342
      %v6520 = vpop.permute.xlu0 %6519
      %v6523 = vunpack.c.l.s4 839922192
      %v6524 = vunpack.c.0.s8 %v6523
      %v6525 = vlaneseq
      %v6526 = vshrl.u32 %v6525, 7
      %v6527 = vsub.s32 %v6524, %v6526
      %v6528 = vrot.slane %v6520, %v6527
      %6530 = vset.pattern.permute.xlu0 0
      %6531 = vperm.xlu0 %6530, %v6343
      %v6532 = vpop.permute.xlu0 %6531
      %v6535 = vunpack.c.l.s4 839922192
      %v6536 = vunpack.c.0.s8 %v6535
      %v6537 = vlaneseq
      %v6538 = vshrl.u32 %v6537, 7
      %v6539 = vsub.s32 %v6536, %v6538
      %v6540 = vrot.slane %v6532, %v6539
      %6542 = vset.pattern.permute.xlu0 0
      %6543 = vperm.xlu0 %6542, %v6344
      %v6544 = vpop.permute.xlu0 %6543
      %v6547 = vunpack.c.l.s4 839922192
      %v6548 = vunpack.c.0.s8 %v6547
      %v6549 = vlaneseq
      %v6550 = vshrl.u32 %v6549, 7
      %v6551 = vsub.s32 %v6548, %v6550
      %v6552 = vrot.slane %v6544, %v6551
      %6554 = vset.pattern.permute.xlu0 0
      %6555 = vperm.xlu0 %6554, %v6345
      %v6556 = vpop.permute.xlu0 %6555
      %v6559 = vunpack.c.l.s4 839922192
      %v6560 = vunpack.c.0.s8 %v6559
      %v6561 = vlaneseq
      %v6562 = vshrl.u32 %v6561, 7
      %v6563 = vsub.s32 %v6560, %v6562
      %v6564 = vrot.slane %v6556, %v6563
      %6566 = vset.pattern.permute.xlu0 0
      %6567 = vperm.xlu0 %6566, %v6346
      %v6568 = vpop.permute.xlu0 %6567
      %v6571 = vunpack.c.l.s4 839922192
      %v6572 = vunpack.c.0.s8 %v6571
      %v6573 = vlaneseq
      %v6574 = vshrl.u32 %v6573, 7
      %v6575 = vsub.s32 %v6572, %v6574
      %v6576 = vrot.slane %v6568, %v6575
      %6578 = vset.pattern.permute.xlu0 0
      %6579 = vperm.xlu0 %6578, %v6347
      %v6580 = vpop.permute.xlu0 %6579
      %v6583 = vunpack.c.l.s4 839922192
      %v6584 = vunpack.c.0.s8 %v6583
      %v6585 = vlaneseq
      %v6586 = vshrl.u32 %v6585, 7
      %v6587 = vsub.s32 %v6584, %v6586
      %v6588 = vrot.slane %v6580, %v6587
      %6590 = vset.pattern.permute.xlu0 0
      %6591 = vperm.xlu0 %6590, %v6348
      %v6592 = vpop.permute.xlu0 %6591
      %v6595 = vunpack.c.l.s4 839922192
      %v6596 = vunpack.c.0.s8 %v6595
      %v6597 = vlaneseq
      %v6598 = vshrl.u32 %v6597, 7
      %v6599 = vsub.s32 %v6596, %v6598
      %v6600 = vrot.slane %v6592, %v6599
      %6602 = vset.pattern.permute.xlu0 0
      %6603 = vperm.xlu0 %6602, %v6349
      %v6604 = vpop.permute.xlu0 %6603
      %v6607 = vunpack.c.l.s4 839922192
      %v6608 = vunpack.c.0.s8 %v6607
      %v6609 = vlaneseq
      %v6610 = vshrl.u32 %v6609, 7
      %v6611 = vsub.s32 %v6608, %v6610
      %v6612 = vrot.slane %v6604, %v6611
      %6614 = vset.pattern.permute.xlu0 0
      %6615 = vperm.xlu0 %6614, %v6350
      %v6616 = vpop.permute.xlu0 %6615
      %v6619 = vunpack.c.l.s4 839922192
      %v6620 = vunpack.c.0.s8 %v6619
      %v6621 = vlaneseq
      %v6622 = vshrl.u32 %v6621, 7
      %v6623 = vsub.s32 %v6620, %v6622
      %v6624 = vrot.slane %v6616, %v6623
      %6626 = vset.pattern.permute.xlu0 0
      %6627 = vperm.xlu0 %6626, %v6351
      %v6628 = vpop.permute.xlu0 %6627
      %v6631 = vunpack.c.l.s4 839922192
      %v6632 = vunpack.c.0.s8 %v6631
      %v6633 = vlaneseq
      %v6634 = vshrl.u32 %v6633, 7
      %v6635 = vsub.s32 %v6632, %v6634
      %v6636 = vrot.slane %v6628, %v6635
      %6638 = vset.pattern.permute.xlu0 0
      %6639 = vperm.xlu0 %6638, %v6352
      %v6640 = vpop.permute.xlu0 %6639
      %v6643 = vunpack.c.l.s4 839922192
      %v6644 = vunpack.c.0.s8 %v6643
      %v6645 = vlaneseq
      %v6646 = vshrl.u32 %v6645, 7
      %v6647 = vsub.s32 %v6644, %v6646
      %v6648 = vrot.slane %v6640, %v6647
      %6650 = vset.pattern.permute.xlu0 0
      %6651 = vperm.xlu0 %6650, %v6353
      %v6652 = vpop.permute.xlu0 %6651
      %v6655 = vunpack.c.l.s4 839922192
      %v6656 = vunpack.c.0.s8 %v6655
      %v6657 = vlaneseq
      %v6658 = vshrl.u32 %v6657, 7
      %v6659 = vsub.s32 %v6656, %v6658
      %v6660 = vrot.slane %v6652, %v6659
      %6662 = vset.pattern.permute.xlu0 0
      %6663 = vperm.xlu0 %6662, %v6354
      %v6664 = vpop.permute.xlu0 %6663
      %v6667 = vunpack.c.l.s4 839922192
      %v6668 = vunpack.c.0.s8 %v6667
      %v6669 = vlaneseq
      %v6670 = vshrl.u32 %v6669, 7
      %v6671 = vsub.s32 %v6668, %v6670
      %v6672 = vrot.slane %v6664, %v6671
      %6674 = vset.pattern.permute.xlu0 0
      %6675 = vperm.xlu0 %6674, %v6355
      %v6676 = vpop.permute.xlu0 %6675
      %v6679 = vunpack.c.l.s4 839922192
      %v6680 = vunpack.c.0.s8 %v6679
      %v6681 = vlaneseq
      %v6682 = vshrl.u32 %v6681, 7
      %v6683 = vsub.s32 %v6680, %v6682
      %v6684 = vrot.slane %v6676, %v6683
      %6686 = vset.pattern.permute.xlu0 0
      %6687 = vperm.xlu0 %6686, %v6356
      %v6688 = vpop.permute.xlu0 %6687
      %v6691 = vunpack.c.l.s4 839922192
      %v6692 = vunpack.c.0.s8 %v6691
      %v6693 = vlaneseq
      %v6694 = vshrl.u32 %v6693, 7
      %v6695 = vsub.s32 %v6692, %v6694
      %v6696 = vrot.slane %v6688, %v6695
      %6698 = vset.pattern.permute.xlu0 0
      %6699 = vperm.xlu0 %6698, %v6357
      %v6700 = vpop.permute.xlu0 %6699
      %v6703 = vunpack.c.l.s4 839922192
      %v6704 = vunpack.c.0.s8 %v6703
      %v6705 = vlaneseq
      %v6706 = vshrl.u32 %v6705, 7
      %v6707 = vsub.s32 %v6704, %v6706
      %v6708 = vrot.slane %v6700, %v6707
      %6710 = vset.pattern.permute.xlu0 0
      %6711 = vperm.xlu0 %6710, %v6358
      %v6712 = vpop.permute.xlu0 %6711
      %v6715 = vunpack.c.l.s4 839922192
      %v6716 = vunpack.c.0.s8 %v6715
      %v6717 = vlaneseq
      %v6718 = vshrl.u32 %v6717, 7
      %v6719 = vsub.s32 %v6716, %v6718
      %v6720 = vrot.slane %v6712, %v6719
      %6722 = vset.pattern.permute.xlu0 0
      %6723 = vperm.xlu0 %6722, %v6359
      %v6724 = vpop.permute.xlu0 %6723
      %v6727 = vunpack.c.l.s4 839922192
      %v6728 = vunpack.c.0.s8 %v6727
      %v6729 = vlaneseq
      %v6730 = vshrl.u32 %v6729, 7
      %v6731 = vsub.s32 %v6728, %v6730
      %v6732 = vrot.slane %v6724, %v6731
      %6734 = vset.pattern.permute.xlu0 0
      %6735 = vperm.xlu0 %6734, %v6360
      %v6736 = vpop.permute.xlu0 %6735
      %v6739 = vunpack.c.l.s4 839922192
      %v6740 = vunpack.c.0.s8 %v6739
      %v6741 = vlaneseq
      %v6742 = vshrl.u32 %v6741, 7
      %v6743 = vsub.s32 %v6740, %v6742
      %v6744 = vrot.slane %v6736, %v6743
      %v6746 = vshrl.u32 %v6372, 16
      %v6748 = vrot.slane %v6746, 7
      %v6749 = vshll.u32 %v6372, 16
      %v6751 = vor.u32 %v6748, %v6749
      %v6752 = vrot.slane %v6748, 4
      %v6754 = vshrl.u32 %v6384, 16
      %v6756 = vrot.slane %v6754, 7
      %v6757 = vshll.u32 %v6384, 16
      %v6759 = vor.u32 %v6756, %v6757
      %v6760 = vsel %vm1159, %v6752, %v6759
      %v6761 = vrot.slane %v6756, 4
      %v6763 = vshrl.u32 %v6396, 16
      %v6765 = vrot.slane %v6763, 7
      %v6766 = vshll.u32 %v6396, 16
      %v6768 = vor.u32 %v6765, %v6766
      %v6769 = vsel %vm1159, %v6761, %v6768
      %v6770 = vrot.slane %v6765, 4
      %v6772 = vshrl.u32 %v6408, 16
      %v6774 = vrot.slane %v6772, 7
      %v6775 = vshll.u32 %v6408, 16
      %v6777 = vor.u32 %v6774, %v6775
      %v6778 = vsel %vm1159, %v6770, %v6777
      %v6779 = vrot.slane %v6774, 4
      %v6781 = vshrl.u32 %v6420, 16
      %v6783 = vrot.slane %v6781, 7
      %v6784 = vshll.u32 %v6420, 16
      %v6786 = vor.u32 %v6783, %v6784
      %v6787 = vsel %vm1159, %v6779, %v6786
      %v6788 = vrot.slane %v6783, 4
      %v6790 = vshrl.u32 %v6432, 16
      %v6792 = vrot.slane %v6790, 7
      %v6793 = vshll.u32 %v6432, 16
      %v6795 = vor.u32 %v6792, %v6793
      %v6796 = vsel %vm1159, %v6788, %v6795
      %v6797 = vrot.slane %v6792, 4
      %v6799 = vshrl.u32 %v6444, 16
      %v6801 = vrot.slane %v6799, 7
      %v6802 = vshll.u32 %v6444, 16
      %v6804 = vor.u32 %v6801, %v6802
      %v6805 = vsel %vm1159, %v6797, %v6804
      %v6806 = vrot.slane %v6801, 4
      %v6808 = vshrl.u32 %v6456, 16
      %v6810 = vrot.slane %v6808, 7
      %v6811 = vshll.u32 %v6456, 16
      %v6813 = vor.u32 %v6810, %v6811
      %v6814 = vsel %vm1159, %v6806, %v6813
      %v6815 = vrot.slane %v6810, 4
      %v6817 = vshrl.u32 %v6468, 16
      %v6819 = vrot.slane %v6817, 7
      %v6820 = vshll.u32 %v6468, 16
      %v6822 = vor.u32 %v6819, %v6820
      %v6823 = vsel %vm1159, %v6815, %v6822
      %v6824 = vrot.slane %v6819, 4
      %v6826 = vshrl.u32 %v6480, 16
      %v6828 = vrot.slane %v6826, 7
      %v6829 = vshll.u32 %v6480, 16
      %v6831 = vor.u32 %v6828, %v6829
      %v6832 = vsel %vm1159, %v6824, %v6831
      %v6833 = vrot.slane %v6828, 4
      %v6835 = vshrl.u32 %v6492, 16
      %v6837 = vrot.slane %v6835, 7
      %v6838 = vshll.u32 %v6492, 16
      %v6840 = vor.u32 %v6837, %v6838
      %v6841 = vsel %vm1159, %v6833, %v6840
      %v6842 = vrot.slane %v6837, 4
      %v6844 = vshrl.u32 %v6504, 16
      %v6846 = vrot.slane %v6844, 7
      %v6847 = vshll.u32 %v6504, 16
      %v6849 = vor.u32 %v6846, %v6847
      %v6850 = vsel %vm1159, %v6842, %v6849
      %v6851 = vrot.slane %v6846, 4
      %v6853 = vshrl.u32 %v6516, 16
      %v6855 = vrot.slane %v6853, 7
      %v6856 = vshll.u32 %v6516, 16
      %v6858 = vor.u32 %v6855, %v6856
      %v6859 = vsel %vm1159, %v6851, %v6858
      %v6860 = vrot.slane %v6855, 4
      %v6862 = vshrl.u32 %v6528, 16
      %v6864 = vrot.slane %v6862, 7
      %v6865 = vshll.u32 %v6528, 16
      %v6867 = vor.u32 %v6864, %v6865
      %v6868 = vsel %vm1159, %v6860, %v6867
      %v6869 = vrot.slane %v6864, 4
      %v6871 = vshrl.u32 %v6540, 16
      %v6873 = vrot.slane %v6871, 7
      %v6874 = vshll.u32 %v6540, 16
      %v6876 = vor.u32 %v6873, %v6874
      %v6877 = vsel %vm1159, %v6869, %v6876
      %v6878 = vrot.slane %v6873, 4
      %v6880 = vshrl.u32 %v6552, 16
      %v6882 = vrot.slane %v6880, 7
      %v6883 = vshll.u32 %v6552, 16
      %v6885 = vor.u32 %v6882, %v6883
      %v6886 = vsel %vm1159, %v6878, %v6885
      %v6887 = vrot.slane %v6882, 4
      %v6889 = vshrl.u32 %v6564, 16
      %v6891 = vrot.slane %v6889, 7
      %v6892 = vshll.u32 %v6564, 16
      %v6894 = vor.u32 %v6891, %v6892
      %v6895 = vsel %vm1159, %v6887, %v6894
      %v6896 = vrot.slane %v6891, 4
      %v6898 = vshrl.u32 %v6576, 16
      %v6900 = vrot.slane %v6898, 7
      %v6901 = vshll.u32 %v6576, 16
      %v6903 = vor.u32 %v6900, %v6901
      %v6904 = vsel %vm1159, %v6896, %v6903
      %v6905 = vrot.slane %v6900, 4
      %v6907 = vshrl.u32 %v6588, 16
      %v6909 = vrot.slane %v6907, 7
      %v6910 = vshll.u32 %v6588, 16
      %v6912 = vor.u32 %v6909, %v6910
      %v6913 = vsel %vm1159, %v6905, %v6912
      %v6914 = vrot.slane %v6909, 4
      %v6916 = vshrl.u32 %v6600, 16
      %v6918 = vrot.slane %v6916, 7
      %v6919 = vshll.u32 %v6600, 16
      %v6921 = vor.u32 %v6918, %v6919
      %v6922 = vsel %vm1159, %v6914, %v6921
      %v6923 = vrot.slane %v6918, 4
      %v6925 = vshrl.u32 %v6612, 16
      %v6927 = vrot.slane %v6925, 7
      %v6928 = vshll.u32 %v6612, 16
      %v6930 = vor.u32 %v6927, %v6928
      %v6931 = vsel %vm1159, %v6923, %v6930
      %v6932 = vrot.slane %v6927, 4
      %v6934 = vshrl.u32 %v6624, 16
      %v6936 = vrot.slane %v6934, 7
      %v6937 = vshll.u32 %v6624, 16
      %v6939 = vor.u32 %v6936, %v6937
      %v6940 = vsel %vm1159, %v6932, %v6939
      %v6941 = vrot.slane %v6936, 4
      %v6943 = vshrl.u32 %v6636, 16
      %v6945 = vrot.slane %v6943, 7
      %v6946 = vshll.u32 %v6636, 16
      %v6948 = vor.u32 %v6945, %v6946
      %v6949 = vsel %vm1159, %v6941, %v6948
      %v6950 = vrot.slane %v6945, 4
      %v6952 = vshrl.u32 %v6648, 16
      %v6954 = vrot.slane %v6952, 7
      %v6955 = vshll.u32 %v6648, 16
      %v6957 = vor.u32 %v6954, %v6955
      %v6958 = vsel %vm1159, %v6950, %v6957
      %v6959 = vrot.slane %v6954, 4
      %v6961 = vshrl.u32 %v6660, 16
      %v6963 = vrot.slane %v6961, 7
      %v6964 = vshll.u32 %v6660, 16
      %v6966 = vor.u32 %v6963, %v6964
      %v6967 = vsel %vm1159, %v6959, %v6966
      %v6968 = vrot.slane %v6963, 4
      %v6970 = vshrl.u32 %v6672, 16
      %v6972 = vrot.slane %v6970, 7
      %v6973 = vshll.u32 %v6672, 16
      %v6975 = vor.u32 %v6972, %v6973
      %v6976 = vsel %vm1159, %v6968, %v6975
      %v6977 = vrot.slane %v6972, 4
      %v6979 = vshrl.u32 %v6684, 16
      %v6981 = vrot.slane %v6979, 7
      %v6982 = vshll.u32 %v6684, 16
      %v6984 = vor.u32 %v6981, %v6982
      %v6985 = vsel %vm1159, %v6977, %v6984
      %v6986 = vrot.slane %v6981, 4
      %v6988 = vshrl.u32 %v6696, 16
      %v6990 = vrot.slane %v6988, 7
      %v6991 = vshll.u32 %v6696, 16
      %v6993 = vor.u32 %v6990, %v6991
      %v6994 = vsel %vm1159, %v6986, %v6993
      %v6995 = vrot.slane %v6990, 4
      %v6997 = vshrl.u32 %v6708, 16
      %v6999 = vrot.slane %v6997, 7
      %v7000 = vshll.u32 %v6708, 16
      %v7002 = vor.u32 %v6999, %v7000
      %v7003 = vsel %vm1159, %v6995, %v7002
      %v7004 = vrot.slane %v6999, 4
      %v7006 = vshrl.u32 %v6720, 16
      %v7008 = vrot.slane %v7006, 7
      %v7009 = vshll.u32 %v6720, 16
      %v7011 = vor.u32 %v7008, %v7009
      %v7012 = vsel %vm1159, %v7004, %v7011
      %v7013 = vrot.slane %v7008, 4
      %v7015 = vshrl.u32 %v6732, 16
      %v7017 = vrot.slane %v7015, 7
      %v7018 = vshll.u32 %v6732, 16
      %v7020 = vor.u32 %v7017, %v7018
      %v7021 = vsel %vm1159, %v7013, %v7020
      %v7022 = vrot.slane %v7017, 4
      %v7024 = vshrl.u32 %v6744, 16
      %v7026 = vrot.slane %v7024, 7
      %v7027 = vshll.u32 %v6744, 16
      %v7029 = vor.u32 %v7026, %v7027
      %v7030 = vsel %vm1159, %v7022, %v7029
      %v7031 = vrot.slane %v7026, 4
      %v7065 = vmul.bf16 %v6295, %v6751
      %v7066 = vmul.bf16 %v6296, %v6760
      %v7067 = vmul.bf16 %v6297, %v6769
      %v7068 = vmul.bf16 %v6298, %v6778
      %v7069 = vmul.bf16 %v6299, %v6787
      %v7070 = vmul.bf16 %v6300, %v6796
      %v7071 = vmul.bf16 %v6301, %v6805
      %v7072 = vmul.bf16 %v6302, %v6814
      %v7073 = vmul.bf16 %v6303, %v6823
      %v7074 = vmul.bf16 %v6304, %v6832
      %v7075 = vmul.bf16 %v6305, %v6841
      %v7076 = vmul.bf16 %v6306, %v6850
      %v7077 = vmul.bf16 %v6307, %v6859
      %v7078 = vmul.bf16 %v6308, %v6868
      %v7079 = vmul.bf16 %v6309, %v6877
      %v7080 = vmul.bf16 %v6310, %v6886
      %v7081 = vmul.bf16 %v6311, %v6895
      %v7082 = vmul.bf16 %v6312, %v6904
      %v7083 = vmul.bf16 %v6313, %v6913
      %v7084 = vmul.bf16 %v6314, %v6922
      %v7085 = vmul.bf16 %v6315, %v6931
      %v7086 = vmul.bf16 %v6316, %v6940
      %v7087 = vmul.bf16 %v6317, %v6949
      %v7088 = vmul.bf16 %v6318, %v6958
      %v7089 = vmul.bf16 %v6319, %v6967
      %v7090 = vmul.bf16 %v6320, %v6976
      %v7091 = vmul.bf16 %v6321, %v6985
      %v7092 = vmul.bf16 %v6322, %v6994
      %v7093 = vmul.bf16 %v6323, %v7003
      %v7094 = vmul.bf16 %v6324, %v7012
      %v7095 = vmul.bf16 %v6325, %v7021
      %v7096 = vmul.bf16 %v6326, %v7030
      %v7097 = vmul.bf16 %v6327, %v7031
      %s7098 = scalar_lea.vmem %s1, 14
      %v7099 = vld [vmem:[%s7098] sm:$0x3]
      %v7133 = vunpack.c.l.b16 %v7065
      %v7134 = vunpack.c.l.b16 %v7066
      %v7135 = vunpack.c.l.b16 %v7067
      %v7136 = vunpack.c.l.b16 %v7068
      %v7137 = vunpack.c.l.b16 %v7069
      %v7138 = vunpack.c.l.b16 %v7070
      %v7139 = vunpack.c.l.b16 %v7071
      %v7140 = vunpack.c.l.b16 %v7072
      %v7141 = vunpack.c.l.b16 %v7073
      %v7142 = vunpack.c.l.b16 %v7074
      %v7143 = vunpack.c.l.b16 %v7075
      %v7144 = vunpack.c.l.b16 %v7076
      %v7145 = vunpack.c.l.b16 %v7077
      %v7146 = vunpack.c.l.b16 %v7078
      %v7147 = vunpack.c.l.b16 %v7079
      %v7148 = vunpack.c.l.b16 %v7080
      %v7149 = vunpack.c.l.b16 %v7081
      %v7150 = vunpack.c.l.b16 %v7082
      %v7151 = vunpack.c.l.b16 %v7083
      %v7152 = vunpack.c.l.b16 %v7084
      %v7153 = vunpack.c.l.b16 %v7085
      %v7154 = vunpack.c.l.b16 %v7086
      %v7155 = vunpack.c.l.b16 %v7087
      %v7156 = vunpack.c.l.b16 %v7088
      %v7157 = vunpack.c.l.b16 %v7089
      %v7158 = vunpack.c.l.b16 %v7090
      %v7159 = vunpack.c.l.b16 %v7091
      %v7160 = vunpack.c.l.b16 %v7092
      %v7161 = vunpack.c.l.b16 %v7093
      %v7162 = vunpack.c.l.b16 %v7094
      %v7163 = vunpack.c.l.b16 %v7095
      %v7164 = vunpack.c.l.b16 %v7096
      %v7165 = vunpack.c.l.b16 %v7097
      %v7166 = vpack.c.b16 %v7134, %v7133
      %v7167 = vpack.c.b16 %v7136, %v7135
      %v7168 = vpack.c.b16 %v7138, %v7137
      %v7169 = vpack.c.b16 %v7140, %v7139
      %v7170 = vpack.c.b16 %v7142, %v7141
      %v7171 = vpack.c.b16 %v7144, %v7143
      %v7172 = vpack.c.b16 %v7146, %v7145
      %v7173 = vpack.c.b16 %v7148, %v7147
      %v7174 = vpack.c.b16 %v7150, %v7149
      %v7175 = vpack.c.b16 %v7152, %v7151
      %v7176 = vpack.c.b16 %v7154, %v7153
      %v7177 = vpack.c.b16 %v7156, %v7155
      %v7178 = vpack.c.b16 %v7158, %v7157
      %v7179 = vpack.c.b16 %v7160, %v7159
      %v7180 = vpack.c.b16 %v7162, %v7161
      %v7181 = vpack.c.b16 %v7164, %v7163
      %v7182 = vpack.c.b16 %v7165, %v7165
      %v7184 = vshrl.u32 %v7166, 16
      %v7186 = vshll.u32 %v7166, 16
      %v7188 = vrot.slane %v7186, 1
      %v7189 = vor.u32 %v7184, %v7188
      %v7191 = vshll.u32 %v7167, 16
      %v7193 = vrot.slane %v7191, 1
      %v7194 = vsel %vm1598, %v7189, %v7193
      %v7195 = vshrl.u32 %v7167, 16
      %v7197 = vor.u32 %v7195, %v7193
      %v7199 = vshll.u32 %v7168, 16
      %v7201 = vrot.slane %v7199, 1
      %v7202 = vsel %vm1598, %v7197, %v7201
      %v7203 = vshrl.u32 %v7168, 16
      %v7205 = vor.u32 %v7203, %v7201
      %v7207 = vshll.u32 %v7169, 16
      %v7209 = vrot.slane %v7207, 1
      %v7210 = vsel %vm1598, %v7205, %v7209
      %v7211 = vshrl.u32 %v7169, 16
      %v7213 = vor.u32 %v7211, %v7209
      %v7215 = vshll.u32 %v7170, 16
      %v7217 = vrot.slane %v7215, 1
      %v7218 = vsel %vm1598, %v7213, %v7217
      %v7219 = vshrl.u32 %v7170, 16
      %v7221 = vor.u32 %v7219, %v7217
      %v7223 = vshll.u32 %v7171, 16
      %v7225 = vrot.slane %v7223, 1
      %v7226 = vsel %vm1598, %v7221, %v7225
      %v7227 = vshrl.u32 %v7171, 16
      %v7229 = vor.u32 %v7227, %v7225
      %v7231 = vshll.u32 %v7172, 16
      %v7233 = vrot.slane %v7231, 1
      %v7234 = vsel %vm1598, %v7229, %v7233
      %v7235 = vshrl.u32 %v7172, 16
      %v7237 = vor.u32 %v7235, %v7233
      %v7239 = vshll.u32 %v7173, 16
      %v7241 = vrot.slane %v7239, 1
      %v7242 = vsel %vm1598, %v7237, %v7241
      %v7243 = vshrl.u32 %v7173, 16
      %v7245 = vor.u32 %v7243, %v7241
      %v7247 = vshll.u32 %v7174, 16
      %v7249 = vrot.slane %v7247, 1
      %v7250 = vsel %vm1598, %v7245, %v7249
      %v7251 = vshrl.u32 %v7174, 16
      %v7253 = vor.u32 %v7251, %v7249
      %v7255 = vshll.u32 %v7175, 16
      %v7257 = vrot.slane %v7255, 1
      %v7258 = vsel %vm1598, %v7253, %v7257
      %v7259 = vshrl.u32 %v7175, 16
      %v7261 = vor.u32 %v7259, %v7257
      %v7263 = vshll.u32 %v7176, 16
      %v7265 = vrot.slane %v7263, 1
      %v7266 = vsel %vm1598, %v7261, %v7265
      %v7267 = vshrl.u32 %v7176, 16
      %v7269 = vor.u32 %v7267, %v7265
      %v7271 = vshll.u32 %v7177, 16
      %v7273 = vrot.slane %v7271, 1
      %v7274 = vsel %vm1598, %v7269, %v7273
      %v7275 = vshrl.u32 %v7177, 16
      %v7277 = vor.u32 %v7275, %v7273
      %v7279 = vshll.u32 %v7178, 16
      %v7281 = vrot.slane %v7279, 1
      %v7282 = vsel %vm1598, %v7277, %v7281
      %v7283 = vshrl.u32 %v7178, 16
      %v7285 = vor.u32 %v7283, %v7281
      %v7287 = vshll.u32 %v7179, 16
      %v7289 = vrot.slane %v7287, 1
      %v7290 = vsel %vm1598, %v7285, %v7289
      %v7291 = vshrl.u32 %v7179, 16
      %v7293 = vor.u32 %v7291, %v7289
      %v7295 = vshll.u32 %v7180, 16
      %v7297 = vrot.slane %v7295, 1
      %v7298 = vsel %vm1598, %v7293, %v7297
      %v7299 = vshrl.u32 %v7180, 16
      %v7301 = vor.u32 %v7299, %v7297
      %v7303 = vshll.u32 %v7181, 16
      %v7305 = vrot.slane %v7303, 1
      %v7306 = vsel %vm1598, %v7301, %v7305
      %v7307 = vshrl.u32 %v7181, 16
      %v7309 = vor.u32 %v7307, %v7305
      %v7311 = vshll.u32 %v7182, 16
      %v7313 = vrot.slane %v7311, 1
      %v7314 = vsel %vm1598, %v7309, %v7313
      %v7316 = vsel %vm1731, %v7194, 0
      %v7319 = vsel %vm1731, %v7202, 0
      %v7322 = vsel %vm1731, %v7210, 0
      %v7325 = vsel %vm1731, %v7218, 0
      %v7328 = vsel %vm1731, %v7226, 0
      %v7331 = vsel %vm1731, %v7234, 0
      %v7334 = vsel %vm1731, %v7242, 0
      %v7337 = vsel %vm1731, %v7250, 0
      %v7340 = vsel %vm1731, %v7258, 0
      %v7343 = vsel %vm1731, %v7266, 0
      %v7346 = vsel %vm1731, %v7274, 0
      %v7349 = vsel %vm1731, %v7282, 0
      %v7352 = vsel %vm1731, %v7290, 0
      %v7355 = vsel %vm1731, %v7298, 0
      %v7358 = vsel %vm1731, %v7306, 0
      %v7361 = vsel %vm1731, %v7314, 0
      %v7364 = vsel %vm1780, %v7099, 0
      %7366 = vmatprep.subr.bf16.mxu0 0
      %7367 = vmatpush1.bf16.msra.mxu0 %v7364
      %7368 = vmatprep.subr.bf16.mxu0 0
      %7369 = vmatpush1.bf16.msra.mxu0 0
      %7370 = vmatprep.subr.bf16.mxu0 0
      %7371 = vmatpush1.bf16.msra.mxu0 0
      %7372 = vmatprep.subr.bf16.mxu0 0
      %7373 = vmatpush1.bf16.msra.mxu0 0
      %7374 = vmatprep.subr.bf16.mxu0 0
      %7375 = vmatpush1.bf16.msra.mxu0 0
      %7376 = vmatprep.subr.bf16.mxu0 0
      %7377 = vmatpush1.bf16.msra.mxu0 0
      %7378 = vmatprep.subr.bf16.mxu0 0
      %7379 = vmatpush1.bf16.msra.mxu0 0
      %7380 = vmatprep.subr.bf16.mxu0 0
      %7381 = vmatpush1.bf16.msra.mxu0 0
      %7382 = vmatprep.subr.bf16.mxu0 0
      %7383 = vmatpush1.bf16.msra.mxu0 0
      %7384 = vmatprep.subr.bf16.mxu0 0
      %7385 = vmatpush1.bf16.msra.mxu0 0
      %7386 = vmatprep.subr.bf16.mxu0 0
      %7387 = vmatpush1.bf16.msra.mxu0 0
      %7388 = vmatprep.subr.bf16.mxu0 0
      %7389 = vmatpush1.bf16.msra.mxu0 0
      %7390 = vmatprep.subr.bf16.mxu0 0
      %7391 = vmatpush1.bf16.msra.mxu0 0
      %7392 = vmatprep.subr.bf16.mxu0 0
      %7393 = vmatpush1.bf16.msra.mxu0 0
      %7394 = vmatprep.subr.bf16.mxu0 0
      %7395 = vmatpush1.bf16.msra.mxu0 0
      %7396 = vmatprep.subr.bf16.mxu0 0
      %7397 = vmatpush1.bf16.msra.mxu0 0
      %7398 = vmatprep.mubr.bf16.mxu0 0
      %7399 = vmatmul.mubr.bf16.gmra.mrb[0].mxu0 %v7316
      %v7400 = vpop.f32.mrb[0].mxu0
      %v7401 = vadd.f32 0.0, %v7400
      %v7402 = vpop.f32.mrb[0].mxu0
      %v7403 = vpop.f32.mrb[0].mxu0
      %v7404 = vadd.f32 0.0, %v7403
      %v7405 = vpop.f32.mrb[0].mxu0
      %7406 = vmatprep.mubr.bf16.mxu0 0
      %7407 = vmatmul.mubr.bf16.gmra.mrb[0].mxu0 %v7319
      %v7408 = vpop.f32.mrb[0].mxu0
      %v7409 = vadd.f32 0.0, %v7408
      %v7410 = vpop.f32.mrb[0].mxu0
      %v7411 = vpop.f32.mrb[0].mxu0
      %v7412 = vadd.f32 0.0, %v7411
      %v7413 = vpop.f32.mrb[0].mxu0
      %7414 = vmatprep.mubr.bf16.mxu0 0
      %7415 = vmatmul.mubr.bf16.gmra.mrb[0].mxu0 %v7322
      %v7416 = vpop.f32.mrb[0].mxu0
      %v7417 = vadd.f32 0.0, %v7416
      %v7418 = vpop.f32.mrb[0].mxu0
      %v7419 = vpop.f32.mrb[0].mxu0
      %v7420 = vadd.f32 0.0, %v7419
      %v7421 = vpop.f32.mrb[0].mxu0
      %7422 = vmatprep.mubr.bf16.mxu0 0
      %7423 = vmatmul.mubr.bf16.gmra.mrb[0].mxu0 %v7325
      %v7424 = vpop.f32.mrb[0].mxu0
      %v7425 = vadd.f32 0.0, %v7424
      %v7426 = vpop.f32.mrb[0].mxu0
      %v7427 = vpop.f32.mrb[0].mxu0
      %v7428 = vadd.f32 0.0, %v7427
      %v7429 = vpop.f32.mrb[0].mxu0
      %7430 = vmatprep.mubr.bf16.mxu0 0
      %7431 = vmatmul.mubr.bf16.gmra.mrb[0].mxu0 %v7328
      %v7432 = vpop.f32.mrb[0].mxu0
      %v7433 = vadd.f32 0.0, %v7432
      %v7434 = vpop.f32.mrb[0].mxu0
      %v7435 = vpop.f32.mrb[0].mxu0
      %v7436 = vadd.f32 0.0, %v7435
      %v7437 = vpop.f32.mrb[0].mxu0
      %7438 = vmatprep.mubr.bf16.mxu0 0
      %7439 = vmatmul.mubr.bf16.gmra.mrb[0].mxu0 %v7331
      %v7440 = vpop.f32.mrb[0].mxu0
      %v7441 = vadd.f32 0.0, %v7440
      %v7442 = vpop.f32.mrb[0].mxu0
      %v7443 = vpop.f32.mrb[0].mxu0
      %v7444 = vadd.f32 0.0, %v7443
      %v7445 = vpop.f32.mrb[0].mxu0
      %7446 = vmatprep.mubr.bf16.mxu0 0
      %7447 = vmatmul.mubr.bf16.gmra.mrb[0].mxu0 %v7334
      %v7448 = vpop.f32.mrb[0].mxu0
      %v7449 = vadd.f32 0.0, %v7448
      %v7450 = vpop.f32.mrb[0].mxu0
      %v7451 = vpop.f32.mrb[0].mxu0
      %v7452 = vadd.f32 0.0, %v7451
      %v7453 = vpop.f32.mrb[0].mxu0
      %7454 = vmatprep.mubr.bf16.mxu0 0
      %7455 = vmatmul.mubr.bf16.gmra.mrb[0].mxu0 %v7337
      %v7456 = vpop.f32.mrb[0].mxu0
      %v7457 = vadd.f32 0.0, %v7456
      %v7458 = vpop.f32.mrb[0].mxu0
      %v7459 = vpop.f32.mrb[0].mxu0
      %v7460 = vadd.f32 0.0, %v7459
      %v7461 = vpop.f32.mrb[0].mxu0
      %7462 = vmatprep.mubr.bf16.mxu0 0
      %7463 = vmatmul.mubr.bf16.gmra.mrb[0].mxu0 %v7340
      %v7464 = vpop.f32.mrb[0].mxu0
      %v7465 = vadd.f32 0.0, %v7464
      %v7466 = vpop.f32.mrb[0].mxu0
      %v7467 = vpop.f32.mrb[0].mxu0
      %v7468 = vadd.f32 0.0, %v7467
      %v7469 = vpop.f32.mrb[0].mxu0
      %7470 = vmatprep.mubr.bf16.mxu0 0
      %7471 = vmatmul.mubr.bf16.gmra.mrb[0].mxu0 %v7343
      %v7472 = vpop.f32.mrb[0].mxu0
      %v7473 = vadd.f32 0.0, %v7472
      %v7474 = vpop.f32.mrb[0].mxu0
      %v7475 = vpop.f32.mrb[0].mxu0
      %v7476 = vadd.f32 0.0, %v7475
      %v7477 = vpop.f32.mrb[0].mxu0
      %7478 = vmatprep.mubr.bf16.mxu0 0
      %7479 = vmatmul.mubr.bf16.gmra.mrb[0].mxu0 %v7346
      %v7480 = vpop.f32.mrb[0].mxu0
      %v7481 = vadd.f32 0.0, %v7480
      %v7482 = vpop.f32.mrb[0].mxu0
      %v7483 = vpop.f32.mrb[0].mxu0
      %v7484 = vadd.f32 0.0, %v7483
      %v7485 = vpop.f32.mrb[0].mxu0
      %7486 = vmatprep.mubr.bf16.mxu0 0
      %7487 = vmatmul.mubr.bf16.gmra.mrb[0].mxu0 %v7349
      %v7488 = vpop.f32.mrb[0].mxu0
      %v7489 = vadd.f32 0.0, %v7488
      %v7490 = vpop.f32.mrb[0].mxu0
      %v7491 = vpop.f32.mrb[0].mxu0
      %v7492 = vadd.f32 0.0, %v7491
      %v7493 = vpop.f32.mrb[0].mxu0
      %7494 = vmatprep.mubr.bf16.mxu0 0
      %7495 = vmatmul.mubr.bf16.gmra.mrb[0].mxu0 %v7352
      %v7496 = vpop.f32.mrb[0].mxu0
      %v7497 = vadd.f32 0.0, %v7496
      %v7498 = vpop.f32.mrb[0].mxu0
      %v7499 = vpop.f32.mrb[0].mxu0
      %v7500 = vadd.f32 0.0, %v7499
      %v7501 = vpop.f32.mrb[0].mxu0
      %7502 = vmatprep.mubr.bf16.mxu0 0
      %7503 = vmatmul.mubr.bf16.gmra.mrb[0].mxu0 %v7355
      %v7504 = vpop.f32.mrb[0].mxu0
      %v7505 = vadd.f32 0.0, %v7504
      %v7506 = vpop.f32.mrb[0].mxu0
      %v7507 = vpop.f32.mrb[0].mxu0
      %v7508 = vadd.f32 0.0, %v7507
      %v7509 = vpop.f32.mrb[0].mxu0
      %7510 = vmatprep.mubr.bf16.mxu0 0
      %7511 = vmatmul.mubr.bf16.gmra.mrb[0].mxu0 %v7358
      %v7512 = vpop.f32.mrb[0].mxu0
      %v7513 = vadd.f32 0.0, %v7512
      %v7514 = vpop.f32.mrb[0].mxu0
      %v7515 = vpop.f32.mrb[0].mxu0
      %v7516 = vadd.f32 0.0, %v7515
      %v7517 = vpop.f32.mrb[0].mxu0
      %7518 = vmatprep.mubr.bf16.mxu0 0
      %7519 = vmatmul.mubr.bf16.gmra.mrb[0].mxu0 %v7361
      %v7520 = vpop.f32.mrb[0].mxu0
      %v7521 = vadd.f32 0.0, %v7520
      %v7522 = vpop.f32.mrb[0].mxu0
      %v7523 = vpop.f32.mrb[0].mxu0
      %v7524 = vadd.f32 0.0, %v7523
      %v7525 = vpop.f32.mrb[0].mxu0
      %7526 = vdwg.mxu0
      %v7527 = vadd.f32 %v6263, %v7401
      %v7528 = vadd.f32 %v6264, %v7404
      %v7529 = vadd.f32 %v6265, %v7409
      %v7530 = vadd.f32 %v6266, %v7412
      %v7531 = vadd.f32 %v6267, %v7417
      %v7532 = vadd.f32 %v6268, %v7420
      %v7533 = vadd.f32 %v6269, %v7425
      %v7534 = vadd.f32 %v6270, %v7428
      %v7535 = vadd.f32 %v6271, %v7433
      %v7536 = vadd.f32 %v6272, %v7436
      %v7537 = vadd.f32 %v6273, %v7441
      %v7538 = vadd.f32 %v6274, %v7444
      %v7539 = vadd.f32 %v6275, %v7449
      %v7540 = vadd.f32 %v6276, %v7452
      %v7541 = vadd.f32 %v6277, %v7457
      %v7542 = vadd.f32 %v6278, %v7460
      %v7543 = vadd.f32 %v6279, %v7465
      %v7544 = vadd.f32 %v6280, %v7468
      %v7545 = vadd.f32 %v6281, %v7473
      %v7546 = vadd.f32 %v6282, %v7476
      %v7547 = vadd.f32 %v6283, %v7481
      %v7548 = vadd.f32 %v6284, %v7484
      %v7549 = vadd.f32 %v6285, %v7489
      %v7550 = vadd.f32 %v6286, %v7492
      %v7551 = vadd.f32 %v6287, %v7497
      %v7552 = vadd.f32 %v6288, %v7500
      %v7553 = vadd.f32 %v6289, %v7505
      %v7554 = vadd.f32 %v6290, %v7508
      %v7555 = vadd.f32 %v6291, %v7513
      %v7556 = vadd.f32 %v6292, %v7516
      %v7557 = vadd.f32 %v6293, %v7521
      %v7558 = vadd.f32 %v6294, %v7524
      %v7559 = vld [vmem:[%s219 + $0x10] sm:$0xe]
      %s7560 = scalar_lea.vmem %s2, 1024
      %v7561 = vld [vmem:[%s7560] sm:$0xf]
      %v7562 = vld [vmem:[%s7560 + $0x4] sm:$0xf]
      %v7563 = vld [vmem:[%s7560 + $0x8] sm:$0xf]
      %v7564 = vld [vmem:[%s7560 + $0xc] sm:$0xf]
      %v7565 = vld [vmem:[%s7560 + $0x10] sm:$0xf]
      %v7566 = vld [vmem:[%s7560 + $0x14] sm:$0xf]
      %v7567 = vld [vmem:[%s7560 + $0x18] sm:$0xf]
      %v7568 = vld [vmem:[%s7560 + $0x1c] sm:$0xf]
      %v7569 = vld [vmem:[%s7560 + $0x20] sm:$0xf]
      %v7570 = vld [vmem:[%s7560 + $0x24] sm:$0xf]
      %v7571 = vld [vmem:[%s7560 + $0x28] sm:$0xf]
      %v7572 = vld [vmem:[%s7560 + $0x2c] sm:$0xf]
      %v7573 = vld [vmem:[%s7560 + $0x30] sm:$0xf]
      %v7574 = vld [vmem:[%s7560 + $0x34] sm:$0xf]
      %v7575 = vld [vmem:[%s7560 + $0x38] sm:$0xf]
      %v7576 = vld [vmem:[%s7560 + $0x3c] sm:$0xf]
      %v7577 = vld [vmem:[%s7560 + $0x40] sm:$0xf]
      %v7578 = vld [vmem:[%s7560 + $0x44] sm:$0xf]
      %v7579 = vld [vmem:[%s7560 + $0x48] sm:$0xf]
      %v7580 = vld [vmem:[%s7560 + $0x4c] sm:$0xf]
      %v7581 = vld [vmem:[%s7560 + $0x50] sm:$0xf]
      %v7582 = vld [vmem:[%s7560 + $0x54] sm:$0xf]
      %v7583 = vld [vmem:[%s7560 + $0x58] sm:$0xf]
      %v7584 = vld [vmem:[%s7560 + $0x5c] sm:$0xf]
      %v7585 = vld [vmem:[%s7560 + $0x60] sm:$0xf]
      %v7586 = vld [vmem:[%s7560 + $0x64] sm:$0xf]
      %v7587 = vld [vmem:[%s7560 + $0x68] sm:$0xf]
      %v7588 = vld [vmem:[%s7560 + $0x6c] sm:$0xf]
      %v7589 = vld [vmem:[%s7560 + $0x70] sm:$0xf]
      %v7590 = vld [vmem:[%s7560 + $0x74] sm:$0xf]
      %v7591 = vld [vmem:[%s7560 + $0x78] sm:$0xf]
      %v7592 = vld [vmem:[%s7560 + $0x7c] sm:$0xf]
      %7594 = vset.pattern.permute.xlu0 0
      %7595 = vperm.xlu0 %7594, %v7561
      %v7596 = vpop.permute.xlu0 %7595
      %v7599 = vunpack.c.l.s4 839922192
      %v7600 = vunpack.c.0.s8 %v7599
      %v7601 = vlaneseq
      %v7602 = vshrl.u32 %v7601, 7
      %v7603 = vsub.s32 %v7600, %v7602
      %v7604 = vrot.slane %v7596, %v7603
      %7606 = vset.pattern.permute.xlu0 0
      %7607 = vperm.xlu0 %7606, %v7562
      %v7608 = vpop.permute.xlu0 %7607
      %v7611 = vunpack.c.l.s4 839922192
      %v7612 = vunpack.c.0.s8 %v7611
      %v7613 = vlaneseq
      %v7614 = vshrl.u32 %v7613, 7
      %v7615 = vsub.s32 %v7612, %v7614
      %v7616 = vrot.slane %v7608, %v7615
      %7618 = vset.pattern.permute.xlu0 0
      %7619 = vperm.xlu0 %7618, %v7563
      %v7620 = vpop.permute.xlu0 %7619
      %v7623 = vunpack.c.l.s4 839922192
      %v7624 = vunpack.c.0.s8 %v7623
      %v7625 = vlaneseq
      %v7626 = vshrl.u32 %v7625, 7
      %v7627 = vsub.s32 %v7624, %v7626
      %v7628 = vrot.slane %v7620, %v7627
      %7630 = vset.pattern.permute.xlu0 0
      %7631 = vperm.xlu0 %7630, %v7564
      %v7632 = vpop.permute.xlu0 %7631
      %v7635 = vunpack.c.l.s4 839922192
      %v7636 = vunpack.c.0.s8 %v7635
      %v7637 = vlaneseq
      %v7638 = vshrl.u32 %v7637, 7
      %v7639 = vsub.s32 %v7636, %v7638
      %v7640 = vrot.slane %v7632, %v7639
      %7642 = vset.pattern.permute.xlu0 0
      %7643 = vperm.xlu0 %7642, %v7565
      %v7644 = vpop.permute.xlu0 %7643
      %v7647 = vunpack.c.l.s4 839922192
      %v7648 = vunpack.c.0.s8 %v7647
      %v7649 = vlaneseq
      %v7650 = vshrl.u32 %v7649, 7
      %v7651 = vsub.s32 %v7648, %v7650
      %v7652 = vrot.slane %v7644, %v7651
      %7654 = vset.pattern.permute.xlu0 0
      %7655 = vperm.xlu0 %7654, %v7566
      %v7656 = vpop.permute.xlu0 %7655
      %v7659 = vunpack.c.l.s4 839922192
      %v7660 = vunpack.c.0.s8 %v7659
      %v7661 = vlaneseq
      %v7662 = vshrl.u32 %v7661, 7
      %v7663 = vsub.s32 %v7660, %v7662
      %v7664 = vrot.slane %v7656, %v7663
      %7666 = vset.pattern.permute.xlu0 0
      %7667 = vperm.xlu0 %7666, %v7567
      %v7668 = vpop.permute.xlu0 %7667
      %v7671 = vunpack.c.l.s4 839922192
      %v7672 = vunpack.c.0.s8 %v7671
      %v7673 = vlaneseq
      %v7674 = vshrl.u32 %v7673, 7
      %v7675 = vsub.s32 %v7672, %v7674
      %v7676 = vrot.slane %v7668, %v7675
      %7678 = vset.pattern.permute.xlu0 0
      %7679 = vperm.xlu0 %7678, %v7568
      %v7680 = vpop.permute.xlu0 %7679
      %v7683 = vunpack.c.l.s4 839922192
      %v7684 = vunpack.c.0.s8 %v7683
      %v7685 = vlaneseq
      %v7686 = vshrl.u32 %v7685, 7
      %v7687 = vsub.s32 %v7684, %v7686
      %v7688 = vrot.slane %v7680, %v7687
      %7690 = vset.pattern.permute.xlu0 0
      %7691 = vperm.xlu0 %7690, %v7569
      %v7692 = vpop.permute.xlu0 %7691
      %v7695 = vunpack.c.l.s4 839922192
      %v7696 = vunpack.c.0.s8 %v7695
      %v7697 = vlaneseq
      %v7698 = vshrl.u32 %v7697, 7
      %v7699 = vsub.s32 %v7696, %v7698
      %v7700 = vrot.slane %v7692, %v7699
      %7702 = vset.pattern.permute.xlu0 0
      %7703 = vperm.xlu0 %7702, %v7570
      %v7704 = vpop.permute.xlu0 %7703
      %v7707 = vunpack.c.l.s4 839922192
      %v7708 = vunpack.c.0.s8 %v7707
      %v7709 = vlaneseq
      %v7710 = vshrl.u32 %v7709, 7
      %v7711 = vsub.s32 %v7708, %v7710
      %v7712 = vrot.slane %v7704, %v7711
      %7714 = vset.pattern.permute.xlu0 0
      %7715 = vperm.xlu0 %7714, %v7571
      %v7716 = vpop.permute.xlu0 %7715
      %v7719 = vunpack.c.l.s4 839922192
      %v7720 = vunpack.c.0.s8 %v7719
      %v7721 = vlaneseq
      %v7722 = vshrl.u32 %v7721, 7
      %v7723 = vsub.s32 %v7720, %v7722
      %v7724 = vrot.slane %v7716, %v7723
      %7726 = vset.pattern.permute.xlu0 0
      %7727 = vperm.xlu0 %7726, %v7572
      %v7728 = vpop.permute.xlu0 %7727
      %v7731 = vunpack.c.l.s4 839922192
      %v7732 = vunpack.c.0.s8 %v7731
      %v7733 = vlaneseq
      %v7734 = vshrl.u32 %v7733, 7
      %v7735 = vsub.s32 %v7732, %v7734
      %v7736 = vrot.slane %v7728, %v7735
      %7738 = vset.pattern.permute.xlu0 0
      %7739 = vperm.xlu0 %7738, %v7573
      %v7740 = vpop.permute.xlu0 %7739
      %v7743 = vunpack.c.l.s4 839922192
      %v7744 = vunpack.c.0.s8 %v7743
      %v7745 = vlaneseq
      %v7746 = vshrl.u32 %v7745, 7
      %v7747 = vsub.s32 %v7744, %v7746
      %v7748 = vrot.slane %v7740, %v7747
      %7750 = vset.pattern.permute.xlu0 0
      %7751 = vperm.xlu0 %7750, %v7574
      %v7752 = vpop.permute.xlu0 %7751
      %v7755 = vunpack.c.l.s4 839922192
      %v7756 = vunpack.c.0.s8 %v7755
      %v7757 = vlaneseq
      %v7758 = vshrl.u32 %v7757, 7
      %v7759 = vsub.s32 %v7756, %v7758
      %v7760 = vrot.slane %v7752, %v7759
      %7762 = vset.pattern.permute.xlu0 0
      %7763 = vperm.xlu0 %7762, %v7575
      %v7764 = vpop.permute.xlu0 %7763
      %v7767 = vunpack.c.l.s4 839922192
      %v7768 = vunpack.c.0.s8 %v7767
      %v7769 = vlaneseq
      %v7770 = vshrl.u32 %v7769, 7
      %v7771 = vsub.s32 %v7768, %v7770
      %v7772 = vrot.slane %v7764, %v7771
      %7774 = vset.pattern.permute.xlu0 0
      %7775 = vperm.xlu0 %7774, %v7576
      %v7776 = vpop.permute.xlu0 %7775
      %v7779 = vunpack.c.l.s4 839922192
      %v7780 = vunpack.c.0.s8 %v7779
      %v7781 = vlaneseq
      %v7782 = vshrl.u32 %v7781, 7
      %v7783 = vsub.s32 %v7780, %v7782
      %v7784 = vrot.slane %v7776, %v7783
      %7786 = vset.pattern.permute.xlu0 0
      %7787 = vperm.xlu0 %7786, %v7577
      %v7788 = vpop.permute.xlu0 %7787
      %v7791 = vunpack.c.l.s4 839922192
      %v7792 = vunpack.c.0.s8 %v7791
      %v7793 = vlaneseq
      %v7794 = vshrl.u32 %v7793, 7
      %v7795 = vsub.s32 %v7792, %v7794
      %v7796 = vrot.slane %v7788, %v7795
      %7798 = vset.pattern.permute.xlu0 0
      %7799 = vperm.xlu0 %7798, %v7578
      %v7800 = vpop.permute.xlu0 %7799
      %v7803 = vunpack.c.l.s4 839922192
      %v7804 = vunpack.c.0.s8 %v7803
      %v7805 = vlaneseq
      %v7806 = vshrl.u32 %v7805, 7
      %v7807 = vsub.s32 %v7804, %v7806
      %v7808 = vrot.slane %v7800, %v7807
      %7810 = vset.pattern.permute.xlu0 0
      %7811 = vperm.xlu0 %7810, %v7579
      %v7812 = vpop.permute.xlu0 %7811
      %v7815 = vunpack.c.l.s4 839922192
      %v7816 = vunpack.c.0.s8 %v7815
      %v7817 = vlaneseq
      %v7818 = vshrl.u32 %v7817, 7
      %v7819 = vsub.s32 %v7816, %v7818
      %v7820 = vrot.slane %v7812, %v7819
      %7822 = vset.pattern.permute.xlu0 0
      %7823 = vperm.xlu0 %7822, %v7580
      %v7824 = vpop.permute.xlu0 %7823
      %v7827 = vunpack.c.l.s4 839922192
      %v7828 = vunpack.c.0.s8 %v7827
      %v7829 = vlaneseq
      %v7830 = vshrl.u32 %v7829, 7
      %v7831 = vsub.s32 %v7828, %v7830
      %v7832 = vrot.slane %v7824, %v7831
      %7834 = vset.pattern.permute.xlu0 0
      %7835 = vperm.xlu0 %7834, %v7581
      %v7836 = vpop.permute.xlu0 %7835
      %v7839 = vunpack.c.l.s4 839922192
      %v7840 = vunpack.c.0.s8 %v7839
      %v7841 = vlaneseq
      %v7842 = vshrl.u32 %v7841, 7
      %v7843 = vsub.s32 %v7840, %v7842
      %v7844 = vrot.slane %v7836, %v7843
      %7846 = vset.pattern.permute.xlu0 0
      %7847 = vperm.xlu0 %7846, %v7582
      %v7848 = vpop.permute.xlu0 %7847
      %v7851 = vunpack.c.l.s4 839922192
      %v7852 = vunpack.c.0.s8 %v7851
      %v7853 = vlaneseq
      %v7854 = vshrl.u32 %v7853, 7
      %v7855 = vsub.s32 %v7852, %v7854
      %v7856 = vrot.slane %v7848, %v7855
      %7858 = vset.pattern.permute.xlu0 0
      %7859 = vperm.xlu0 %7858, %v7583
      %v7860 = vpop.permute.xlu0 %7859
      %v7863 = vunpack.c.l.s4 839922192
      %v7864 = vunpack.c.0.s8 %v7863
      %v7865 = vlaneseq
      %v7866 = vshrl.u32 %v7865, 7
      %v7867 = vsub.s32 %v7864, %v7866
      %v7868 = vrot.slane %v7860, %v7867
      %7870 = vset.pattern.permute.xlu0 0
      %7871 = vperm.xlu0 %7870, %v7584
      %v7872 = vpop.permute.xlu0 %7871
      %v7875 = vunpack.c.l.s4 839922192
      %v7876 = vunpack.c.0.s8 %v7875
      %v7877 = vlaneseq
      %v7878 = vshrl.u32 %v7877, 7
      %v7879 = vsub.s32 %v7876, %v7878
      %v7880 = vrot.slane %v7872, %v7879
      %7882 = vset.pattern.permute.xlu0 0
      %7883 = vperm.xlu0 %7882, %v7585
      %v7884 = vpop.permute.xlu0 %7883
      %v7887 = vunpack.c.l.s4 839922192
      %v7888 = vunpack.c.0.s8 %v7887
      %v7889 = vlaneseq
      %v7890 = vshrl.u32 %v7889, 7
      %v7891 = vsub.s32 %v7888, %v7890
      %v7892 = vrot.slane %v7884, %v7891
      %7894 = vset.pattern.permute.xlu0 0
      %7895 = vperm.xlu0 %7894, %v7586
      %v7896 = vpop.permute.xlu0 %7895
      %v7899 = vunpack.c.l.s4 839922192
      %v7900 = vunpack.c.0.s8 %v7899
      %v7901 = vlaneseq
      %v7902 = vshrl.u32 %v7901, 7
      %v7903 = vsub.s32 %v7900, %v7902
      %v7904 = vrot.slane %v7896, %v7903
      %7906 = vset.pattern.permute.xlu0 0
      %7907 = vperm.xlu0 %7906, %v7587
      %v7908 = vpop.permute.xlu0 %7907
      %v7911 = vunpack.c.l.s4 839922192
      %v7912 = vunpack.c.0.s8 %v7911
      %v7913 = vlaneseq
      %v7914 = vshrl.u32 %v7913, 7
      %v7915 = vsub.s32 %v7912, %v7914
      %v7916 = vrot.slane %v7908, %v7915
      %7918 = vset.pattern.permute.xlu0 0
      %7919 = vperm.xlu0 %7918, %v7588
      %v7920 = vpop.permute.xlu0 %7919
      %v7923 = vunpack.c.l.s4 839922192
      %v7924 = vunpack.c.0.s8 %v7923
      %v7925 = vlaneseq
      %v7926 = vshrl.u32 %v7925, 7
      %v7927 = vsub.s32 %v7924, %v7926
      %v7928 = vrot.slane %v7920, %v7927
      %7930 = vset.pattern.permute.xlu0 0
      %7931 = vperm.xlu0 %7930, %v7589
      %v7932 = vpop.permute.xlu0 %7931
      %v7935 = vunpack.c.l.s4 839922192
      %v7936 = vunpack.c.0.s8 %v7935
      %v7937 = vlaneseq
      %v7938 = vshrl.u32 %v7937, 7
      %v7939 = vsub.s32 %v7936, %v7938
      %v7940 = vrot.slane %v7932, %v7939
      %7942 = vset.pattern.permute.xlu0 0
      %7943 = vperm.xlu0 %7942, %v7590
      %v7944 = vpop.permute.xlu0 %7943
      %v7947 = vunpack.c.l.s4 839922192
      %v7948 = vunpack.c.0.s8 %v7947
      %v7949 = vlaneseq
      %v7950 = vshrl.u32 %v7949, 7
      %v7951 = vsub.s32 %v7948, %v7950
      %v7952 = vrot.slane %v7944, %v7951
      %7954 = vset.pattern.permute.xlu0 0
      %7955 = vperm.xlu0 %7954, %v7591
      %v7956 = vpop.permute.xlu0 %7955
      %v7959 = vunpack.c.l.s4 839922192
      %v7960 = vunpack.c.0.s8 %v7959
      %v7961 = vlaneseq
      %v7962 = vshrl.u32 %v7961, 7
      %v7963 = vsub.s32 %v7960, %v7962
      %v7964 = vrot.slane %v7956, %v7963
      %7966 = vset.pattern.permute.xlu0 0
      %7967 = vperm.xlu0 %7966, %v7592
      %v7968 = vpop.permute.xlu0 %7967
      %v7971 = vunpack.c.l.s4 839922192
      %v7972 = vunpack.c.0.s8 %v7971
      %v7973 = vlaneseq
      %v7974 = vshrl.u32 %v7973, 7
      %v7975 = vsub.s32 %v7972, %v7974
      %v7976 = vrot.slane %v7968, %v7975
      %v8009 = vrot.slane %v7604, 7
      %v8010 = vrot.slane %v8009, 4
      %v8011 = vrot.slane %v7616, 7
      %v8012 = vsel %vm2689, %v8010, %v8011
      %v8013 = vrot.slane %v8011, 4
      %v8014 = vrot.slane %v7628, 7
      %v8015 = vsel %vm2689, %v8013, %v8014
      %v8016 = vrot.slane %v8014, 4
      %v8017 = vrot.slane %v7640, 7
      %v8018 = vsel %vm2689, %v8016, %v8017
      %v8019 = vrot.slane %v8017, 4
      %v8020 = vrot.slane %v7652, 7
      %v8021 = vsel %vm2689, %v8019, %v8020
      %v8022 = vrot.slane %v8020, 4
      %v8023 = vrot.slane %v7664, 7
      %v8024 = vsel %vm2689, %v8022, %v8023
      %v8025 = vrot.slane %v8023, 4
      %v8026 = vrot.slane %v7676, 7
      %v8027 = vsel %vm2689, %v8025, %v8026
      %v8028 = vrot.slane %v8026, 4
      %v8029 = vrot.slane %v7688, 7
      %v8030 = vsel %vm2689, %v8028, %v8029
      %v8031 = vrot.slane %v8029, 4
      %v8032 = vrot.slane %v7700, 7
      %v8033 = vsel %vm2689, %v8031, %v8032
      %v8034 = vrot.slane %v8032, 4
      %v8035 = vrot.slane %v7712, 7
      %v8036 = vsel %vm2689, %v8034, %v8035
      %v8037 = vrot.slane %v8035, 4
      %v8038 = vrot.slane %v7724, 7
      %v8039 = vsel %vm2689, %v8037, %v8038
      %v8040 = vrot.slane %v8038, 4
      %v8041 = vrot.slane %v7736, 7
      %v8042 = vsel %vm2689, %v8040, %v8041
      %v8043 = vrot.slane %v8041, 4
      %v8044 = vrot.slane %v7748, 7
      %v8045 = vsel %vm2689, %v8043, %v8044
      %v8046 = vrot.slane %v8044, 4
      %v8047 = vrot.slane %v7760, 7
      %v8048 = vsel %vm2689, %v8046, %v8047
      %v8049 = vrot.slane %v8047, 4
      %v8050 = vrot.slane %v7772, 7
      %v8051 = vsel %vm2689, %v8049, %v8050
      %v8052 = vrot.slane %v8050, 4
      %v8053 = vrot.slane %v7784, 7
      %v8054 = vsel %vm2689, %v8052, %v8053
      %v8055 = vrot.slane %v8053, 4
      %v8056 = vrot.slane %v7796, 7
      %v8057 = vsel %vm2689, %v8055, %v8056
      %v8058 = vrot.slane %v8056, 4
      %v8059 = vrot.slane %v7808, 7
      %v8060 = vsel %vm2689, %v8058, %v8059
      %v8061 = vrot.slane %v8059, 4
      %v8062 = vrot.slane %v7820, 7
      %v8063 = vsel %vm2689, %v8061, %v8062
      %v8064 = vrot.slane %v8062, 4
      %v8065 = vrot.slane %v7832, 7
      %v8066 = vsel %vm2689, %v8064, %v8065
      %v8067 = vrot.slane %v8065, 4
      %v8068 = vrot.slane %v7844, 7
      %v8069 = vsel %vm2689, %v8067, %v8068
      %v8070 = vrot.slane %v8068, 4
      %v8071 = vrot.slane %v7856, 7
      %v8072 = vsel %vm2689, %v8070, %v8071
      %v8073 = vrot.slane %v8071, 4
      %v8074 = vrot.slane %v7868, 7
      %v8075 = vsel %vm2689, %v8073, %v8074
      %v8076 = vrot.slane %v8074, 4
      %v8077 = vrot.slane %v7880, 7
      %v8078 = vsel %vm2689, %v8076, %v8077
      %v8079 = vrot.slane %v8077, 4
      %v8080 = vrot.slane %v7892, 7
      %v8081 = vsel %vm2689, %v8079, %v8080
      %v8082 = vrot.slane %v8080, 4
      %v8083 = vrot.slane %v7904, 7
      %v8084 = vsel %vm2689, %v8082, %v8083
      %v8085 = vrot.slane %v8083, 4
      %v8086 = vrot.slane %v7916, 7
      %v8087 = vsel %vm2689, %v8085, %v8086
      %v8088 = vrot.slane %v8086, 4
      %v8089 = vrot.slane %v7928, 7
      %v8090 = vsel %vm2689, %v8088, %v8089
      %v8091 = vrot.slane %v8089, 4
      %v8092 = vrot.slane %v7940, 7
      %v8093 = vsel %vm2689, %v8091, %v8092
      %v8094 = vrot.slane %v8092, 4
      %v8095 = vrot.slane %v7952, 7
      %v8096 = vsel %vm2689, %v8094, %v8095
      %v8097 = vrot.slane %v8095, 4
      %v8098 = vrot.slane %v7964, 7
      %v8099 = vsel %vm2689, %v8097, %v8098
      %v8100 = vrot.slane %v8098, 4
      %v8101 = vrot.slane %v7976, 7
      %v8102 = vsel %vm2689, %v8100, %v8101
      %v8103 = vrot.slane %v8101, 4
      %v8137 = vmul.bf16 %v7559, %v8009
      %v8138 = vmul.bf16 %v6296, %v8012
      %v8139 = vmul.bf16 %v6297, %v8015
      %v8140 = vmul.bf16 %v6298, %v8018
      %v8141 = vmul.bf16 %v6299, %v8021
      %v8142 = vmul.bf16 %v6300, %v8024
      %v8143 = vmul.bf16 %v6301, %v8027
      %v8144 = vmul.bf16 %v6302, %v8030
      %v8145 = vmul.bf16 %v6303, %v8033
      %v8146 = vmul.bf16 %v6304, %v8036
      %v8147 = vmul.bf16 %v6305, %v8039
      %v8148 = vmul.bf16 %v6306, %v8042
      %v8149 = vmul.bf16 %v6307, %v8045
      %v8150 = vmul.bf16 %v6308, %v8048
      %v8151 = vmul.bf16 %v6309, %v8051
      %v8152 = vmul.bf16 %v6310, %v8054
      %v8153 = vmul.bf16 %v6311, %v8057
      %v8154 = vmul.bf16 %v6312, %v8060
      %v8155 = vmul.bf16 %v6313, %v8063
      %v8156 = vmul.bf16 %v6314, %v8066
      %v8157 = vmul.bf16 %v6315, %v8069
      %v8158 = vmul.bf16 %v6316, %v8072
      %v8159 = vmul.bf16 %v6317, %v8075
      %v8160 = vmul.bf16 %v6318, %v8078
      %v8161 = vmul.bf16 %v6319, %v8081
      %v8162 = vmul.bf16 %v6320, %v8084
      %v8163 = vmul.bf16 %v6321, %v8087
      %v8164 = vmul.bf16 %v6322, %v8090
      %v8165 = vmul.bf16 %v6323, %v8093
      %v8166 = vmul.bf16 %v6324, %v8096
      %v8167 = vmul.bf16 %v6325, %v8099
      %v8168 = vmul.bf16 %v6326, %v8102
      %v8169 = vmul.bf16 %v6327, %v8103
      %s8170 = scalar_lea.vmem %s1, 16
      %v8171 = vld [vmem:[%s8170] sm:$0x3]
      %v8205 = vunpack.c.l.b16 %v8137
      %v8206 = vunpack.c.l.b16 %v8138
      %v8207 = vunpack.c.l.b16 %v8139
      %v8208 = vunpack.c.l.b16 %v8140
      %v8209 = vunpack.c.l.b16 %v8141
      %v8210 = vunpack.c.l.b16 %v8142
      %v8211 = vunpack.c.l.b16 %v8143
      %v8212 = vunpack.c.l.b16 %v8144
      %v8213 = vunpack.c.l.b16 %v8145
      %v8214 = vunpack.c.l.b16 %v8146
      %v8215 = vunpack.c.l.b16 %v8147
      %v8216 = vunpack.c.l.b16 %v8148
      %v8217 = vunpack.c.l.b16 %v8149
      %v8218 = vunpack.c.l.b16 %v8150
      %v8219 = vunpack.c.l.b16 %v8151
      %v8220 = vunpack.c.l.b16 %v8152
      %v8221 = vunpack.c.l.b16 %v8153
      %v8222 = vunpack.c.l.b16 %v8154
      %v8223 = vunpack.c.l.b16 %v8155
      %v8224 = vunpack.c.l.b16 %v8156
      %v8225 = vunpack.c.l.b16 %v8157
      %v8226 = vunpack.c.l.b16 %v8158
      %v8227 = vunpack.c.l.b16 %v8159
      %v8228 = vunpack.c.l.b16 %v8160
      %v8229 = vunpack.c.l.b16 %v8161
      %v8230 = vunpack.c.l.b16 %v8162
      %v8231 = vunpack.c.l.b16 %v8163
      %v8232 = vunpack.c.l.b16 %v8164
      %v8233 = vunpack.c.l.b16 %v8165
      %v8234 = vunpack.c.l.b16 %v8166
      %v8235 = vunpack.c.l.b16 %v8167
      %v8236 = vunpack.c.l.b16 %v8168
      %v8237 = vunpack.c.l.b16 %v8169
      %v8238 = vpack.c.b16 %v8206, %v8205
      %v8239 = vpack.c.b16 %v8208, %v8207
      %v8240 = vpack.c.b16 %v8210, %v8209
      %v8241 = vpack.c.b16 %v8212, %v8211
      %v8242 = vpack.c.b16 %v8214, %v8213
      %v8243 = vpack.c.b16 %v8216, %v8215
      %v8244 = vpack.c.b16 %v8218, %v8217
      %v8245 = vpack.c.b16 %v8220, %v8219
      %v8246 = vpack.c.b16 %v8222, %v8221
      %v8247 = vpack.c.b16 %v8224, %v8223
      %v8248 = vpack.c.b16 %v8226, %v8225
      %v8249 = vpack.c.b16 %v8228, %v8227
      %v8250 = vpack.c.b16 %v8230, %v8229
      %v8251 = vpack.c.b16 %v8232, %v8231
      %v8252 = vpack.c.b16 %v8234, %v8233
      %v8253 = vpack.c.b16 %v8236, %v8235
      %v8254 = vpack.c.b16 %v8237, %v8237
      %v8255 = vrot.slane %v8238, 1
      %v8256 = vrot.slane %v8239, 1
      %v8257 = vsel %vm2936, %v8255, %v8256
      %v8258 = vrot.slane %v8240, 1
      %v8259 = vsel %vm2936, %v8256, %v8258
      %v8260 = vrot.slane %v8241, 1
      %v8261 = vsel %vm2936, %v8258, %v8260
      %v8262 = vrot.slane %v8242, 1
      %v8263 = vsel %vm2936, %v8260, %v8262
      %v8264 = vrot.slane %v8243, 1
      %v8265 = vsel %vm2936, %v8262, %v8264
      %v8266 = vrot.slane %v8244, 1
      %v8267 = vsel %vm2936, %v8264, %v8266
      %v8268 = vrot.slane %v8245, 1
      %v8269 = vsel %vm2936, %v8266, %v8268
      %v8270 = vrot.slane %v8246, 1
      %v8271 = vsel %vm2936, %v8268, %v8270
      %v8272 = vrot.slane %v8247, 1
      %v8273 = vsel %vm2936, %v8270, %v8272
      %v8274 = vrot.slane %v8248, 1
      %v8275 = vsel %vm2936, %v8272, %v8274
      %v8276 = vrot.slane %v8249, 1
      %v8277 = vsel %vm2936, %v8274, %v8276
      %v8278 = vrot.slane %v8250, 1
      %v8279 = vsel %vm2936, %v8276, %v8278
      %v8280 = vrot.slane %v8251, 1
      %v8281 = vsel %vm2936, %v8278, %v8280
      %v8282 = vrot.slane %v8252, 1
      %v8283 = vsel %vm2936, %v8280, %v8282
      %v8284 = vrot.slane %v8253, 1
      %v8285 = vsel %vm2936, %v8282, %v8284
      %v8286 = vrot.slane %v8254, 1
      %v8287 = vsel %vm2936, %v8284, %v8286
      %v8289 = vsel %vm1731, %v8257, 0
      %v8292 = vsel %vm1731, %v8259, 0
      %v8295 = vsel %vm1731, %v8261, 0
      %v8298 = vsel %vm1731, %v8263, 0
      %v8301 = vsel %vm1731, %v8265, 0
      %v8304 = vsel %vm1731, %v8267, 0
      %v8307 = vsel %vm1731, %v8269, 0
      %v8310 = vsel %vm1731, %v8271, 0
      %v8313 = vsel %vm1731, %v8273, 0
      %v8316 = vsel %vm1731, %v8275, 0
      %v8319 = vsel %vm1731, %v8277, 0
      %v8322 = vsel %vm1731, %v8279, 0
      %v8325 = vsel %vm1731, %v8281, 0
      %v8328 = vsel %vm1731, %v8283, 0
      %v8331 = vsel %vm1731, %v8285, 0
      %v8334 = vsel %vm1731, %v8287, 0
      %v8337 = vsel %vm1780, %v8171, 0
      %8339 = vmatprep.subr.bf16.mxu0 0
      %8340 = vmatpush1.bf16.msra.mxu0 %v8337
      %8341 = vmatprep.subr.bf16.mxu0 0
      %8342 = vmatpush1.bf16.msra.mxu0 0
      %8343 = vmatprep.subr.bf16.mxu0 0
      %8344 = vmatpush1.bf16.msra.mxu0 0
      %8345 = vmatprep.subr.bf16.mxu0 0
      %8346 = vmatpush1.bf16.msra.mxu0 0
      %8347 = vmatprep.subr.bf16.mxu0 0
      %8348 = vmatpush1.bf16.msra.mxu0 0
      %8349 = vmatprep.subr.bf16.mxu0 0
      %8350 = vmatpush1.bf16.msra.mxu0 0
      %8351 = vmatprep.subr.bf16.mxu0 0
      %8352 = vmatpush1.bf16.msra.mxu0 0
      %8353 = vmatprep.subr.bf16.mxu0 0
      %8354 = vmatpush1.bf16.msra.mxu0 0
      %8355 = vmatprep.subr.bf16.mxu0 0
      %8356 = vmatpush1.bf16.msra.mxu0 0
      %8357 = vmatprep.subr.bf16.mxu0 0
      %8358 = vmatpush1.bf16.msra.mxu0 0
      %8359 = vmatprep.subr.bf16.mxu0 0
      %8360 = vmatpush1.bf16.msra.mxu0 0
      %8361 = vmatprep.subr.bf16.mxu0 0
      %8362 = vmatpush1.bf16.msra.mxu0 0
      %8363 = vmatprep.subr.bf16.mxu0 0
      %8364 = vmatpush1.bf16.msra.mxu0 0
      %8365 = vmatprep.subr.bf16.mxu0 0
      %8366 = vmatpush1.bf16.msra.mxu0 0
      %8367 = vmatprep.subr.bf16.mxu0 0
      %8368 = vmatpush1.bf16.msra.mxu0 0
      %8369 = vmatprep.subr.bf16.mxu0 0
      %8370 = vmatpush1.bf16.msra.mxu0 0
      %8371 = vmatprep.mubr.bf16.mxu0 0
      %8372 = vmatmul.mubr.bf16.gmra.mrb[0].mxu0 %v8289
      %v8373 = vpop.f32.mrb[0].mxu0
      %v8374 = vadd.f32 0.0, %v8373
      %v8375 = vpop.f32.mrb[0].mxu0
      %v8376 = vpop.f32.mrb[0].mxu0
      %v8377 = vadd.f32 0.0, %v8376
      %v8378 = vpop.f32.mrb[0].mxu0
      %8379 = vmatprep.mubr.bf16.mxu0 0
      %8380 = vmatmul.mubr.bf16.gmra.mrb[0].mxu0 %v8292
      %v8381 = vpop.f32.mrb[0].mxu0
      %v8382 = vadd.f32 0.0, %v8381
      %v8383 = vpop.f32.mrb[0].mxu0
      %v8384 = vpop.f32.mrb[0].mxu0
      %v8385 = vadd.f32 0.0, %v8384
      %v8386 = vpop.f32.mrb[0].mxu0
      %8387 = vmatprep.mubr.bf16.mxu0 0
      %8388 = vmatmul.mubr.bf16.gmra.mrb[0].mxu0 %v8295
      %v8389 = vpop.f32.mrb[0].mxu0
      %v8390 = vadd.f32 0.0, %v8389
      %v8391 = vpop.f32.mrb[0].mxu0
      %v8392 = vpop.f32.mrb[0].mxu0
      %v8393 = vadd.f32 0.0, %v8392
      %v8394 = vpop.f32.mrb[0].mxu0
      %8395 = vmatprep.mubr.bf16.mxu0 0
      %8396 = vmatmul.mubr.bf16.gmra.mrb[0].mxu0 %v8298
      %v8397 = vpop.f32.mrb[0].mxu0
      %v8398 = vadd.f32 0.0, %v8397
      %v8399 = vpop.f32.mrb[0].mxu0
      %v8400 = vpop.f32.mrb[0].mxu0
      %v8401 = vadd.f32 0.0, %v8400
      %v8402 = vpop.f32.mrb[0].mxu0
      %8403 = vmatprep.mubr.bf16.mxu0 0
      %8404 = vmatmul.mubr.bf16.gmra.mrb[0].mxu0 %v8301
      %v8405 = vpop.f32.mrb[0].mxu0
      %v8406 = vadd.f32 0.0, %v8405
      %v8407 = vpop.f32.mrb[0].mxu0
      %v8408 = vpop.f32.mrb[0].mxu0
      %v8409 = vadd.f32 0.0, %v8408
      %v8410 = vpop.f32.mrb[0].mxu0
      %8411 = vmatprep.mubr.bf16.mxu0 0
      %8412 = vmatmul.mubr.bf16.gmra.mrb[0].mxu0 %v8304
      %v8413 = vpop.f32.mrb[0].mxu0
      %v8414 = vadd.f32 0.0, %v8413
      %v8415 = vpop.f32.mrb[0].mxu0
      %v8416 = vpop.f32.mrb[0].mxu0
      %v8417 = vadd.f32 0.0, %v8416
      %v8418 = vpop.f32.mrb[0].mxu0
      %8419 = vmatprep.mubr.bf16.mxu0 0
      %8420 = vmatmul.mubr.bf16.gmra.mrb[0].mxu0 %v8307
      %v8421 = vpop.f32.mrb[0].mxu0
      %v8422 = vadd.f32 0.0, %v8421
      %v8423 = vpop.f32.mrb[0].mxu0
      %v8424 = vpop.f32.mrb[0].mxu0
      %v8425 = vadd.f32 0.0, %v8424
      %v8426 = vpop.f32.mrb[0].mxu0
      %8427 = vmatprep.mubr.bf16.mxu0 0
      %8428 = vmatmul.mubr.bf16.gmra.mrb[0].mxu0 %v8310
      %v8429 = vpop.f32.mrb[0].mxu0
      %v8430 = vadd.f32 0.0, %v8429
      %v8431 = vpop.f32.mrb[0].mxu0
      %v8432 = vpop.f32.mrb[0].mxu0
      %v8433 = vadd.f32 0.0, %v8432
      %v8434 = vpop.f32.mrb[0].mxu0
      %8435 = vmatprep.mubr.bf16.mxu0 0
      %8436 = vmatmul.mubr.bf16.gmra.mrb[0].mxu0 %v8313
      %v8437 = vpop.f32.mrb[0].mxu0
      %v8438 = vadd.f32 0.0, %v8437
      %v8439 = vpop.f32.mrb[0].mxu0
      %v8440 = vpop.f32.mrb[0].mxu0
      %v8441 = vadd.f32 0.0, %v8440
      %v8442 = vpop.f32.mrb[0].mxu0
      %8443 = vmatprep.mubr.bf16.mxu0 0
      %8444 = vmatmul.mubr.bf16.gmra.mrb[0].mxu0 %v8316
      %v8445 = vpop.f32.mrb[0].mxu0
      %v8446 = vadd.f32 0.0, %v8445
      %v8447 = vpop.f32.mrb[0].mxu0
      %v8448 = vpop.f32.mrb[0].mxu0
      %v8449 = vadd.f32 0.0, %v8448
      %v8450 = vpop.f32.mrb[0].mxu0
      %8451 = vmatprep.mubr.bf16.mxu0 0
      %8452 = vmatmul.mubr.bf16.gmra.mrb[0].mxu0 %v8319
      %v8453 = vpop.f32.mrb[0].mxu0
      %v8454 = vadd.f32 0.0, %v8453
      %v8455 = vpop.f32.mrb[0].mxu0
      %v8456 = vpop.f32.mrb[0].mxu0
      %v8457 = vadd.f32 0.0, %v8456
      %v8458 = vpop.f32.mrb[0].mxu0
      %8459 = vmatprep.mubr.bf16.mxu0 0
      %8460 = vmatmul.mubr.bf16.gmra.mrb[0].mxu0 %v8322
      %v8461 = vpop.f32.mrb[0].mxu0
      %v8462 = vadd.f32 0.0, %v8461
      %v8463 = vpop.f32.mrb[0].mxu0
      %v8464 = vpop.f32.mrb[0].mxu0
      %v8465 = vadd.f32 0.0, %v8464
      %v8466 = vpop.f32.mrb[0].mxu0
      %8467 = vmatprep.mubr.bf16.mxu0 0
      %8468 = vmatmul.mubr.bf16.gmra.mrb[0].mxu0 %v8325
      %v8469 = vpop.f32.mrb[0].mxu0
      %v8470 = vadd.f32 0.0, %v8469
      %v8471 = vpop.f32.mrb[0].mxu0
      %v8472 = vpop.f32.mrb[0].mxu0
      %v8473 = vadd.f32 0.0, %v8472
      %v8474 = vpop.f32.mrb[0].mxu0
      %8475 = vmatprep.mubr.bf16.mxu0 0
      %8476 = vmatmul.mubr.bf16.gmra.mrb[0].mxu0 %v8328
      %v8477 = vpop.f32.mrb[0].mxu0
      %v8478 = vadd.f32 0.0, %v8477
      %v8479 = vpop.f32.mrb[0].mxu0
      %v8480 = vpop.f32.mrb[0].mxu0
      %v8481 = vadd.f32 0.0, %v8480
      %v8482 = vpop.f32.mrb[0].mxu0
      %8483 = vmatprep.mubr.bf16.mxu0 0
      %8484 = vmatmul.mubr.bf16.gmra.mrb[0].mxu0 %v8331
      %v8485 = vpop.f32.mrb[0].mxu0
      %v8486 = vadd.f32 0.0, %v8485
      %v8487 = vpop.f32.mrb[0].mxu0
      %v8488 = vpop.f32.mrb[0].mxu0
      %v8489 = vadd.f32 0.0, %v8488
      %v8490 = vpop.f32.mrb[0].mxu0
      %8491 = vmatprep.mubr.bf16.mxu0 0
      %8492 = vmatmul.mubr.bf16.gmra.mrb[0].mxu0 %v8334
      %v8493 = vpop.f32.mrb[0].mxu0
      %v8494 = vadd.f32 0.0, %v8493
      %v8495 = vpop.f32.mrb[0].mxu0
      %v8496 = vpop.f32.mrb[0].mxu0
      %v8497 = vadd.f32 0.0, %v8496
      %v8498 = vpop.f32.mrb[0].mxu0
      %8499 = vdwg.mxu0
      %v8500 = vadd.f32 %v7527, %v8374
      %v8501 = vadd.f32 %v7528, %v8377
      %v8502 = vadd.f32 %v7529, %v8382
      %v8503 = vadd.f32 %v7530, %v8385
      %v8504 = vadd.f32 %v7531, %v8390
      %v8505 = vadd.f32 %v7532, %v8393
      %v8506 = vadd.f32 %v7533, %v8398
      %v8507 = vadd.f32 %v7534, %v8401
      %v8508 = vadd.f32 %v7535, %v8406
      %v8509 = vadd.f32 %v7536, %v8409
      %v8510 = vadd.f32 %v7537, %v8414
      %v8511 = vadd.f32 %v7538, %v8417
      %v8512 = vadd.f32 %v7539, %v8422
      %v8513 = vadd.f32 %v7540, %v8425
      %v8514 = vadd.f32 %v7541, %v8430
      %v8515 = vadd.f32 %v7542, %v8433
      %v8516 = vadd.f32 %v7543, %v8438
      %v8517 = vadd.f32 %v7544, %v8441
      %v8518 = vadd.f32 %v7545, %v8446
      %v8519 = vadd.f32 %v7546, %v8449
      %v8520 = vadd.f32 %v7547, %v8454
      %v8521 = vadd.f32 %v7548, %v8457
      %v8522 = vadd.f32 %v7549, %v8462
      %v8523 = vadd.f32 %v7550, %v8465
      %v8524 = vadd.f32 %v7551, %v8470
      %v8525 = vadd.f32 %v7552, %v8473
      %v8526 = vadd.f32 %v7553, %v8478
      %v8527 = vadd.f32 %v7554, %v8481
      %v8528 = vadd.f32 %v7555, %v8486
      %v8529 = vadd.f32 %v7556, %v8489
      %v8530 = vadd.f32 %v7557, %v8494
      %v8531 = vadd.f32 %v7558, %v8497
      %v8532 = vld [vmem:[%s3] sm:$0x1]
      %v8534 = vlaneseq
      %v8535 = vshrl.u32 %v8534, 7
      %v8536 = vsub.s32 0, %v8535
      %v8537 = vrot.slane %v8532, %v8536
      %v8539 = vmul.f32 %v8500, %v8537
      %v8540 = vmul.f32 %v8501, %v8537
      %v8541 = vmul.f32 %v8502, %v8537
      %v8542 = vmul.f32 %v8503, %v8537
      %v8543 = vmul.f32 %v8504, %v8537
      %v8544 = vmul.f32 %v8505, %v8537
      %v8545 = vmul.f32 %v8506, %v8537
      %v8546 = vmul.f32 %v8507, %v8537
      %v8547 = vmul.f32 %v8508, %v8537
      %v8548 = vmul.f32 %v8509, %v8537
      %v8549 = vmul.f32 %v8510, %v8537
      %v8550 = vmul.f32 %v8511, %v8537
      %v8551 = vmul.f32 %v8512, %v8537
      %v8552 = vmul.f32 %v8513, %v8537
      %v8553 = vmul.f32 %v8514, %v8537
      %v8554 = vmul.f32 %v8515, %v8537
      %v8555 = vmul.f32 %v8516, %v8537
      %v8556 = vmul.f32 %v8517, %v8537
      %v8557 = vmul.f32 %v8518, %v8537
      %v8558 = vmul.f32 %v8519, %v8537
      %v8559 = vmul.f32 %v8520, %v8537
      %v8560 = vmul.f32 %v8521, %v8537
      %v8561 = vmul.f32 %v8522, %v8537
      %v8562 = vmul.f32 %v8523, %v8537
      %v8563 = vmul.f32 %v8524, %v8537
      %v8564 = vmul.f32 %v8525, %v8537
      %v8565 = vmul.f32 %v8526, %v8537
      %v8566 = vmul.f32 %v8527, %v8537
      %v8567 = vmul.f32 %v8528, %v8537
      %v8568 = vmul.f32 %v8529, %v8537
      %v8569 = vmul.f32 %v8530, %v8537
      %v8570 = vmul.f32 %v8531, %v8537
      %v8571 = vld [vmem:[%s4] sm:$0x1]
      %v8573 = vlaneseq
      %v8574 = vshrl.u32 %v8573, 7
      %v8575 = vsub.s32 0, %v8574
      %v8576 = vrot.slane %v8571, %v8575
      %v8578 = vadd.f32 %v8539, %v8576
      %v8579 = vadd.f32 %v8540, %v8576
      %v8580 = vadd.f32 %v8541, %v8576
      %v8581 = vadd.f32 %v8542, %v8576
      %v8582 = vadd.f32 %v8543, %v8576
      %v8583 = vadd.f32 %v8544, %v8576
      %v8584 = vadd.f32 %v8545, %v8576
      %v8585 = vadd.f32 %v8546, %v8576
      %v8586 = vadd.f32 %v8547, %v8576
      %v8587 = vadd.f32 %v8548, %v8576
      %v8588 = vadd.f32 %v8549, %v8576
      %v8589 = vadd.f32 %v8550, %v8576
      %v8590 = vadd.f32 %v8551, %v8576
      %v8591 = vadd.f32 %v8552, %v8576
      %v8592 = vadd.f32 %v8553, %v8576
      %v8593 = vadd.f32 %v8554, %v8576
      %v8594 = vadd.f32 %v8555, %v8576
      %v8595 = vadd.f32 %v8556, %v8576
      %v8596 = vadd.f32 %v8557, %v8576
      %v8597 = vadd.f32 %v8558, %v8576
      %v8598 = vadd.f32 %v8559, %v8576
      %v8599 = vadd.f32 %v8560, %v8576
      %v8600 = vadd.f32 %v8561, %v8576
      %v8601 = vadd.f32 %v8562, %v8576
      %v8602 = vadd.f32 %v8563, %v8576
      %v8603 = vadd.f32 %v8564, %v8576
      %v8604 = vadd.f32 %v8565, %v8576
      %v8605 = vadd.f32 %v8566, %v8576
      %v8606 = vadd.f32 %v8567, %v8576
      %v8607 = vadd.f32 %v8568, %v8576
      %v8608 = vadd.f32 %v8569, %v8576
      %v8609 = vadd.f32 %v8570, %v8576
      %v8610 = vmax.f32 %v8578, 0.0
      %v8611 = vmax.f32 %v8579, 0.0
      %v8612 = vmax.f32 %v8580, 0.0
      %v8613 = vmax.f32 %v8581, 0.0
      %v8614 = vmax.f32 %v8582, 0.0
      %v8615 = vmax.f32 %v8583, 0.0
      %v8616 = vmax.f32 %v8584, 0.0
      %v8617 = vmax.f32 %v8585, 0.0
      %v8618 = vmax.f32 %v8586, 0.0
      %v8619 = vmax.f32 %v8587, 0.0
      %v8620 = vmax.f32 %v8588, 0.0
      %v8621 = vmax.f32 %v8589, 0.0
      %v8622 = vmax.f32 %v8590, 0.0
      %v8623 = vmax.f32 %v8591, 0.0
      %v8624 = vmax.f32 %v8592, 0.0
      %v8625 = vmax.f32 %v8593, 0.0
      %v8626 = vmax.f32 %v8594, 0.0
      %v8627 = vmax.f32 %v8595, 0.0
      %v8628 = vmax.f32 %v8596, 0.0
      %v8629 = vmax.f32 %v8597, 0.0
      %v8630 = vmax.f32 %v8598, 0.0
      %v8631 = vmax.f32 %v8599, 0.0
      %v8632 = vmax.f32 %v8600, 0.0
      %v8633 = vmax.f32 %v8601, 0.0
      %v8634 = vmax.f32 %v8602, 0.0
      %v8635 = vmax.f32 %v8603, 0.0
      %v8636 = vmax.f32 %v8604, 0.0
      %v8637 = vmax.f32 %v8605, 0.0
      %v8638 = vmax.f32 %v8606, 0.0
      %v8639 = vmax.f32 %v8607, 0.0
      %v8640 = vmax.f32 %v8608, 0.0
      %v8641 = vmax.f32 %v8609, 0.0
      %v8642 = vpack.c.bf16 %v8611, %v8610
      %v8643 = vpack.c.bf16 %v8613, %v8612
      %v8644 = vpack.c.bf16 %v8615, %v8614
      %v8645 = vpack.c.bf16 %v8617, %v8616
      %v8646 = vpack.c.bf16 %v8619, %v8618
      %v8647 = vpack.c.bf16 %v8621, %v8620
      %v8648 = vpack.c.bf16 %v8623, %v8622
      %v8649 = vpack.c.bf16 %v8625, %v8624
      %v8650 = vpack.c.bf16 %v8627, %v8626
      %v8651 = vpack.c.bf16 %v8629, %v8628
      %v8652 = vpack.c.bf16 %v8631, %v8630
      %v8653 = vpack.c.bf16 %v8633, %v8632
      %v8654 = vpack.c.bf16 %v8635, %v8634
      %v8655 = vpack.c.bf16 %v8637, %v8636
      %v8656 = vpack.c.bf16 %v8639, %v8638
      %v8657 = vpack.c.bf16 %v8641, %v8640
      %v8674 = vunpack.c.l.b16 %v8642
      %v8675 = vunpack.c.h.b16 %v8642
      %v8676 = vunpack.c.l.b16 %v8643
      %v8677 = vunpack.c.h.b16 %v8643
      %v8678 = vunpack.c.l.b16 %v8644
      %v8679 = vunpack.c.h.b16 %v8644
      %v8680 = vunpack.c.l.b16 %v8645
      %v8681 = vunpack.c.h.b16 %v8645
      %v8682 = vunpack.c.l.b16 %v8646
      %v8683 = vunpack.c.h.b16 %v8646
      %v8684 = vunpack.c.l.b16 %v8647
      %v8685 = vunpack.c.h.b16 %v8647
      %v8686 = vunpack.c.l.b16 %v8648
      %v8687 = vunpack.c.h.b16 %v8648
      %v8688 = vunpack.c.l.b16 %v8649
      %v8689 = vunpack.c.h.b16 %v8649
      %v8690 = vunpack.c.l.b16 %v8650
      %v8691 = vunpack.c.h.b16 %v8650
      %v8692 = vunpack.c.l.b16 %v8651
      %v8693 = vunpack.c.h.b16 %v8651
      %v8694 = vunpack.c.l.b16 %v8652
      %v8695 = vunpack.c.h.b16 %v8652
      %v8696 = vunpack.c.l.b16 %v8653
      %v8697 = vunpack.c.h.b16 %v8653
      %v8698 = vunpack.c.l.b16 %v8654
      %v8699 = vunpack.c.h.b16 %v8654
      %v8700 = vunpack.c.l.b16 %v8655
      %v8701 = vunpack.c.h.b16 %v8655
      %v8702 = vunpack.c.l.b16 %v8656
      %v8703 = vunpack.c.h.b16 %v8656
      %v8704 = vunpack.c.l.b16 %v8657
      %v8705 = vunpack.c.h.b16 %v8657
      %v8706 = vpack.c.b16 %v8674, %v8674
      %v8707 = vpack.c.b16 %v8675, %v8675
      %v8708 = vpack.c.b16 %v8676, %v8676
      %v8709 = vpack.c.b16 %v8677, %v8677
      %v8710 = vpack.c.b16 %v8678, %v8678
      %v8711 = vpack.c.b16 %v8679, %v8679
      %v8712 = vpack.c.b16 %v8680, %v8680
      %v8713 = vpack.c.b16 %v8681, %v8681
      %v8714 = vpack.c.b16 %v8682, %v8682
      %v8715 = vpack.c.b16 %v8683, %v8683
      %v8716 = vpack.c.b16 %v8684, %v8684
      %v8717 = vpack.c.b16 %v8685, %v8685
      %v8718 = vpack.c.b16 %v8686, %v8686
      %v8719 = vpack.c.b16 %v8687, %v8687
      %v8720 = vpack.c.b16 %v8688, %v8688
      %v8721 = vpack.c.b16 %v8689, %v8689
      %v8722 = vpack.c.b16 %v8690, %v8690
      %v8723 = vpack.c.b16 %v8691, %v8691
      %v8724 = vpack.c.b16 %v8692, %v8692
      %v8725 = vpack.c.b16 %v8693, %v8693
      %v8726 = vpack.c.b16 %v8694, %v8694
      %v8727 = vpack.c.b16 %v8695, %v8695
      %v8728 = vpack.c.b16 %v8696, %v8696
      %v8729 = vpack.c.b16 %v8697, %v8697
      %v8730 = vpack.c.b16 %v8698, %v8698
      %v8731 = vpack.c.b16 %v8699, %v8699
      %v8732 = vpack.c.b16 %v8700, %v8700
      %v8733 = vpack.c.b16 %v8701, %v8701
      %v8734 = vpack.c.b16 %v8702, %v8702
      %v8735 = vpack.c.b16 %v8703, %v8703
      %v8736 = vpack.c.b16 %v8704, %v8704
      %v8737 = vpack.c.b16 %v8705, %v8705
      %vm8770 = vcmask 519168
      %8771 = vst.msk [vmem:[%s224] sm:$0xf] %vm8770, %v8706
      %8772 = vst.msk [vmem:[%s224 + $0x4] sm:$0xf] %vm8770, %v8707
      %8773 = vst.msk [vmem:[%s224 + $0x8] sm:$0xf] %vm8770, %v8708
      %8774 = vst.msk [vmem:[%s224 + $0xc] sm:$0xf] %vm8770, %v8709
      %8775 = vst.msk [vmem:[%s224 + $0x10] sm:$0xf] %vm8770, %v8710
      %8776 = vst.msk [vmem:[%s224 + $0x14] sm:$0xf] %vm8770, %v8711
      %8777 = vst.msk [vmem:[%s224 + $0x18] sm:$0xf] %vm8770, %v8712
      %8778 = vst.msk [vmem:[%s224 + $0x1c] sm:$0xf] %vm8770, %v8713
      %8779 = vst.msk [vmem:[%s224 + $0x20] sm:$0xf] %vm8770, %v8714
      %8780 = vst.msk [vmem:[%s224 + $0x24] sm:$0xf] %vm8770, %v8715
      %8781 = vst.msk [vmem:[%s224 + $0x28] sm:$0xf] %vm8770, %v8716
      %8782 = vst.msk [vmem:[%s224 + $0x2c] sm:$0xf] %vm8770, %v8717
      %8783 = vst.msk [vmem:[%s224 + $0x30] sm:$0xf] %vm8770, %v8718
      %8784 = vst.msk [vmem:[%s224 + $0x34] sm:$0xf] %vm8770, %v8719
      %8785 = vst.msk [vmem:[%s224 + $0x38] sm:$0xf] %vm8770, %v8720
      %8786 = vst.msk [vmem:[%s224 + $0x3c] sm:$0xf] %vm8770, %v8721
      %8787 = vst.msk [vmem:[%s224 + $0x40] sm:$0xf] %vm8770, %v8722
      %8788 = vst.msk [vmem:[%s224 + $0x44] sm:$0xf] %vm8770, %v8723
      %8789 = vst.msk [vmem:[%s224 + $0x48] sm:$0xf] %vm8770, %v8724
      %8790 = vst.msk [vmem:[%s224 + $0x4c] sm:$0xf] %vm8770, %v8725
      %8791 = vst.msk [vmem:[%s224 + $0x50] sm:$0xf] %vm8770, %v8726
      %8792 = vst.msk [vmem:[%s224 + $0x54] sm:$0xf] %vm8770, %v8727
      %8793 = vst.msk [vmem:[%s224 + $0x58] sm:$0xf] %vm8770, %v8728
      %8794 = vst.msk [vmem:[%s224 + $0x5c] sm:$0xf] %vm8770, %v8729
      %8795 = vst.msk [vmem:[%s224 + $0x60] sm:$0xf] %vm8770, %v8730
      %8796 = vst.msk [vmem:[%s224 + $0x64] sm:$0xf] %vm8770, %v8731
      %8797 = vst.msk [vmem:[%s224 + $0x68] sm:$0xf] %vm8770, %v8732
      %8798 = vst.msk [vmem:[%s224 + $0x6c] sm:$0xf] %vm8770, %v8733
      %8799 = vst.msk [vmem:[%s224 + $0x70] sm:$0xf] %vm8770, %v8734
      %8800 = vst.msk [vmem:[%s224 + $0x74] sm:$0xf] %vm8770, %v8735
      %8801 = vst.msk [vmem:[%s224 + $0x78] sm:$0xf] %vm8770, %v8736
      %8802 = vst.msk [vmem:[%s224 + $0x7c] sm:$0xf] %vm8770, %v8737
      %p8803 = scmp.lt.s32.totalorder %s16, 1
      %s8804 = scalar_select %p8803, %s16, 1
      %s8805 = smul.addr %s8804, 32
      %s8806 = smul.addr %s8805, 4
      %s8807 = scalar_lea.vmem %s5, %s8806
      // Predicated region
      $region41: #{tpu_custom_call.1} parent=39 // pred_check
        %p8808 = pneg %p144
      $region42: #{tpu_custom_call.1} parent=39 // pred_check_branch
        %8810 = sbr.rel (%p8808) target = $region44
      $region43: #{tpu_custom_call.1} parent=39 // pred_region
        _
      $region44: #{tpu_custom_call.1} parent=39 // pred_fallthru
        _
    $region40: #{tpu_custom_call.1} parent=5 // pred_fallthru
      _
    %p8811 = scmp.le.s32.totalorder 2, %s11
    // Predicated region
    $region45: #{tpu_custom_call.1} parent=5 // pred_check
      %p8812 = pneg %p8811
    $region46: #{tpu_custom_call.1} parent=5 // pred_check_branch
      %8814 = sbr.rel (%p8812) target = $region48
    $region47: #{tpu_custom_call.1} parent=5 // pred_region
      %s8815 = ssub.s32 %s11, 2
      // Predicated region
      $region49: #{tpu_custom_call.1} parent=47 // pred_check
        %p8816 = pneg %p150
      $region50: #{tpu_custom_call.1} parent=47 // pred_check_branch
        %8818 = sbr.rel (%p8816) target = $region52
      $region51: #{tpu_custom_call.1} parent=47 // pred_region
        %p8819 = scmp.lt.s32.totalorder %s17, 1
        %s8820 = scalar_select %p8819, %s17, 1
        %s8821 = smul.addr %s8820, 32
        %s8822 = smul.addr %s8821, 4
        %s8823 = scalar_lea.vmem %s5, %s8822
      $region52: #{tpu_custom_call.1} parent=47 // pred_fallthru
        _
    $region48: #{tpu_custom_call.1} parent=5 // pred_fallthru
      _
  $region6: #{tpu_custom_call.1} parent=0 // loop_footer
    %s15 = sadd.s32 1, %s11
  $region7: #{tpu_custom_call.1} parent=0 // loop_footer_branch
    %10 = sbr.rel target = $region3
  $region8: #{tpu_custom_call.1} parent=0 // loop_exit
    _

</llo_original>
